<compile_context>
chip_gen: v6e
topology: v6e:2x2x1
jax: 0.10.0
libtpu: 0.0.40
codegen_flags: <defaults>
</compile_context>

<pallas_src>
import functools

import jax
import jax.numpy as jnp
from jax.experimental import pallas as pl
from jax.experimental.pallas import tpu as pltpu


def _round_up(x, m):
    return (x + m - 1) // m * m


def _pick_tm(m, cap=1024):
    """Row tile: >= 2 grid steps when possible (v7x has 2 TensorCores), a multiple
    of 8, and an exact divisor of m (fall back to one full block otherwise)."""
    tm = min(cap, _round_up(max(m // 2, 8), 8), m)
    if m % tm:
        tm = m
    return tm


def _cparams(n_parallel, *tile_bytes):
    """Parallel dimension semantics + right-sized VMEM limit: double-buffered tile
    bytes + slack for in-kernel temporaries, floored at the 32 MiB default and
    capped below v7x's 64 MiB physical VMEM."""
    need = 2 * sum(int(b) for b in tile_bytes) + (8 << 20)
    vmem = int(min(max(need, 32 << 20), 60 << 20))
    return pltpu.CompilerParams(
        dimension_semantics=("parallel",) * n_parallel,
        vmem_limit_bytes=vmem)


# ----------------------------------------------------------------------------
# Kernel 1: M-tiled matmul + bias (+ optional ReLU) -- 1x1 convs, im2col'd convs
# ----------------------------------------------------------------------------
def _mm_bias_act_kernel(x_ref, w_ref, b_ref, o_ref, *, relu):
    acc = jnp.dot(x_ref[...], w_ref[...], preferred_element_type=jnp.float32)
    acc = acc + b_ref[...]                      # (1, N) broadcasts
    if relu:
        acc = jnp.maximum(acc, 0.0)
    o_ref[...] = acc.astype(o_ref.dtype)


def mm_bias_act(x, w, b, relu=True, out_dtype=jnp.bfloat16):
    M, K = x.shape
    K2, N = w.shape
    assert K == K2
    TM = _pick_tm(M)
    xb = x if x.dtype == jnp.bfloat16 else x.astype(jnp.bfloat16)
    out_bytes = TM * N * jnp.dtype(out_dtype).itemsize
    return pl.pallas_call(
        functools.partial(_mm_bias_act_kernel, relu=relu),
        grid=(M // TM,),
        out_shape=jax.ShapeDtypeStruct((M, N), out_dtype),
        in_specs=[
            pl.BlockSpec((TM, K), lambda i: (i, 0)),
            pl.BlockSpec((K, N), lambda i: (0, 0)),     # weights stay resident
            pl.BlockSpec((1, N), lambda i: (0, 0)),
        ],
        out_specs=pl.BlockSpec((TM, N), lambda i: (i, 0)),
        compiler_params=_cparams(1, TM * K * 2, K * N * 2, out_bytes),
    )(xb, w.astype(jnp.bfloat16), b.reshape(1, N).astype(jnp.float32))


# ----------------------------------------------------------------------------
# Kernel 2: direct 3x3 stride-1 pad-1 conv (the `expand` conv).
# The whole padded image of the current batch element stays resident across the
# row-block axis (one DMA per batch, not 3 per row); each grid step slices its
# rows+2 haloed rows, builds a local (rows*W, 9*Cin) VMEM im2col via lane concat
# of the 9 shifted taps, and issues ONE deep matmul (M = rows*W >= 256).
# ----------------------------------------------------------------------------
def _conv3x3_s1_kernel(x_ref, w_ref, b_ref, o_ref, *, rows, w_out, relu):
    row0 = pl.multiple_of(pl.program_id(1) * rows, rows)
    xin = x_ref[0, pl.ds(row0, rows + 2), :, :]               # (rows+2, Wp, Cin)
    taps = []
    for dh in range(3):
        for dw in range(3):
            taps.append(xin[dh:dh + rows, dw:dw + w_out, :])  # (rows, W, Cin)
    patch = jnp.concatenate(taps, axis=-1)                    # (rows, W, 9*Cin)
    patch = patch.reshape(rows * w_out, patch.shape[-1])      # in-VMEM im2col
    acc = jnp.dot(patch, w_ref[...], preferred_element_type=jnp.float32)
    acc = acc + b_ref[...]
    if relu:
        acc = jnp.maximum(acc, 0.0)
    o_ref[0] = acc.reshape(rows, w_out, -1).astype(o_ref.dtype)


def _pick_rows(h, w, target=256):
    for rb in range(1, h + 1):
        if h % rb == 0 and rb * w >= target:
            return rb
    return h


def conv3x3_s1(x_nhwc, w, b, relu=True, out_dtype=jnp.float32):
    """3x3 conv, stride 1, pad 1.  w: (9*Cin, Cout), tap-major / channel-minor."""
    B, H, W, Cin = x_nhwc.shape
    Cout = w.shape[-1]
    Hp, Wp = H + 2, W + 2
    xp = jnp.pad(x_nhwc.astype(jnp.bfloat16), ((0, 0), (1, 1), (1, 1), (0, 0)))
    RB = _pick_rows(H, W)
    out_bytes = RB * W * Cout * jnp.dtype(out_dtype).itemsize
    im2col_bytes = RB * W * 9 * Cin * 2
    return pl.pallas_call(
        functools.partial(_conv3x3_s1_kernel, rows=RB, w_out=W, relu=relu),
        grid=(B, H // RB),
        out_shape=jax.ShapeDtypeStruct((B, H, W, Cout), out_dtype),
        in_specs=[
            pl.BlockSpec((1, Hp, Wp, Cin), lambda bb, hh: (bb, 0, 0, 0)),
            pl.BlockSpec((9 * Cin, Cout), lambda bb, hh: (0, 0)),
            pl.BlockSpec((1, Cout), lambda bb, hh: (0, 0)),
        ],
        out_specs=pl.BlockSpec((1, RB, W, Cout), lambda bb, hh: (bb, hh, 0, 0)),
        compiler_params=_cparams(2, Hp * Wp * Cin * 2, 9 * Cin * Cout * 2,
                                 out_bytes, im2col_bytes),
    )(xp, w.astype(jnp.bfloat16), b.reshape(1, Cout).astype(jnp.float32))


# ----------------------------------------------------------------------------
# Kernel 3: fused ASFF weighting (row-block streaming).
#   * four weight_level_i convs merged into one block-diagonal (4C, 64) matmul.
#   * weight_levels (64, 4) matmul, stable softmax with pl.reciprocal(approx).
#   * TM rows per grid step (>= 256 to fill the v6e/v7x MXU, >= 2 grid steps).
# ----------------------------------------------------------------------------
def _asff_fuse_kernel(l0_ref, l1_ref, l2_ref, l3_ref,
                      wbd_ref, bbd_ref, wl_ref, bl_ref, o_ref):
    l0 = l0_ref[...]
    l1 = l1_ref[...]
    l2 = l2_ref[...]
    l3 = l3_ref[...]

    cat = jnp.concatenate([l0, l1, l2, l3], axis=-1)                  # (TM, 4C) bf16
    w1 = jnp.dot(cat, wbd_ref[...], preferred_element_type=jnp.float32)
    w1 = jnp.maximum(w1 + bbd_ref[...], 0.0)                          # (TM, 64) f32
    logits = jnp.dot(w1, wl_ref[...], preferred_element_type=jnp.float32)
    logits = logits + bl_ref[...]                                     # (TM, 4)

    m = jnp.max(logits, axis=-1, keepdims=True)
    e0 = jnp.exp(logits[:, 0:1] - m)
    e1 = jnp.exp(logits[:, 1:2] - m)
    e2 = jnp.exp(logits[:, 2:3] - m)
    e3 = jnp.exp(logits[:, 3:4] - m)
    inv = pl.reciprocal(e0 + e1 + e2 + e3, approx=True)

    acc = (l0.astype(jnp.float32) * e0 + l1.astype(jnp.float32) * e1 +
           l2.astype(jnp.float32) * e2 + l3.astype(jnp.float32) * e3)
    o_ref[...] = (acc * inv).astype(o_ref.dtype)


def asff_fuse(l0f, l1f, l2f, l3f, wbd, bbd, wl, bl, out_dtype=jnp.bfloat16):
    # All four levels pre-flattened to (B*H*W, C) bf16.
    M, C = l0f.shape
    cc4 = wbd.shape[-1]
    TM = _pick_tm(M, cap=512)
    lvl_bytes = TM * C * 2
    return pl.pallas_call(
        _asff_fuse_kernel,
        grid=(M // TM,),
        out_shape=jax.ShapeDtypeStruct((M, C), out_dtype),
        in_specs=[
            pl.BlockSpec((TM, C), lambda k: (k, 0)),
            pl.BlockSpec((TM, C), lambda k: (k, 0)),
            pl.BlockSpec((TM, C), lambda k: (k, 0)),
            pl.BlockSpec((TM, C), lambda k: (k, 0)),
            pl.BlockSpec((4 * C, cc4), lambda k: (0, 0)),
            pl.BlockSpec((1, cc4), lambda k: (0, 0)),
            pl.BlockSpec((cc4, 4), lambda k: (0, 0)),
            pl.BlockSpec((1, 4), lambda k: (0, 0)),
        ],
        out_specs=pl.BlockSpec((TM, C), lambda k: (k, 0)),
        compiler_params=_cparams(1, 4 * lvl_bytes, 4 * C * cc4 * 2,
                                 lvl_bytes, TM * 4 * C * 2),
    )(l0f, l1f, l2f, l3f, wbd, bbd, wl, bl)


# ----------------------------------------------------------------------------
# Plain-JAX glue: layout plumbing / patch extraction / pooling
# ----------------------------------------------------------------------------
def im2col_3x3(x, stride, pad, pad_k_to=128):
    """x: (B,H,W,C) bf16 -> patches (B*Ho*Wo, K), K = 9*C zero-padded to a
    lane-dense multiple of pad_k_to.  Tap order dh*3+dw, channel-minor."""
    B, H, W, C = x.shape
    xp = jnp.pad(x, ((0, 0), (pad, pad), (pad, pad), (0, 0)))
    Ho = (H + 2 * pad - 3) // stride + 1
    Wo = (W + 2 * pad - 3) // stride + 1
    cols = []
    for dh in range(3):
        for dw in range(3):
            cols.append(xp[:, dh:dh + stride * (Ho - 1) + 1:stride,
                            dw:dw + stride * (Wo - 1) + 1:stride, :])
    patches = jnp.concatenate(cols, axis=-1).reshape(B * Ho * Wo, 9 * C)
    K = 9 * C
    Kp = _round_up(K, pad_k_to)
    if Kp != K:
        patches = jnp.pad(patches, ((0, 0), (0, Kp - K)))
    return patches, (B, Ho, Wo), K


def max_pool_3x3(x, stride, pad):
    """F.max_pool2d(x, 3, stride, pad) in NHWC (padding behaves like -inf)."""
    B, H, W, C = x.shape
    xp = jnp.pad(x, ((0, 0), (pad, pad), (pad, pad), (0, 0)),
                 constant_values=-jnp.inf)
    Ho = (H + 2 * pad - 3) // stride + 1
    Wo = (W + 2 * pad - 3) // stride + 1
    out = None
    for dh in range(3):
        for dw in range(3):
            win = xp[:, dh:dh + stride * (Ho - 1) + 1:stride,
                        dw:dw + stride * (Wo - 1) + 1:stride, :]
            out = win if out is None else jnp.maximum(out, win)
    return out


def conv1x1(x_nhwc, w, b, relu=True, out_dtype=jnp.bfloat16):
    B, H, W, C = x_nhwc.shape
    y = mm_bias_act(x_nhwc.reshape(B * H * W, C), w, b, relu=relu, out_dtype=out_dtype)
    return y.reshape(B, H, W, -1)


def conv3x3_im2col(x_nhwc, w, b, stride, pad=1, relu=True, out_dtype=jnp.bfloat16):
    # TODO(synk): replace with a direct Pallas conv using strided column reads
    #             (pl.ds(..., stride=2)) + row blocking like conv3x3_s1.
    patches, (B, Ho, Wo), K = im2col_3x3(x_nhwc.astype(jnp.bfloat16), stride, pad)
    Kp = patches.shape[1]
    if Kp != K:                                   # pad weight rows to the padded K
        w = jnp.pad(w, ((0, Kp - K), (0, 0)))
    y = mm_bias_act(patches, w, b, relu=relu, out_dtype=out_dtype)
    return y.reshape(B, Ho, Wo, -1)


# ----------------------------------------------------------------------------
# ASFF (level=1) forward.  External interface NCHW, internal NHWC / flattened.
# ----------------------------------------------------------------------------
def asff_level1_forward(params, p5, p4, p3, p2):
    to_nhwc = lambda t: jnp.transpose(t, (0, 2, 3, 1)).astype(jnp.float32)
    p5, p4, p3, p2 = map(to_nhwc, (p5, p4, p3, p2))

    B, H, W, C = p4.shape                       # level-1 resolution, C == inter_dim
    assert H % 2 == 0 and W % 8 == 0, "demo config must be TPU-tile friendly"

    # level_0: 1x1 compress at half resolution, then nearest-x2 materialized once in
    # the wrapper (tiny bf16 write) so the fuse kernel is a pure streaming block.
    l0 = conv1x1(p5, params["cl0_w"], params["cl0_b"], relu=True)     # (B,H/2,W/2,C)
    l0 = jnp.repeat(jnp.repeat(l0, 2, axis=1), 2, axis=2)             # (B,H,W,C) bf16

    l1 = p4.astype(jnp.bfloat16)
    l2 = conv3x3_im2col(p3, params["sl2_w"], params["sl2_b"], stride=2)
    l3 = conv3x3_im2col(max_pool_3x3(p2, stride=2, pad=1),
                        params["sl3_w"], params["sl3_b"], stride=2)

    # Block-diagonal merge of the four weight_level_i 1x1 convs: (4C, 4*cc).
    cc = params["wl_w"].shape[-1]
    wbd = jnp.zeros((4 * C, 4 * cc), jnp.float32)
    for i in range(4):
        wbd = wbd.at[i * C:(i + 1) * C, i * cc:(i + 1) * cc].set(params["wl_w"][i])

    flat = lambda t: t.reshape(B * H * W, C)
    fused = asff_fuse(flat(l0), flat(l1), flat(l2), flat(l3),
                      wbd.astype(jnp.bfloat16),
                      params["wl_b"].reshape(1, 4 * cc).astype(jnp.float32),
                      params["ww_w"].astype(jnp.float32),
                      params["ww_b"].reshape(1, 4).astype(jnp.float32))
    fused = fused.reshape(B, H, W, C)

    out = conv3x3_s1(fused, params["exp_w"], params["exp_b"],
                     relu=True, out_dtype=jnp.float32)
    return jnp.transpose(out, (0, 3, 1, 2))     # back to NCHW


def init_params(key, dim=(256, 128, 64, 32), compress_c=16):
    """Synthetic parameters for ASFF level=1 (channel dims scaled from [768,384,192,96])."""
    inter = dim[1]
    ks = jax.random.split(key, 12)
    n = lambda k, s: jax.random.normal(k, s, jnp.float32) * 0.05
    return {
        # compress_level_0: 1x1 conv dim[0] -> inter
        "cl0_w": n(ks[0], (dim[0], inter)), "cl0_b": n(ks[1], (inter,)),
        # stride_level_2: 3x3 s2 conv dim[2] -> inter (im2col layout (9*Cin, Cout))
        "sl2_w": n(ks[2], (9 * dim[2], inter)), "sl2_b": n(ks[3], (inter,)),
        # stride_level_3: 3x3 s2 conv dim[3] -> inter
        "sl3_w": n(ks[4], (9 * dim[3], inter)), "sl3_b": n(ks[5], (inter,)),
        # expand: 3x3 s1 conv inter -> dim[1], direct-conv layout (9*Cin, Cout)
        "exp_w": n(ks[6], (9 * inter, dim[1])), "exp_b": n(ks[7], (dim[1],)),
        # weight_level_0..3: 1x1 convs inter -> compress_c (stacked)
        "wl_w": n(ks[8], (4, inter, compress_c)), "wl_b": n(ks[9], (4, compress_c)),
        # weight_levels: 1x1 conv 4*compress_c -> 4 (bias, no activation)
        "ww_w": n(ks[10], (4 * compress_c, 4)), "ww_b": n(ks[11], (4,)),
    }


if __name__ == "__main__":
    key = jax.random.PRNGKey(0)
    kp, k5, k4, k3, k2 = jax.random.split(key, 5)

    dim = (256, 128, 64, 32)       # scaled-down stand-in for [768, 384, 192, 96]
    B = 2
    # pyramid: p5 coarsest ... p2 finest (NCHW, like the PyTorch module)
    p5 = jax.random.normal(k5, (B, dim[0], 8, 8), jnp.float32)
    p4 = jax.random.normal(k4, (B, dim[1], 16, 16), jnp.float32)
    p3 = jax.random.normal(k3, (B, dim[2], 32, 32), jnp.float32)
    p2 = jax.random.normal(k2, (B, dim[3], 64, 64), jnp.float32)

    params = init_params(kp, dim=dim)

    fwd = jax.jit(asff_level1_forward)
    out = jax.block_until_ready(fwd(params, p5, p4, p3, p2))
    assert out.shape == (B, dim[1], 16, 16), out.shape
    assert bool(jnp.all(jnp.isfinite(out)))
    print("KERNEL_OK")
</pallas_src>

<mosaic_0001>
module attributes {stable_mosaic.version = 11 : i64} {
  func.func @_mm_bias_act_kernel(%arg0: i32, %arg1: memref<256x384xbf16, #tpu.memory_space<vmem>>, %arg2: memref<384x128xbf16, #tpu.memory_space<vmem>>, %arg3: memref<1x128xf32, #tpu.memory_space<vmem>>, %arg4: memref<256x128xbf16, #tpu.memory_space<vmem>>) attributes {dimension_semantics = [#tpu.dimension_semantics<parallel>], iteration_bounds = array<i64: 2>, scalar_prefetch = 0 : i64, scratch_operands = 0 : i64, tpu.core_type = #tpu.core_type<tc>, window_params = [{transform_indices = @transform_0, window_bounds = array<i64: 256, 384>}, {pipeline_mode = #tpu.pipeline_mode<synchronous>, transform_indices = @transform_1, window_bounds = array<i64: 384, 128>}, {pipeline_mode = #tpu.pipeline_mode<synchronous>, transform_indices = @transform_2, window_bounds = array<i64: 1, 128>}, {transform_indices = @transform_3, window_bounds = array<i64: 256, 128>}]} {
    %c0 = arith.constant 0 : index
    %c0_0 = arith.constant 0 : index
    %0 = vector.load %arg1[%c0, %c0_0] : memref<256x384xbf16, #tpu.memory_space<vmem>>, vector<256x384xbf16>
    %c0_1 = arith.constant 0 : index
    %c0_2 = arith.constant 0 : index
    %1 = vector.load %arg2[%c0_1, %c0_2] : memref<384x128xbf16, #tpu.memory_space<vmem>>, vector<384x128xbf16>
    %cst = arith.constant dense<0.000000e+00> : vector<256x128xf32>
    %2 = tpu.matmul %0, %1, %cst {dimension_numbers = #tpu.dot_dimension_numbers<[1], [0], [0], [1], [0, 0, 1, 1], [], []>} : vector<256x384xbf16>, vector<384x128xbf16>, vector<256x128xf32> -> vector<256x128xf32>
    %c0_3 = arith.constant 0 : index
    %c0_4 = arith.constant 0 : index
    %3 = vector.load %arg3[%c0_3, %c0_4] : memref<1x128xf32, #tpu.memory_space<vmem>>, vector<1x128xf32>
    %4 = vector.broadcast %3 : vector<1x128xf32> to vector<256x128xf32>
    %5 = arith.addf %2, %4 : vector<256x128xf32>
    %cst_5 = arith.constant 0.000000e+00 : f32
    %6 = vector.broadcast %cst_5 : f32 to vector<256x128xf32>
    %7 = arith.maximumf %5, %6 : vector<256x128xf32>
    %8 = arith.truncf %7 : vector<256x128xf32> to vector<256x128xbf16>
    %c0_6 = arith.constant 0 : index
    %c0_7 = arith.constant 0 : index
    %9 = vector.load %arg4[%c0_6, %c0_7] : memref<256x128xbf16, #tpu.memory_space<vmem>>, vector<256x128xbf16>
    tpu.vector_store %arg4[%c0_6, %c0_7], %8 {strides = array<i32>} : memref<256x128xbf16, #tpu.memory_space<vmem>>, vector<256x128xbf16>,
    return
  }
  func.func @transform_0(%arg0: i32) -> (i32, i32) {
    %c0_i32 = arith.constant 0 : i32
    %c0_i32_0 = arith.constant 0 : i32
    return %arg0, %c0_i32 : i32, i32
  }
  func.func @transform_1(%arg0: i32) -> (i32, i32) {
    %c0_i32 = arith.constant 0 : i32
    %c0_i32_0 = arith.constant 0 : i32
    %c0_i32_1 = arith.constant 0 : i32
    return %c0_i32, %c0_i32_0 : i32, i32
  }
  func.func @transform_2(%arg0: i32) -> (i32, i32) {
    %c0_i32 = arith.constant 0 : i32
    %c0_i32_0 = arith.constant 0 : i32
    %c0_i32_1 = arith.constant 0 : i32
    return %c0_i32, %c0_i32_0 : i32, i32
  }
  func.func @transform_3(%arg0: i32) -> (i32, i32) {
    %c0_i32 = arith.constant 0 : i32
    %c0_i32_0 = arith.constant 0 : i32
    return %arg0, %c0_i32 : i32, i32
  }
}

module attributes {stable_mosaic.version = 11 : i64} {
  func.func @_mm_bias_act_kernel(%arg0: i32, %arg1: memref<256x640xbf16, #tpu.memory_space<vmem>>, %arg2: memref<640x128xbf16, #tpu.memory_space<vmem>>, %arg3: memref<1x128xf32, #tpu.memory_space<vmem>>, %arg4: memref<256x128xbf16, #tpu.memory_space<vmem>>) attributes {dimension_semantics = [#tpu.dimension_semantics<parallel>], iteration_bounds = array<i64: 2>, scalar_prefetch = 0 : i64, scratch_operands = 0 : i64, tpu.core_type = #tpu.core_type<tc>, window_params = [{transform_indices = @transform_0, window_bounds = array<i64: 256, 640>}, {pipeline_mode = #tpu.pipeline_mode<synchronous>, transform_indices = @transform_1, window_bounds = array<i64: 640, 128>}, {pipeline_mode = #tpu.pipeline_mode<synchronous>, transform_indices = @transform_2, window_bounds = array<i64: 1, 128>}, {transform_indices = @transform_3, window_bounds = array<i64: 256, 128>}]} {
    %c0 = arith.constant 0 : index
    %c0_0 = arith.constant 0 : index
    %0 = vector.load %arg1[%c0, %c0_0] : memref<256x640xbf16, #tpu.memory_space<vmem>>, vector<256x640xbf16>
    %c0_1 = arith.constant 0 : index
    %c0_2 = arith.constant 0 : index
    %1 = vector.load %arg2[%c0_1, %c0_2] : memref<640x128xbf16, #tpu.memory_space<vmem>>, vector<640x128xbf16>
    %cst = arith.constant dense<0.000000e+00> : vector<256x128xf32>
    %2 = tpu.matmul %0, %1, %cst {dimension_numbers = #tpu.dot_dimension_numbers<[1], [0], [0], [1], [0, 0, 1, 1], [], []>} : vector<256x640xbf16>, vector<640x128xbf16>, vector<256x128xf32> -> vector<256x128xf32>
    %c0_3 = arith.constant 0 : index
    %c0_4 = arith.constant 0 : index
    %3 = vector.load %arg3[%c0_3, %c0_4] : memref<1x128xf32, #tpu.memory_space<vmem>>, vector<1x128xf32>
    %4 = vector.broadcast %3 : vector<1x128xf32> to vector<256x128xf32>
    %5 = arith.addf %2, %4 : vector<256x128xf32>
    %cst_5 = arith.constant 0.000000e+00 : f32
    %6 = vector.broadcast %cst_5 : f32 to vector<256x128xf32>
    %7 = arith.maximumf %5, %6 : vector<256x128xf32>
    %8 = arith.truncf %7 : vector<256x128xf32> to vector<256x128xbf16>
    %c0_6 = arith.constant 0 : index
    %c0_7 = arith.constant 0 : index
    %9 = vector.load %arg4[%c0_6, %c0_7] : memref<256x128xbf16, #tpu.memory_space<vmem>>, vector<256x128xbf16>
    tpu.vector_store %arg4[%c0_6, %c0_7], %8 {strides = array<i32>} : memref<256x128xbf16, #tpu.memory_space<vmem>>, vector<256x128xbf16>,
    return
  }
  func.func @transform_0(%arg0: i32) -> (i32, i32) {
    %c0_i32 = arith.constant 0 : i32
    %c0_i32_0 = arith.constant 0 : i32
    return %arg0, %c0_i32 : i32, i32
  }
  func.func @transform_1(%arg0: i32) -> (i32, i32) {
    %c0_i32 = arith.constant 0 : i32
    %c0_i32_0 = arith.constant 0 : i32
    %c0_i32_1 = arith.constant 0 : i32
    return %c0_i32, %c0_i32_0 : i32, i32
  }
  func.func @transform_2(%arg0: i32) -> (i32, i32) {
    %c0_i32 = arith.constant 0 : i32
    %c0_i32_0 = arith.constant 0 : i32
    %c0_i32_1 = arith.constant 0 : i32
    return %c0_i32, %c0_i32_0 : i32, i32
  }
  func.func @transform_3(%arg0: i32) -> (i32, i32) {
    %c0_i32 = arith.constant 0 : i32
    %c0_i32_0 = arith.constant 0 : i32
    return %arg0, %c0_i32 : i32, i32
  }
}

module attributes {stable_mosaic.version = 11 : i64} {
  func.func @_mm_bias_act_kernel(%arg0: i32, %arg1: memref<64x256xbf16, #tpu.memory_space<vmem>>, %arg2: memref<256x128xbf16, #tpu.memory_space<vmem>>, %arg3: memref<1x128xf32, #tpu.memory_space<vmem>>, %arg4: memref<64x128xbf16, #tpu.memory_space<vmem>>) attributes {dimension_semantics = [#tpu.dimension_semantics<parallel>], iteration_bounds = array<i64: 2>, scalar_prefetch = 0 : i64, scratch_operands = 0 : i64, tpu.core_type = #tpu.core_type<tc>, window_params = [{transform_indices = @transform_0, window_bounds = array<i64: 64, 256>}, {pipeline_mode = #tpu.pipeline_mode<synchronous>, transform_indices = @transform_1, window_bounds = array<i64: 256, 128>}, {pipeline_mode = #tpu.pipeline_mode<synchronous>, transform_indices = @transform_2, window_bounds = array<i64: 1, 128>}, {transform_indices = @transform_3, window_bounds = array<i64: 64, 128>}]} {
    %c0 = arith.constant 0 : index
    %c0_0 = arith.constant 0 : index
    %0 = vector.load %arg1[%c0, %c0_0] : memref<64x256xbf16, #tpu.memory_space<vmem>>, vector<64x256xbf16>
    %c0_1 = arith.constant 0 : index
    %c0_2 = arith.constant 0 : index
    %1 = vector.load %arg2[%c0_1, %c0_2] : memref<256x128xbf16, #tpu.memory_space<vmem>>, vector<256x128xbf16>
    %cst = arith.constant dense<0.000000e+00> : vector<64x128xf32>
    %2 = tpu.matmul %0, %1, %cst {dimension_numbers = #tpu.dot_dimension_numbers<[1], [0], [0], [1], [0, 0, 1, 1], [], []>} : vector<64x256xbf16>, vector<256x128xbf16>, vector<64x128xf32> -> vector<64x128xf32>
    %c0_3 = arith.constant 0 : index
    %c0_4 = arith.constant 0 : index
    %3 = vector.load %arg3[%c0_3, %c0_4] : memref<1x128xf32, #tpu.memory_space<vmem>>, vector<1x128xf32>
    %4 = vector.broadcast %3 : vector<1x128xf32> to vector<64x128xf32>
    %5 = arith.addf %2, %4 : vector<64x128xf32>
    %cst_5 = arith.constant 0.000000e+00 : f32
    %6 = vector.broadcast %cst_5 : f32 to vector<64x128xf32>
    %7 = arith.maximumf %5, %6 : vector<64x128xf32>
    %8 = arith.truncf %7 : vector<64x128xf32> to vector<64x128xbf16>
    %c0_6 = arith.constant 0 : index
    %c0_7 = arith.constant 0 : index
    %9 = vector.load %arg4[%c0_6, %c0_7] : memref<64x128xbf16, #tpu.memory_space<vmem>>, vector<64x128xbf16>
    tpu.vector_store %arg4[%c0_6, %c0_7], %8 {strides = array<i32>} : memref<64x128xbf16, #tpu.memory_space<vmem>>, vector<64x128xbf16>,
    return
  }
  func.func @transform_0(%arg0: i32) -> (i32, i32) {
    %c0_i32 = arith.constant 0 : i32
    %c0_i32_0 = arith.constant 0 : i32
    return %arg0, %c0_i32 : i32, i32
  }
  func.func @transform_1(%arg0: i32) -> (i32, i32) {
    %c0_i32 = arith.constant 0 : i32
    %c0_i32_0 = arith.constant 0 : i32
    %c0_i32_1 = arith.constant 0 : i32
    return %c0_i32, %c0_i32_0 : i32, i32
  }
  func.func @transform_2(%arg0: i32) -> (i32, i32) {
    %c0_i32 = arith.constant 0 : i32
    %c0_i32_0 = arith.constant 0 : i32
    %c0_i32_1 = arith.constant 0 : i32
    return %c0_i32, %c0_i32_0 : i32, i32
  }
  func.func @transform_3(%arg0: i32) -> (i32, i32) {
    %c0_i32 = arith.constant 0 : i32
    %c0_i32_0 = arith.constant 0 : i32
    return %arg0, %c0_i32 : i32, i32
  }
}

module attributes {stable_mosaic.version = 11 : i64} {
  func.func @_asff_fuse_kernel(%arg0: i32, %arg1: memref<256x128xbf16, #tpu.memory_space<vmem>>, %arg2: memref<256x128xbf16, #tpu.memory_space<vmem>>, %arg3: memref<256x128xbf16, #tpu.memory_space<vmem>>, %arg4: memref<256x128xbf16, #tpu.memory_space<vmem>>, %arg5: memref<512x64xbf16, #tpu.memory_space<vmem>>, %arg6: memref<1x64xf32, #tpu.memory_space<vmem>>, %arg7: memref<64x4xf32, #tpu.memory_space<vmem>>, %arg8: memref<1x4xf32, #tpu.memory_space<vmem>>, %arg9: memref<256x128xbf16, #tpu.memory_space<vmem>>) attributes {dimension_semantics = [#tpu.dimension_semantics<parallel>], iteration_bounds = array<i64: 2>, scalar_prefetch = 0 : i64, scratch_operands = 0 : i64, tpu.core_type = #tpu.core_type<tc>, window_params = [{transform_indices = @transform_0, window_bounds = array<i64: 256, 128>}, {transform_indices = @transform_1, window_bounds = array<i64: 256, 128>}, {transform_indices = @transform_2, window_bounds = array<i64: 256, 128>}, {transform_indices = @transform_3, window_bounds = array<i64: 256, 128>}, {pipeline_mode = #tpu.pipeline_mode<synchronous>, transform_indices = @transform_4, window_bounds = array<i64: 512, 64>}, {pipeline_mode = #tpu.pipeline_mode<synchronous>, transform_indices = @transform_5, window_bounds = array<i64: 1, 64>}, {pipeline_mode = #tpu.pipeline_mode<synchronous>, transform_indices = @transform_6, window_bounds = array<i64: 64, 4>}, {pipeline_mode = #tpu.pipeline_mode<synchronous>, transform_indices = @transform_7, window_bounds = array<i64: 1, 4>}, {transform_indices = @transform_8, window_bounds = array<i64: 256, 128>}]} {
    %c0 = arith.constant 0 : index
    %c0_0 = arith.constant 0 : index
    %0 = vector.load %arg1[%c0, %c0_0] : memref<256x128xbf16, #tpu.memory_space<vmem>>, vector<256x128xbf16>
    %c0_1 = arith.constant 0 : index
    %c0_2 = arith.constant 0 : index
    %1 = vector.load %arg2[%c0_1, %c0_2] : memref<256x128xbf16, #tpu.memory_space<vmem>>, vector<256x128xbf16>
    %c0_3 = arith.constant 0 : index
    %c0_4 = arith.constant 0 : index
    %2 = vector.load %arg3[%c0_3, %c0_4] : memref<256x128xbf16, #tpu.memory_space<vmem>>, vector<256x128xbf16>
    %c0_5 = arith.constant 0 : index
    %c0_6 = arith.constant 0 : index
    %3 = vector.load %arg4[%c0_5, %c0_6] : memref<256x128xbf16, #tpu.memory_space<vmem>>, vector<256x128xbf16>
    %4 = tpu.concatenate %0, %1, %2, %3 in 1 : vector<256x128xbf16>, vector<256x128xbf16>, vector<256x128xbf16>, vector<256x128xbf16> -> vector<256x512xbf16>
    %c0_7 = arith.constant 0 : index
    %c0_8 = arith.constant 0 : index
    %5 = vector.load %arg5[%c0_7, %c0_8] : memref<512x64xbf16, #tpu.memory_space<vmem>>, vector<512x64xbf16>
    %cst = arith.constant dense<0.000000e+00> : vector<256x64xf32>
    %6 = tpu.matmul %4, %5, %cst {dimension_numbers = #tpu.dot_dimension_numbers<[1], [0], [0], [1], [0, 0, 1, 1], [], []>} : vector<256x512xbf16>, vector<512x64xbf16>, vector<256x64xf32> -> vector<256x64xf32>
    %c0_9 = arith.constant 0 : index
    %c0_10 = arith.constant 0 : index
    %7 = vector.load %arg6[%c0_9, %c0_10] : memref<1x64xf32, #tpu.memory_space<vmem>>, vector<1x64xf32>
    %8 = vector.broadcast %7 : vector<1x64xf32> to vector<256x64xf32>
    %9 = arith.addf %6, %8 : vector<256x64xf32>
    %cst_11 = arith.constant 0.000000e+00 : f32
    %10 = vector.broadcast %cst_11 : f32 to vector<256x64xf32>
    %11 = arith.maximumf %9, %10 : vector<256x64xf32>
    %c0_12 = arith.constant 0 : index
    %c0_13 = arith.constant 0 : index
    %12 = vector.load %arg7[%c0_12, %c0_13] : memref<64x4xf32, #tpu.memory_space<vmem>>, vector<64x4xf32>
    %cst_14 = arith.constant dense<0.000000e+00> : vector<256x4xf32>
    %13 = tpu.matmul %11, %12, %cst_14 {dimension_numbers = #tpu.dot_dimension_numbers<[1], [0], [0], [1], [0, 0, 1, 1], [], []>} : vector<256x64xf32>, vector<64x4xf32>, vector<256x4xf32> -> vector<256x4xf32>
    %c0_15 = arith.constant 0 : index
    %c0_16 = arith.constant 0 : index
    %14 = vector.load %arg8[%c0_15, %c0_16] : memref<1x4xf32, #tpu.memory_space<vmem>>, vector<1x4xf32>
    %15 = vector.broadcast %14 : vector<1x4xf32> to vector<256x4xf32>
    %16 = arith.addf %13, %15 : vector<256x4xf32>
    %cst_17 = arith.constant dense<0xFF800000> : vector<256xf32>
    %17 = vector.multi_reduction <maximumf>, %16, %cst_17 [1] : vector<256x4xf32> to vector<256xf32>
    %18 = vector.shape_cast %17 : vector<256xf32> to vector<256x1xf32>
    %19 = vector.extract_strided_slice %16 {offsets = [0, 0], sizes = [256, 1], strides = [1, 1]} : vector<256x4xf32> to vector<256x1xf32>
    %20 = arith.subf %19, %18 : vector<256x1xf32>
    %21 = math.exp %20 : vector<256x1xf32>
    %22 = vector.extract_strided_slice %16 {offsets = [0, 1], sizes = [256, 1], strides = [1, 1]} : vector<256x4xf32> to vector<256x1xf32>
    %23 = arith.subf %22, %18 : vector<256x1xf32>
    %24 = math.exp %23 : vector<256x1xf32>
    %25 = vector.extract_strided_slice %16 {offsets = [0, 2], sizes = [256, 1], strides = [1, 1]} : vector<256x4xf32> to vector<256x1xf32>
    %26 = arith.subf %25, %18 : vector<256x1xf32>
    %27 = math.exp %26 : vector<256x1xf32>
    %28 = vector.extract_strided_slice %16 {offsets = [0, 3], sizes = [256, 1], strides = [1, 1]} : vector<256x4xf32> to vector<256x1xf32>
    %29 = arith.subf %28, %18 : vector<256x1xf32>
    %30 = math.exp %29 : vector<256x1xf32>
    %31 = arith.addf %21, %24 : vector<256x1xf32>
    %32 = arith.addf %31, %27 : vector<256x1xf32>
    %33 = arith.addf %32, %30 : vector<256x1xf32>
    %34 = tpu.reciprocal %33 {approx = true} : vector<256x1xf32> -> vector<256x1xf32>
    %35 = arith.extf %0 : vector<256x128xbf16> to vector<256x128xf32>
    %36 = vector.broadcast %21 : vector<256x1xf32> to vector<256x128xf32>
    %37 = arith.mulf %35, %36 : vector<256x128xf32>
    %38 = arith.extf %1 : vector<256x128xbf16> to vector<256x128xf32>
    %39 = vector.broadcast %24 : vector<256x1xf32> to vector<256x128xf32>
    %40 = arith.mulf %38, %39 : vector<256x128xf32>
    %41 = arith.addf %37, %40 : vector<256x128xf32>
    %42 = arith.extf %2 : vector<256x128xbf16> to vector<256x128xf32>
    %43 = vector.broadcast %27 : vector<256x1xf32> to vector<256x128xf32>
    %44 = arith.mulf %42, %43 : vector<256x128xf32>
    %45 = arith.addf %41, %44 : vector<256x128xf32>
    %46 = arith.extf %3 : vector<256x128xbf16> to vector<256x128xf32>
    %47 = vector.broadcast %30 : vector<256x1xf32> to vector<256x128xf32>
    %48 = arith.mulf %46, %47 : vector<256x128xf32>
    %49 = arith.addf %45, %48 : vector<256x128xf32>
    %50 = vector.broadcast %34 : vector<256x1xf32> to vector<256x128xf32>
    %51 = arith.mulf %49, %50 : vector<256x128xf32>
    %52 = arith.truncf %51 : vector<256x128xf32> to vector<256x128xbf16>
    %c0_18 = arith.constant 0 : index
    %c0_19 = arith.constant 0 : index
    %53 = vector.load %arg9[%c0_18, %c0_19] : memref<256x128xbf16, #tpu.memory_space<vmem>>, vector<256x128xbf16>
    tpu.vector_store %arg9[%c0_18, %c0_19], %52 {strides = array<i32>} : memref<256x128xbf16, #tpu.memory_space<vmem>>, vector<256x128xbf16>,
    return
  }
  func.func @transform_0(%arg0: i32) -> (i32, i32) {
    %c0_i32 = arith.constant 0 : i32
    %c0_i32_0 = arith.constant 0 : i32
    return %arg0, %c0_i32 : i32, i32
  }
  func.func @transform_1(%arg0: i32) -> (i32, i32) {
    %c0_i32 = arith.constant 0 : i32
    %c0_i32_0 = arith.constant 0 : i32
    return %arg0, %c0_i32 : i32, i32
  }
  func.func @transform_2(%arg0: i32) -> (i32, i32) {
    %c0_i32 = arith.constant 0 : i32
    %c0_i32_0 = arith.constant 0 : i32
    return %arg0, %c0_i32 : i32, i32
  }
  func.func @transform_3(%arg0: i32) -> (i32, i32) {
    %c0_i32 = arith.constant 0 : i32
    %c0_i32_0 = arith.constant 0 : i32
    return %arg0, %c0_i32 : i32, i32
  }
  func.func @transform_4(%arg0: i32) -> (i32, i32) {
    %c0_i32 = arith.constant 0 : i32
    %c0_i32_0 = arith.constant 0 : i32
    %c0_i32_1 = arith.constant 0 : i32
    return %c0_i32, %c0_i32_0 : i32, i32
  }
  func.func @transform_5(%arg0: i32) -> (i32, i32) {
    %c0_i32 = arith.constant 0 : i32
    %c0_i32_0 = arith.constant 0 : i32
    %c0_i32_1 = arith.constant 0 : i32
    return %c0_i32, %c0_i32_0 : i32, i32
  }
  func.func @transform_6(%arg0: i32) -> (i32, i32) {
    %c0_i32 = arith.constant 0 : i32
    %c0_i32_0 = arith.constant 0 : i32
    %c0_i32_1 = arith.constant 0 : i32
    return %c0_i32, %c0_i32_0 : i32, i32
  }
  func.func @transform_7(%arg0: i32) -> (i32, i32) {
    %c0_i32 = arith.constant 0 : i32
    %c0_i32_0 = arith.constant 0 : i32
    %c0_i32_1 = arith.constant 0 : i32
    return %c0_i32, %c0_i32_0 : i32, i32
  }
  func.func @transform_8(%arg0: i32) -> (i32, i32) {
    %c0_i32 = arith.constant 0 : i32
    %c0_i32_0 = arith.constant 0 : i32
    return %arg0, %c0_i32 : i32, i32
  }
}

module attributes {stable_mosaic.version = 11 : i64} {
  func.func @_conv3x3_s1_kernel(%arg0: i32, %arg1: i32, %arg2: memref<1x18x18x128xbf16, #tpu.memory_space<vmem>>, %arg3: memref<1152x128xbf16, #tpu.memory_space<vmem>>, %arg4: memref<1x128xf32, #tpu.memory_space<vmem>>, %arg5: memref<1x16x16x128xf32, #tpu.memory_space<vmem>>) attributes {dimension_semantics = [#tpu.dimension_semantics<parallel>, #tpu.dimension_semantics<parallel>], iteration_bounds = array<i64: 2, 1>, scalar_prefetch = 0 : i64, scratch_operands = 0 : i64, tpu.core_type = #tpu.core_type<tc>, window_params = [{transform_indices = @transform_0, window_bounds = array<i64: 1, 18, 18, 128>}, {pipeline_mode = #tpu.pipeline_mode<synchronous>, transform_indices = @transform_1, window_bounds = array<i64: 1152, 128>}, {pipeline_mode = #tpu.pipeline_mode<synchronous>, transform_indices = @transform_2, window_bounds = array<i64: 1, 128>}, {transform_indices = @transform_3, window_bounds = array<i64: 1, 16, 16, 128>}]} {
    %c16_i32 = arith.constant 16 : i32
    %0 = arith.muli %arg1, %c16_i32 : i32
    %1 = tpu.assume_multiple %0, 16 : i32
    %c0 = arith.constant 0 : index
    %2 = arith.index_cast %1 : i32 to index
    %c0_0 = arith.constant 0 : index
    %c0_1 = arith.constant 0 : index
    %3 = vector.load %arg2[%c0, %2, %c0_0, %c0_1] : memref<1x18x18x128xbf16, #tpu.memory_space<vmem>>, vector<1x18x18x128xbf16>
    %4 = vector.shape_cast %3 : vector<1x18x18x128xbf16> to vector<18x18x128xbf16>
    %5 = vector.extract_strided_slice %4 {offsets = [0, 0, 0], sizes = [16, 16, 128], strides = [1, 1, 1]} : vector<18x18x128xbf16> to vector<16x16x128xbf16>
    %6 = vector.extract_strided_slice %4 {offsets = [0, 1, 0], sizes = [16, 16, 128], strides = [1, 1, 1]} : vector<18x18x128xbf16> to vector<16x16x128xbf16>
    %7 = vector.extract_strided_slice %4 {offsets = [0, 2, 0], sizes = [16, 16, 128], strides = [1, 1, 1]} : vector<18x18x128xbf16> to vector<16x16x128xbf16>
    %8 = vector.extract_strided_slice %4 {offsets = [1, 0, 0], sizes = [16, 16, 128], strides = [1, 1, 1]} : vector<18x18x128xbf16> to vector<16x16x128xbf16>
    %9 = vector.extract_strided_slice %4 {offsets = [1, 1, 0], sizes = [16, 16, 128], strides = [1, 1, 1]} : vector<18x18x128xbf16> to vector<16x16x128xbf16>
    %10 = vector.extract_strided_slice %4 {offsets = [1, 2, 0], sizes = [16, 16, 128], strides = [1, 1, 1]} : vector<18x18x128xbf16> to vector<16x16x128xbf16>
    %11 = vector.extract_strided_slice %4 {offsets = [2, 0, 0], sizes = [16, 16, 128], strides = [1, 1, 1]} : vector<18x18x128xbf16> to vector<16x16x128xbf16>
    %12 = vector.extract_strided_slice %4 {offsets = [2, 1, 0], sizes = [16, 16, 128], strides = [1, 1, 1]} : vector<18x18x128xbf16> to vector<16x16x128xbf16>
    %13 = vector.extract_strided_slice %4 {offsets = [2, 2, 0], sizes = [16, 16, 128], strides = [1, 1, 1]} : vector<18x18x128xbf16> to vector<16x16x128xbf16>
    %14 = tpu.concatenate %5, %6, %7, %8, %9, %10, %11, %12, %13 in 2 : vector<16x16x128xbf16>, vector<16x16x128xbf16>, vector<16x16x128xbf16>, vector<16x16x128xbf16>, vector<16x16x128xbf16>, vector<16x16x128xbf16>, vector<16x16x128xbf16>, vector<16x16x128xbf16>, vector<16x16x128xbf16> -> vector<16x16x1152xbf16>
    %15 = vector.shape_cast %14 : vector<16x16x1152xbf16> to vector<256x1152xbf16>
    %c0_2 = arith.constant 0 : index
    %c0_3 = arith.constant 0 : index
    %16 = vector.load %arg3[%c0_2, %c0_3] : memref<1152x128xbf16, #tpu.memory_space<vmem>>, vector<1152x128xbf16>
    %cst = arith.constant dense<0.000000e+00> : vector<256x128xf32>
    %17 = tpu.matmul %15, %16, %cst {dimension_numbers = #tpu.dot_dimension_numbers<[1], [0], [0], [1], [0, 0, 1, 1], [], []>} : vector<256x1152xbf16>, vector<1152x128xbf16>, vector<256x128xf32> -> vector<256x128xf32>
    %c0_4 = arith.constant 0 : index
    %c0_5 = arith.constant 0 : index
    %18 = vector.load %arg4[%c0_4, %c0_5] : memref<1x128xf32, #tpu.memory_space<vmem>>, vector<1x128xf32>
    %19 = vector.broadcast %18 : vector<1x128xf32> to vector<256x128xf32>
    %20 = arith.addf %17, %19 : vector<256x128xf32>
    %cst_6 = arith.constant 0.000000e+00 : f32
    %21 = vector.broadcast %cst_6 : f32 to vector<256x128xf32>
    %22 = arith.maximumf %20, %21 : vector<256x128xf32>
    %23 = vector.shape_cast %22 : vector<256x128xf32> to vector<16x16x128xf32>
    %c0_7 = arith.constant 0 : index
    %c0_8 = arith.constant 0 : index
    %c0_9 = arith.constant 0 : index
    %c0_10 = arith.constant 0 : index
    %24 = vector.load %arg5[%c0_7, %c0_8, %c0_9, %c0_10] : memref<1x16x16x128xf32, #tpu.memory_space<vmem>>, vector<1x16x16x128xf32>
    %25 = vector.shape_cast %24 : vector<1x16x16x128xf32> to vector<16x16x128xf32>
    %26 = vector.shape_cast %23 : vector<16x16x128xf32> to vector<1x16x16x128xf32>
    tpu.vector_store %arg5[%c0_7, %c0_8, %c0_9, %c0_10], %26 {strides = array<i32>} : memref<1x16x16x128xf32, #tpu.memory_space<vmem>>, vector<1x16x16x128xf32>,
    return
  }
  func.func @transform_0(%arg0: i32, %arg1: i32) -> (i32, i32, i32, i32) {
    %c0_i32 = arith.constant 0 : i32
    %c0_i32_0 = arith.constant 0 : i32
    %c0_i32_1 = arith.constant 0 : i32
    %c0_i32_2 = arith.constant 0 : i32
    return %arg0, %c0_i32, %c0_i32_0, %c0_i32_1 : i32, i32, i32, i32
  }
  func.func @transform_1(%arg0: i32, %arg1: i32) -> (i32, i32) {
    %c0_i32 = arith.constant 0 : i32
    %c0_i32_0 = arith.constant 0 : i32
    %c0_i32_1 = arith.constant 0 : i32
    return %c0_i32, %c0_i32_0 : i32, i32
  }
  func.func @transform_2(%arg0: i32, %arg1: i32) -> (i32, i32) {
    %c0_i32 = arith.constant 0 : i32
    %c0_i32_0 = arith.constant 0 : i32
    %c0_i32_1 = arith.constant 0 : i32
    return %c0_i32, %c0_i32_0 : i32, i32
  }
  func.func @transform_3(%arg0: i32, %arg1: i32) -> (i32, i32, i32, i32) {
    %c0_i32 = arith.constant 0 : i32
    %c0_i32_0 = arith.constant 0 : i32
    %c0_i32_1 = arith.constant 0 : i32
    return %arg0, %arg1, %c0_i32, %c0_i32_0 : i32, i32, i32, i32
  }
}

</mosaic_0001>

<llo_original>
// kernel: asff_level1_forward.7
$region0: #{asff_level1_forward.7}
  #allocation0 [shape = 'u32[]', space=smem, size = 0x4, offset = 0x4, fixed_abs, tag = 'smem constant byte address 0x4 - core index']
  #allocation1 [shape = 'u32[144,128]{1,0:T(1,128)}', space=vmem, size = 0x12000, scoped, tag = 'internal scratch']
  %s0 = inlined_call_operand.vmem [shape: bf16[512,384], index: 0, kind: input, shape index: {}]
  %s1 = inlined_call_operand.vmem [shape: bf16[384,128], index: 1, kind: input, shape index: {}]
  %s2 = inlined_call_operand.vmem [shape: f32[1,128], index: 2, kind: input, shape index: {}]
  %s3 = inlined_call_operand.vmem [shape: bf16[512,128], index: 3, kind: output, shape index: {}]
  %s4 = sld [smem:[#allocation0]]
  $region45: #{asff_level1_forward.7} parent=0
    _
  %s6 = ssub.s32 1, %s4
  %s7 = scalar_select 0, %s6, %s4
  loop: start=0, step=1, limit=4
  $region2: #{asff_level1_forward.7} parent=0 // loop_pre_header
    _
  $region3: #{asff_level1_forward.7} parent=0 // loop_header
    %s9 = sphi 0, %s13
    %p10 = scmp.ge.s32.totalorder %s9, 4
    %s19 = sphi 0, %s21
    %s22 = sphi 0, %s19
    %s23 = sphi 0, %s22
    %s39 = sphi 0, %s23
    %s43 = sphi 0, %s43
    %s45 = sphi 0, %s43
    %s46 = sphi 0, %s45
    %s60 = sphi 0, %s46
    %s64 = sphi 0, %s64
    %s66 = sphi 0, %s64
    %s67 = sphi 0, %s66
    %s81 = sphi 0, %s67
    %s87 = sphi 0, %s89
    %s90 = sphi 0, %s87
    %s91 = sphi 0, %s90
    %s107 = sphi 0, %s91
  $region4: #{asff_level1_forward.7} parent=0 // loop_header_branch
    %12 = sbr.rel (%p10) target = $region8
  $region5: #{asff_level1_forward.7} parent=0 // loop_body
    %s14 = ssub.s32 %s9, 1
    %s15 = ssub.s32 %s9, 2
    %s16 = sadd.s32 %s9, 1
    %s17 = ssub.s32 %s9, %s16
    %p18 = scmp.eq.s32.totalorder %s17, 0
    %s20 = sadd.s32 %s19, 1
    %s21 = scalar_select %p18, %s19, %s20
    %p24 = pneg %p18
    %p25 = scmp.eq.s32.totalorder %s9, 1
    %p26 = por %p24, %p25
    %p27 = scmp.ne.s32.totalorder %s19, %s22
    %p28 = scmp.eq.s32.totalorder %s9, 0
    %p29 = por %p27, %p28
    %p30 = scmp.ne.s32.totalorder %s19, %s22
    %p31 = scmp.eq.s32.totalorder %s14, 1
    %p32 = por %p30, %p31
    %p33 = scmp.ne.s32.totalorder %s22, %s23
    %p34 = scmp.eq.s32.totalorder %s14, 0
    %p35 = por %p33, %p34
    %p36 = scmp.ne.s32.totalorder %s22, %s23
    %p37 = scmp.eq.s32.totalorder %s15, 1
    %p38 = por %p36, %p37
    %p40 = scmp.ne.s32.totalorder %s23, %s39
    %p41 = scmp.eq.s32.totalorder %s15, 0
    %p42 = por %p40, %p41
    %s44 = sadd.s32 %s43, 1
    %p47 = scmp.eq.s32.totalorder %s9, 1
    %p48 = scmp.ne.s32.totalorder %s43, %s45
    %p49 = scmp.eq.s32.totalorder %s9, 0
    %p50 = por %p48, %p49
    %p51 = scmp.ne.s32.totalorder %s43, %s45
    %p52 = scmp.eq.s32.totalorder %s14, 1
    %p53 = por %p51, %p52
    %p54 = scmp.ne.s32.totalorder %s45, %s46
    %p55 = scmp.eq.s32.totalorder %s14, 0
    %p56 = por %p54, %p55
    %p57 = scmp.ne.s32.totalorder %s45, %s46
    %p58 = scmp.eq.s32.totalorder %s15, 1
    %p59 = por %p57, %p58
    %p61 = scmp.ne.s32.totalorder %s46, %s60
    %p62 = scmp.eq.s32.totalorder %s15, 0
    %p63 = por %p61, %p62
    %s65 = sadd.s32 %s64, 1
    %p68 = scmp.eq.s32.totalorder %s9, 1
    %p69 = scmp.ne.s32.totalorder %s64, %s66
    %p70 = scmp.eq.s32.totalorder %s9, 0
    %p71 = por %p69, %p70
    %p72 = scmp.ne.s32.totalorder %s64, %s66
    %p73 = scmp.eq.s32.totalorder %s14, 1
    %p74 = por %p72, %p73
    %p75 = scmp.ne.s32.totalorder %s66, %s67
    %p76 = scmp.eq.s32.totalorder %s14, 0
    %p77 = por %p75, %p76
    %p78 = scmp.ne.s32.totalorder %s66, %s67
    %p79 = scmp.eq.s32.totalorder %s15, 1
    %p80 = por %p78, %p79
    %p82 = scmp.ne.s32.totalorder %s67, %s81
    %p83 = scmp.eq.s32.totalorder %s15, 0
    %p84 = por %p82, %p83
    %s85 = ssub.s32 %s9, %s16
    %p86 = scmp.eq.s32.totalorder %s85, 0
    %s88 = sadd.s32 %s87, 1
    %s89 = scalar_select %p86, %s87, %s88
    %p92 = pneg %p86
    %p93 = scmp.eq.s32.totalorder %s9, 1
    %p94 = por %p92, %p93
    %p95 = scmp.ne.s32.totalorder %s87, %s90
    %p96 = scmp.eq.s32.totalorder %s9, 0
    %p97 = por %p95, %p96
    %p98 = scmp.ne.s32.totalorder %s87, %s90
    %p99 = scmp.eq.s32.totalorder %s14, 1
    %p100 = por %p98, %p99
    %p101 = scmp.ne.s32.totalorder %s90, %s91
    %p102 = scmp.eq.s32.totalorder %s14, 0
    %p103 = por %p101, %p102
    %p104 = scmp.ne.s32.totalorder %s90, %s91
    %p105 = scmp.eq.s32.totalorder %s15, 1
    %p106 = por %p104, %p105
    %p108 = scmp.ne.s32.totalorder %s91, %s107
    %p109 = scmp.eq.s32.totalorder %s15, 0
    %p110 = por %p108, %p109
    %p111 = scmp.le.s32.totalorder 1, %s9
    %p112 = scmp.lt.s32.totalorder %s9, 3
    %p113 = pnand %p111, %p112
    %p114 = pneg %p113
    // Predicated region
    $region9: #{asff_level1_forward.7} parent=5 // pred_check
      _
    $region10: #{asff_level1_forward.7} parent=5 // pred_check_branch
      %116 = sbr.rel (%p113) target = $region12
    $region11: #{asff_level1_forward.7} parent=5 // pred_region
      %s117 = ssub.s32 %s9, 1
      // Predicated region
      $region13: #{asff_level1_forward.7} parent=11 // pred_check
        %p118 = pneg %p56
      $region14: #{asff_level1_forward.7} parent=11 // pred_check_branch
        %120 = sbr.rel (%p118) target = $region16
      $region15: #{asff_level1_forward.7} parent=11 // pred_region
        _
      $region16: #{asff_level1_forward.7} parent=11 // pred_fallthru
        _
      // Predicated region
      $region17: #{asff_level1_forward.7} parent=11 // pred_check
        %p121 = pneg %p77
      $region18: #{asff_level1_forward.7} parent=11 // pred_check_branch
        %123 = sbr.rel (%p121) target = $region20
      $region19: #{asff_level1_forward.7} parent=11 // pred_region
        _
      $region20: #{asff_level1_forward.7} parent=11 // pred_fallthru
        _
    $region12: #{asff_level1_forward.7} parent=5 // pred_fallthru
      _
    %p124 = scmp.lt.s32.totalorder %s9, 2
    // Predicated region
    $region21: #{asff_level1_forward.7} parent=5 // pred_check
      %p125 = pneg %p124
    $region22: #{asff_level1_forward.7} parent=5 // pred_check_branch
      %127 = sbr.rel (%p125) target = $region24
    $region23: #{asff_level1_forward.7} parent=5 // pred_region
      // Predicated region
      $region25: #{asff_level1_forward.7} parent=23 // pred_check
        %p128 = pneg %p29
      $region26: #{asff_level1_forward.7} parent=23 // pred_check_branch
        %130 = sbr.rel (%p128) target = $region28
      $region27: #{asff_level1_forward.7} parent=23 // pred_region
        %s131 = smul.u32 32, %s9
        %p132 = scmp.lt.s32.totalorder %s131, 63
        %s133 = scalar_select %p132, %s131, 63
        %s134 = smul.addr %s133, 3
        %s135 = smul.addr %s134, 4
        %s136 = scalar_lea.vmem %s0, %s135
        %s137 = smul.u32 32, %s9
      $region28: #{asff_level1_forward.7} parent=23 // pred_fallthru
        _
    $region24: #{asff_level1_forward.7} parent=5 // pred_fallthru
      _
    %p138 = scmp.le.s32.totalorder 1, %s9
    %p139 = scmp.lt.s32.totalorder %s9, 3
    %p140 = pnand %p138, %p139
    %p141 = pneg %p140
    // Predicated region
    $region29: #{asff_level1_forward.7} parent=5 // pred_check
      _
    $region30: #{asff_level1_forward.7} parent=5 // pred_check_branch
      %143 = sbr.rel (%p140) target = $region32
    $region31: #{asff_level1_forward.7} parent=5 // pred_region
      %s144 = ssub.s32 %s9, 1
      %s145 = smul.u32 32, %s14
      %p146 = scmp.lt.s32.totalorder %s145, 63
      %s147 = scalar_select %p146, %s145, 63
      %s148 = smul.addr %s147, 3
      %s149 = smul.addr %s148, 4
      %s150 = scalar_lea.vmem %s0, %s149
      %p151 = pneg %p35
      %p152 = pneg %p32
      %p153 = pneg %p56
      %p154 = pneg %p53
      %p155 = pneg %p77
      %p156 = pneg %p74
      %p157 = pneg %p103
      %p158 = pneg %p100
      %s159 = smul.u32 32, %s14
      %p160 = scmp.lt.s32.totalorder %s159, 63
      %s161 = scalar_select %p160, %s159, 63
      %s162 = smul.addr %s161, 4
      %s163 = scalar_lea.vmem %s3, %s162
      %s164 = smul.u32 32, %s14
      %p165 = scmp.lt.s32.totalorder %s164, 63
      %s166 = scalar_select %p165, %s164, 63
      %s167 = smul.addr %s166, 3
      %s168 = smul.addr %s167, 4
      %s169 = scalar_lea.vmem %s0, %s168
      %s170 = smul.u32 32, %s14
      %s171 = smul.u32 32, %s14
      %p172 = scmp.lt.s32.totalorder %s171, 63
      %s173 = scalar_select %p172, %s171, 63
      %s174 = smul.addr %s173, 4
      %s175 = scalar_lea.vmem %s3, %s174
      %s176 = smul.u32 32, %s14
      %v178 = vld [vmem:[%s169] sm:$0xff]
      %v179 = vld [vmem:[%s169 + $0x8] sm:$0xf]
      %v180 = vld [vmem:[%s169 + $0xc] sm:$0xff]
      %v181 = vld [vmem:[%s169 + $0x14] sm:$0xf]
      %v182 = vld [vmem:[%s169 + $0x18] sm:$0xff]
      %v183 = vld [vmem:[%s169 + $0x20] sm:$0xf]
      %v184 = vld [vmem:[%s169 + $0x24] sm:$0xff]
      %v185 = vld [vmem:[%s169 + $0x2c] sm:$0xf]
      %v186 = vld [vmem:[%s169 + $0x30] sm:$0xff]
      %v187 = vld [vmem:[%s169 + $0x38] sm:$0xf]
      %v188 = vld [vmem:[%s169 + $0x3c] sm:$0xff]
      %v189 = vld [vmem:[%s169 + $0x44] sm:$0xf]
      %v190 = vld [vmem:[%s169 + $0x48] sm:$0xff]
      %v191 = vld [vmem:[%s169 + $0x50] sm:$0xf]
      %v192 = vld [vmem:[%s169 + $0x54] sm:$0xff]
      %v193 = vld [vmem:[%s169 + $0x5c] sm:$0xf]
      %v194 = vld [vmem:[%s169 + $0x60] sm:$0xff]
      %v195 = vld [vmem:[%s169 + $0x68] sm:$0xf]
      %v196 = vld [vmem:[%s169 + $0x6c] sm:$0xff]
      %v197 = vld [vmem:[%s169 + $0x74] sm:$0xf]
      %v198 = vld [vmem:[%s169 + $0x78] sm:$0xff]
      %v199 = vld [vmem:[%s169 + $0x80] sm:$0xf]
      %v200 = vld [vmem:[%s169 + $0x84] sm:$0xff]
      %v201 = vld [vmem:[%s169 + $0x8c] sm:$0xf]
      %v202 = vld [vmem:[%s169 + $0x90] sm:$0xff]
      %v203 = vld [vmem:[%s169 + $0x98] sm:$0xf]
      %v204 = vld [vmem:[%s169 + $0x9c] sm:$0xff]
      %v205 = vld [vmem:[%s169 + $0xa4] sm:$0xf]
      %v206 = vld [vmem:[%s169 + $0xa8] sm:$0xff]
      %v207 = vld [vmem:[%s169 + $0xb0] sm:$0xf]
      %v208 = vld [vmem:[%s169 + $0xb4] sm:$0xff]
      %v209 = vld [vmem:[%s169 + $0xbc] sm:$0xf]
      %v210 = vld [vmem:[%s169 + $0xc0] sm:$0xff]
      %v211 = vld [vmem:[%s169 + $0xc8] sm:$0xf]
      %v212 = vld [vmem:[%s169 + $0xcc] sm:$0xff]
      %v213 = vld [vmem:[%s169 + $0xd4] sm:$0xf]
      %v214 = vld [vmem:[%s169 + $0xd8] sm:$0xff]
      %v215 = vld [vmem:[%s169 + $0xe0] sm:$0xf]
      %v216 = vld [vmem:[%s169 + $0xe4] sm:$0xff]
      %v217 = vld [vmem:[%s169 + $0xec] sm:$0xf]
      %v218 = vld [vmem:[%s169 + $0xf0] sm:$0xff]
      %v219 = vld [vmem:[%s169 + $0xf8] sm:$0xf]
      %v220 = vld [vmem:[%s169 + $0xfc] sm:$0xff]
      %v221 = vld [vmem:[%s169 + $0x104] sm:$0xf]
      %v222 = vld [vmem:[%s169 + $0x108] sm:$0xff]
      %v223 = vld [vmem:[%s169 + $0x110] sm:$0xf]
      %v224 = vld [vmem:[%s169 + $0x114] sm:$0xff]
      %v225 = vld [vmem:[%s169 + $0x11c] sm:$0xf]
      %v226 = vld [vmem:[%s169 + $0x120] sm:$0xff]
      %v227 = vld [vmem:[%s169 + $0x128] sm:$0xf]
      %v228 = vld [vmem:[%s169 + $0x12c] sm:$0xff]
      %v229 = vld [vmem:[%s169 + $0x134] sm:$0xf]
      %v230 = vld [vmem:[%s169 + $0x138] sm:$0xff]
      %v231 = vld [vmem:[%s169 + $0x140] sm:$0xf]
      %v232 = vld [vmem:[%s169 + $0x144] sm:$0xff]
      %v233 = vld [vmem:[%s169 + $0x14c] sm:$0xf]
      %v234 = vld [vmem:[%s169 + $0x150] sm:$0xff]
      %v235 = vld [vmem:[%s169 + $0x158] sm:$0xf]
      %v236 = vld [vmem:[%s169 + $0x15c] sm:$0xff]
      %v237 = vld [vmem:[%s169 + $0x164] sm:$0xf]
      %v238 = vld [vmem:[%s169 + $0x168] sm:$0xff]
      %v239 = vld [vmem:[%s169 + $0x170] sm:$0xf]
      %v240 = vld [vmem:[%s169 + $0x174] sm:$0xff]
      %v241 = vld [vmem:[%s169 + $0x17c] sm:$0xf]
      %v242 = vld [vmem:[%s1] sm:$0xf]
      %v243 = vld [vmem:[%s1 + $0x4] sm:$0xf]
      %v244 = vld [vmem:[%s1 + $0x8] sm:$0xf]
      %v245 = vld [vmem:[%s1 + $0xc] sm:$0xf]
      %v246 = vld [vmem:[%s1 + $0x10] sm:$0xf]
      %v247 = vld [vmem:[%s1 + $0x14] sm:$0xf]
      %v248 = vld [vmem:[%s1 + $0x18] sm:$0xf]
      %v249 = vld [vmem:[%s1 + $0x1c] sm:$0xf]
      %v250 = vld [vmem:[%s1 + $0x20] sm:$0xf]
      %v251 = vld [vmem:[%s1 + $0x24] sm:$0xf]
      %v252 = vld [vmem:[%s1 + $0x28] sm:$0xf]
      %v253 = vld [vmem:[%s1 + $0x2c] sm:$0xf]
      %v254 = vld [vmem:[%s1 + $0x30] sm:$0xf]
      %v255 = vld [vmem:[%s1 + $0x34] sm:$0xf]
      %v256 = vld [vmem:[%s1 + $0x38] sm:$0xf]
      %v257 = vld [vmem:[%s1 + $0x3c] sm:$0xf]
      %v258 = vld [vmem:[%s1 + $0x40] sm:$0xf]
      %v259 = vld [vmem:[%s1 + $0x44] sm:$0xf]
      %v260 = vld [vmem:[%s1 + $0x48] sm:$0xf]
      %v261 = vld [vmem:[%s1 + $0x4c] sm:$0xf]
      %v262 = vld [vmem:[%s1 + $0x50] sm:$0xf]
      %v263 = vld [vmem:[%s1 + $0x54] sm:$0xf]
      %v264 = vld [vmem:[%s1 + $0x58] sm:$0xf]
      %v265 = vld [vmem:[%s1 + $0x5c] sm:$0xf]
      %v266 = vld [vmem:[%s1 + $0x60] sm:$0xf]
      %v267 = vld [vmem:[%s1 + $0x64] sm:$0xf]
      %v268 = vld [vmem:[%s1 + $0x68] sm:$0xf]
      %v269 = vld [vmem:[%s1 + $0x6c] sm:$0xf]
      %v270 = vld [vmem:[%s1 + $0x70] sm:$0xf]
      %v271 = vld [vmem:[%s1 + $0x74] sm:$0xf]
      %v272 = vld [vmem:[%s1 + $0x78] sm:$0xf]
      %v273 = vld [vmem:[%s1 + $0x7c] sm:$0xf]
      %v274 = vld [vmem:[%s1 + $0x80] sm:$0xf]
      %v275 = vld [vmem:[%s1 + $0x84] sm:$0xf]
      %v276 = vld [vmem:[%s1 + $0x88] sm:$0xf]
      %v277 = vld [vmem:[%s1 + $0x8c] sm:$0xf]
      %v278 = vld [vmem:[%s1 + $0x90] sm:$0xf]
      %v279 = vld [vmem:[%s1 + $0x94] sm:$0xf]
      %v280 = vld [vmem:[%s1 + $0x98] sm:$0xf]
      %v281 = vld [vmem:[%s1 + $0x9c] sm:$0xf]
      %v282 = vld [vmem:[%s1 + $0xa0] sm:$0xf]
      %v283 = vld [vmem:[%s1 + $0xa4] sm:$0xf]
      %v284 = vld [vmem:[%s1 + $0xa8] sm:$0xf]
      %v285 = vld [vmem:[%s1 + $0xac] sm:$0xf]
      %v286 = vld [vmem:[%s1 + $0xb0] sm:$0xf]
      %v287 = vld [vmem:[%s1 + $0xb4] sm:$0xf]
      %v288 = vld [vmem:[%s1 + $0xb8] sm:$0xf]
      %v289 = vld [vmem:[%s1 + $0xbc] sm:$0xf]
      %v290 = vld [vmem:[%s2] sm:$0x1]
      %v292 = vlaneseq
      %v293 = vshrl.u32 %v292, 7
      %v294 = vsub.s32 0, %v293
      %v295 = vrot.slane %v290, %v294
      %v361 = vunpack.c.l.b16 %v178
      %v362 = vunpack.c.h.b16 %v178
      %v363 = vunpack.c.l.b16 %v179
      %v364 = vunpack.c.l.b16 %v180
      %v365 = vunpack.c.h.b16 %v180
      %v366 = vunpack.c.l.b16 %v181
      %v367 = vunpack.c.l.b16 %v182
      %v368 = vunpack.c.h.b16 %v182
      %v369 = vunpack.c.l.b16 %v183
      %v370 = vunpack.c.l.b16 %v184
      %v371 = vunpack.c.h.b16 %v184
      %v372 = vunpack.c.l.b16 %v185
      %v373 = vunpack.c.l.b16 %v186
      %v374 = vunpack.c.h.b16 %v186
      %v375 = vunpack.c.l.b16 %v187
      %v376 = vunpack.c.l.b16 %v188
      %v377 = vunpack.c.h.b16 %v188
      %v378 = vunpack.c.l.b16 %v189
      %v379 = vunpack.c.l.b16 %v190
      %v380 = vunpack.c.h.b16 %v190
      %v381 = vunpack.c.l.b16 %v191
      %v382 = vunpack.c.l.b16 %v192
      %v383 = vunpack.c.h.b16 %v192
      %v384 = vunpack.c.l.b16 %v193
      %v385 = vunpack.c.l.b16 %v194
      %v386 = vunpack.c.h.b16 %v194
      %v387 = vunpack.c.l.b16 %v195
      %v388 = vunpack.c.l.b16 %v196
      %v389 = vunpack.c.h.b16 %v196
      %v390 = vunpack.c.l.b16 %v197
      %v391 = vunpack.c.l.b16 %v198
      %v392 = vunpack.c.h.b16 %v198
      %v393 = vunpack.c.l.b16 %v199
      %v394 = vunpack.c.l.b16 %v200
      %v395 = vunpack.c.h.b16 %v200
      %v396 = vunpack.c.l.b16 %v201
      %v397 = vunpack.c.l.b16 %v202
      %v398 = vunpack.c.h.b16 %v202
      %v399 = vunpack.c.l.b16 %v203
      %v400 = vunpack.c.l.b16 %v204
      %v401 = vunpack.c.h.b16 %v204
      %v402 = vunpack.c.l.b16 %v205
      %v403 = vunpack.c.l.b16 %v206
      %v404 = vunpack.c.h.b16 %v206
      %v405 = vunpack.c.l.b16 %v207
      %v406 = vunpack.c.l.b16 %v208
      %v407 = vunpack.c.h.b16 %v208
      %v408 = vunpack.c.l.b16 %v209
      %v409 = vunpack.c.l.b16 %v210
      %v410 = vunpack.c.h.b16 %v210
      %v411 = vunpack.c.l.b16 %v211
      %v412 = vunpack.c.l.b16 %v212
      %v413 = vunpack.c.h.b16 %v212
      %v414 = vunpack.c.l.b16 %v213
      %v415 = vunpack.c.l.b16 %v214
      %v416 = vunpack.c.h.b16 %v214
      %v417 = vunpack.c.l.b16 %v215
      %v418 = vunpack.c.l.b16 %v216
      %v419 = vunpack.c.h.b16 %v216
      %v420 = vunpack.c.l.b16 %v217
      %v421 = vunpack.c.l.b16 %v218
      %v422 = vunpack.c.h.b16 %v218
      %v423 = vunpack.c.l.b16 %v219
      %v424 = vunpack.c.l.b16 %v220
      %v425 = vunpack.c.h.b16 %v220
      %v426 = vunpack.c.l.b16 %v221
      %v427 = vunpack.c.l.b16 %v222
      %v428 = vunpack.c.h.b16 %v222
      %v429 = vunpack.c.l.b16 %v223
      %v430 = vunpack.c.l.b16 %v224
      %v431 = vunpack.c.h.b16 %v224
      %v432 = vunpack.c.l.b16 %v225
      %v433 = vunpack.c.l.b16 %v226
      %v434 = vunpack.c.h.b16 %v226
      %v435 = vunpack.c.l.b16 %v227
      %v436 = vunpack.c.l.b16 %v228
      %v437 = vunpack.c.h.b16 %v228
      %v438 = vunpack.c.l.b16 %v229
      %v439 = vunpack.c.l.b16 %v230
      %v440 = vunpack.c.h.b16 %v230
      %v441 = vunpack.c.l.b16 %v231
      %v442 = vunpack.c.l.b16 %v232
      %v443 = vunpack.c.h.b16 %v232
      %v444 = vunpack.c.l.b16 %v233
      %v445 = vunpack.c.l.b16 %v234
      %v446 = vunpack.c.h.b16 %v234
      %v447 = vunpack.c.l.b16 %v235
      %v448 = vunpack.c.l.b16 %v236
      %v449 = vunpack.c.h.b16 %v236
      %v450 = vunpack.c.l.b16 %v237
      %v451 = vunpack.c.l.b16 %v238
      %v452 = vunpack.c.h.b16 %v238
      %v453 = vunpack.c.l.b16 %v239
      %v454 = vunpack.c.l.b16 %v240
      %v455 = vunpack.c.h.b16 %v240
      %v456 = vunpack.c.l.b16 %v241
      %v457 = vpack.c.b16 %v364, %v361
      %v458 = vpack.c.b16 %v365, %v362
      %v459 = vpack.c.b16 %v366, %v363
      %v460 = vpack.c.b16 %v370, %v367
      %v461 = vpack.c.b16 %v371, %v368
      %v462 = vpack.c.b16 %v372, %v369
      %v463 = vpack.c.b16 %v376, %v373
      %v464 = vpack.c.b16 %v377, %v374
      %v465 = vpack.c.b16 %v378, %v375
      %v466 = vpack.c.b16 %v382, %v379
      %v467 = vpack.c.b16 %v383, %v380
      %v468 = vpack.c.b16 %v384, %v381
      %v469 = vpack.c.b16 %v388, %v385
      %v470 = vpack.c.b16 %v389, %v386
      %v471 = vpack.c.b16 %v390, %v387
      %v472 = vpack.c.b16 %v394, %v391
      %v473 = vpack.c.b16 %v395, %v392
      %v474 = vpack.c.b16 %v396, %v393
      %v475 = vpack.c.b16 %v400, %v397
      %v476 = vpack.c.b16 %v401, %v398
      %v477 = vpack.c.b16 %v402, %v399
      %v478 = vpack.c.b16 %v406, %v403
      %v479 = vpack.c.b16 %v407, %v404
      %v480 = vpack.c.b16 %v408, %v405
      %v481 = vpack.c.b16 %v412, %v409
      %v482 = vpack.c.b16 %v413, %v410
      %v483 = vpack.c.b16 %v414, %v411
      %v484 = vpack.c.b16 %v418, %v415
      %v485 = vpack.c.b16 %v419, %v416
      %v486 = vpack.c.b16 %v420, %v417
      %v487 = vpack.c.b16 %v424, %v421
      %v488 = vpack.c.b16 %v425, %v422
      %v489 = vpack.c.b16 %v426, %v423
      %v490 = vpack.c.b16 %v430, %v427
      %v491 = vpack.c.b16 %v431, %v428
      %v492 = vpack.c.b16 %v432, %v429
      %v493 = vpack.c.b16 %v436, %v433
      %v494 = vpack.c.b16 %v437, %v434
      %v495 = vpack.c.b16 %v438, %v435
      %v496 = vpack.c.b16 %v442, %v439
      %v497 = vpack.c.b16 %v443, %v440
      %v498 = vpack.c.b16 %v444, %v441
      %v499 = vpack.c.b16 %v448, %v445
      %v500 = vpack.c.b16 %v449, %v446
      %v501 = vpack.c.b16 %v450, %v447
      %v502 = vpack.c.b16 %v454, %v451
      %v503 = vpack.c.b16 %v455, %v452
      %v504 = vpack.c.b16 %v456, %v453
      %v601 = vunpack.c.l.b16 %v242
      %v602 = vunpack.c.l.b16 %v243
      %v603 = vunpack.c.l.b16 %v244
      %v604 = vunpack.c.l.b16 %v245
      %v605 = vunpack.c.l.b16 %v246
      %v606 = vunpack.c.l.b16 %v247
      %v607 = vunpack.c.l.b16 %v248
      %v608 = vunpack.c.l.b16 %v249
      %v609 = vunpack.c.l.b16 %v250
      %v610 = vunpack.c.l.b16 %v251
      %v611 = vunpack.c.l.b16 %v252
      %v612 = vunpack.c.l.b16 %v253
      %v613 = vunpack.c.l.b16 %v254
      %v614 = vunpack.c.l.b16 %v255
      %v615 = vunpack.c.l.b16 %v256
      %v616 = vunpack.c.l.b16 %v257
      %v617 = vunpack.c.l.b16 %v258
      %v618 = vunpack.c.l.b16 %v259
      %v619 = vunpack.c.l.b16 %v260
      %v620 = vunpack.c.l.b16 %v261
      %v621 = vunpack.c.l.b16 %v262
      %v622 = vunpack.c.l.b16 %v263
      %v623 = vunpack.c.l.b16 %v264
      %v624 = vunpack.c.l.b16 %v265
      %v625 = vunpack.c.l.b16 %v266
      %v626 = vunpack.c.l.b16 %v267
      %v627 = vunpack.c.l.b16 %v268
      %v628 = vunpack.c.l.b16 %v269
      %v629 = vunpack.c.l.b16 %v270
      %v630 = vunpack.c.l.b16 %v271
      %v631 = vunpack.c.l.b16 %v272
      %v632 = vunpack.c.l.b16 %v273
      %v633 = vunpack.c.l.b16 %v274
      %v634 = vunpack.c.l.b16 %v275
      %v635 = vunpack.c.l.b16 %v276
      %v636 = vunpack.c.l.b16 %v277
      %v637 = vunpack.c.l.b16 %v278
      %v638 = vunpack.c.l.b16 %v279
      %v639 = vunpack.c.l.b16 %v280
      %v640 = vunpack.c.l.b16 %v281
      %v641 = vunpack.c.l.b16 %v282
      %v642 = vunpack.c.l.b16 %v283
      %v643 = vunpack.c.l.b16 %v284
      %v644 = vunpack.c.l.b16 %v285
      %v645 = vunpack.c.l.b16 %v286
      %v646 = vunpack.c.l.b16 %v287
      %v647 = vunpack.c.l.b16 %v288
      %v648 = vunpack.c.l.b16 %v289
      %v649 = vpack.c.b16 %v602, %v601
      %v650 = vpack.c.b16 %v604, %v603
      %v651 = vpack.c.b16 %v606, %v605
      %v652 = vpack.c.b16 %v608, %v607
      %v653 = vpack.c.b16 %v610, %v609
      %v654 = vpack.c.b16 %v612, %v611
      %v655 = vpack.c.b16 %v614, %v613
      %v656 = vpack.c.b16 %v616, %v615
      %v657 = vpack.c.b16 %v618, %v617
      %v658 = vpack.c.b16 %v620, %v619
      %v659 = vpack.c.b16 %v622, %v621
      %v660 = vpack.c.b16 %v624, %v623
      %v661 = vpack.c.b16 %v626, %v625
      %v662 = vpack.c.b16 %v628, %v627
      %v663 = vpack.c.b16 %v630, %v629
      %v664 = vpack.c.b16 %v632, %v631
      %v665 = vpack.c.b16 %v634, %v633
      %v666 = vpack.c.b16 %v636, %v635
      %v667 = vpack.c.b16 %v638, %v637
      %v668 = vpack.c.b16 %v640, %v639
      %v669 = vpack.c.b16 %v642, %v641
      %v670 = vpack.c.b16 %v644, %v643
      %v671 = vpack.c.b16 %v646, %v645
      %v672 = vpack.c.b16 %v648, %v647
      %697 = vmatprep.subr.bf16.mxu0 0
      %698 = vmatpush1.bf16.msra.mxu0 %v656
      %699 = vmatprep.subr.bf16.mxu0 0
      %700 = vmatpush1.bf16.msra.mxu0 %v655
      %701 = vmatprep.subr.bf16.mxu0 0
      %702 = vmatpush1.bf16.msra.mxu0 %v654
      %703 = vmatprep.subr.bf16.mxu0 0
      %704 = vmatpush1.bf16.msra.mxu0 %v653
      %705 = vmatprep.subr.bf16.mxu0 0
      %706 = vmatpush1.bf16.msra.mxu0 %v652
      %707 = vmatprep.subr.bf16.mxu0 0
      %708 = vmatpush1.bf16.msra.mxu0 %v651
      %709 = vmatprep.subr.bf16.mxu0 0
      %710 = vmatpush1.bf16.msra.mxu0 %v650
      %711 = vmatprep.subr.bf16.mxu0 0
      %712 = vmatpush1.bf16.msra.mxu0 %v649
      %713 = vmatprep.subr.bf16.mxu0 0
      %714 = vmatpush2.bf16.msra.mxu0 %v664
      %715 = vmatprep.subr.bf16.mxu0 0
      %716 = vmatpush2.bf16.msra.mxu0 %v663
      %717 = vmatprep.subr.bf16.mxu0 0
      %718 = vmatpush2.bf16.msra.mxu0 %v662
      %719 = vmatprep.subr.bf16.mxu0 0
      %720 = vmatpush2.bf16.msra.mxu0 %v661
      %721 = vmatprep.subr.bf16.mxu0 0
      %722 = vmatpush2.bf16.msra.mxu0 %v660
      %723 = vmatprep.subr.bf16.mxu0 0
      %724 = vmatpush2.bf16.msra.mxu0 %v659
      %725 = vmatprep.subr.bf16.mxu0 0
      %726 = vmatpush2.bf16.msra.mxu0 %v658
      %727 = vmatprep.subr.bf16.mxu0 0
      %728 = vmatpush2.bf16.msra.mxu0 %v657
      %729 = vmatprep.mubr.bf16.mxu0 %v458
      %730 = vmatmul.mubr.bf16.gmra.mxu0 %v457
      %v731 = vpop.f32.mrf.mxu0
      %v732 = vadd.f32 %v295, %v731
      %v733 = vpop.f32.mrf.mxu0
      %v734 = vpop.f32.mrf.mxu0
      %v735 = vadd.f32 %v295, %v734
      %v736 = vpop.f32.mrf.mxu0
      %737 = vmatprep.mubr.bf16.mxu0 %v461
      %738 = vmatmul.mubr.bf16.gmra.mxu0 %v460
      %v739 = vpop.f32.mrf.mxu0
      %v740 = vadd.f32 %v295, %v739
      %v741 = vpop.f32.mrf.mxu0
      %v742 = vpop.f32.mrf.mxu0
      %v743 = vadd.f32 %v295, %v742
      %v744 = vpop.f32.mrf.mxu0
      %745 = vmatprep.mubr.bf16.mxu0 %v464
      %746 = vmatmul.mubr.bf16.gmra.mxu0 %v463
      %v747 = vpop.f32.mrf.mxu0
      %v748 = vadd.f32 %v295, %v747
      %v749 = vpop.f32.mrf.mxu0
      %v750 = vpop.f32.mrf.mxu0
      %v751 = vadd.f32 %v295, %v750
      %v752 = vpop.f32.mrf.mxu0
      %753 = vmatprep.mubr.bf16.mxu0 %v467
      %754 = vmatmul.mubr.bf16.gmra.mxu0 %v466
      %v755 = vpop.f32.mrf.mxu0
      %v756 = vadd.f32 %v295, %v755
      %v757 = vpop.f32.mrf.mxu0
      %v758 = vpop.f32.mrf.mxu0
      %v759 = vadd.f32 %v295, %v758
      %v760 = vpop.f32.mrf.mxu0
      %761 = vmatprep.mubr.bf16.mxu0 %v470
      %762 = vmatmul.mubr.bf16.gmra.mxu0 %v469
      %v763 = vpop.f32.mrf.mxu0
      %v764 = vadd.f32 %v295, %v763
      %v765 = vpop.f32.mrf.mxu0
      %v766 = vpop.f32.mrf.mxu0
      %v767 = vadd.f32 %v295, %v766
      %v768 = vpop.f32.mrf.mxu0
      %769 = vmatprep.mubr.bf16.mxu0 %v473
      %770 = vmatmul.mubr.bf16.gmra.mxu0 %v472
      %v771 = vpop.f32.mrf.mxu0
      %v772 = vadd.f32 %v295, %v771
      %v773 = vpop.f32.mrf.mxu0
      %v774 = vpop.f32.mrf.mxu0
      %v775 = vadd.f32 %v295, %v774
      %v776 = vpop.f32.mrf.mxu0
      %777 = vmatprep.mubr.bf16.mxu0 %v476
      %778 = vmatmul.mubr.bf16.gmra.mxu0 %v475
      %v779 = vpop.f32.mrf.mxu0
      %v780 = vadd.f32 %v295, %v779
      %v781 = vpop.f32.mrf.mxu0
      %v782 = vpop.f32.mrf.mxu0
      %v783 = vadd.f32 %v295, %v782
      %v784 = vpop.f32.mrf.mxu0
      %785 = vmatprep.mubr.bf16.mxu0 %v479
      %786 = vmatmul.mubr.bf16.gmra.mxu0 %v478
      %v787 = vpop.f32.mrf.mxu0
      %v788 = vadd.f32 %v295, %v787
      %v789 = vpop.f32.mrf.mxu0
      %v790 = vpop.f32.mrf.mxu0
      %v791 = vadd.f32 %v295, %v790
      %v792 = vpop.f32.mrf.mxu0
      %793 = vmatprep.mubr.bf16.mxu0 %v482
      %794 = vmatmul.mubr.bf16.gmra.mxu0 %v481
      %v795 = vpop.f32.mrf.mxu0
      %v796 = vadd.f32 %v295, %v795
      %v797 = vpop.f32.mrf.mxu0
      %v798 = vpop.f32.mrf.mxu0
      %v799 = vadd.f32 %v295, %v798
      %v800 = vpop.f32.mrf.mxu0
      %801 = vmatprep.mubr.bf16.mxu0 %v485
      %802 = vmatmul.mubr.bf16.gmra.mxu0 %v484
      %v803 = vpop.f32.mrf.mxu0
      %v804 = vadd.f32 %v295, %v803
      %v805 = vpop.f32.mrf.mxu0
      %v806 = vpop.f32.mrf.mxu0
      %v807 = vadd.f32 %v295, %v806
      %v808 = vpop.f32.mrf.mxu0
      %809 = vmatprep.mubr.bf16.mxu0 %v488
      %810 = vmatmul.mubr.bf16.gmra.mxu0 %v487
      %v811 = vpop.f32.mrf.mxu0
      %v812 = vadd.f32 %v295, %v811
      %v813 = vpop.f32.mrf.mxu0
      %v814 = vpop.f32.mrf.mxu0
      %v815 = vadd.f32 %v295, %v814
      %v816 = vpop.f32.mrf.mxu0
      %817 = vmatprep.mubr.bf16.mxu0 %v491
      %818 = vmatmul.mubr.bf16.gmra.mxu0 %v490
      %v819 = vpop.f32.mrf.mxu0
      %v820 = vadd.f32 %v295, %v819
      %v821 = vpop.f32.mrf.mxu0
      %v822 = vpop.f32.mrf.mxu0
      %v823 = vadd.f32 %v295, %v822
      %v824 = vpop.f32.mrf.mxu0
      %825 = vmatprep.mubr.bf16.mxu0 %v494
      %826 = vmatmul.mubr.bf16.gmra.mxu0 %v493
      %v827 = vpop.f32.mrf.mxu0
      %v828 = vadd.f32 %v295, %v827
      %v829 = vpop.f32.mrf.mxu0
      %v830 = vpop.f32.mrf.mxu0
      %v831 = vadd.f32 %v295, %v830
      %v832 = vpop.f32.mrf.mxu0
      %833 = vmatprep.mubr.bf16.mxu0 %v497
      %834 = vmatmul.mubr.bf16.gmra.mxu0 %v496
      %v835 = vpop.f32.mrf.mxu0
      %v836 = vadd.f32 %v295, %v835
      %v837 = vpop.f32.mrf.mxu0
      %v838 = vpop.f32.mrf.mxu0
      %v839 = vadd.f32 %v295, %v838
      %v840 = vpop.f32.mrf.mxu0
      %841 = vmatprep.mubr.bf16.mxu0 %v500
      %842 = vmatmul.mubr.bf16.gmra.mxu0 %v499
      %v843 = vpop.f32.mrf.mxu0
      %v844 = vadd.f32 %v295, %v843
      %v845 = vpop.f32.mrf.mxu0
      %v846 = vpop.f32.mrf.mxu0
      %v847 = vadd.f32 %v295, %v846
      %v848 = vpop.f32.mrf.mxu0
      %849 = vmatprep.mubr.bf16.mxu0 %v503
      %850 = vmatmul.mubr.bf16.gmra.mxu0 %v502
      %v851 = vpop.f32.mrf.mxu0
      %v852 = vadd.f32 %v295, %v851
      %v853 = vpop.f32.mrf.mxu0
      %v854 = vpop.f32.mrf.mxu0
      %v855 = vadd.f32 %v295, %v854
      %v856 = vpop.f32.mrf.mxu0
      %857 = vdwg.mxu0
      %858 = vmatprep.subr.bf16.mxu0 0
      %859 = vmatpush1.bf16.msra.mxu0 %v672
      %860 = vmatprep.subr.bf16.mxu0 0
      %861 = vmatpush1.bf16.msra.mxu0 %v671
      %862 = vmatprep.subr.bf16.mxu0 0
      %863 = vmatpush1.bf16.msra.mxu0 %v670
      %864 = vmatprep.subr.bf16.mxu0 0
      %865 = vmatpush1.bf16.msra.mxu0 %v669
      %866 = vmatprep.subr.bf16.mxu0 0
      %867 = vmatpush1.bf16.msra.mxu0 %v668
      %868 = vmatprep.subr.bf16.mxu0 0
      %869 = vmatpush1.bf16.msra.mxu0 %v667
      %870 = vmatprep.subr.bf16.mxu0 0
      %871 = vmatpush1.bf16.msra.mxu0 %v666
      %872 = vmatprep.subr.bf16.mxu0 0
      %873 = vmatpush1.bf16.msra.mxu0 %v665
      %874 = vmatprep.subr.bf16.mxu0 0
      %875 = vmatpush2.bf16.msra.mxu0 0
      %876 = vmatprep.subr.bf16.mxu0 0
      %877 = vmatpush2.bf16.msra.mxu0 0
      %878 = vmatprep.subr.bf16.mxu0 0
      %879 = vmatpush2.bf16.msra.mxu0 0
      %880 = vmatprep.subr.bf16.mxu0 0
      %881 = vmatpush2.bf16.msra.mxu0 0
      %882 = vmatprep.subr.bf16.mxu0 0
      %883 = vmatpush2.bf16.msra.mxu0 0
      %884 = vmatprep.subr.bf16.mxu0 0
      %885 = vmatpush2.bf16.msra.mxu0 0
      %886 = vmatprep.subr.bf16.mxu0 0
      %887 = vmatpush2.bf16.msra.mxu0 0
      %888 = vmatprep.subr.bf16.mxu0 0
      %889 = vmatpush2.bf16.msra.mxu0 0
      %890 = vmatprep.mubr.bf16.mxu0 0
      %891 = vmatmul.mubr.bf16.gmra.mxu0 %v459
      %v892 = vpop.f32.mrf.mxu0
      %v893 = vadd.f32 %v732, %v892
      %v894 = vpop.f32.mrf.mxu0
      %v895 = vpop.f32.mrf.mxu0
      %v896 = vadd.f32 %v735, %v895
      %v897 = vpop.f32.mrf.mxu0
      %898 = vmatprep.mubr.bf16.mxu0 0
      %899 = vmatmul.mubr.bf16.gmra.mxu0 %v462
      %v900 = vpop.f32.mrf.mxu0
      %v901 = vadd.f32 %v740, %v900
      %v902 = vpop.f32.mrf.mxu0
      %v903 = vpop.f32.mrf.mxu0
      %v904 = vadd.f32 %v743, %v903
      %v905 = vpop.f32.mrf.mxu0
      %906 = vmatprep.mubr.bf16.mxu0 0
      %907 = vmatmul.mubr.bf16.gmra.mxu0 %v465
      %v908 = vpop.f32.mrf.mxu0
      %v909 = vadd.f32 %v748, %v908
      %v910 = vpop.f32.mrf.mxu0
      %v911 = vpop.f32.mrf.mxu0
      %v912 = vadd.f32 %v751, %v911
      %v913 = vpop.f32.mrf.mxu0
      %914 = vmatprep.mubr.bf16.mxu0 0
      %915 = vmatmul.mubr.bf16.gmra.mxu0 %v468
      %v916 = vpop.f32.mrf.mxu0
      %v917 = vadd.f32 %v756, %v916
      %v918 = vpop.f32.mrf.mxu0
      %v919 = vpop.f32.mrf.mxu0
      %v920 = vadd.f32 %v759, %v919
      %v921 = vpop.f32.mrf.mxu0
      %922 = vmatprep.mubr.bf16.mxu0 0
      %923 = vmatmul.mubr.bf16.gmra.mxu0 %v471
      %v924 = vpop.f32.mrf.mxu0
      %v925 = vadd.f32 %v764, %v924
      %v926 = vpop.f32.mrf.mxu0
      %v927 = vpop.f32.mrf.mxu0
      %v928 = vadd.f32 %v767, %v927
      %v929 = vpop.f32.mrf.mxu0
      %930 = vmatprep.mubr.bf16.mxu0 0
      %931 = vmatmul.mubr.bf16.gmra.mxu0 %v474
      %v932 = vpop.f32.mrf.mxu0
      %v933 = vadd.f32 %v772, %v932
      %v934 = vpop.f32.mrf.mxu0
      %v935 = vpop.f32.mrf.mxu0
      %v936 = vadd.f32 %v775, %v935
      %v937 = vpop.f32.mrf.mxu0
      %938 = vmatprep.mubr.bf16.mxu0 0
      %939 = vmatmul.mubr.bf16.gmra.mxu0 %v477
      %v940 = vpop.f32.mrf.mxu0
      %v941 = vadd.f32 %v780, %v940
      %v942 = vpop.f32.mrf.mxu0
      %v943 = vpop.f32.mrf.mxu0
      %v944 = vadd.f32 %v783, %v943
      %v945 = vpop.f32.mrf.mxu0
      %946 = vmatprep.mubr.bf16.mxu0 0
      %947 = vmatmul.mubr.bf16.gmra.mxu0 %v480
      %v948 = vpop.f32.mrf.mxu0
      %v949 = vadd.f32 %v788, %v948
      %v950 = vpop.f32.mrf.mxu0
      %v951 = vpop.f32.mrf.mxu0
      %v952 = vadd.f32 %v791, %v951
      %v953 = vpop.f32.mrf.mxu0
      %954 = vmatprep.mubr.bf16.mxu0 0
      %955 = vmatmul.mubr.bf16.gmra.mxu0 %v483
      %v956 = vpop.f32.mrf.mxu0
      %v957 = vadd.f32 %v796, %v956
      %v958 = vpop.f32.mrf.mxu0
      %v959 = vpop.f32.mrf.mxu0
      %v960 = vadd.f32 %v799, %v959
      %v961 = vpop.f32.mrf.mxu0
      %962 = vmatprep.mubr.bf16.mxu0 0
      %963 = vmatmul.mubr.bf16.gmra.mxu0 %v486
      %v964 = vpop.f32.mrf.mxu0
      %v965 = vadd.f32 %v804, %v964
      %v966 = vpop.f32.mrf.mxu0
      %v967 = vpop.f32.mrf.mxu0
      %v968 = vadd.f32 %v807, %v967
      %v969 = vpop.f32.mrf.mxu0
      %970 = vmatprep.mubr.bf16.mxu0 0
      %971 = vmatmul.mubr.bf16.gmra.mxu0 %v489
      %v972 = vpop.f32.mrf.mxu0
      %v973 = vadd.f32 %v812, %v972
      %v974 = vpop.f32.mrf.mxu0
      %v975 = vpop.f32.mrf.mxu0
      %v976 = vadd.f32 %v815, %v975
      %v977 = vpop.f32.mrf.mxu0
      %978 = vmatprep.mubr.bf16.mxu0 0
      %979 = vmatmul.mubr.bf16.gmra.mxu0 %v492
      %v980 = vpop.f32.mrf.mxu0
      %v981 = vadd.f32 %v820, %v980
      %v982 = vpop.f32.mrf.mxu0
      %v983 = vpop.f32.mrf.mxu0
      %v984 = vadd.f32 %v823, %v983
      %v985 = vpop.f32.mrf.mxu0
      %986 = vmatprep.mubr.bf16.mxu0 0
      %987 = vmatmul.mubr.bf16.gmra.mxu0 %v495
      %v988 = vpop.f32.mrf.mxu0
      %v989 = vadd.f32 %v828, %v988
      %v990 = vpop.f32.mrf.mxu0
      %v991 = vpop.f32.mrf.mxu0
      %v992 = vadd.f32 %v831, %v991
      %v993 = vpop.f32.mrf.mxu0
      %994 = vmatprep.mubr.bf16.mxu0 0
      %995 = vmatmul.mubr.bf16.gmra.mxu0 %v498
      %v996 = vpop.f32.mrf.mxu0
      %v997 = vadd.f32 %v836, %v996
      %v998 = vpop.f32.mrf.mxu0
      %v999 = vpop.f32.mrf.mxu0
      %v1000 = vadd.f32 %v839, %v999
      %v1001 = vpop.f32.mrf.mxu0
      %1002 = vmatprep.mubr.bf16.mxu0 0
      %1003 = vmatmul.mubr.bf16.gmra.mxu0 %v501
      %v1004 = vpop.f32.mrf.mxu0
      %v1005 = vadd.f32 %v844, %v1004
      %v1006 = vpop.f32.mrf.mxu0
      %v1007 = vpop.f32.mrf.mxu0
      %v1008 = vadd.f32 %v847, %v1007
      %v1009 = vpop.f32.mrf.mxu0
      %1010 = vmatprep.mubr.bf16.mxu0 0
      %1011 = vmatmul.mubr.bf16.gmra.mxu0 %v504
      %v1012 = vpop.f32.mrf.mxu0
      %v1013 = vadd.f32 %v852, %v1012
      %v1014 = vpop.f32.mrf.mxu0
      %v1015 = vpop.f32.mrf.mxu0
      %v1016 = vadd.f32 %v855, %v1015
      %v1017 = vpop.f32.mrf.mxu0
      %1018 = vdwg.mxu0
      %v1019 = vmax.f32 %v893, 0.0
      %v1020 = vmax.f32 %v896, 0.0
      %v1021 = vmax.f32 %v901, 0.0
      %v1022 = vmax.f32 %v904, 0.0
      %v1023 = vmax.f32 %v909, 0.0
      %v1024 = vmax.f32 %v912, 0.0
      %v1025 = vmax.f32 %v917, 0.0
      %v1026 = vmax.f32 %v920, 0.0
      %v1027 = vmax.f32 %v925, 0.0
      %v1028 = vmax.f32 %v928, 0.0
      %v1029 = vmax.f32 %v933, 0.0
      %v1030 = vmax.f32 %v936, 0.0
      %v1031 = vmax.f32 %v941, 0.0
      %v1032 = vmax.f32 %v944, 0.0
      %v1033 = vmax.f32 %v949, 0.0
      %v1034 = vmax.f32 %v952, 0.0
      %v1035 = vmax.f32 %v957, 0.0
      %v1036 = vmax.f32 %v960, 0.0
      %v1037 = vmax.f32 %v965, 0.0
      %v1038 = vmax.f32 %v968, 0.0
      %v1039 = vmax.f32 %v973, 0.0
      %v1040 = vmax.f32 %v976, 0.0
      %v1041 = vmax.f32 %v981, 0.0
      %v1042 = vmax.f32 %v984, 0.0
      %v1043 = vmax.f32 %v989, 0.0
      %v1044 = vmax.f32 %v992, 0.0
      %v1045 = vmax.f32 %v997, 0.0
      %v1046 = vmax.f32 %v1000, 0.0
      %v1047 = vmax.f32 %v1005, 0.0
      %v1048 = vmax.f32 %v1008, 0.0
      %v1049 = vmax.f32 %v1013, 0.0
      %v1050 = vmax.f32 %v1016, 0.0
      %v1051 = vpack.c.bf16 %v1020, %v1019
      %v1052 = vpack.c.bf16 %v1022, %v1021
      %v1053 = vpack.c.bf16 %v1024, %v1023
      %v1054 = vpack.c.bf16 %v1026, %v1025
      %v1055 = vpack.c.bf16 %v1028, %v1027
      %v1056 = vpack.c.bf16 %v1030, %v1029
      %v1057 = vpack.c.bf16 %v1032, %v1031
      %v1058 = vpack.c.bf16 %v1034, %v1033
      %v1059 = vpack.c.bf16 %v1036, %v1035
      %v1060 = vpack.c.bf16 %v1038, %v1037
      %v1061 = vpack.c.bf16 %v1040, %v1039
      %v1062 = vpack.c.bf16 %v1042, %v1041
      %v1063 = vpack.c.bf16 %v1044, %v1043
      %v1064 = vpack.c.bf16 %v1046, %v1045
      %v1065 = vpack.c.bf16 %v1048, %v1047
      %v1066 = vpack.c.bf16 %v1050, %v1049
      %v1083 = vunpack.c.l.b16 %v1051
      %v1084 = vunpack.c.h.b16 %v1051
      %v1085 = vunpack.c.l.b16 %v1052
      %v1086 = vunpack.c.h.b16 %v1052
      %v1087 = vunpack.c.l.b16 %v1053
      %v1088 = vunpack.c.h.b16 %v1053
      %v1089 = vunpack.c.l.b16 %v1054
      %v1090 = vunpack.c.h.b16 %v1054
      %v1091 = vunpack.c.l.b16 %v1055
      %v1092 = vunpack.c.h.b16 %v1055
      %v1093 = vunpack.c.l.b16 %v1056
      %v1094 = vunpack.c.h.b16 %v1056
      %v1095 = vunpack.c.l.b16 %v1057
      %v1096 = vunpack.c.h.b16 %v1057
      %v1097 = vunpack.c.l.b16 %v1058
      %v1098 = vunpack.c.h.b16 %v1058
      %v1099 = vunpack.c.l.b16 %v1059
      %v1100 = vunpack.c.h.b16 %v1059
      %v1101 = vunpack.c.l.b16 %v1060
      %v1102 = vunpack.c.h.b16 %v1060
      %v1103 = vunpack.c.l.b16 %v1061
      %v1104 = vunpack.c.h.b16 %v1061
      %v1105 = vunpack.c.l.b16 %v1062
      %v1106 = vunpack.c.h.b16 %v1062
      %v1107 = vunpack.c.l.b16 %v1063
      %v1108 = vunpack.c.h.b16 %v1063
      %v1109 = vunpack.c.l.b16 %v1064
      %v1110 = vunpack.c.h.b16 %v1064
      %v1111 = vunpack.c.l.b16 %v1065
      %v1112 = vunpack.c.h.b16 %v1065
      %v1113 = vunpack.c.l.b16 %v1066
      %v1114 = vunpack.c.h.b16 %v1066
      %v1115 = vpack.c.b16 %v1083, %v1083
      %v1116 = vpack.c.b16 %v1084, %v1084
      %v1117 = vpack.c.b16 %v1085, %v1085
      %v1118 = vpack.c.b16 %v1086, %v1086
      %v1119 = vpack.c.b16 %v1087, %v1087
      %v1120 = vpack.c.b16 %v1088, %v1088
      %v1121 = vpack.c.b16 %v1089, %v1089
      %v1122 = vpack.c.b16 %v1090, %v1090
      %v1123 = vpack.c.b16 %v1091, %v1091
      %v1124 = vpack.c.b16 %v1092, %v1092
      %v1125 = vpack.c.b16 %v1093, %v1093
      %v1126 = vpack.c.b16 %v1094, %v1094
      %v1127 = vpack.c.b16 %v1095, %v1095
      %v1128 = vpack.c.b16 %v1096, %v1096
      %v1129 = vpack.c.b16 %v1097, %v1097
      %v1130 = vpack.c.b16 %v1098, %v1098
      %v1131 = vpack.c.b16 %v1099, %v1099
      %v1132 = vpack.c.b16 %v1100, %v1100
      %v1133 = vpack.c.b16 %v1101, %v1101
      %v1134 = vpack.c.b16 %v1102, %v1102
      %v1135 = vpack.c.b16 %v1103, %v1103
      %v1136 = vpack.c.b16 %v1104, %v1104
      %v1137 = vpack.c.b16 %v1105, %v1105
      %v1138 = vpack.c.b16 %v1106, %v1106
      %v1139 = vpack.c.b16 %v1107, %v1107
      %v1140 = vpack.c.b16 %v1108, %v1108
      %v1141 = vpack.c.b16 %v1109, %v1109
      %v1142 = vpack.c.b16 %v1110, %v1110
      %v1143 = vpack.c.b16 %v1111, %v1111
      %v1144 = vpack.c.b16 %v1112, %v1112
      %v1145 = vpack.c.b16 %v1113, %v1113
      %v1146 = vpack.c.b16 %v1114, %v1114
      %1179 = vst [vmem:[%s175] sm:$0xf] %v1115
      %1180 = vst [vmem:[%s175 + $0x4] sm:$0xf] %v1116
      %1181 = vst [vmem:[%s175 + $0x8] sm:$0xf] %v1117
      %1182 = vst [vmem:[%s175 + $0xc] sm:$0xf] %v1118
      %1183 = vst [vmem:[%s175 + $0x10] sm:$0xf] %v1119
      %1184 = vst [vmem:[%s175 + $0x14] sm:$0xf] %v1120
      %1185 = vst [vmem:[%s175 + $0x18] sm:$0xf] %v1121
      %1186 = vst [vmem:[%s175 + $0x1c] sm:$0xf] %v1122
      %1187 = vst [vmem:[%s175 + $0x20] sm:$0xf] %v1123
      %1188 = vst [vmem:[%s175 + $0x24] sm:$0xf] %v1124
      %1189 = vst [vmem:[%s175 + $0x28] sm:$0xf] %v1125
      %1190 = vst [vmem:[%s175 + $0x2c] sm:$0xf] %v1126
      %1191 = vst [vmem:[%s175 + $0x30] sm:$0xf] %v1127
      %1192 = vst [vmem:[%s175 + $0x34] sm:$0xf] %v1128
      %1193 = vst [vmem:[%s175 + $0x38] sm:$0xf] %v1129
      %1194 = vst [vmem:[%s175 + $0x3c] sm:$0xf] %v1130
      %1195 = vst [vmem:[%s175 + $0x40] sm:$0xf] %v1131
      %1196 = vst [vmem:[%s175 + $0x44] sm:$0xf] %v1132
      %1197 = vst [vmem:[%s175 + $0x48] sm:$0xf] %v1133
      %1198 = vst [vmem:[%s175 + $0x4c] sm:$0xf] %v1134
      %1199 = vst [vmem:[%s175 + $0x50] sm:$0xf] %v1135
      %1200 = vst [vmem:[%s175 + $0x54] sm:$0xf] %v1136
      %1201 = vst [vmem:[%s175 + $0x58] sm:$0xf] %v1137
      %1202 = vst [vmem:[%s175 + $0x5c] sm:$0xf] %v1138
      %1203 = vst [vmem:[%s175 + $0x60] sm:$0xf] %v1139
      %1204 = vst [vmem:[%s175 + $0x64] sm:$0xf] %v1140
      %1205 = vst [vmem:[%s175 + $0x68] sm:$0xf] %v1141
      %1206 = vst [vmem:[%s175 + $0x6c] sm:$0xf] %v1142
      %1207 = vst [vmem:[%s175 + $0x70] sm:$0xf] %v1143
      %1208 = vst [vmem:[%s175 + $0x74] sm:$0xf] %v1144
      %1209 = vst [vmem:[%s175 + $0x78] sm:$0xf] %v1145
      %1210 = vst [vmem:[%s175 + $0x7c] sm:$0xf] %v1146
      %s1211 = smul.u32 32, %s14
      %p1212 = scmp.lt.s32.totalorder %s1211, 63
      %s1213 = scalar_select %p1212, %s1211, 63
      %s1214 = smul.addr %s1213, 4
      %s1215 = scalar_lea.vmem %s3, %s1214
      // Predicated region
      $region33: #{asff_level1_forward.7} parent=31 // pred_check
        %p1216 = pneg %p100
      $region34: #{asff_level1_forward.7} parent=31 // pred_check_branch
        %1218 = sbr.rel (%p1216) target = $region36
      $region35: #{asff_level1_forward.7} parent=31 // pred_region
        %s1219 = smul.u32 32, %s14
      $region36: #{asff_level1_forward.7} parent=31 // pred_fallthru
        _
    $region32: #{asff_level1_forward.7} parent=5 // pred_fallthru
      _
    %p1220 = scmp.le.s32.totalorder 2, %s9
    // Predicated region
    $region37: #{asff_level1_forward.7} parent=5 // pred_check
      %p1221 = pneg %p1220
    $region38: #{asff_level1_forward.7} parent=5 // pred_check_branch
      %1223 = sbr.rel (%p1221) target = $region40
    $region39: #{asff_level1_forward.7} parent=5 // pred_region
      %s1224 = ssub.s32 %s9, 2
      // Predicated region
      $region41: #{asff_level1_forward.7} parent=39 // pred_check
        %p1225 = pneg %p106
      $region42: #{asff_level1_forward.7} parent=39 // pred_check_branch
        %1227 = sbr.rel (%p1225) target = $region44
      $region43: #{asff_level1_forward.7} parent=39 // pred_region
        %s1228 = smul.u32 32, %s15
        %p1229 = scmp.lt.s32.totalorder %s1228, 63
        %s1230 = scalar_select %p1229, %s1228, 63
        %s1231 = smul.addr %s1230, 4
        %s1232 = scalar_lea.vmem %s3, %s1231
      $region44: #{asff_level1_forward.7} parent=39 // pred_fallthru
        _
    $region40: #{asff_level1_forward.7} parent=5 // pred_fallthru
      _
  $region6: #{asff_level1_forward.7} parent=0 // loop_footer
    %s13 = sadd.s32 1, %s9
  $region7: #{asff_level1_forward.7} parent=0 // loop_footer_branch
    %8 = sbr.rel target = $region3
  $region8: #{asff_level1_forward.7} parent=0 // loop_exit
    _

// kernel: asff_level1_forward.6
$region0: #{asff_level1_forward.6}
  #allocation0 [shape = 'u32[]', space=smem, size = 0x4, offset = 0x4, fixed_abs, tag = 'smem constant byte address 0x4 - core index']
  #allocation1 [shape = 'u32[144,128]{1,0:T(1,128)}', space=vmem, size = 0x12000, scoped, tag = 'internal scratch']
  %s0 = inlined_call_operand.vmem [shape: bf16[512,640], index: 0, kind: input, shape index: {}]
  %s1 = inlined_call_operand.vmem [shape: bf16[640,128], index: 1, kind: input, shape index: {}]
  %s2 = inlined_call_operand.vmem [shape: f32[1,128], index: 2, kind: input, shape index: {}]
  %s3 = inlined_call_operand.vmem [shape: bf16[512,128], index: 3, kind: output, shape index: {}]
  %s4 = sld [smem:[#allocation0]]
  $region45: #{asff_level1_forward.6} parent=0
    _
  %s6 = ssub.s32 1, %s4
  %s7 = scalar_select 0, %s6, %s4
  loop: start=0, step=1, limit=4
  $region2: #{asff_level1_forward.6} parent=0 // loop_pre_header
    _
  $region3: #{asff_level1_forward.6} parent=0 // loop_header
    %s9 = sphi 0, %s13
    %p10 = scmp.ge.s32.totalorder %s9, 4
    %s19 = sphi 0, %s21
    %s22 = sphi 0, %s19
    %s23 = sphi 0, %s22
    %s39 = sphi 0, %s23
    %s43 = sphi 0, %s43
    %s45 = sphi 0, %s43
    %s46 = sphi 0, %s45
    %s60 = sphi 0, %s46
    %s64 = sphi 0, %s64
    %s66 = sphi 0, %s64
    %s67 = sphi 0, %s66
    %s81 = sphi 0, %s67
    %s87 = sphi 0, %s89
    %s90 = sphi 0, %s87
    %s91 = sphi 0, %s90
    %s107 = sphi 0, %s91
  $region4: #{asff_level1_forward.6} parent=0 // loop_header_branch
    %12 = sbr.rel (%p10) target = $region8
  $region5: #{asff_level1_forward.6} parent=0 // loop_body
    %s14 = ssub.s32 %s9, 1
    %s15 = ssub.s32 %s9, 2
    %s16 = sadd.s32 %s9, 1
    %s17 = ssub.s32 %s9, %s16
    %p18 = scmp.eq.s32.totalorder %s17, 0
    %s20 = sadd.s32 %s19, 1
    %s21 = scalar_select %p18, %s19, %s20
    %p24 = pneg %p18
    %p25 = scmp.eq.s32.totalorder %s9, 1
    %p26 = por %p24, %p25
    %p27 = scmp.ne.s32.totalorder %s19, %s22
    %p28 = scmp.eq.s32.totalorder %s9, 0
    %p29 = por %p27, %p28
    %p30 = scmp.ne.s32.totalorder %s19, %s22
    %p31 = scmp.eq.s32.totalorder %s14, 1
    %p32 = por %p30, %p31
    %p33 = scmp.ne.s32.totalorder %s22, %s23
    %p34 = scmp.eq.s32.totalorder %s14, 0
    %p35 = por %p33, %p34
    %p36 = scmp.ne.s32.totalorder %s22, %s23
    %p37 = scmp.eq.s32.totalorder %s15, 1
    %p38 = por %p36, %p37
    %p40 = scmp.ne.s32.totalorder %s23, %s39
    %p41 = scmp.eq.s32.totalorder %s15, 0
    %p42 = por %p40, %p41
    %s44 = sadd.s32 %s43, 1
    %p47 = scmp.eq.s32.totalorder %s9, 1
    %p48 = scmp.ne.s32.totalorder %s43, %s45
    %p49 = scmp.eq.s32.totalorder %s9, 0
    %p50 = por %p48, %p49
    %p51 = scmp.ne.s32.totalorder %s43, %s45
    %p52 = scmp.eq.s32.totalorder %s14, 1
    %p53 = por %p51, %p52
    %p54 = scmp.ne.s32.totalorder %s45, %s46
    %p55 = scmp.eq.s32.totalorder %s14, 0
    %p56 = por %p54, %p55
    %p57 = scmp.ne.s32.totalorder %s45, %s46
    %p58 = scmp.eq.s32.totalorder %s15, 1
    %p59 = por %p57, %p58
    %p61 = scmp.ne.s32.totalorder %s46, %s60
    %p62 = scmp.eq.s32.totalorder %s15, 0
    %p63 = por %p61, %p62
    %s65 = sadd.s32 %s64, 1
    %p68 = scmp.eq.s32.totalorder %s9, 1
    %p69 = scmp.ne.s32.totalorder %s64, %s66
    %p70 = scmp.eq.s32.totalorder %s9, 0
    %p71 = por %p69, %p70
    %p72 = scmp.ne.s32.totalorder %s64, %s66
    %p73 = scmp.eq.s32.totalorder %s14, 1
    %p74 = por %p72, %p73
    %p75 = scmp.ne.s32.totalorder %s66, %s67
    %p76 = scmp.eq.s32.totalorder %s14, 0
    %p77 = por %p75, %p76
    %p78 = scmp.ne.s32.totalorder %s66, %s67
    %p79 = scmp.eq.s32.totalorder %s15, 1
    %p80 = por %p78, %p79
    %p82 = scmp.ne.s32.totalorder %s67, %s81
    %p83 = scmp.eq.s32.totalorder %s15, 0
    %p84 = por %p82, %p83
    %s85 = ssub.s32 %s9, %s16
    %p86 = scmp.eq.s32.totalorder %s85, 0
    %s88 = sadd.s32 %s87, 1
    %s89 = scalar_select %p86, %s87, %s88
    %p92 = pneg %p86
    %p93 = scmp.eq.s32.totalorder %s9, 1
    %p94 = por %p92, %p93
    %p95 = scmp.ne.s32.totalorder %s87, %s90
    %p96 = scmp.eq.s32.totalorder %s9, 0
    %p97 = por %p95, %p96
    %p98 = scmp.ne.s32.totalorder %s87, %s90
    %p99 = scmp.eq.s32.totalorder %s14, 1
    %p100 = por %p98, %p99
    %p101 = scmp.ne.s32.totalorder %s90, %s91
    %p102 = scmp.eq.s32.totalorder %s14, 0
    %p103 = por %p101, %p102
    %p104 = scmp.ne.s32.totalorder %s90, %s91
    %p105 = scmp.eq.s32.totalorder %s15, 1
    %p106 = por %p104, %p105
    %p108 = scmp.ne.s32.totalorder %s91, %s107
    %p109 = scmp.eq.s32.totalorder %s15, 0
    %p110 = por %p108, %p109
    %p111 = scmp.le.s32.totalorder 1, %s9
    %p112 = scmp.lt.s32.totalorder %s9, 3
    %p113 = pnand %p111, %p112
    %p114 = pneg %p113
    // Predicated region
    $region9: #{asff_level1_forward.6} parent=5 // pred_check
      _
    $region10: #{asff_level1_forward.6} parent=5 // pred_check_branch
      %116 = sbr.rel (%p113) target = $region12
    $region11: #{asff_level1_forward.6} parent=5 // pred_region
      %s117 = ssub.s32 %s9, 1
      // Predicated region
      $region13: #{asff_level1_forward.6} parent=11 // pred_check
        %p118 = pneg %p56
      $region14: #{asff_level1_forward.6} parent=11 // pred_check_branch
        %120 = sbr.rel (%p118) target = $region16
      $region15: #{asff_level1_forward.6} parent=11 // pred_region
        _
      $region16: #{asff_level1_forward.6} parent=11 // pred_fallthru
        _
      // Predicated region
      $region17: #{asff_level1_forward.6} parent=11 // pred_check
        %p121 = pneg %p77
      $region18: #{asff_level1_forward.6} parent=11 // pred_check_branch
        %123 = sbr.rel (%p121) target = $region20
      $region19: #{asff_level1_forward.6} parent=11 // pred_region
        _
      $region20: #{asff_level1_forward.6} parent=11 // pred_fallthru
        _
    $region12: #{asff_level1_forward.6} parent=5 // pred_fallthru
      _
    %p124 = scmp.lt.s32.totalorder %s9, 2
    // Predicated region
    $region21: #{asff_level1_forward.6} parent=5 // pred_check
      %p125 = pneg %p124
    $region22: #{asff_level1_forward.6} parent=5 // pred_check_branch
      %127 = sbr.rel (%p125) target = $region24
    $region23: #{asff_level1_forward.6} parent=5 // pred_region
      // Predicated region
      $region25: #{asff_level1_forward.6} parent=23 // pred_check
        %p128 = pneg %p29
      $region26: #{asff_level1_forward.6} parent=23 // pred_check_branch
        %130 = sbr.rel (%p128) target = $region28
      $region27: #{asff_level1_forward.6} parent=23 // pred_region
        %s131 = smul.u32 32, %s9
        %p132 = scmp.lt.s32.totalorder %s131, 63
        %s133 = scalar_select %p132, %s131, 63
        %s134 = smul.addr %s133, 5
        %s135 = smul.addr %s134, 4
        %s136 = scalar_lea.vmem %s0, %s135
        %s137 = smul.u32 32, %s9
      $region28: #{asff_level1_forward.6} parent=23 // pred_fallthru
        _
    $region24: #{asff_level1_forward.6} parent=5 // pred_fallthru
      _
    %p138 = scmp.le.s32.totalorder 1, %s9
    %p139 = scmp.lt.s32.totalorder %s9, 3
    %p140 = pnand %p138, %p139
    %p141 = pneg %p140
    // Predicated region
    $region29: #{asff_level1_forward.6} parent=5 // pred_check
      _
    $region30: #{asff_level1_forward.6} parent=5 // pred_check_branch
      %143 = sbr.rel (%p140) target = $region32
    $region31: #{asff_level1_forward.6} parent=5 // pred_region
      %s144 = ssub.s32 %s9, 1
      %s145 = smul.u32 32, %s14
      %p146 = scmp.lt.s32.totalorder %s145, 63
      %s147 = scalar_select %p146, %s145, 63
      %s148 = smul.addr %s147, 5
      %s149 = smul.addr %s148, 4
      %s150 = scalar_lea.vmem %s0, %s149
      %p151 = pneg %p35
      %p152 = pneg %p32
      %p153 = pneg %p56
      %p154 = pneg %p53
      %p155 = pneg %p77
      %p156 = pneg %p74
      %p157 = pneg %p103
      %p158 = pneg %p100
      %s159 = smul.u32 32, %s14
      %p160 = scmp.lt.s32.totalorder %s159, 63
      %s161 = scalar_select %p160, %s159, 63
      %s162 = smul.addr %s161, 4
      %s163 = scalar_lea.vmem %s3, %s162
      %s164 = smul.u32 32, %s14
      %p165 = scmp.lt.s32.totalorder %s164, 63
      %s166 = scalar_select %p165, %s164, 63
      %s167 = smul.addr %s166, 5
      %s168 = smul.addr %s167, 4
      %s169 = scalar_lea.vmem %s0, %s168
      %s170 = smul.u32 32, %s14
      %s171 = smul.u32 32, %s14
      %p172 = scmp.lt.s32.totalorder %s171, 63
      %s173 = scalar_select %p172, %s171, 63
      %s174 = smul.addr %s173, 4
      %s175 = scalar_lea.vmem %s3, %s174
      %s176 = smul.u32 32, %s14
      %v178 = vld [vmem:[%s169] sm:$0xff]
      %v179 = vld [vmem:[%s169 + $0x8] sm:$0xff]
      %v180 = vld [vmem:[%s169 + $0x10] sm:$0xf]
      %v181 = vld [vmem:[%s169 + $0x14] sm:$0xff]
      %v182 = vld [vmem:[%s169 + $0x1c] sm:$0xff]
      %v183 = vld [vmem:[%s169 + $0x24] sm:$0xf]
      %v184 = vld [vmem:[%s169 + $0x28] sm:$0xff]
      %v185 = vld [vmem:[%s169 + $0x30] sm:$0xff]
      %v186 = vld [vmem:[%s169 + $0x38] sm:$0xf]
      %v187 = vld [vmem:[%s169 + $0x3c] sm:$0xff]
      %v188 = vld [vmem:[%s169 + $0x44] sm:$0xff]
      %v189 = vld [vmem:[%s169 + $0x4c] sm:$0xf]
      %v190 = vld [vmem:[%s169 + $0x50] sm:$0xff]
      %v191 = vld [vmem:[%s169 + $0x58] sm:$0xff]
      %v192 = vld [vmem:[%s169 + $0x60] sm:$0xf]
      %v193 = vld [vmem:[%s169 + $0x64] sm:$0xff]
      %v194 = vld [vmem:[%s169 + $0x6c] sm:$0xff]
      %v195 = vld [vmem:[%s169 + $0x74] sm:$0xf]
      %v196 = vld [vmem:[%s169 + $0x78] sm:$0xff]
      %v197 = vld [vmem:[%s169 + $0x80] sm:$0xff]
      %v198 = vld [vmem:[%s169 + $0x88] sm:$0xf]
      %v199 = vld [vmem:[%s169 + $0x8c] sm:$0xff]
      %v200 = vld [vmem:[%s169 + $0x94] sm:$0xff]
      %v201 = vld [vmem:[%s169 + $0x9c] sm:$0xf]
      %v202 = vld [vmem:[%s169 + $0xa0] sm:$0xff]
      %v203 = vld [vmem:[%s169 + $0xa8] sm:$0xff]
      %v204 = vld [vmem:[%s169 + $0xb0] sm:$0xf]
      %v205 = vld [vmem:[%s169 + $0xb4] sm:$0xff]
      %v206 = vld [vmem:[%s169 + $0xbc] sm:$0xff]
      %v207 = vld [vmem:[%s169 + $0xc4] sm:$0xf]
      %v208 = vld [vmem:[%s169 + $0xc8] sm:$0xff]
      %v209 = vld [vmem:[%s169 + $0xd0] sm:$0xff]
      %v210 = vld [vmem:[%s169 + $0xd8] sm:$0xf]
      %v211 = vld [vmem:[%s169 + $0xdc] sm:$0xff]
      %v212 = vld [vmem:[%s169 + $0xe4] sm:$0xff]
      %v213 = vld [vmem:[%s169 + $0xec] sm:$0xf]
      %v214 = vld [vmem:[%s169 + $0xf0] sm:$0xff]
      %v215 = vld [vmem:[%s169 + $0xf8] sm:$0xff]
      %v216 = vld [vmem:[%s169 + $0x100] sm:$0xf]
      %v217 = vld [vmem:[%s169 + $0x104] sm:$0xff]
      %v218 = vld [vmem:[%s169 + $0x10c] sm:$0xff]
      %v219 = vld [vmem:[%s169 + $0x114] sm:$0xf]
      %v220 = vld [vmem:[%s169 + $0x118] sm:$0xff]
      %v221 = vld [vmem:[%s169 + $0x120] sm:$0xff]
      %v222 = vld [vmem:[%s169 + $0x128] sm:$0xf]
      %v223 = vld [vmem:[%s169 + $0x12c] sm:$0xff]
      %v224 = vld [vmem:[%s169 + $0x134] sm:$0xff]
      %v225 = vld [vmem:[%s169 + $0x13c] sm:$0xf]
      %v226 = vld [vmem:[%s169 + $0x140] sm:$0xff]
      %v227 = vld [vmem:[%s169 + $0x148] sm:$0xff]
      %v228 = vld [vmem:[%s169 + $0x150] sm:$0xf]
      %v229 = vld [vmem:[%s169 + $0x154] sm:$0xff]
      %v230 = vld [vmem:[%s169 + $0x15c] sm:$0xff]
      %v231 = vld [vmem:[%s169 + $0x164] sm:$0xf]
      %v232 = vld [vmem:[%s169 + $0x168] sm:$0xff]
      %v233 = vld [vmem:[%s169 + $0x170] sm:$0xff]
      %v234 = vld [vmem:[%s169 + $0x178] sm:$0xf]
      %v235 = vld [vmem:[%s169 + $0x17c] sm:$0xff]
      %v236 = vld [vmem:[%s169 + $0x184] sm:$0xff]
      %v237 = vld [vmem:[%s169 + $0x18c] sm:$0xf]
      %v238 = vld [vmem:[%s169 + $0x190] sm:$0xff]
      %v239 = vld [vmem:[%s169 + $0x198] sm:$0xff]
      %v240 = vld [vmem:[%s169 + $0x1a0] sm:$0xf]
      %v241 = vld [vmem:[%s169 + $0x1a4] sm:$0xff]
      %v242 = vld [vmem:[%s169 + $0x1ac] sm:$0xff]
      %v243 = vld [vmem:[%s169 + $0x1b4] sm:$0xf]
      %v244 = vld [vmem:[%s169 + $0x1b8] sm:$0xff]
      %v245 = vld [vmem:[%s169 + $0x1c0] sm:$0xff]
      %v246 = vld [vmem:[%s169 + $0x1c8] sm:$0xf]
      %v247 = vld [vmem:[%s169 + $0x1cc] sm:$0xff]
      %v248 = vld [vmem:[%s169 + $0x1d4] sm:$0xff]
      %v249 = vld [vmem:[%s169 + $0x1dc] sm:$0xf]
      %v250 = vld [vmem:[%s169 + $0x1e0] sm:$0xff]
      %v251 = vld [vmem:[%s169 + $0x1e8] sm:$0xff]
      %v252 = vld [vmem:[%s169 + $0x1f0] sm:$0xf]
      %v253 = vld [vmem:[%s169 + $0x1f4] sm:$0xff]
      %v254 = vld [vmem:[%s169 + $0x1fc] sm:$0xff]
      %v255 = vld [vmem:[%s169 + $0x204] sm:$0xf]
      %v256 = vld [vmem:[%s169 + $0x208] sm:$0xff]
      %v257 = vld [vmem:[%s169 + $0x210] sm:$0xff]
      %v258 = vld [vmem:[%s169 + $0x218] sm:$0xf]
      %v259 = vld [vmem:[%s169 + $0x21c] sm:$0xff]
      %v260 = vld [vmem:[%s169 + $0x224] sm:$0xff]
      %v261 = vld [vmem:[%s169 + $0x22c] sm:$0xf]
      %v262 = vld [vmem:[%s169 + $0x230] sm:$0xff]
      %v263 = vld [vmem:[%s169 + $0x238] sm:$0xff]
      %v264 = vld [vmem:[%s169 + $0x240] sm:$0xf]
      %v265 = vld [vmem:[%s169 + $0x244] sm:$0xff]
      %v266 = vld [vmem:[%s169 + $0x24c] sm:$0xff]
      %v267 = vld [vmem:[%s169 + $0x254] sm:$0xf]
      %v268 = vld [vmem:[%s169 + $0x258] sm:$0xff]
      %v269 = vld [vmem:[%s169 + $0x260] sm:$0xff]
      %v270 = vld [vmem:[%s169 + $0x268] sm:$0xf]
      %v271 = vld [vmem:[%s169 + $0x26c] sm:$0xff]
      %v272 = vld [vmem:[%s169 + $0x274] sm:$0xff]
      %v273 = vld [vmem:[%s169 + $0x27c] sm:$0xf]
      %v274 = vld [vmem:[%s1] sm:$0xf]
      %v275 = vld [vmem:[%s1 + $0x4] sm:$0xf]
      %v276 = vld [vmem:[%s1 + $0x8] sm:$0xf]
      %v277 = vld [vmem:[%s1 + $0xc] sm:$0xf]
      %v278 = vld [vmem:[%s1 + $0x10] sm:$0xf]
      %v279 = vld [vmem:[%s1 + $0x14] sm:$0xf]
      %v280 = vld [vmem:[%s1 + $0x18] sm:$0xf]
      %v281 = vld [vmem:[%s1 + $0x1c] sm:$0xf]
      %v282 = vld [vmem:[%s1 + $0x20] sm:$0xf]
      %v283 = vld [vmem:[%s1 + $0x24] sm:$0xf]
      %v284 = vld [vmem:[%s1 + $0x28] sm:$0xf]
      %v285 = vld [vmem:[%s1 + $0x2c] sm:$0xf]
      %v286 = vld [vmem:[%s1 + $0x30] sm:$0xf]
      %v287 = vld [vmem:[%s1 + $0x34] sm:$0xf]
      %v288 = vld [vmem:[%s1 + $0x38] sm:$0xf]
      %v289 = vld [vmem:[%s1 + $0x3c] sm:$0xf]
      %v290 = vld [vmem:[%s1 + $0x40] sm:$0xf]
      %v291 = vld [vmem:[%s1 + $0x44] sm:$0xf]
      %v292 = vld [vmem:[%s1 + $0x48] sm:$0xf]
      %v293 = vld [vmem:[%s1 + $0x4c] sm:$0xf]
      %v294 = vld [vmem:[%s1 + $0x50] sm:$0xf]
      %v295 = vld [vmem:[%s1 + $0x54] sm:$0xf]
      %v296 = vld [vmem:[%s1 + $0x58] sm:$0xf]
      %v297 = vld [vmem:[%s1 + $0x5c] sm:$0xf]
      %v298 = vld [vmem:[%s1 + $0x60] sm:$0xf]
      %v299 = vld [vmem:[%s1 + $0x64] sm:$0xf]
      %v300 = vld [vmem:[%s1 + $0x68] sm:$0xf]
      %v301 = vld [vmem:[%s1 + $0x6c] sm:$0xf]
      %v302 = vld [vmem:[%s1 + $0x70] sm:$0xf]
      %v303 = vld [vmem:[%s1 + $0x74] sm:$0xf]
      %v304 = vld [vmem:[%s1 + $0x78] sm:$0xf]
      %v305 = vld [vmem:[%s1 + $0x7c] sm:$0xf]
      %v306 = vld [vmem:[%s1 + $0x80] sm:$0xf]
      %v307 = vld [vmem:[%s1 + $0x84] sm:$0xf]
      %v308 = vld [vmem:[%s1 + $0x88] sm:$0xf]
      %v309 = vld [vmem:[%s1 + $0x8c] sm:$0xf]
      %v310 = vld [vmem:[%s1 + $0x90] sm:$0xf]
      %v311 = vld [vmem:[%s1 + $0x94] sm:$0xf]
      %v312 = vld [vmem:[%s1 + $0x98] sm:$0xf]
      %v313 = vld [vmem:[%s1 + $0x9c] sm:$0xf]
      %v314 = vld [vmem:[%s1 + $0xa0] sm:$0xf]
      %v315 = vld [vmem:[%s1 + $0xa4] sm:$0xf]
      %v316 = vld [vmem:[%s1 + $0xa8] sm:$0xf]
      %v317 = vld [vmem:[%s1 + $0xac] sm:$0xf]
      %v318 = vld [vmem:[%s1 + $0xb0] sm:$0xf]
      %v319 = vld [vmem:[%s1 + $0xb4] sm:$0xf]
      %v320 = vld [vmem:[%s1 + $0xb8] sm:$0xf]
      %v321 = vld [vmem:[%s1 + $0xbc] sm:$0xf]
      %v322 = vld [vmem:[%s1 + $0xc0] sm:$0xf]
      %v323 = vld [vmem:[%s1 + $0xc4] sm:$0xf]
      %v324 = vld [vmem:[%s1 + $0xc8] sm:$0xf]
      %v325 = vld [vmem:[%s1 + $0xcc] sm:$0xf]
      %v326 = vld [vmem:[%s1 + $0xd0] sm:$0xf]
      %v327 = vld [vmem:[%s1 + $0xd4] sm:$0xf]
      %v328 = vld [vmem:[%s1 + $0xd8] sm:$0xf]
      %v329 = vld [vmem:[%s1 + $0xdc] sm:$0xf]
      %v330 = vld [vmem:[%s1 + $0xe0] sm:$0xf]
      %v331 = vld [vmem:[%s1 + $0xe4] sm:$0xf]
      %v332 = vld [vmem:[%s1 + $0xe8] sm:$0xf]
      %v333 = vld [vmem:[%s1 + $0xec] sm:$0xf]
      %v334 = vld [vmem:[%s1 + $0xf0] sm:$0xf]
      %v335 = vld [vmem:[%s1 + $0xf4] sm:$0xf]
      %v336 = vld [vmem:[%s1 + $0xf8] sm:$0xf]
      %v337 = vld [vmem:[%s1 + $0xfc] sm:$0xf]
      %v338 = vld [vmem:[%s1 + $0x100] sm:$0xf]
      %v339 = vld [vmem:[%s1 + $0x104] sm:$0xf]
      %v340 = vld [vmem:[%s1 + $0x108] sm:$0xf]
      %v341 = vld [vmem:[%s1 + $0x10c] sm:$0xf]
      %v342 = vld [vmem:[%s1 + $0x110] sm:$0xf]
      %v343 = vld [vmem:[%s1 + $0x114] sm:$0xf]
      %v344 = vld [vmem:[%s1 + $0x118] sm:$0xf]
      %v345 = vld [vmem:[%s1 + $0x11c] sm:$0xf]
      %v346 = vld [vmem:[%s1 + $0x120] sm:$0xf]
      %v347 = vld [vmem:[%s1 + $0x124] sm:$0xf]
      %v348 = vld [vmem:[%s1 + $0x128] sm:$0xf]
      %v349 = vld [vmem:[%s1 + $0x12c] sm:$0xf]
      %v350 = vld [vmem:[%s1 + $0x130] sm:$0xf]
      %v351 = vld [vmem:[%s1 + $0x134] sm:$0xf]
      %v352 = vld [vmem:[%s1 + $0x138] sm:$0xf]
      %v353 = vld [vmem:[%s1 + $0x13c] sm:$0xf]
      %v354 = vld [vmem:[%s2] sm:$0x1]
      %v356 = vlaneseq
      %v357 = vshrl.u32 %v356, 7
      %v358 = vsub.s32 0, %v357
      %v359 = vrot.slane %v354, %v358
      %v457 = vunpack.c.l.b16 %v178
      %v458 = vunpack.c.h.b16 %v178
      %v459 = vunpack.c.l.b16 %v179
      %v460 = vunpack.c.h.b16 %v179
      %v461 = vunpack.c.l.b16 %v180
      %v462 = vunpack.c.l.b16 %v181
      %v463 = vunpack.c.h.b16 %v181
      %v464 = vunpack.c.l.b16 %v182
      %v465 = vunpack.c.h.b16 %v182
      %v466 = vunpack.c.l.b16 %v183
      %v467 = vunpack.c.l.b16 %v184
      %v468 = vunpack.c.h.b16 %v184
      %v469 = vunpack.c.l.b16 %v185
      %v470 = vunpack.c.h.b16 %v185
      %v471 = vunpack.c.l.b16 %v186
      %v472 = vunpack.c.l.b16 %v187
      %v473 = vunpack.c.h.b16 %v187
      %v474 = vunpack.c.l.b16 %v188
      %v475 = vunpack.c.h.b16 %v188
      %v476 = vunpack.c.l.b16 %v189
      %v477 = vunpack.c.l.b16 %v190
      %v478 = vunpack.c.h.b16 %v190
      %v479 = vunpack.c.l.b16 %v191
      %v480 = vunpack.c.h.b16 %v191
      %v481 = vunpack.c.l.b16 %v192
      %v482 = vunpack.c.l.b16 %v193
      %v483 = vunpack.c.h.b16 %v193
      %v484 = vunpack.c.l.b16 %v194
      %v485 = vunpack.c.h.b16 %v194
      %v486 = vunpack.c.l.b16 %v195
      %v487 = vunpack.c.l.b16 %v196
      %v488 = vunpack.c.h.b16 %v196
      %v489 = vunpack.c.l.b16 %v197
      %v490 = vunpack.c.h.b16 %v197
      %v491 = vunpack.c.l.b16 %v198
      %v492 = vunpack.c.l.b16 %v199
      %v493 = vunpack.c.h.b16 %v199
      %v494 = vunpack.c.l.b16 %v200
      %v495 = vunpack.c.h.b16 %v200
      %v496 = vunpack.c.l.b16 %v201
      %v497 = vunpack.c.l.b16 %v202
      %v498 = vunpack.c.h.b16 %v202
      %v499 = vunpack.c.l.b16 %v203
      %v500 = vunpack.c.h.b16 %v203
      %v501 = vunpack.c.l.b16 %v204
      %v502 = vunpack.c.l.b16 %v205
      %v503 = vunpack.c.h.b16 %v205
      %v504 = vunpack.c.l.b16 %v206
      %v505 = vunpack.c.h.b16 %v206
      %v506 = vunpack.c.l.b16 %v207
      %v507 = vunpack.c.l.b16 %v208
      %v508 = vunpack.c.h.b16 %v208
      %v509 = vunpack.c.l.b16 %v209
      %v510 = vunpack.c.h.b16 %v209
      %v511 = vunpack.c.l.b16 %v210
      %v512 = vunpack.c.l.b16 %v211
      %v513 = vunpack.c.h.b16 %v211
      %v514 = vunpack.c.l.b16 %v212
      %v515 = vunpack.c.h.b16 %v212
      %v516 = vunpack.c.l.b16 %v213
      %v517 = vunpack.c.l.b16 %v214
      %v518 = vunpack.c.h.b16 %v214
      %v519 = vunpack.c.l.b16 %v215
      %v520 = vunpack.c.h.b16 %v215
      %v521 = vunpack.c.l.b16 %v216
      %v522 = vunpack.c.l.b16 %v217
      %v523 = vunpack.c.h.b16 %v217
      %v524 = vunpack.c.l.b16 %v218
      %v525 = vunpack.c.h.b16 %v218
      %v526 = vunpack.c.l.b16 %v219
      %v527 = vunpack.c.l.b16 %v220
      %v528 = vunpack.c.h.b16 %v220
      %v529 = vunpack.c.l.b16 %v221
      %v530 = vunpack.c.h.b16 %v221
      %v531 = vunpack.c.l.b16 %v222
      %v532 = vunpack.c.l.b16 %v223
      %v533 = vunpack.c.h.b16 %v223
      %v534 = vunpack.c.l.b16 %v224
      %v535 = vunpack.c.h.b16 %v224
      %v536 = vunpack.c.l.b16 %v225
      %v537 = vunpack.c.l.b16 %v226
      %v538 = vunpack.c.h.b16 %v226
      %v539 = vunpack.c.l.b16 %v227
      %v540 = vunpack.c.h.b16 %v227
      %v541 = vunpack.c.l.b16 %v228
      %v542 = vunpack.c.l.b16 %v229
      %v543 = vunpack.c.h.b16 %v229
      %v544 = vunpack.c.l.b16 %v230
      %v545 = vunpack.c.h.b16 %v230
      %v546 = vunpack.c.l.b16 %v231
      %v547 = vunpack.c.l.b16 %v232
      %v548 = vunpack.c.h.b16 %v232
      %v549 = vunpack.c.l.b16 %v233
      %v550 = vunpack.c.h.b16 %v233
      %v551 = vunpack.c.l.b16 %v234
      %v552 = vunpack.c.l.b16 %v235
      %v553 = vunpack.c.h.b16 %v235
      %v554 = vunpack.c.l.b16 %v236
      %v555 = vunpack.c.h.b16 %v236
      %v556 = vunpack.c.l.b16 %v237
      %v557 = vunpack.c.l.b16 %v238
      %v558 = vunpack.c.h.b16 %v238
      %v559 = vunpack.c.l.b16 %v239
      %v560 = vunpack.c.h.b16 %v239
      %v561 = vunpack.c.l.b16 %v240
      %v562 = vunpack.c.l.b16 %v241
      %v563 = vunpack.c.h.b16 %v241
      %v564 = vunpack.c.l.b16 %v242
      %v565 = vunpack.c.h.b16 %v242
      %v566 = vunpack.c.l.b16 %v243
      %v567 = vunpack.c.l.b16 %v244
      %v568 = vunpack.c.h.b16 %v244
      %v569 = vunpack.c.l.b16 %v245
      %v570 = vunpack.c.h.b16 %v245
      %v571 = vunpack.c.l.b16 %v246
      %v572 = vunpack.c.l.b16 %v247
      %v573 = vunpack.c.h.b16 %v247
      %v574 = vunpack.c.l.b16 %v248
      %v575 = vunpack.c.h.b16 %v248
      %v576 = vunpack.c.l.b16 %v249
      %v577 = vunpack.c.l.b16 %v250
      %v578 = vunpack.c.h.b16 %v250
      %v579 = vunpack.c.l.b16 %v251
      %v580 = vunpack.c.h.b16 %v251
      %v581 = vunpack.c.l.b16 %v252
      %v582 = vunpack.c.l.b16 %v253
      %v583 = vunpack.c.h.b16 %v253
      %v584 = vunpack.c.l.b16 %v254
      %v585 = vunpack.c.h.b16 %v254
      %v586 = vunpack.c.l.b16 %v255
      %v587 = vunpack.c.l.b16 %v256
      %v588 = vunpack.c.h.b16 %v256
      %v589 = vunpack.c.l.b16 %v257
      %v590 = vunpack.c.h.b16 %v257
      %v591 = vunpack.c.l.b16 %v258
      %v592 = vunpack.c.l.b16 %v259
      %v593 = vunpack.c.h.b16 %v259
      %v594 = vunpack.c.l.b16 %v260
      %v595 = vunpack.c.h.b16 %v260
      %v596 = vunpack.c.l.b16 %v261
      %v597 = vunpack.c.l.b16 %v262
      %v598 = vunpack.c.h.b16 %v262
      %v599 = vunpack.c.l.b16 %v263
      %v600 = vunpack.c.h.b16 %v263
      %v601 = vunpack.c.l.b16 %v264
      %v602 = vunpack.c.l.b16 %v265
      %v603 = vunpack.c.h.b16 %v265
      %v604 = vunpack.c.l.b16 %v266
      %v605 = vunpack.c.h.b16 %v266
      %v606 = vunpack.c.l.b16 %v267
      %v607 = vunpack.c.l.b16 %v268
      %v608 = vunpack.c.h.b16 %v268
      %v609 = vunpack.c.l.b16 %v269
      %v610 = vunpack.c.h.b16 %v269
      %v611 = vunpack.c.l.b16 %v270
      %v612 = vunpack.c.l.b16 %v271
      %v613 = vunpack.c.h.b16 %v271
      %v614 = vunpack.c.l.b16 %v272
      %v615 = vunpack.c.h.b16 %v272
      %v616 = vunpack.c.l.b16 %v273
      %v617 = vpack.c.b16 %v462, %v457
      %v618 = vpack.c.b16 %v463, %v458
      %v619 = vpack.c.b16 %v464, %v459
      %v620 = vpack.c.b16 %v465, %v460
      %v621 = vpack.c.b16 %v466, %v461
      %v622 = vpack.c.b16 %v472, %v467
      %v623 = vpack.c.b16 %v473, %v468
      %v624 = vpack.c.b16 %v474, %v469
      %v625 = vpack.c.b16 %v475, %v470
      %v626 = vpack.c.b16 %v476, %v471
      %v627 = vpack.c.b16 %v482, %v477
      %v628 = vpack.c.b16 %v483, %v478
      %v629 = vpack.c.b16 %v484, %v479
      %v630 = vpack.c.b16 %v485, %v480
      %v631 = vpack.c.b16 %v486, %v481
      %v632 = vpack.c.b16 %v492, %v487
      %v633 = vpack.c.b16 %v493, %v488
      %v634 = vpack.c.b16 %v494, %v489
      %v635 = vpack.c.b16 %v495, %v490
      %v636 = vpack.c.b16 %v496, %v491
      %v637 = vpack.c.b16 %v502, %v497
      %v638 = vpack.c.b16 %v503, %v498
      %v639 = vpack.c.b16 %v504, %v499
      %v640 = vpack.c.b16 %v505, %v500
      %v641 = vpack.c.b16 %v506, %v501
      %v642 = vpack.c.b16 %v512, %v507
      %v643 = vpack.c.b16 %v513, %v508
      %v644 = vpack.c.b16 %v514, %v509
      %v645 = vpack.c.b16 %v515, %v510
      %v646 = vpack.c.b16 %v516, %v511
      %v647 = vpack.c.b16 %v522, %v517
      %v648 = vpack.c.b16 %v523, %v518
      %v649 = vpack.c.b16 %v524, %v519
      %v650 = vpack.c.b16 %v525, %v520
      %v651 = vpack.c.b16 %v526, %v521
      %v652 = vpack.c.b16 %v532, %v527
      %v653 = vpack.c.b16 %v533, %v528
      %v654 = vpack.c.b16 %v534, %v529
      %v655 = vpack.c.b16 %v535, %v530
      %v656 = vpack.c.b16 %v536, %v531
      %v657 = vpack.c.b16 %v542, %v537
      %v658 = vpack.c.b16 %v543, %v538
      %v659 = vpack.c.b16 %v544, %v539
      %v660 = vpack.c.b16 %v545, %v540
      %v661 = vpack.c.b16 %v546, %v541
      %v662 = vpack.c.b16 %v552, %v547
      %v663 = vpack.c.b16 %v553, %v548
      %v664 = vpack.c.b16 %v554, %v549
      %v665 = vpack.c.b16 %v555, %v550
      %v666 = vpack.c.b16 %v556, %v551
      %v667 = vpack.c.b16 %v562, %v557
      %v668 = vpack.c.b16 %v563, %v558
      %v669 = vpack.c.b16 %v564, %v559
      %v670 = vpack.c.b16 %v565, %v560
      %v671 = vpack.c.b16 %v566, %v561
      %v672 = vpack.c.b16 %v572, %v567
      %v673 = vpack.c.b16 %v573, %v568
      %v674 = vpack.c.b16 %v574, %v569
      %v675 = vpack.c.b16 %v575, %v570
      %v676 = vpack.c.b16 %v576, %v571
      %v677 = vpack.c.b16 %v582, %v577
      %v678 = vpack.c.b16 %v583, %v578
      %v679 = vpack.c.b16 %v584, %v579
      %v680 = vpack.c.b16 %v585, %v580
      %v681 = vpack.c.b16 %v586, %v581
      %v682 = vpack.c.b16 %v592, %v587
      %v683 = vpack.c.b16 %v593, %v588
      %v684 = vpack.c.b16 %v594, %v589
      %v685 = vpack.c.b16 %v595, %v590
      %v686 = vpack.c.b16 %v596, %v591
      %v687 = vpack.c.b16 %v602, %v597
      %v688 = vpack.c.b16 %v603, %v598
      %v689 = vpack.c.b16 %v604, %v599
      %v690 = vpack.c.b16 %v605, %v600
      %v691 = vpack.c.b16 %v606, %v601
      %v692 = vpack.c.b16 %v612, %v607
      %v693 = vpack.c.b16 %v613, %v608
      %v694 = vpack.c.b16 %v614, %v609
      %v695 = vpack.c.b16 %v615, %v610
      %v696 = vpack.c.b16 %v616, %v611
      %v857 = vunpack.c.l.b16 %v274
      %v858 = vunpack.c.l.b16 %v275
      %v859 = vunpack.c.l.b16 %v276
      %v860 = vunpack.c.l.b16 %v277
      %v861 = vunpack.c.l.b16 %v278
      %v862 = vunpack.c.l.b16 %v279
      %v863 = vunpack.c.l.b16 %v280
      %v864 = vunpack.c.l.b16 %v281
      %v865 = vunpack.c.l.b16 %v282
      %v866 = vunpack.c.l.b16 %v283
      %v867 = vunpack.c.l.b16 %v284
      %v868 = vunpack.c.l.b16 %v285
      %v869 = vunpack.c.l.b16 %v286
      %v870 = vunpack.c.l.b16 %v287
      %v871 = vunpack.c.l.b16 %v288
      %v872 = vunpack.c.l.b16 %v289
      %v873 = vunpack.c.l.b16 %v290
      %v874 = vunpack.c.l.b16 %v291
      %v875 = vunpack.c.l.b16 %v292
      %v876 = vunpack.c.l.b16 %v293
      %v877 = vunpack.c.l.b16 %v294
      %v878 = vunpack.c.l.b16 %v295
      %v879 = vunpack.c.l.b16 %v296
      %v880 = vunpack.c.l.b16 %v297
      %v881 = vunpack.c.l.b16 %v298
      %v882 = vunpack.c.l.b16 %v299
      %v883 = vunpack.c.l.b16 %v300
      %v884 = vunpack.c.l.b16 %v301
      %v885 = vunpack.c.l.b16 %v302
      %v886 = vunpack.c.l.b16 %v303
      %v887 = vunpack.c.l.b16 %v304
      %v888 = vunpack.c.l.b16 %v305
      %v889 = vunpack.c.l.b16 %v306
      %v890 = vunpack.c.l.b16 %v307
      %v891 = vunpack.c.l.b16 %v308
      %v892 = vunpack.c.l.b16 %v309
      %v893 = vunpack.c.l.b16 %v310
      %v894 = vunpack.c.l.b16 %v311
      %v895 = vunpack.c.l.b16 %v312
      %v896 = vunpack.c.l.b16 %v313
      %v897 = vunpack.c.l.b16 %v314
      %v898 = vunpack.c.l.b16 %v315
      %v899 = vunpack.c.l.b16 %v316
      %v900 = vunpack.c.l.b16 %v317
      %v901 = vunpack.c.l.b16 %v318
      %v902 = vunpack.c.l.b16 %v319
      %v903 = vunpack.c.l.b16 %v320
      %v904 = vunpack.c.l.b16 %v321
      %v905 = vunpack.c.l.b16 %v322
      %v906 = vunpack.c.l.b16 %v323
      %v907 = vunpack.c.l.b16 %v324
      %v908 = vunpack.c.l.b16 %v325
      %v909 = vunpack.c.l.b16 %v326
      %v910 = vunpack.c.l.b16 %v327
      %v911 = vunpack.c.l.b16 %v328
      %v912 = vunpack.c.l.b16 %v329
      %v913 = vunpack.c.l.b16 %v330
      %v914 = vunpack.c.l.b16 %v331
      %v915 = vunpack.c.l.b16 %v332
      %v916 = vunpack.c.l.b16 %v333
      %v917 = vunpack.c.l.b16 %v334
      %v918 = vunpack.c.l.b16 %v335
      %v919 = vunpack.c.l.b16 %v336
      %v920 = vunpack.c.l.b16 %v337
      %v921 = vunpack.c.l.b16 %v338
      %v922 = vunpack.c.l.b16 %v339
      %v923 = vunpack.c.l.b16 %v340
      %v924 = vunpack.c.l.b16 %v341
      %v925 = vunpack.c.l.b16 %v342
      %v926 = vunpack.c.l.b16 %v343
      %v927 = vunpack.c.l.b16 %v344
      %v928 = vunpack.c.l.b16 %v345
      %v929 = vunpack.c.l.b16 %v346
      %v930 = vunpack.c.l.b16 %v347
      %v931 = vunpack.c.l.b16 %v348
      %v932 = vunpack.c.l.b16 %v349
      %v933 = vunpack.c.l.b16 %v350
      %v934 = vunpack.c.l.b16 %v351
      %v935 = vunpack.c.l.b16 %v352
      %v936 = vunpack.c.l.b16 %v353
      %v937 = vpack.c.b16 %v858, %v857
      %v938 = vpack.c.b16 %v860, %v859
      %v939 = vpack.c.b16 %v862, %v861
      %v940 = vpack.c.b16 %v864, %v863
      %v941 = vpack.c.b16 %v866, %v865
      %v942 = vpack.c.b16 %v868, %v867
      %v943 = vpack.c.b16 %v870, %v869
      %v944 = vpack.c.b16 %v872, %v871
      %v945 = vpack.c.b16 %v874, %v873
      %v946 = vpack.c.b16 %v876, %v875
      %v947 = vpack.c.b16 %v878, %v877
      %v948 = vpack.c.b16 %v880, %v879
      %v949 = vpack.c.b16 %v882, %v881
      %v950 = vpack.c.b16 %v884, %v883
      %v951 = vpack.c.b16 %v886, %v885
      %v952 = vpack.c.b16 %v888, %v887
      %v953 = vpack.c.b16 %v890, %v889
      %v954 = vpack.c.b16 %v892, %v891
      %v955 = vpack.c.b16 %v894, %v893
      %v956 = vpack.c.b16 %v896, %v895
      %v957 = vpack.c.b16 %v898, %v897
      %v958 = vpack.c.b16 %v900, %v899
      %v959 = vpack.c.b16 %v902, %v901
      %v960 = vpack.c.b16 %v904, %v903
      %v961 = vpack.c.b16 %v906, %v905
      %v962 = vpack.c.b16 %v908, %v907
      %v963 = vpack.c.b16 %v910, %v909
      %v964 = vpack.c.b16 %v912, %v911
      %v965 = vpack.c.b16 %v914, %v913
      %v966 = vpack.c.b16 %v916, %v915
      %v967 = vpack.c.b16 %v918, %v917
      %v968 = vpack.c.b16 %v920, %v919
      %v969 = vpack.c.b16 %v922, %v921
      %v970 = vpack.c.b16 %v924, %v923
      %v971 = vpack.c.b16 %v926, %v925
      %v972 = vpack.c.b16 %v928, %v927
      %v973 = vpack.c.b16 %v930, %v929
      %v974 = vpack.c.b16 %v932, %v931
      %v975 = vpack.c.b16 %v934, %v933
      %v976 = vpack.c.b16 %v936, %v935
      %1017 = vmatprep.subr.bf16.mxu0 0
      %1018 = vmatpush1.bf16.msra.mxu0 %v944
      %1019 = vmatprep.subr.bf16.mxu0 0
      %1020 = vmatpush1.bf16.msra.mxu0 %v943
      %1021 = vmatprep.subr.bf16.mxu0 0
      %1022 = vmatpush1.bf16.msra.mxu0 %v942
      %1023 = vmatprep.subr.bf16.mxu0 0
      %1024 = vmatpush1.bf16.msra.mxu0 %v941
      %1025 = vmatprep.subr.bf16.mxu0 0
      %1026 = vmatpush1.bf16.msra.mxu0 %v940
      %1027 = vmatprep.subr.bf16.mxu0 0
      %1028 = vmatpush1.bf16.msra.mxu0 %v939
      %1029 = vmatprep.subr.bf16.mxu0 0
      %1030 = vmatpush1.bf16.msra.mxu0 %v938
      %1031 = vmatprep.subr.bf16.mxu0 0
      %1032 = vmatpush1.bf16.msra.mxu0 %v937
      %1033 = vmatprep.subr.bf16.mxu0 0
      %1034 = vmatpush2.bf16.msra.mxu0 %v952
      %1035 = vmatprep.subr.bf16.mxu0 0
      %1036 = vmatpush2.bf16.msra.mxu0 %v951
      %1037 = vmatprep.subr.bf16.mxu0 0
      %1038 = vmatpush2.bf16.msra.mxu0 %v950
      %1039 = vmatprep.subr.bf16.mxu0 0
      %1040 = vmatpush2.bf16.msra.mxu0 %v949
      %1041 = vmatprep.subr.bf16.mxu0 0
      %1042 = vmatpush2.bf16.msra.mxu0 %v948
      %1043 = vmatprep.subr.bf16.mxu0 0
      %1044 = vmatpush2.bf16.msra.mxu0 %v947
      %1045 = vmatprep.subr.bf16.mxu0 0
      %1046 = vmatpush2.bf16.msra.mxu0 %v946
      %1047 = vmatprep.subr.bf16.mxu0 0
      %1048 = vmatpush2.bf16.msra.mxu0 %v945
      %1049 = vmatprep.mubr.bf16.mxu0 %v618
      %1050 = vmatmul.mubr.bf16.gmra.mxu0 %v617
      %v1051 = vpop.f32.mrf.mxu0
      %v1052 = vadd.f32 %v359, %v1051
      %v1053 = vpop.f32.mrf.mxu0
      %v1054 = vpop.f32.mrf.mxu0
      %v1055 = vadd.f32 %v359, %v1054
      %v1056 = vpop.f32.mrf.mxu0
      %1057 = vmatprep.mubr.bf16.mxu0 %v623
      %1058 = vmatmul.mubr.bf16.gmra.mxu0 %v622
      %v1059 = vpop.f32.mrf.mxu0
      %v1060 = vadd.f32 %v359, %v1059
      %v1061 = vpop.f32.mrf.mxu0
      %v1062 = vpop.f32.mrf.mxu0
      %v1063 = vadd.f32 %v359, %v1062
      %v1064 = vpop.f32.mrf.mxu0
      %1065 = vmatprep.mubr.bf16.mxu0 %v628
      %1066 = vmatmul.mubr.bf16.gmra.mxu0 %v627
      %v1067 = vpop.f32.mrf.mxu0
      %v1068 = vadd.f32 %v359, %v1067
      %v1069 = vpop.f32.mrf.mxu0
      %v1070 = vpop.f32.mrf.mxu0
      %v1071 = vadd.f32 %v359, %v1070
      %v1072 = vpop.f32.mrf.mxu0
      %1073 = vmatprep.mubr.bf16.mxu0 %v633
      %1074 = vmatmul.mubr.bf16.gmra.mxu0 %v632
      %v1075 = vpop.f32.mrf.mxu0
      %v1076 = vadd.f32 %v359, %v1075
      %v1077 = vpop.f32.mrf.mxu0
      %v1078 = vpop.f32.mrf.mxu0
      %v1079 = vadd.f32 %v359, %v1078
      %v1080 = vpop.f32.mrf.mxu0
      %1081 = vmatprep.mubr.bf16.mxu0 %v638
      %1082 = vmatmul.mubr.bf16.gmra.mxu0 %v637
      %v1083 = vpop.f32.mrf.mxu0
      %v1084 = vadd.f32 %v359, %v1083
      %v1085 = vpop.f32.mrf.mxu0
      %v1086 = vpop.f32.mrf.mxu0
      %v1087 = vadd.f32 %v359, %v1086
      %v1088 = vpop.f32.mrf.mxu0
      %1089 = vmatprep.mubr.bf16.mxu0 %v643
      %1090 = vmatmul.mubr.bf16.gmra.mxu0 %v642
      %v1091 = vpop.f32.mrf.mxu0
      %v1092 = vadd.f32 %v359, %v1091
      %v1093 = vpop.f32.mrf.mxu0
      %v1094 = vpop.f32.mrf.mxu0
      %v1095 = vadd.f32 %v359, %v1094
      %v1096 = vpop.f32.mrf.mxu0
      %1097 = vmatprep.mubr.bf16.mxu0 %v648
      %1098 = vmatmul.mubr.bf16.gmra.mxu0 %v647
      %v1099 = vpop.f32.mrf.mxu0
      %v1100 = vadd.f32 %v359, %v1099
      %v1101 = vpop.f32.mrf.mxu0
      %v1102 = vpop.f32.mrf.mxu0
      %v1103 = vadd.f32 %v359, %v1102
      %v1104 = vpop.f32.mrf.mxu0
      %1105 = vmatprep.mubr.bf16.mxu0 %v653
      %1106 = vmatmul.mubr.bf16.gmra.mxu0 %v652
      %v1107 = vpop.f32.mrf.mxu0
      %v1108 = vadd.f32 %v359, %v1107
      %v1109 = vpop.f32.mrf.mxu0
      %v1110 = vpop.f32.mrf.mxu0
      %v1111 = vadd.f32 %v359, %v1110
      %v1112 = vpop.f32.mrf.mxu0
      %1113 = vmatprep.mubr.bf16.mxu0 %v658
      %1114 = vmatmul.mubr.bf16.gmra.mxu0 %v657
      %v1115 = vpop.f32.mrf.mxu0
      %v1116 = vadd.f32 %v359, %v1115
      %v1117 = vpop.f32.mrf.mxu0
      %v1118 = vpop.f32.mrf.mxu0
      %v1119 = vadd.f32 %v359, %v1118
      %v1120 = vpop.f32.mrf.mxu0
      %1121 = vmatprep.mubr.bf16.mxu0 %v663
      %1122 = vmatmul.mubr.bf16.gmra.mxu0 %v662
      %v1123 = vpop.f32.mrf.mxu0
      %v1124 = vadd.f32 %v359, %v1123
      %v1125 = vpop.f32.mrf.mxu0
      %v1126 = vpop.f32.mrf.mxu0
      %v1127 = vadd.f32 %v359, %v1126
      %v1128 = vpop.f32.mrf.mxu0
      %1129 = vmatprep.mubr.bf16.mxu0 %v668
      %1130 = vmatmul.mubr.bf16.gmra.mxu0 %v667
      %v1131 = vpop.f32.mrf.mxu0
      %v1132 = vadd.f32 %v359, %v1131
      %v1133 = vpop.f32.mrf.mxu0
      %v1134 = vpop.f32.mrf.mxu0
      %v1135 = vadd.f32 %v359, %v1134
      %v1136 = vpop.f32.mrf.mxu0
      %1137 = vmatprep.mubr.bf16.mxu0 %v673
      %1138 = vmatmul.mubr.bf16.gmra.mxu0 %v672
      %v1139 = vpop.f32.mrf.mxu0
      %v1140 = vadd.f32 %v359, %v1139
      %v1141 = vpop.f32.mrf.mxu0
      %v1142 = vpop.f32.mrf.mxu0
      %v1143 = vadd.f32 %v359, %v1142
      %v1144 = vpop.f32.mrf.mxu0
      %1145 = vmatprep.mubr.bf16.mxu0 %v678
      %1146 = vmatmul.mubr.bf16.gmra.mxu0 %v677
      %v1147 = vpop.f32.mrf.mxu0
      %v1148 = vadd.f32 %v359, %v1147
      %v1149 = vpop.f32.mrf.mxu0
      %v1150 = vpop.f32.mrf.mxu0
      %v1151 = vadd.f32 %v359, %v1150
      %v1152 = vpop.f32.mrf.mxu0
      %1153 = vmatprep.mubr.bf16.mxu0 %v683
      %1154 = vmatmul.mubr.bf16.gmra.mxu0 %v682
      %v1155 = vpop.f32.mrf.mxu0
      %v1156 = vadd.f32 %v359, %v1155
      %v1157 = vpop.f32.mrf.mxu0
      %v1158 = vpop.f32.mrf.mxu0
      %v1159 = vadd.f32 %v359, %v1158
      %v1160 = vpop.f32.mrf.mxu0
      %1161 = vmatprep.mubr.bf16.mxu0 %v688
      %1162 = vmatmul.mubr.bf16.gmra.mxu0 %v687
      %v1163 = vpop.f32.mrf.mxu0
      %v1164 = vadd.f32 %v359, %v1163
      %v1165 = vpop.f32.mrf.mxu0
      %v1166 = vpop.f32.mrf.mxu0
      %v1167 = vadd.f32 %v359, %v1166
      %v1168 = vpop.f32.mrf.mxu0
      %1169 = vmatprep.mubr.bf16.mxu0 %v693
      %1170 = vmatmul.mubr.bf16.gmra.mxu0 %v692
      %v1171 = vpop.f32.mrf.mxu0
      %v1172 = vadd.f32 %v359, %v1171
      %v1173 = vpop.f32.mrf.mxu0
      %v1174 = vpop.f32.mrf.mxu0
      %v1175 = vadd.f32 %v359, %v1174
      %v1176 = vpop.f32.mrf.mxu0
      %1177 = vdwg.mxu0
      %1178 = vmatprep.subr.bf16.mxu0 0
      %1179 = vmatpush1.bf16.msra.mxu0 %v960
      %1180 = vmatprep.subr.bf16.mxu0 0
      %1181 = vmatpush1.bf16.msra.mxu0 %v959
      %1182 = vmatprep.subr.bf16.mxu0 0
      %1183 = vmatpush1.bf16.msra.mxu0 %v958
      %1184 = vmatprep.subr.bf16.mxu0 0
      %1185 = vmatpush1.bf16.msra.mxu0 %v957
      %1186 = vmatprep.subr.bf16.mxu0 0
      %1187 = vmatpush1.bf16.msra.mxu0 %v956
      %1188 = vmatprep.subr.bf16.mxu0 0
      %1189 = vmatpush1.bf16.msra.mxu0 %v955
      %1190 = vmatprep.subr.bf16.mxu0 0
      %1191 = vmatpush1.bf16.msra.mxu0 %v954
      %1192 = vmatprep.subr.bf16.mxu0 0
      %1193 = vmatpush1.bf16.msra.mxu0 %v953
      %1194 = vmatprep.subr.bf16.mxu0 0
      %1195 = vmatpush2.bf16.msra.mxu0 %v968
      %1196 = vmatprep.subr.bf16.mxu0 0
      %1197 = vmatpush2.bf16.msra.mxu0 %v967
      %1198 = vmatprep.subr.bf16.mxu0 0
      %1199 = vmatpush2.bf16.msra.mxu0 %v966
      %1200 = vmatprep.subr.bf16.mxu0 0
      %1201 = vmatpush2.bf16.msra.mxu0 %v965
      %1202 = vmatprep.subr.bf16.mxu0 0
      %1203 = vmatpush2.bf16.msra.mxu0 %v964
      %1204 = vmatprep.subr.bf16.mxu0 0
      %1205 = vmatpush2.bf16.msra.mxu0 %v963
      %1206 = vmatprep.subr.bf16.mxu0 0
      %1207 = vmatpush2.bf16.msra.mxu0 %v962
      %1208 = vmatprep.subr.bf16.mxu0 0
      %1209 = vmatpush2.bf16.msra.mxu0 %v961
      %1210 = vmatprep.mubr.bf16.mxu0 %v620
      %1211 = vmatmul.mubr.bf16.gmra.mxu0 %v619
      %v1212 = vpop.f32.mrf.mxu0
      %v1213 = vadd.f32 %v1052, %v1212
      %v1214 = vpop.f32.mrf.mxu0
      %v1215 = vpop.f32.mrf.mxu0
      %v1216 = vadd.f32 %v1055, %v1215
      %v1217 = vpop.f32.mrf.mxu0
      %1218 = vmatprep.mubr.bf16.mxu0 %v625
      %1219 = vmatmul.mubr.bf16.gmra.mxu0 %v624
      %v1220 = vpop.f32.mrf.mxu0
      %v1221 = vadd.f32 %v1060, %v1220
      %v1222 = vpop.f32.mrf.mxu0
      %v1223 = vpop.f32.mrf.mxu0
      %v1224 = vadd.f32 %v1063, %v1223
      %v1225 = vpop.f32.mrf.mxu0
      %1226 = vmatprep.mubr.bf16.mxu0 %v630
      %1227 = vmatmul.mubr.bf16.gmra.mxu0 %v629
      %v1228 = vpop.f32.mrf.mxu0
      %v1229 = vadd.f32 %v1068, %v1228
      %v1230 = vpop.f32.mrf.mxu0
      %v1231 = vpop.f32.mrf.mxu0
      %v1232 = vadd.f32 %v1071, %v1231
      %v1233 = vpop.f32.mrf.mxu0
      %1234 = vmatprep.mubr.bf16.mxu0 %v635
      %1235 = vmatmul.mubr.bf16.gmra.mxu0 %v634
      %v1236 = vpop.f32.mrf.mxu0
      %v1237 = vadd.f32 %v1076, %v1236
      %v1238 = vpop.f32.mrf.mxu0
      %v1239 = vpop.f32.mrf.mxu0
      %v1240 = vadd.f32 %v1079, %v1239
      %v1241 = vpop.f32.mrf.mxu0
      %1242 = vmatprep.mubr.bf16.mxu0 %v640
      %1243 = vmatmul.mubr.bf16.gmra.mxu0 %v639
      %v1244 = vpop.f32.mrf.mxu0
      %v1245 = vadd.f32 %v1084, %v1244
      %v1246 = vpop.f32.mrf.mxu0
      %v1247 = vpop.f32.mrf.mxu0
      %v1248 = vadd.f32 %v1087, %v1247
      %v1249 = vpop.f32.mrf.mxu0
      %1250 = vmatprep.mubr.bf16.mxu0 %v645
      %1251 = vmatmul.mubr.bf16.gmra.mxu0 %v644
      %v1252 = vpop.f32.mrf.mxu0
      %v1253 = vadd.f32 %v1092, %v1252
      %v1254 = vpop.f32.mrf.mxu0
      %v1255 = vpop.f32.mrf.mxu0
      %v1256 = vadd.f32 %v1095, %v1255
      %v1257 = vpop.f32.mrf.mxu0
      %1258 = vmatprep.mubr.bf16.mxu0 %v650
      %1259 = vmatmul.mubr.bf16.gmra.mxu0 %v649
      %v1260 = vpop.f32.mrf.mxu0
      %v1261 = vadd.f32 %v1100, %v1260
      %v1262 = vpop.f32.mrf.mxu0
      %v1263 = vpop.f32.mrf.mxu0
      %v1264 = vadd.f32 %v1103, %v1263
      %v1265 = vpop.f32.mrf.mxu0
      %1266 = vmatprep.mubr.bf16.mxu0 %v655
      %1267 = vmatmul.mubr.bf16.gmra.mxu0 %v654
      %v1268 = vpop.f32.mrf.mxu0
      %v1269 = vadd.f32 %v1108, %v1268
      %v1270 = vpop.f32.mrf.mxu0
      %v1271 = vpop.f32.mrf.mxu0
      %v1272 = vadd.f32 %v1111, %v1271
      %v1273 = vpop.f32.mrf.mxu0
      %1274 = vmatprep.mubr.bf16.mxu0 %v660
      %1275 = vmatmul.mubr.bf16.gmra.mxu0 %v659
      %v1276 = vpop.f32.mrf.mxu0
      %v1277 = vadd.f32 %v1116, %v1276
      %v1278 = vpop.f32.mrf.mxu0
      %v1279 = vpop.f32.mrf.mxu0
      %v1280 = vadd.f32 %v1119, %v1279
      %v1281 = vpop.f32.mrf.mxu0
      %1282 = vmatprep.mubr.bf16.mxu0 %v665
      %1283 = vmatmul.mubr.bf16.gmra.mxu0 %v664
      %v1284 = vpop.f32.mrf.mxu0
      %v1285 = vadd.f32 %v1124, %v1284
      %v1286 = vpop.f32.mrf.mxu0
      %v1287 = vpop.f32.mrf.mxu0
      %v1288 = vadd.f32 %v1127, %v1287
      %v1289 = vpop.f32.mrf.mxu0
      %1290 = vmatprep.mubr.bf16.mxu0 %v670
      %1291 = vmatmul.mubr.bf16.gmra.mxu0 %v669
      %v1292 = vpop.f32.mrf.mxu0
      %v1293 = vadd.f32 %v1132, %v1292
      %v1294 = vpop.f32.mrf.mxu0
      %v1295 = vpop.f32.mrf.mxu0
      %v1296 = vadd.f32 %v1135, %v1295
      %v1297 = vpop.f32.mrf.mxu0
      %1298 = vmatprep.mubr.bf16.mxu0 %v675
      %1299 = vmatmul.mubr.bf16.gmra.mxu0 %v674
      %v1300 = vpop.f32.mrf.mxu0
      %v1301 = vadd.f32 %v1140, %v1300
      %v1302 = vpop.f32.mrf.mxu0
      %v1303 = vpop.f32.mrf.mxu0
      %v1304 = vadd.f32 %v1143, %v1303
      %v1305 = vpop.f32.mrf.mxu0
      %1306 = vmatprep.mubr.bf16.mxu0 %v680
      %1307 = vmatmul.mubr.bf16.gmra.mxu0 %v679
      %v1308 = vpop.f32.mrf.mxu0
      %v1309 = vadd.f32 %v1148, %v1308
      %v1310 = vpop.f32.mrf.mxu0
      %v1311 = vpop.f32.mrf.mxu0
      %v1312 = vadd.f32 %v1151, %v1311
      %v1313 = vpop.f32.mrf.mxu0
      %1314 = vmatprep.mubr.bf16.mxu0 %v685
      %1315 = vmatmul.mubr.bf16.gmra.mxu0 %v684
      %v1316 = vpop.f32.mrf.mxu0
      %v1317 = vadd.f32 %v1156, %v1316
      %v1318 = vpop.f32.mrf.mxu0
      %v1319 = vpop.f32.mrf.mxu0
      %v1320 = vadd.f32 %v1159, %v1319
      %v1321 = vpop.f32.mrf.mxu0
      %1322 = vmatprep.mubr.bf16.mxu0 %v690
      %1323 = vmatmul.mubr.bf16.gmra.mxu0 %v689
      %v1324 = vpop.f32.mrf.mxu0
      %v1325 = vadd.f32 %v1164, %v1324
      %v1326 = vpop.f32.mrf.mxu0
      %v1327 = vpop.f32.mrf.mxu0
      %v1328 = vadd.f32 %v1167, %v1327
      %v1329 = vpop.f32.mrf.mxu0
      %1330 = vmatprep.mubr.bf16.mxu0 %v695
      %1331 = vmatmul.mubr.bf16.gmra.mxu0 %v694
      %v1332 = vpop.f32.mrf.mxu0
      %v1333 = vadd.f32 %v1172, %v1332
      %v1334 = vpop.f32.mrf.mxu0
      %v1335 = vpop.f32.mrf.mxu0
      %v1336 = vadd.f32 %v1175, %v1335
      %v1337 = vpop.f32.mrf.mxu0
      %1338 = vdwg.mxu0
      %1339 = vmatprep.subr.bf16.mxu0 0
      %1340 = vmatpush1.bf16.msra.mxu0 %v976
      %1341 = vmatprep.subr.bf16.mxu0 0
      %1342 = vmatpush1.bf16.msra.mxu0 %v975
      %1343 = vmatprep.subr.bf16.mxu0 0
      %1344 = vmatpush1.bf16.msra.mxu0 %v974
      %1345 = vmatprep.subr.bf16.mxu0 0
      %1346 = vmatpush1.bf16.msra.mxu0 %v973
      %1347 = vmatprep.subr.bf16.mxu0 0
      %1348 = vmatpush1.bf16.msra.mxu0 %v972
      %1349 = vmatprep.subr.bf16.mxu0 0
      %1350 = vmatpush1.bf16.msra.mxu0 %v971
      %1351 = vmatprep.subr.bf16.mxu0 0
      %1352 = vmatpush1.bf16.msra.mxu0 %v970
      %1353 = vmatprep.subr.bf16.mxu0 0
      %1354 = vmatpush1.bf16.msra.mxu0 %v969
      %1355 = vmatprep.subr.bf16.mxu0 0
      %1356 = vmatpush2.bf16.msra.mxu0 0
      %1357 = vmatprep.subr.bf16.mxu0 0
      %1358 = vmatpush2.bf16.msra.mxu0 0
      %1359 = vmatprep.subr.bf16.mxu0 0
      %1360 = vmatpush2.bf16.msra.mxu0 0
      %1361 = vmatprep.subr.bf16.mxu0 0
      %1362 = vmatpush2.bf16.msra.mxu0 0
      %1363 = vmatprep.subr.bf16.mxu0 0
      %1364 = vmatpush2.bf16.msra.mxu0 0
      %1365 = vmatprep.subr.bf16.mxu0 0
      %1366 = vmatpush2.bf16.msra.mxu0 0
      %1367 = vmatprep.subr.bf16.mxu0 0
      %1368 = vmatpush2.bf16.msra.mxu0 0
      %1369 = vmatprep.subr.bf16.mxu0 0
      %1370 = vmatpush2.bf16.msra.mxu0 0
      %1371 = vmatprep.mubr.bf16.mxu0 0
      %1372 = vmatmul.mubr.bf16.gmra.mxu0 %v621
      %v1373 = vpop.f32.mrf.mxu0
      %v1374 = vadd.f32 %v1213, %v1373
      %v1375 = vpop.f32.mrf.mxu0
      %v1376 = vpop.f32.mrf.mxu0
      %v1377 = vadd.f32 %v1216, %v1376
      %v1378 = vpop.f32.mrf.mxu0
      %1379 = vmatprep.mubr.bf16.mxu0 0
      %1380 = vmatmul.mubr.bf16.gmra.mxu0 %v626
      %v1381 = vpop.f32.mrf.mxu0
      %v1382 = vadd.f32 %v1221, %v1381
      %v1383 = vpop.f32.mrf.mxu0
      %v1384 = vpop.f32.mrf.mxu0
      %v1385 = vadd.f32 %v1224, %v1384
      %v1386 = vpop.f32.mrf.mxu0
      %1387 = vmatprep.mubr.bf16.mxu0 0
      %1388 = vmatmul.mubr.bf16.gmra.mxu0 %v631
      %v1389 = vpop.f32.mrf.mxu0
      %v1390 = vadd.f32 %v1229, %v1389
      %v1391 = vpop.f32.mrf.mxu0
      %v1392 = vpop.f32.mrf.mxu0
      %v1393 = vadd.f32 %v1232, %v1392
      %v1394 = vpop.f32.mrf.mxu0
      %1395 = vmatprep.mubr.bf16.mxu0 0
      %1396 = vmatmul.mubr.bf16.gmra.mxu0 %v636
      %v1397 = vpop.f32.mrf.mxu0
      %v1398 = vadd.f32 %v1237, %v1397
      %v1399 = vpop.f32.mrf.mxu0
      %v1400 = vpop.f32.mrf.mxu0
      %v1401 = vadd.f32 %v1240, %v1400
      %v1402 = vpop.f32.mrf.mxu0
      %1403 = vmatprep.mubr.bf16.mxu0 0
      %1404 = vmatmul.mubr.bf16.gmra.mxu0 %v641
      %v1405 = vpop.f32.mrf.mxu0
      %v1406 = vadd.f32 %v1245, %v1405
      %v1407 = vpop.f32.mrf.mxu0
      %v1408 = vpop.f32.mrf.mxu0
      %v1409 = vadd.f32 %v1248, %v1408
      %v1410 = vpop.f32.mrf.mxu0
      %1411 = vmatprep.mubr.bf16.mxu0 0
      %1412 = vmatmul.mubr.bf16.gmra.mxu0 %v646
      %v1413 = vpop.f32.mrf.mxu0
      %v1414 = vadd.f32 %v1253, %v1413
      %v1415 = vpop.f32.mrf.mxu0
      %v1416 = vpop.f32.mrf.mxu0
      %v1417 = vadd.f32 %v1256, %v1416
      %v1418 = vpop.f32.mrf.mxu0
      %1419 = vmatprep.mubr.bf16.mxu0 0
      %1420 = vmatmul.mubr.bf16.gmra.mxu0 %v651
      %v1421 = vpop.f32.mrf.mxu0
      %v1422 = vadd.f32 %v1261, %v1421
      %v1423 = vpop.f32.mrf.mxu0
      %v1424 = vpop.f32.mrf.mxu0
      %v1425 = vadd.f32 %v1264, %v1424
      %v1426 = vpop.f32.mrf.mxu0
      %1427 = vmatprep.mubr.bf16.mxu0 0
      %1428 = vmatmul.mubr.bf16.gmra.mxu0 %v656
      %v1429 = vpop.f32.mrf.mxu0
      %v1430 = vadd.f32 %v1269, %v1429
      %v1431 = vpop.f32.mrf.mxu0
      %v1432 = vpop.f32.mrf.mxu0
      %v1433 = vadd.f32 %v1272, %v1432
      %v1434 = vpop.f32.mrf.mxu0
      %1435 = vmatprep.mubr.bf16.mxu0 0
      %1436 = vmatmul.mubr.bf16.gmra.mxu0 %v661
      %v1437 = vpop.f32.mrf.mxu0
      %v1438 = vadd.f32 %v1277, %v1437
      %v1439 = vpop.f32.mrf.mxu0
      %v1440 = vpop.f32.mrf.mxu0
      %v1441 = vadd.f32 %v1280, %v1440
      %v1442 = vpop.f32.mrf.mxu0
      %1443 = vmatprep.mubr.bf16.mxu0 0
      %1444 = vmatmul.mubr.bf16.gmra.mxu0 %v666
      %v1445 = vpop.f32.mrf.mxu0
      %v1446 = vadd.f32 %v1285, %v1445
      %v1447 = vpop.f32.mrf.mxu0
      %v1448 = vpop.f32.mrf.mxu0
      %v1449 = vadd.f32 %v1288, %v1448
      %v1450 = vpop.f32.mrf.mxu0
      %1451 = vmatprep.mubr.bf16.mxu0 0
      %1452 = vmatmul.mubr.bf16.gmra.mxu0 %v671
      %v1453 = vpop.f32.mrf.mxu0
      %v1454 = vadd.f32 %v1293, %v1453
      %v1455 = vpop.f32.mrf.mxu0
      %v1456 = vpop.f32.mrf.mxu0
      %v1457 = vadd.f32 %v1296, %v1456
      %v1458 = vpop.f32.mrf.mxu0
      %1459 = vmatprep.mubr.bf16.mxu0 0
      %1460 = vmatmul.mubr.bf16.gmra.mxu0 %v676
      %v1461 = vpop.f32.mrf.mxu0
      %v1462 = vadd.f32 %v1301, %v1461
      %v1463 = vpop.f32.mrf.mxu0
      %v1464 = vpop.f32.mrf.mxu0
      %v1465 = vadd.f32 %v1304, %v1464
      %v1466 = vpop.f32.mrf.mxu0
      %1467 = vmatprep.mubr.bf16.mxu0 0
      %1468 = vmatmul.mubr.bf16.gmra.mxu0 %v681
      %v1469 = vpop.f32.mrf.mxu0
      %v1470 = vadd.f32 %v1309, %v1469
      %v1471 = vpop.f32.mrf.mxu0
      %v1472 = vpop.f32.mrf.mxu0
      %v1473 = vadd.f32 %v1312, %v1472
      %v1474 = vpop.f32.mrf.mxu0
      %1475 = vmatprep.mubr.bf16.mxu0 0
      %1476 = vmatmul.mubr.bf16.gmra.mxu0 %v686
      %v1477 = vpop.f32.mrf.mxu0
      %v1478 = vadd.f32 %v1317, %v1477
      %v1479 = vpop.f32.mrf.mxu0
      %v1480 = vpop.f32.mrf.mxu0
      %v1481 = vadd.f32 %v1320, %v1480
      %v1482 = vpop.f32.mrf.mxu0
      %1483 = vmatprep.mubr.bf16.mxu0 0
      %1484 = vmatmul.mubr.bf16.gmra.mxu0 %v691
      %v1485 = vpop.f32.mrf.mxu0
      %v1486 = vadd.f32 %v1325, %v1485
      %v1487 = vpop.f32.mrf.mxu0
      %v1488 = vpop.f32.mrf.mxu0
      %v1489 = vadd.f32 %v1328, %v1488
      %v1490 = vpop.f32.mrf.mxu0
      %1491 = vmatprep.mubr.bf16.mxu0 0
      %1492 = vmatmul.mubr.bf16.gmra.mxu0 %v696
      %v1493 = vpop.f32.mrf.mxu0
      %v1494 = vadd.f32 %v1333, %v1493
      %v1495 = vpop.f32.mrf.mxu0
      %v1496 = vpop.f32.mrf.mxu0
      %v1497 = vadd.f32 %v1336, %v1496
      %v1498 = vpop.f32.mrf.mxu0
      %1499 = vdwg.mxu0
      %v1500 = vmax.f32 %v1374, 0.0
      %v1501 = vmax.f32 %v1377, 0.0
      %v1502 = vmax.f32 %v1382, 0.0
      %v1503 = vmax.f32 %v1385, 0.0
      %v1504 = vmax.f32 %v1390, 0.0
      %v1505 = vmax.f32 %v1393, 0.0
      %v1506 = vmax.f32 %v1398, 0.0
      %v1507 = vmax.f32 %v1401, 0.0
      %v1508 = vmax.f32 %v1406, 0.0
      %v1509 = vmax.f32 %v1409, 0.0
      %v1510 = vmax.f32 %v1414, 0.0
      %v1511 = vmax.f32 %v1417, 0.0
      %v1512 = vmax.f32 %v1422, 0.0
      %v1513 = vmax.f32 %v1425, 0.0
      %v1514 = vmax.f32 %v1430, 0.0
      %v1515 = vmax.f32 %v1433, 0.0
      %v1516 = vmax.f32 %v1438, 0.0
      %v1517 = vmax.f32 %v1441, 0.0
      %v1518 = vmax.f32 %v1446, 0.0
      %v1519 = vmax.f32 %v1449, 0.0
      %v1520 = vmax.f32 %v1454, 0.0
      %v1521 = vmax.f32 %v1457, 0.0
      %v1522 = vmax.f32 %v1462, 0.0
      %v1523 = vmax.f32 %v1465, 0.0
      %v1524 = vmax.f32 %v1470, 0.0
      %v1525 = vmax.f32 %v1473, 0.0
      %v1526 = vmax.f32 %v1478, 0.0
      %v1527 = vmax.f32 %v1481, 0.0
      %v1528 = vmax.f32 %v1486, 0.0
      %v1529 = vmax.f32 %v1489, 0.0
      %v1530 = vmax.f32 %v1494, 0.0
      %v1531 = vmax.f32 %v1497, 0.0
      %v1532 = vpack.c.bf16 %v1501, %v1500
      %v1533 = vpack.c.bf16 %v1503, %v1502
      %v1534 = vpack.c.bf16 %v1505, %v1504
      %v1535 = vpack.c.bf16 %v1507, %v1506
      %v1536 = vpack.c.bf16 %v1509, %v1508
      %v1537 = vpack.c.bf16 %v1511, %v1510
      %v1538 = vpack.c.bf16 %v1513, %v1512
      %v1539 = vpack.c.bf16 %v1515, %v1514
      %v1540 = vpack.c.bf16 %v1517, %v1516
      %v1541 = vpack.c.bf16 %v1519, %v1518
      %v1542 = vpack.c.bf16 %v1521, %v1520
      %v1543 = vpack.c.bf16 %v1523, %v1522
      %v1544 = vpack.c.bf16 %v1525, %v1524
      %v1545 = vpack.c.bf16 %v1527, %v1526
      %v1546 = vpack.c.bf16 %v1529, %v1528
      %v1547 = vpack.c.bf16 %v1531, %v1530
      %v1564 = vunpack.c.l.b16 %v1532
      %v1565 = vunpack.c.h.b16 %v1532
      %v1566 = vunpack.c.l.b16 %v1533
      %v1567 = vunpack.c.h.b16 %v1533
      %v1568 = vunpack.c.l.b16 %v1534
      %v1569 = vunpack.c.h.b16 %v1534
      %v1570 = vunpack.c.l.b16 %v1535
      %v1571 = vunpack.c.h.b16 %v1535
      %v1572 = vunpack.c.l.b16 %v1536
      %v1573 = vunpack.c.h.b16 %v1536
      %v1574 = vunpack.c.l.b16 %v1537
      %v1575 = vunpack.c.h.b16 %v1537
      %v1576 = vunpack.c.l.b16 %v1538
      %v1577 = vunpack.c.h.b16 %v1538
      %v1578 = vunpack.c.l.b16 %v1539
      %v1579 = vunpack.c.h.b16 %v1539
      %v1580 = vunpack.c.l.b16 %v1540
      %v1581 = vunpack.c.h.b16 %v1540
      %v1582 = vunpack.c.l.b16 %v1541
      %v1583 = vunpack.c.h.b16 %v1541
      %v1584 = vunpack.c.l.b16 %v1542
      %v1585 = vunpack.c.h.b16 %v1542
      %v1586 = vunpack.c.l.b16 %v1543
      %v1587 = vunpack.c.h.b16 %v1543
      %v1588 = vunpack.c.l.b16 %v1544
      %v1589 = vunpack.c.h.b16 %v1544
      %v1590 = vunpack.c.l.b16 %v1545
      %v1591 = vunpack.c.h.b16 %v1545
      %v1592 = vunpack.c.l.b16 %v1546
      %v1593 = vunpack.c.h.b16 %v1546
      %v1594 = vunpack.c.l.b16 %v1547
      %v1595 = vunpack.c.h.b16 %v1547
      %v1596 = vpack.c.b16 %v1564, %v1564
      %v1597 = vpack.c.b16 %v1565, %v1565
      %v1598 = vpack.c.b16 %v1566, %v1566
      %v1599 = vpack.c.b16 %v1567, %v1567
      %v1600 = vpack.c.b16 %v1568, %v1568
      %v1601 = vpack.c.b16 %v1569, %v1569
      %v1602 = vpack.c.b16 %v1570, %v1570
      %v1603 = vpack.c.b16 %v1571, %v1571
      %v1604 = vpack.c.b16 %v1572, %v1572
      %v1605 = vpack.c.b16 %v1573, %v1573
      %v1606 = vpack.c.b16 %v1574, %v1574
      %v1607 = vpack.c.b16 %v1575, %v1575
      %v1608 = vpack.c.b16 %v1576, %v1576
      %v1609 = vpack.c.b16 %v1577, %v1577
      %v1610 = vpack.c.b16 %v1578, %v1578
      %v1611 = vpack.c.b16 %v1579, %v1579
      %v1612 = vpack.c.b16 %v1580, %v1580
      %v1613 = vpack.c.b16 %v1581, %v1581
      %v1614 = vpack.c.b16 %v1582, %v1582
      %v1615 = vpack.c.b16 %v1583, %v1583
      %v1616 = vpack.c.b16 %v1584, %v1584
      %v1617 = vpack.c.b16 %v1585, %v1585
      %v1618 = vpack.c.b16 %v1586, %v1586
      %v1619 = vpack.c.b16 %v1587, %v1587
      %v1620 = vpack.c.b16 %v1588, %v1588
      %v1621 = vpack.c.b16 %v1589, %v1589
      %v1622 = vpack.c.b16 %v1590, %v1590
      %v1623 = vpack.c.b16 %v1591, %v1591
      %v1624 = vpack.c.b16 %v1592, %v1592
      %v1625 = vpack.c.b16 %v1593, %v1593
      %v1626 = vpack.c.b16 %v1594, %v1594
      %v1627 = vpack.c.b16 %v1595, %v1595
      %1660 = vst [vmem:[%s175] sm:$0xf] %v1596
      %1661 = vst [vmem:[%s175 + $0x4] sm:$0xf] %v1597
      %1662 = vst [vmem:[%s175 + $0x8] sm:$0xf] %v1598
      %1663 = vst [vmem:[%s175 + $0xc] sm:$0xf] %v1599
      %1664 = vst [vmem:[%s175 + $0x10] sm:$0xf] %v1600
      %1665 = vst [vmem:[%s175 + $0x14] sm:$0xf] %v1601
      %1666 = vst [vmem:[%s175 + $0x18] sm:$0xf] %v1602
      %1667 = vst [vmem:[%s175 + $0x1c] sm:$0xf] %v1603
      %1668 = vst [vmem:[%s175 + $0x20] sm:$0xf] %v1604
      %1669 = vst [vmem:[%s175 + $0x24] sm:$0xf] %v1605
      %1670 = vst [vmem:[%s175 + $0x28] sm:$0xf] %v1606
      %1671 = vst [vmem:[%s175 + $0x2c] sm:$0xf] %v1607
      %1672 = vst [vmem:[%s175 + $0x30] sm:$0xf] %v1608
      %1673 = vst [vmem:[%s175 + $0x34] sm:$0xf] %v1609
      %1674 = vst [vmem:[%s175 + $0x38] sm:$0xf] %v1610
      %1675 = vst [vmem:[%s175 + $0x3c] sm:$0xf] %v1611
      %1676 = vst [vmem:[%s175 + $0x40] sm:$0xf] %v1612
      %1677 = vst [vmem:[%s175 + $0x44] sm:$0xf] %v1613
      %1678 = vst [vmem:[%s175 + $0x48] sm:$0xf] %v1614
      %1679 = vst [vmem:[%s175 + $0x4c] sm:$0xf] %v1615
      %1680 = vst [vmem:[%s175 + $0x50] sm:$0xf] %v1616
      %1681 = vst [vmem:[%s175 + $0x54] sm:$0xf] %v1617
      %1682 = vst [vmem:[%s175 + $0x58] sm:$0xf] %v1618
      %1683 = vst [vmem:[%s175 + $0x5c] sm:$0xf] %v1619
      %1684 = vst [vmem:[%s175 + $0x60] sm:$0xf] %v1620
      %1685 = vst [vmem:[%s175 + $0x64] sm:$0xf] %v1621
      %1686 = vst [vmem:[%s175 + $0x68] sm:$0xf] %v1622
      %1687 = vst [vmem:[%s175 + $0x6c] sm:$0xf] %v1623
      %1688 = vst [vmem:[%s175 + $0x70] sm:$0xf] %v1624
      %1689 = vst [vmem:[%s175 + $0x74] sm:$0xf] %v1625
      %1690 = vst [vmem:[%s175 + $0x78] sm:$0xf] %v1626
      %1691 = vst [vmem:[%s175 + $0x7c] sm:$0xf] %v1627
      %s1692 = smul.u32 32, %s14
      %p1693 = scmp.lt.s32.totalorder %s1692, 63
      %s1694 = scalar_select %p1693, %s1692, 63
      %s1695 = smul.addr %s1694, 4
      %s1696 = scalar_lea.vmem %s3, %s1695
      // Predicated region
      $region33: #{asff_level1_forward.6} parent=31 // pred_check
        %p1697 = pneg %p100
      $region34: #{asff_level1_forward.6} parent=31 // pred_check_branch
        %1699 = sbr.rel (%p1697) target = $region36
      $region35: #{asff_level1_forward.6} parent=31 // pred_region
        %s1700 = smul.u32 32, %s14
      $region36: #{asff_level1_forward.6} parent=31 // pred_fallthru
        _
    $region32: #{asff_level1_forward.6} parent=5 // pred_fallthru
      _
    %p1701 = scmp.le.s32.totalorder 2, %s9
    // Predicated region
    $region37: #{asff_level1_forward.6} parent=5 // pred_check
      %p1702 = pneg %p1701
    $region38: #{asff_level1_forward.6} parent=5 // pred_check_branch
      %1704 = sbr.rel (%p1702) target = $region40
    $region39: #{asff_level1_forward.6} parent=5 // pred_region
      %s1705 = ssub.s32 %s9, 2
      // Predicated region
      $region41: #{asff_level1_forward.6} parent=39 // pred_check
        %p1706 = pneg %p106
      $region42: #{asff_level1_forward.6} parent=39 // pred_check_branch
        %1708 = sbr.rel (%p1706) target = $region44
      $region43: #{asff_level1_forward.6} parent=39 // pred_region
        %s1709 = smul.u32 32, %s15
        %p1710 = scmp.lt.s32.totalorder %s1709, 63
        %s1711 = scalar_select %p1710, %s1709, 63
        %s1712 = smul.addr %s1711, 4
        %s1713 = scalar_lea.vmem %s3, %s1712
      $region44: #{asff_level1_forward.6} parent=39 // pred_fallthru
        _
    $region40: #{asff_level1_forward.6} parent=5 // pred_fallthru
      _
  $region6: #{asff_level1_forward.6} parent=0 // loop_footer
    %s13 = sadd.s32 1, %s9
  $region7: #{asff_level1_forward.6} parent=0 // loop_footer_branch
    %8 = sbr.rel target = $region3
  $region8: #{asff_level1_forward.6} parent=0 // loop_exit
    _

// kernel: asff_level1_forward.5
$region0: #{asff_level1_forward.5}
  #allocation0 [shape = 'u32[]', space=smem, size = 0x4, offset = 0x4, fixed_abs, tag = 'smem constant byte address 0x4 - core index']
  #allocation1 [shape = 'u32[144,128]{1,0:T(1,128)}', space=vmem, size = 0x12000, scoped, tag = 'internal scratch']
  %s0 = inlined_call_operand.vmem [shape: bf16[128,256], index: 0, kind: input, shape index: {}]
  %s1 = inlined_call_operand.vmem [shape: bf16[256,128], index: 1, kind: input, shape index: {}]
  %s2 = inlined_call_operand.vmem [shape: f32[1,128], index: 2, kind: input, shape index: {}]
  %s3 = inlined_call_operand.vmem [shape: bf16[128,128], index: 3, kind: output, shape index: {}]
  %s4 = sld [smem:[#allocation0]]
  $region45: #{asff_level1_forward.5} parent=0
    _
  %s6 = ssub.s32 1, %s4
  %s7 = scalar_select 0, %s6, %s4
  loop: start=0, step=1, limit=4
  $region2: #{asff_level1_forward.5} parent=0 // loop_pre_header
    _
  $region3: #{asff_level1_forward.5} parent=0 // loop_header
    %s9 = sphi 0, %s13
    %p10 = scmp.ge.s32.totalorder %s9, 4
    %s19 = sphi 0, %s21
    %s22 = sphi 0, %s19
    %s23 = sphi 0, %s22
    %s39 = sphi 0, %s23
    %s43 = sphi 0, %s43
    %s45 = sphi 0, %s43
    %s46 = sphi 0, %s45
    %s60 = sphi 0, %s46
    %s64 = sphi 0, %s64
    %s66 = sphi 0, %s64
    %s67 = sphi 0, %s66
    %s81 = sphi 0, %s67
    %s87 = sphi 0, %s89
    %s90 = sphi 0, %s87
    %s91 = sphi 0, %s90
    %s107 = sphi 0, %s91
  $region4: #{asff_level1_forward.5} parent=0 // loop_header_branch
    %12 = sbr.rel (%p10) target = $region8
  $region5: #{asff_level1_forward.5} parent=0 // loop_body
    %s14 = ssub.s32 %s9, 1
    %s15 = ssub.s32 %s9, 2
    %s16 = sadd.s32 %s9, 1
    %s17 = ssub.s32 %s9, %s16
    %p18 = scmp.eq.s32.totalorder %s17, 0
    %s20 = sadd.s32 %s19, 1
    %s21 = scalar_select %p18, %s19, %s20
    %p24 = pneg %p18
    %p25 = scmp.eq.s32.totalorder %s9, 1
    %p26 = por %p24, %p25
    %p27 = scmp.ne.s32.totalorder %s19, %s22
    %p28 = scmp.eq.s32.totalorder %s9, 0
    %p29 = por %p27, %p28
    %p30 = scmp.ne.s32.totalorder %s19, %s22
    %p31 = scmp.eq.s32.totalorder %s14, 1
    %p32 = por %p30, %p31
    %p33 = scmp.ne.s32.totalorder %s22, %s23
    %p34 = scmp.eq.s32.totalorder %s14, 0
    %p35 = por %p33, %p34
    %p36 = scmp.ne.s32.totalorder %s22, %s23
    %p37 = scmp.eq.s32.totalorder %s15, 1
    %p38 = por %p36, %p37
    %p40 = scmp.ne.s32.totalorder %s23, %s39
    %p41 = scmp.eq.s32.totalorder %s15, 0
    %p42 = por %p40, %p41
    %s44 = sadd.s32 %s43, 1
    %p47 = scmp.eq.s32.totalorder %s9, 1
    %p48 = scmp.ne.s32.totalorder %s43, %s45
    %p49 = scmp.eq.s32.totalorder %s9, 0
    %p50 = por %p48, %p49
    %p51 = scmp.ne.s32.totalorder %s43, %s45
    %p52 = scmp.eq.s32.totalorder %s14, 1
    %p53 = por %p51, %p52
    %p54 = scmp.ne.s32.totalorder %s45, %s46
    %p55 = scmp.eq.s32.totalorder %s14, 0
    %p56 = por %p54, %p55
    %p57 = scmp.ne.s32.totalorder %s45, %s46
    %p58 = scmp.eq.s32.totalorder %s15, 1
    %p59 = por %p57, %p58
    %p61 = scmp.ne.s32.totalorder %s46, %s60
    %p62 = scmp.eq.s32.totalorder %s15, 0
    %p63 = por %p61, %p62
    %s65 = sadd.s32 %s64, 1
    %p68 = scmp.eq.s32.totalorder %s9, 1
    %p69 = scmp.ne.s32.totalorder %s64, %s66
    %p70 = scmp.eq.s32.totalorder %s9, 0
    %p71 = por %p69, %p70
    %p72 = scmp.ne.s32.totalorder %s64, %s66
    %p73 = scmp.eq.s32.totalorder %s14, 1
    %p74 = por %p72, %p73
    %p75 = scmp.ne.s32.totalorder %s66, %s67
    %p76 = scmp.eq.s32.totalorder %s14, 0
    %p77 = por %p75, %p76
    %p78 = scmp.ne.s32.totalorder %s66, %s67
    %p79 = scmp.eq.s32.totalorder %s15, 1
    %p80 = por %p78, %p79
    %p82 = scmp.ne.s32.totalorder %s67, %s81
    %p83 = scmp.eq.s32.totalorder %s15, 0
    %p84 = por %p82, %p83
    %s85 = ssub.s32 %s9, %s16
    %p86 = scmp.eq.s32.totalorder %s85, 0
    %s88 = sadd.s32 %s87, 1
    %s89 = scalar_select %p86, %s87, %s88
    %p92 = pneg %p86
    %p93 = scmp.eq.s32.totalorder %s9, 1
    %p94 = por %p92, %p93
    %p95 = scmp.ne.s32.totalorder %s87, %s90
    %p96 = scmp.eq.s32.totalorder %s9, 0
    %p97 = por %p95, %p96
    %p98 = scmp.ne.s32.totalorder %s87, %s90
    %p99 = scmp.eq.s32.totalorder %s14, 1
    %p100 = por %p98, %p99
    %p101 = scmp.ne.s32.totalorder %s90, %s91
    %p102 = scmp.eq.s32.totalorder %s14, 0
    %p103 = por %p101, %p102
    %p104 = scmp.ne.s32.totalorder %s90, %s91
    %p105 = scmp.eq.s32.totalorder %s15, 1
    %p106 = por %p104, %p105
    %p108 = scmp.ne.s32.totalorder %s91, %s107
    %p109 = scmp.eq.s32.totalorder %s15, 0
    %p110 = por %p108, %p109
    %p111 = scmp.le.s32.totalorder 1, %s9
    %p112 = scmp.lt.s32.totalorder %s9, 3
    %p113 = pnand %p111, %p112
    %p114 = pneg %p113
    // Predicated region
    $region9: #{asff_level1_forward.5} parent=5 // pred_check
      _
    $region10: #{asff_level1_forward.5} parent=5 // pred_check_branch
      %116 = sbr.rel (%p113) target = $region12
    $region11: #{asff_level1_forward.5} parent=5 // pred_region
      %s117 = ssub.s32 %s9, 1
      // Predicated region
      $region13: #{asff_level1_forward.5} parent=11 // pred_check
        %p118 = pneg %p56
      $region14: #{asff_level1_forward.5} parent=11 // pred_check_branch
        %120 = sbr.rel (%p118) target = $region16
      $region15: #{asff_level1_forward.5} parent=11 // pred_region
        _
      $region16: #{asff_level1_forward.5} parent=11 // pred_fallthru
        _
      // Predicated region
      $region17: #{asff_level1_forward.5} parent=11 // pred_check
        %p121 = pneg %p77
      $region18: #{asff_level1_forward.5} parent=11 // pred_check_branch
        %123 = sbr.rel (%p121) target = $region20
      $region19: #{asff_level1_forward.5} parent=11 // pred_region
        _
      $region20: #{asff_level1_forward.5} parent=11 // pred_fallthru
        _
    $region12: #{asff_level1_forward.5} parent=5 // pred_fallthru
      _
    %p124 = scmp.lt.s32.totalorder %s9, 2
    // Predicated region
    $region21: #{asff_level1_forward.5} parent=5 // pred_check
      %p125 = pneg %p124
    $region22: #{asff_level1_forward.5} parent=5 // pred_check_branch
      %127 = sbr.rel (%p125) target = $region24
    $region23: #{asff_level1_forward.5} parent=5 // pred_region
      // Predicated region
      $region25: #{asff_level1_forward.5} parent=23 // pred_check
        %p128 = pneg %p29
      $region26: #{asff_level1_forward.5} parent=23 // pred_check_branch
        %130 = sbr.rel (%p128) target = $region28
      $region27: #{asff_level1_forward.5} parent=23 // pred_region
        %s131 = smul.u32 8, %s9
        %p132 = scmp.lt.s32.totalorder %s131, 15
        %s133 = scalar_select %p132, %s131, 15
        %s134 = smul.addr %s133, 2
        %s135 = smul.addr %s134, 4
        %s136 = scalar_lea.vmem %s0, %s135
        %s137 = smul.u32 8, %s9
      $region28: #{asff_level1_forward.5} parent=23 // pred_fallthru
        _
    $region24: #{asff_level1_forward.5} parent=5 // pred_fallthru
      _
    %p138 = scmp.le.s32.totalorder 1, %s9
    %p139 = scmp.lt.s32.totalorder %s9, 3
    %p140 = pnand %p138, %p139
    %p141 = pneg %p140
    // Predicated region
    $region29: #{asff_level1_forward.5} parent=5 // pred_check
      _
    $region30: #{asff_level1_forward.5} parent=5 // pred_check_branch
      %143 = sbr.rel (%p140) target = $region32
    $region31: #{asff_level1_forward.5} parent=5 // pred_region
      %s144 = ssub.s32 %s9, 1
      %s145 = smul.u32 8, %s14
      %p146 = scmp.lt.s32.totalorder %s145, 15
      %s147 = scalar_select %p146, %s145, 15
      %s148 = smul.addr %s147, 2
      %s149 = smul.addr %s148, 4
      %s150 = scalar_lea.vmem %s0, %s149
      %p151 = pneg %p35
      %p152 = pneg %p32
      %p153 = pneg %p56
      %p154 = pneg %p53
      %p155 = pneg %p77
      %p156 = pneg %p74
      %p157 = pneg %p103
      %p158 = pneg %p100
      %s159 = smul.u32 8, %s14
      %p160 = scmp.lt.s32.totalorder %s159, 15
      %s161 = scalar_select %p160, %s159, 15
      %s162 = smul.addr %s161, 4
      %s163 = scalar_lea.vmem %s3, %s162
      %s164 = smul.u32 8, %s14
      %p165 = scmp.lt.s32.totalorder %s164, 15
      %s166 = scalar_select %p165, %s164, 15
      %s167 = smul.addr %s166, 2
      %s168 = smul.addr %s167, 4
      %s169 = scalar_lea.vmem %s0, %s168
      %s170 = smul.u32 8, %s14
      %s171 = smul.u32 8, %s14
      %p172 = scmp.lt.s32.totalorder %s171, 15
      %s173 = scalar_select %p172, %s171, 15
      %s174 = smul.addr %s173, 4
      %s175 = scalar_lea.vmem %s3, %s174
      %s176 = smul.u32 8, %s14
      %v178 = vld [vmem:[%s169] sm:$0xff]
      %v179 = vld [vmem:[%s169 + $0x8] sm:$0xff]
      %v180 = vld [vmem:[%s169 + $0x10] sm:$0xff]
      %v181 = vld [vmem:[%s169 + $0x18] sm:$0xff]
      %v182 = vld [vmem:[%s169 + $0x20] sm:$0xff]
      %v183 = vld [vmem:[%s169 + $0x28] sm:$0xff]
      %v184 = vld [vmem:[%s169 + $0x30] sm:$0xff]
      %v185 = vld [vmem:[%s169 + $0x38] sm:$0xff]
      %v186 = vld [vmem:[%s1] sm:$0xf]
      %v187 = vld [vmem:[%s1 + $0x4] sm:$0xf]
      %v188 = vld [vmem:[%s1 + $0x8] sm:$0xf]
      %v189 = vld [vmem:[%s1 + $0xc] sm:$0xf]
      %v190 = vld [vmem:[%s1 + $0x10] sm:$0xf]
      %v191 = vld [vmem:[%s1 + $0x14] sm:$0xf]
      %v192 = vld [vmem:[%s1 + $0x18] sm:$0xf]
      %v193 = vld [vmem:[%s1 + $0x1c] sm:$0xf]
      %v194 = vld [vmem:[%s1 + $0x20] sm:$0xf]
      %v195 = vld [vmem:[%s1 + $0x24] sm:$0xf]
      %v196 = vld [vmem:[%s1 + $0x28] sm:$0xf]
      %v197 = vld [vmem:[%s1 + $0x2c] sm:$0xf]
      %v198 = vld [vmem:[%s1 + $0x30] sm:$0xf]
      %v199 = vld [vmem:[%s1 + $0x34] sm:$0xf]
      %v200 = vld [vmem:[%s1 + $0x38] sm:$0xf]
      %v201 = vld [vmem:[%s1 + $0x3c] sm:$0xf]
      %v202 = vld [vmem:[%s1 + $0x40] sm:$0xf]
      %v203 = vld [vmem:[%s1 + $0x44] sm:$0xf]
      %v204 = vld [vmem:[%s1 + $0x48] sm:$0xf]
      %v205 = vld [vmem:[%s1 + $0x4c] sm:$0xf]
      %v206 = vld [vmem:[%s1 + $0x50] sm:$0xf]
      %v207 = vld [vmem:[%s1 + $0x54] sm:$0xf]
      %v208 = vld [vmem:[%s1 + $0x58] sm:$0xf]
      %v209 = vld [vmem:[%s1 + $0x5c] sm:$0xf]
      %v210 = vld [vmem:[%s1 + $0x60] sm:$0xf]
      %v211 = vld [vmem:[%s1 + $0x64] sm:$0xf]
      %v212 = vld [vmem:[%s1 + $0x68] sm:$0xf]
      %v213 = vld [vmem:[%s1 + $0x6c] sm:$0xf]
      %v214 = vld [vmem:[%s1 + $0x70] sm:$0xf]
      %v215 = vld [vmem:[%s1 + $0x74] sm:$0xf]
      %v216 = vld [vmem:[%s1 + $0x78] sm:$0xf]
      %v217 = vld [vmem:[%s1 + $0x7c] sm:$0xf]
      %v218 = vld [vmem:[%s2] sm:$0x1]
      %v220 = vlaneseq
      %v221 = vshrl.u32 %v220, 7
      %v222 = vsub.s32 0, %v221
      %v223 = vrot.slane %v218, %v222
      %v233 = vunpack.c.l.b16 %v178
      %v234 = vunpack.c.h.b16 %v178
      %v235 = vunpack.c.l.b16 %v179
      %v236 = vunpack.c.h.b16 %v179
      %v237 = vunpack.c.l.b16 %v180
      %v238 = vunpack.c.h.b16 %v180
      %v239 = vunpack.c.l.b16 %v181
      %v240 = vunpack.c.h.b16 %v181
      %v241 = vunpack.c.l.b16 %v182
      %v242 = vunpack.c.h.b16 %v182
      %v243 = vunpack.c.l.b16 %v183
      %v244 = vunpack.c.h.b16 %v183
      %v245 = vunpack.c.l.b16 %v184
      %v246 = vunpack.c.h.b16 %v184
      %v247 = vunpack.c.l.b16 %v185
      %v248 = vunpack.c.h.b16 %v185
      %v249 = vpack.c.b16 %v235, %v233
      %v250 = vpack.c.b16 %v236, %v234
      %v251 = vpack.c.b16 %v239, %v237
      %v252 = vpack.c.b16 %v240, %v238
      %v253 = vpack.c.b16 %v243, %v241
      %v254 = vpack.c.b16 %v244, %v242
      %v255 = vpack.c.b16 %v247, %v245
      %v256 = vpack.c.b16 %v248, %v246
      %v297 = vunpack.c.l.b16 %v186
      %v298 = vunpack.c.l.b16 %v187
      %v299 = vunpack.c.l.b16 %v188
      %v300 = vunpack.c.l.b16 %v189
      %v301 = vunpack.c.l.b16 %v190
      %v302 = vunpack.c.l.b16 %v191
      %v303 = vunpack.c.l.b16 %v192
      %v304 = vunpack.c.l.b16 %v193
      %v305 = vunpack.c.l.b16 %v194
      %v306 = vunpack.c.l.b16 %v195
      %v307 = vunpack.c.l.b16 %v196
      %v308 = vunpack.c.l.b16 %v197
      %v309 = vunpack.c.l.b16 %v198
      %v310 = vunpack.c.l.b16 %v199
      %v311 = vunpack.c.l.b16 %v200
      %v312 = vunpack.c.l.b16 %v201
      %v313 = vunpack.c.l.b16 %v202
      %v314 = vunpack.c.l.b16 %v203
      %v315 = vunpack.c.l.b16 %v204
      %v316 = vunpack.c.l.b16 %v205
      %v317 = vunpack.c.l.b16 %v206
      %v318 = vunpack.c.l.b16 %v207
      %v319 = vunpack.c.l.b16 %v208
      %v320 = vunpack.c.l.b16 %v209
      %v321 = vunpack.c.l.b16 %v210
      %v322 = vunpack.c.l.b16 %v211
      %v323 = vunpack.c.l.b16 %v212
      %v324 = vunpack.c.l.b16 %v213
      %v325 = vunpack.c.l.b16 %v214
      %v326 = vunpack.c.l.b16 %v215
      %v327 = vunpack.c.l.b16 %v216
      %v328 = vunpack.c.l.b16 %v217
      %v329 = vpack.c.b16 %v298, %v297
      %v330 = vpack.c.b16 %v300, %v299
      %v331 = vpack.c.b16 %v302, %v301
      %v332 = vpack.c.b16 %v304, %v303
      %v333 = vpack.c.b16 %v306, %v305
      %v334 = vpack.c.b16 %v308, %v307
      %v335 = vpack.c.b16 %v310, %v309
      %v336 = vpack.c.b16 %v312, %v311
      %v337 = vpack.c.b16 %v314, %v313
      %v338 = vpack.c.b16 %v316, %v315
      %v339 = vpack.c.b16 %v318, %v317
      %v340 = vpack.c.b16 %v320, %v319
      %v341 = vpack.c.b16 %v322, %v321
      %v342 = vpack.c.b16 %v324, %v323
      %v343 = vpack.c.b16 %v326, %v325
      %v344 = vpack.c.b16 %v328, %v327
      %361 = vmatprep.subr.bf16.mxu0 0
      %362 = vmatpush1.bf16.msra.mxu0 %v336
      %363 = vmatprep.subr.bf16.mxu0 0
      %364 = vmatpush1.bf16.msra.mxu0 %v335
      %365 = vmatprep.subr.bf16.mxu0 0
      %366 = vmatpush1.bf16.msra.mxu0 %v334
      %367 = vmatprep.subr.bf16.mxu0 0
      %368 = vmatpush1.bf16.msra.mxu0 %v333
      %369 = vmatprep.subr.bf16.mxu0 0
      %370 = vmatpush1.bf16.msra.mxu0 %v332
      %371 = vmatprep.subr.bf16.mxu0 0
      %372 = vmatpush1.bf16.msra.mxu0 %v331
      %373 = vmatprep.subr.bf16.mxu0 0
      %374 = vmatpush1.bf16.msra.mxu0 %v330
      %375 = vmatprep.subr.bf16.mxu0 0
      %376 = vmatpush1.bf16.msra.mxu0 %v329
      %377 = vmatprep.subr.bf16.mxu0 0
      %378 = vmatpush2.bf16.msra.mxu0 %v344
      %379 = vmatprep.subr.bf16.mxu0 0
      %380 = vmatpush2.bf16.msra.mxu0 %v343
      %381 = vmatprep.subr.bf16.mxu0 0
      %382 = vmatpush2.bf16.msra.mxu0 %v342
      %383 = vmatprep.subr.bf16.mxu0 0
      %384 = vmatpush2.bf16.msra.mxu0 %v341
      %385 = vmatprep.subr.bf16.mxu0 0
      %386 = vmatpush2.bf16.msra.mxu0 %v340
      %387 = vmatprep.subr.bf16.mxu0 0
      %388 = vmatpush2.bf16.msra.mxu0 %v339
      %389 = vmatprep.subr.bf16.mxu0 0
      %390 = vmatpush2.bf16.msra.mxu0 %v338
      %391 = vmatprep.subr.bf16.mxu0 0
      %392 = vmatpush2.bf16.msra.mxu0 %v337
      %393 = vmatprep.mubr.bf16.mxu0 %v250
      %394 = vmatmul.mubr.bf16.gmra.mxu0 %v249
      %v395 = vpop.f32.mrf.mxu0
      %v396 = vadd.f32 %v223, %v395
      %v397 = vpop.f32.mrf.mxu0
      %v398 = vpop.f32.mrf.mxu0
      %v399 = vadd.f32 %v223, %v398
      %v400 = vpop.f32.mrf.mxu0
      %401 = vmatprep.mubr.bf16.mxu0 %v252
      %402 = vmatmul.mubr.bf16.gmra.mxu0 %v251
      %v403 = vpop.f32.mrf.mxu0
      %v404 = vadd.f32 %v223, %v403
      %v405 = vpop.f32.mrf.mxu0
      %v406 = vpop.f32.mrf.mxu0
      %v407 = vadd.f32 %v223, %v406
      %v408 = vpop.f32.mrf.mxu0
      %409 = vmatprep.mubr.bf16.mxu0 %v254
      %410 = vmatmul.mubr.bf16.gmra.mxu0 %v253
      %v411 = vpop.f32.mrf.mxu0
      %v412 = vadd.f32 %v223, %v411
      %v413 = vpop.f32.mrf.mxu0
      %v414 = vpop.f32.mrf.mxu0
      %v415 = vadd.f32 %v223, %v414
      %v416 = vpop.f32.mrf.mxu0
      %417 = vmatprep.mubr.bf16.mxu0 %v256
      %418 = vmatmul.mubr.bf16.gmra.mxu0 %v255
      %v419 = vpop.f32.mrf.mxu0
      %v420 = vadd.f32 %v223, %v419
      %v421 = vpop.f32.mrf.mxu0
      %v422 = vpop.f32.mrf.mxu0
      %v423 = vadd.f32 %v223, %v422
      %v424 = vpop.f32.mrf.mxu0
      %425 = vdwg.mxu0
      %v426 = vmax.f32 %v396, 0.0
      %v427 = vmax.f32 %v399, 0.0
      %v428 = vmax.f32 %v404, 0.0
      %v429 = vmax.f32 %v407, 0.0
      %v430 = vmax.f32 %v412, 0.0
      %v431 = vmax.f32 %v415, 0.0
      %v432 = vmax.f32 %v420, 0.0
      %v433 = vmax.f32 %v423, 0.0
      %v434 = vpack.c.bf16 %v427, %v426
      %v435 = vpack.c.bf16 %v429, %v428
      %v436 = vpack.c.bf16 %v431, %v430
      %v437 = vpack.c.bf16 %v433, %v432
      %v442 = vunpack.c.l.b16 %v434
      %v443 = vunpack.c.h.b16 %v434
      %v444 = vunpack.c.l.b16 %v435
      %v445 = vunpack.c.h.b16 %v435
      %v446 = vunpack.c.l.b16 %v436
      %v447 = vunpack.c.h.b16 %v436
      %v448 = vunpack.c.l.b16 %v437
      %v449 = vunpack.c.h.b16 %v437
      %v450 = vpack.c.b16 %v442, %v442
      %v451 = vpack.c.b16 %v443, %v443
      %v452 = vpack.c.b16 %v444, %v444
      %v453 = vpack.c.b16 %v445, %v445
      %v454 = vpack.c.b16 %v446, %v446
      %v455 = vpack.c.b16 %v447, %v447
      %v456 = vpack.c.b16 %v448, %v448
      %v457 = vpack.c.b16 %v449, %v449
      %466 = vst [vmem:[%s175] sm:$0xf] %v450
      %467 = vst [vmem:[%s175 + $0x4] sm:$0xf] %v451
      %468 = vst [vmem:[%s175 + $0x8] sm:$0xf] %v452
      %469 = vst [vmem:[%s175 + $0xc] sm:$0xf] %v453
      %470 = vst [vmem:[%s175 + $0x10] sm:$0xf] %v454
      %471 = vst [vmem:[%s175 + $0x14] sm:$0xf] %v455
      %472 = vst [vmem:[%s175 + $0x18] sm:$0xf] %v456
      %473 = vst [vmem:[%s175 + $0x1c] sm:$0xf] %v457
      %s474 = smul.u32 8, %s14
      %p475 = scmp.lt.s32.totalorder %s474, 15
      %s476 = scalar_select %p475, %s474, 15
      %s477 = smul.addr %s476, 4
      %s478 = scalar_lea.vmem %s3, %s477
      // Predicated region
      $region33: #{asff_level1_forward.5} parent=31 // pred_check
        %p479 = pneg %p100
      $region34: #{asff_level1_forward.5} parent=31 // pred_check_branch
        %481 = sbr.rel (%p479) target = $region36
      $region35: #{asff_level1_forward.5} parent=31 // pred_region
        %s482 = smul.u32 8, %s14
      $region36: #{asff_level1_forward.5} parent=31 // pred_fallthru
        _
    $region32: #{asff_level1_forward.5} parent=5 // pred_fallthru
      _
    %p483 = scmp.le.s32.totalorder 2, %s9
    // Predicated region
    $region37: #{asff_level1_forward.5} parent=5 // pred_check
      %p484 = pneg %p483
    $region38: #{asff_level1_forward.5} parent=5 // pred_check_branch
      %486 = sbr.rel (%p484) target = $region40
    $region39: #{asff_level1_forward.5} parent=5 // pred_region
      %s487 = ssub.s32 %s9, 2
      // Predicated region
      $region41: #{asff_level1_forward.5} parent=39 // pred_check
        %p488 = pneg %p106
      $region42: #{asff_level1_forward.5} parent=39 // pred_check_branch
        %490 = sbr.rel (%p488) target = $region44
      $region43: #{asff_level1_forward.5} parent=39 // pred_region
        %s491 = smul.u32 8, %s15
        %p492 = scmp.lt.s32.totalorder %s491, 15
        %s493 = scalar_select %p492, %s491, 15
        %s494 = smul.addr %s493, 4
        %s495 = scalar_lea.vmem %s3, %s494
      $region44: #{asff_level1_forward.5} parent=39 // pred_fallthru
        _
    $region40: #{asff_level1_forward.5} parent=5 // pred_fallthru
      _
  $region6: #{asff_level1_forward.5} parent=0 // loop_footer
    %s13 = sadd.s32 1, %s9
  $region7: #{asff_level1_forward.5} parent=0 // loop_footer_branch
    %8 = sbr.rel target = $region3
  $region8: #{asff_level1_forward.5} parent=0 // loop_exit
    _

// kernel: asff_level1_forward.8
$region0: #{asff_level1_forward.8}
  #allocation0 [shape = 'u32[]', space=smem, size = 0x4, offset = 0x4, fixed_abs, tag = 'smem constant byte address 0x4 - core index']
  #allocation1 [shape = 'u32[144,128]{1,0:T(1,128)}', space=vmem, size = 0x12000, scoped, tag = 'internal scratch']
  %s0 = inlined_call_operand.vmem [shape: bf16[512,128], index: 0, kind: input, shape index: {}]
  %s1 = inlined_call_operand.vmem [shape: bf16[512,128], index: 1, kind: input, shape index: {}]
  %s2 = inlined_call_operand.vmem [shape: bf16[512,128], index: 2, kind: input, shape index: {}]
  %s3 = inlined_call_operand.vmem [shape: bf16[512,128], index: 3, kind: input, shape index: {}]
  %s4 = inlined_call_operand.vmem [shape: bf16[512,64], index: 4, kind: input, shape index: {}]
  %s5 = inlined_call_operand.vmem [shape: f32[1,64], index: 5, kind: input, shape index: {}]
  %s6 = inlined_call_operand.vmem [shape: f32[64,4], index: 6, kind: input, shape index: {}]
  %s7 = inlined_call_operand.vmem [shape: f32[1,4], index: 7, kind: input, shape index: {}]
  %s8 = inlined_call_operand.vmem [shape: bf16[512,128], index: 8, kind: output, shape index: {}]
  %s9 = sld [smem:[#allocation0]]
  $region65: #{asff_level1_forward.8} parent=0
    _
  %s11 = ssub.s32 1, %s9
  %s12 = scalar_select 0, %s11, %s9
  loop: start=0, step=1, limit=4
  $region2: #{asff_level1_forward.8} parent=0 // loop_pre_header
    _
  $region3: #{asff_level1_forward.8} parent=0 // loop_header
    %s14 = sphi 0, %s18
    %p15 = scmp.ge.s32.totalorder %s14, 4
    %s24 = sphi 0, %s26
    %s27 = sphi 0, %s24
    %s28 = sphi 0, %s27
    %s44 = sphi 0, %s28
    %s50 = sphi 0, %s52
    %s53 = sphi 0, %s50
    %s54 = sphi 0, %s53
    %s70 = sphi 0, %s54
    %s76 = sphi 0, %s78
    %s79 = sphi 0, %s76
    %s80 = sphi 0, %s79
    %s96 = sphi 0, %s80
    %s102 = sphi 0, %s104
    %s105 = sphi 0, %s102
    %s106 = sphi 0, %s105
    %s122 = sphi 0, %s106
    %s126 = sphi 0, %s126
    %s128 = sphi 0, %s126
    %s129 = sphi 0, %s128
    %s143 = sphi 0, %s129
    %s147 = sphi 0, %s147
    %s149 = sphi 0, %s147
    %s150 = sphi 0, %s149
    %s164 = sphi 0, %s150
    %s168 = sphi 0, %s168
    %s170 = sphi 0, %s168
    %s171 = sphi 0, %s170
    %s185 = sphi 0, %s171
    %s189 = sphi 0, %s189
    %s191 = sphi 0, %s189
    %s192 = sphi 0, %s191
    %s206 = sphi 0, %s192
    %s212 = sphi 0, %s214
    %s215 = sphi 0, %s212
    %s216 = sphi 0, %s215
    %s232 = sphi 0, %s216
  $region4: #{asff_level1_forward.8} parent=0 // loop_header_branch
    %17 = sbr.rel (%p15) target = $region8
  $region5: #{asff_level1_forward.8} parent=0 // loop_body
    %s19 = ssub.s32 %s14, 1
    %s20 = ssub.s32 %s14, 2
    %s21 = sadd.s32 %s14, 1
    %s22 = ssub.s32 %s14, %s21
    %p23 = scmp.eq.s32.totalorder %s22, 0
    %s25 = sadd.s32 %s24, 1
    %s26 = scalar_select %p23, %s24, %s25
    %p29 = pneg %p23
    %p30 = scmp.eq.s32.totalorder %s14, 1
    %p31 = por %p29, %p30
    %p32 = scmp.ne.s32.totalorder %s24, %s27
    %p33 = scmp.eq.s32.totalorder %s14, 0
    %p34 = por %p32, %p33
    %p35 = scmp.ne.s32.totalorder %s24, %s27
    %p36 = scmp.eq.s32.totalorder %s19, 1
    %p37 = por %p35, %p36
    %p38 = scmp.ne.s32.totalorder %s27, %s28
    %p39 = scmp.eq.s32.totalorder %s19, 0
    %p40 = por %p38, %p39
    %p41 = scmp.ne.s32.totalorder %s27, %s28
    %p42 = scmp.eq.s32.totalorder %s20, 1
    %p43 = por %p41, %p42
    %p45 = scmp.ne.s32.totalorder %s28, %s44
    %p46 = scmp.eq.s32.totalorder %s20, 0
    %p47 = por %p45, %p46
    %s48 = ssub.s32 %s14, %s21
    %p49 = scmp.eq.s32.totalorder %s48, 0
    %s51 = sadd.s32 %s50, 1
    %s52 = scalar_select %p49, %s50, %s51
    %p55 = pneg %p49
    %p56 = scmp.eq.s32.totalorder %s14, 1
    %p57 = por %p55, %p56
    %p58 = scmp.ne.s32.totalorder %s50, %s53
    %p59 = scmp.eq.s32.totalorder %s14, 0
    %p60 = por %p58, %p59
    %p61 = scmp.ne.s32.totalorder %s50, %s53
    %p62 = scmp.eq.s32.totalorder %s19, 1
    %p63 = por %p61, %p62
    %p64 = scmp.ne.s32.totalorder %s53, %s54
    %p65 = scmp.eq.s32.totalorder %s19, 0
    %p66 = por %p64, %p65
    %p67 = scmp.ne.s32.totalorder %s53, %s54
    %p68 = scmp.eq.s32.totalorder %s20, 1
    %p69 = por %p67, %p68
    %p71 = scmp.ne.s32.totalorder %s54, %s70
    %p72 = scmp.eq.s32.totalorder %s20, 0
    %p73 = por %p71, %p72
    %s74 = ssub.s32 %s14, %s21
    %p75 = scmp.eq.s32.totalorder %s74, 0
    %s77 = sadd.s32 %s76, 1
    %s78 = scalar_select %p75, %s76, %s77
    %p81 = pneg %p75
    %p82 = scmp.eq.s32.totalorder %s14, 1
    %p83 = por %p81, %p82
    %p84 = scmp.ne.s32.totalorder %s76, %s79
    %p85 = scmp.eq.s32.totalorder %s14, 0
    %p86 = por %p84, %p85
    %p87 = scmp.ne.s32.totalorder %s76, %s79
    %p88 = scmp.eq.s32.totalorder %s19, 1
    %p89 = por %p87, %p88
    %p90 = scmp.ne.s32.totalorder %s79, %s80
    %p91 = scmp.eq.s32.totalorder %s19, 0
    %p92 = por %p90, %p91
    %p93 = scmp.ne.s32.totalorder %s79, %s80
    %p94 = scmp.eq.s32.totalorder %s20, 1
    %p95 = por %p93, %p94
    %p97 = scmp.ne.s32.totalorder %s80, %s96
    %p98 = scmp.eq.s32.totalorder %s20, 0
    %p99 = por %p97, %p98
    %s100 = ssub.s32 %s14, %s21
    %p101 = scmp.eq.s32.totalorder %s100, 0
    %s103 = sadd.s32 %s102, 1
    %s104 = scalar_select %p101, %s102, %s103
    %p107 = pneg %p101
    %p108 = scmp.eq.s32.totalorder %s14, 1
    %p109 = por %p107, %p108
    %p110 = scmp.ne.s32.totalorder %s102, %s105
    %p111 = scmp.eq.s32.totalorder %s14, 0
    %p112 = por %p110, %p111
    %p113 = scmp.ne.s32.totalorder %s102, %s105
    %p114 = scmp.eq.s32.totalorder %s19, 1
    %p115 = por %p113, %p114
    %p116 = scmp.ne.s32.totalorder %s105, %s106
    %p117 = scmp.eq.s32.totalorder %s19, 0
    %p118 = por %p116, %p117
    %p119 = scmp.ne.s32.totalorder %s105, %s106
    %p120 = scmp.eq.s32.totalorder %s20, 1
    %p121 = por %p119, %p120
    %p123 = scmp.ne.s32.totalorder %s106, %s122
    %p124 = scmp.eq.s32.totalorder %s20, 0
    %p125 = por %p123, %p124
    %s127 = sadd.s32 %s126, 1
    %p130 = scmp.eq.s32.totalorder %s14, 1
    %p131 = scmp.ne.s32.totalorder %s126, %s128
    %p132 = scmp.eq.s32.totalorder %s14, 0
    %p133 = por %p131, %p132
    %p134 = scmp.ne.s32.totalorder %s126, %s128
    %p135 = scmp.eq.s32.totalorder %s19, 1
    %p136 = por %p134, %p135
    %p137 = scmp.ne.s32.totalorder %s128, %s129
    %p138 = scmp.eq.s32.totalorder %s19, 0
    %p139 = por %p137, %p138
    %p140 = scmp.ne.s32.totalorder %s128, %s129
    %p141 = scmp.eq.s32.totalorder %s20, 1
    %p142 = por %p140, %p141
    %p144 = scmp.ne.s32.totalorder %s129, %s143
    %p145 = scmp.eq.s32.totalorder %s20, 0
    %p146 = por %p144, %p145
    %s148 = sadd.s32 %s147, 1
    %p151 = scmp.eq.s32.totalorder %s14, 1
    %p152 = scmp.ne.s32.totalorder %s147, %s149
    %p153 = scmp.eq.s32.totalorder %s14, 0
    %p154 = por %p152, %p153
    %p155 = scmp.ne.s32.totalorder %s147, %s149
    %p156 = scmp.eq.s32.totalorder %s19, 1
    %p157 = por %p155, %p156
    %p158 = scmp.ne.s32.totalorder %s149, %s150
    %p159 = scmp.eq.s32.totalorder %s19, 0
    %p160 = por %p158, %p159
    %p161 = scmp.ne.s32.totalorder %s149, %s150
    %p162 = scmp.eq.s32.totalorder %s20, 1
    %p163 = por %p161, %p162
    %p165 = scmp.ne.s32.totalorder %s150, %s164
    %p166 = scmp.eq.s32.totalorder %s20, 0
    %p167 = por %p165, %p166
    %s169 = sadd.s32 %s168, 1
    %p172 = scmp.eq.s32.totalorder %s14, 1
    %p173 = scmp.ne.s32.totalorder %s168, %s170
    %p174 = scmp.eq.s32.totalorder %s14, 0
    %p175 = por %p173, %p174
    %p176 = scmp.ne.s32.totalorder %s168, %s170
    %p177 = scmp.eq.s32.totalorder %s19, 1
    %p178 = por %p176, %p177
    %p179 = scmp.ne.s32.totalorder %s170, %s171
    %p180 = scmp.eq.s32.totalorder %s19, 0
    %p181 = por %p179, %p180
    %p182 = scmp.ne.s32.totalorder %s170, %s171
    %p183 = scmp.eq.s32.totalorder %s20, 1
    %p184 = por %p182, %p183
    %p186 = scmp.ne.s32.totalorder %s171, %s185
    %p187 = scmp.eq.s32.totalorder %s20, 0
    %p188 = por %p186, %p187
    %s190 = sadd.s32 %s189, 1
    %p193 = scmp.eq.s32.totalorder %s14, 1
    %p194 = scmp.ne.s32.totalorder %s189, %s191
    %p195 = scmp.eq.s32.totalorder %s14, 0
    %p196 = por %p194, %p195
    %p197 = scmp.ne.s32.totalorder %s189, %s191
    %p198 = scmp.eq.s32.totalorder %s19, 1
    %p199 = por %p197, %p198
    %p200 = scmp.ne.s32.totalorder %s191, %s192
    %p201 = scmp.eq.s32.totalorder %s19, 0
    %p202 = por %p200, %p201
    %p203 = scmp.ne.s32.totalorder %s191, %s192
    %p204 = scmp.eq.s32.totalorder %s20, 1
    %p205 = por %p203, %p204
    %p207 = scmp.ne.s32.totalorder %s192, %s206
    %p208 = scmp.eq.s32.totalorder %s20, 0
    %p209 = por %p207, %p208
    %s210 = ssub.s32 %s14, %s21
    %p211 = scmp.eq.s32.totalorder %s210, 0
    %s213 = sadd.s32 %s212, 1
    %s214 = scalar_select %p211, %s212, %s213
    %p217 = pneg %p211
    %p218 = scmp.eq.s32.totalorder %s14, 1
    %p219 = por %p217, %p218
    %p220 = scmp.ne.s32.totalorder %s212, %s215
    %p221 = scmp.eq.s32.totalorder %s14, 0
    %p222 = por %p220, %p221
    %p223 = scmp.ne.s32.totalorder %s212, %s215
    %p224 = scmp.eq.s32.totalorder %s19, 1
    %p225 = por %p223, %p224
    %p226 = scmp.ne.s32.totalorder %s215, %s216
    %p227 = scmp.eq.s32.totalorder %s19, 0
    %p228 = por %p226, %p227
    %p229 = scmp.ne.s32.totalorder %s215, %s216
    %p230 = scmp.eq.s32.totalorder %s20, 1
    %p231 = por %p229, %p230
    %p233 = scmp.ne.s32.totalorder %s216, %s232
    %p234 = scmp.eq.s32.totalorder %s20, 0
    %p235 = por %p233, %p234
    %p236 = scmp.le.s32.totalorder 1, %s14
    %p237 = scmp.lt.s32.totalorder %s14, 3
    %p238 = pnand %p236, %p237
    %p239 = pneg %p238
    // Predicated region
    $region9: #{asff_level1_forward.8} parent=5 // pred_check
      _
    $region10: #{asff_level1_forward.8} parent=5 // pred_check_branch
      %241 = sbr.rel (%p238) target = $region12
    $region11: #{asff_level1_forward.8} parent=5 // pred_region
      %s242 = ssub.s32 %s14, 1
      // Predicated region
      $region13: #{asff_level1_forward.8} parent=11 // pred_check
        %p243 = pneg %p139
      $region14: #{asff_level1_forward.8} parent=11 // pred_check_branch
        %245 = sbr.rel (%p243) target = $region16
      $region15: #{asff_level1_forward.8} parent=11 // pred_region
        _
      $region16: #{asff_level1_forward.8} parent=11 // pred_fallthru
        _
      // Predicated region
      $region17: #{asff_level1_forward.8} parent=11 // pred_check
        %p246 = pneg %p160
      $region18: #{asff_level1_forward.8} parent=11 // pred_check_branch
        %248 = sbr.rel (%p246) target = $region20
      $region19: #{asff_level1_forward.8} parent=11 // pred_region
        _
      $region20: #{asff_level1_forward.8} parent=11 // pred_fallthru
        _
      // Predicated region
      $region21: #{asff_level1_forward.8} parent=11 // pred_check
        %p249 = pneg %p181
      $region22: #{asff_level1_forward.8} parent=11 // pred_check_branch
        %251 = sbr.rel (%p249) target = $region24
      $region23: #{asff_level1_forward.8} parent=11 // pred_region
        _
      $region24: #{asff_level1_forward.8} parent=11 // pred_fallthru
        _
      // Predicated region
      $region25: #{asff_level1_forward.8} parent=11 // pred_check
        %p252 = pneg %p202
      $region26: #{asff_level1_forward.8} parent=11 // pred_check_branch
        %254 = sbr.rel (%p252) target = $region28
      $region27: #{asff_level1_forward.8} parent=11 // pred_region
        _
      $region28: #{asff_level1_forward.8} parent=11 // pred_fallthru
        _
    $region12: #{asff_level1_forward.8} parent=5 // pred_fallthru
      _
    %p255 = scmp.lt.s32.totalorder %s14, 2
    // Predicated region
    $region29: #{asff_level1_forward.8} parent=5 // pred_check
      %p256 = pneg %p255
    $region30: #{asff_level1_forward.8} parent=5 // pred_check_branch
      %258 = sbr.rel (%p256) target = $region32
    $region31: #{asff_level1_forward.8} parent=5 // pred_region
      // Predicated region
      $region33: #{asff_level1_forward.8} parent=31 // pred_check
        %p259 = pneg %p34
      $region34: #{asff_level1_forward.8} parent=31 // pred_check_branch
        %261 = sbr.rel (%p259) target = $region36
      $region35: #{asff_level1_forward.8} parent=31 // pred_region
        %s262 = smul.u32 32, %s14
        %p263 = scmp.lt.s32.totalorder %s262, 63
        %s264 = scalar_select %p263, %s262, 63
        %s265 = smul.addr %s264, 4
        %s266 = scalar_lea.vmem %s0, %s265
        %s267 = smul.u32 32, %s14
      $region36: #{asff_level1_forward.8} parent=31 // pred_fallthru
        _
      // Predicated region
      $region37: #{asff_level1_forward.8} parent=31 // pred_check
        %p268 = pneg %p60
      $region38: #{asff_level1_forward.8} parent=31 // pred_check_branch
        %270 = sbr.rel (%p268) target = $region40
      $region39: #{asff_level1_forward.8} parent=31 // pred_region
        %s271 = smul.u32 32, %s14
        %p272 = scmp.lt.s32.totalorder %s271, 63
        %s273 = scalar_select %p272, %s271, 63
        %s274 = smul.addr %s273, 4
        %s275 = scalar_lea.vmem %s1, %s274
        %s276 = smul.u32 32, %s14
      $region40: #{asff_level1_forward.8} parent=31 // pred_fallthru
        _
      // Predicated region
      $region41: #{asff_level1_forward.8} parent=31 // pred_check
        %p277 = pneg %p86
      $region42: #{asff_level1_forward.8} parent=31 // pred_check_branch
        %279 = sbr.rel (%p277) target = $region44
      $region43: #{asff_level1_forward.8} parent=31 // pred_region
        %s280 = smul.u32 32, %s14
        %p281 = scmp.lt.s32.totalorder %s280, 63
        %s282 = scalar_select %p281, %s280, 63
        %s283 = smul.addr %s282, 4
        %s284 = scalar_lea.vmem %s2, %s283
        %s285 = smul.u32 32, %s14
      $region44: #{asff_level1_forward.8} parent=31 // pred_fallthru
        _
      // Predicated region
      $region45: #{asff_level1_forward.8} parent=31 // pred_check
        %p286 = pneg %p112
      $region46: #{asff_level1_forward.8} parent=31 // pred_check_branch
        %288 = sbr.rel (%p286) target = $region48
      $region47: #{asff_level1_forward.8} parent=31 // pred_region
        %s289 = smul.u32 32, %s14
        %p290 = scmp.lt.s32.totalorder %s289, 63
        %s291 = scalar_select %p290, %s289, 63
        %s292 = smul.addr %s291, 4
        %s293 = scalar_lea.vmem %s3, %s292
        %s294 = smul.u32 32, %s14
      $region48: #{asff_level1_forward.8} parent=31 // pred_fallthru
        _
    $region32: #{asff_level1_forward.8} parent=5 // pred_fallthru
      _
    %p295 = scmp.le.s32.totalorder 1, %s14
    %p296 = scmp.lt.s32.totalorder %s14, 3
    %p297 = pnand %p295, %p296
    %p298 = pneg %p297
    // Predicated region
    $region49: #{asff_level1_forward.8} parent=5 // pred_check
      _
    $region50: #{asff_level1_forward.8} parent=5 // pred_check_branch
      %300 = sbr.rel (%p297) target = $region52
    $region51: #{asff_level1_forward.8} parent=5 // pred_region
      %s301 = ssub.s32 %s14, 1
      %s302 = smul.u32 32, %s19
      %p303 = scmp.lt.s32.totalorder %s302, 63
      %s304 = scalar_select %p303, %s302, 63
      %s305 = smul.addr %s304, 4
      %s306 = scalar_lea.vmem %s0, %s305
      %p307 = pneg %p40
      %p308 = pneg %p37
      %s309 = smul.u32 32, %s19
      %p310 = scmp.lt.s32.totalorder %s309, 63
      %s311 = scalar_select %p310, %s309, 63
      %s312 = smul.addr %s311, 4
      %s313 = scalar_lea.vmem %s1, %s312
      %p314 = pneg %p66
      %p315 = pneg %p63
      %s316 = smul.u32 32, %s19
      %p317 = scmp.lt.s32.totalorder %s316, 63
      %s318 = scalar_select %p317, %s316, 63
      %s319 = smul.addr %s318, 4
      %s320 = scalar_lea.vmem %s2, %s319
      %p321 = pneg %p92
      %p322 = pneg %p89
      %s323 = smul.u32 32, %s19
      %p324 = scmp.lt.s32.totalorder %s323, 63
      %s325 = scalar_select %p324, %s323, 63
      %s326 = smul.addr %s325, 4
      %s327 = scalar_lea.vmem %s3, %s326
      %p328 = pneg %p118
      %p329 = pneg %p115
      %p330 = pneg %p139
      %p331 = pneg %p136
      %p332 = pneg %p160
      %p333 = pneg %p157
      %p334 = pneg %p181
      %p335 = pneg %p178
      %p336 = pneg %p202
      %p337 = pneg %p199
      %p338 = pneg %p228
      %p339 = pneg %p225
      %s340 = smul.u32 32, %s19
      %p341 = scmp.lt.s32.totalorder %s340, 63
      %s342 = scalar_select %p341, %s340, 63
      %s343 = smul.addr %s342, 4
      %s344 = scalar_lea.vmem %s8, %s343
      %s345 = smul.u32 32, %s19
      %p346 = scmp.lt.s32.totalorder %s345, 63
      %s347 = scalar_select %p346, %s345, 63
      %s348 = smul.addr %s347, 4
      %s349 = scalar_lea.vmem %s0, %s348
      %s350 = smul.u32 32, %s19
      %s351 = smul.u32 32, %s19
      %p352 = scmp.lt.s32.totalorder %s351, 63
      %s353 = scalar_select %p352, %s351, 63
      %s354 = smul.addr %s353, 4
      %s355 = scalar_lea.vmem %s1, %s354
      %s356 = smul.u32 32, %s19
      %s357 = smul.u32 32, %s19
      %p358 = scmp.lt.s32.totalorder %s357, 63
      %s359 = scalar_select %p358, %s357, 63
      %s360 = smul.addr %s359, 4
      %s361 = scalar_lea.vmem %s2, %s360
      %s362 = smul.u32 32, %s19
      %s363 = smul.u32 32, %s19
      %p364 = scmp.lt.s32.totalorder %s363, 63
      %s365 = scalar_select %p364, %s363, 63
      %s366 = smul.addr %s365, 4
      %s367 = scalar_lea.vmem %s3, %s366
      %s368 = smul.u32 32, %s19
      %s369 = smul.u32 32, %s19
      %p370 = scmp.lt.s32.totalorder %s369, 63
      %s371 = scalar_select %p370, %s369, 63
      %s372 = smul.addr %s371, 4
      %s373 = scalar_lea.vmem %s8, %s372
      %s374 = smul.u32 32, %s19
      %v376 = vld [vmem:[%s349] sm:$0xf]
      %v377 = vld [vmem:[%s349 + $0x4] sm:$0xf]
      %v378 = vld [vmem:[%s349 + $0x8] sm:$0xf]
      %v379 = vld [vmem:[%s349 + $0xc] sm:$0xf]
      %v380 = vld [vmem:[%s349 + $0x10] sm:$0xf]
      %v381 = vld [vmem:[%s349 + $0x14] sm:$0xf]
      %v382 = vld [vmem:[%s349 + $0x18] sm:$0xf]
      %v383 = vld [vmem:[%s349 + $0x1c] sm:$0xf]
      %v384 = vld [vmem:[%s349 + $0x20] sm:$0xf]
      %v385 = vld [vmem:[%s349 + $0x24] sm:$0xf]
      %v386 = vld [vmem:[%s349 + $0x28] sm:$0xf]
      %v387 = vld [vmem:[%s349 + $0x2c] sm:$0xf]
      %v388 = vld [vmem:[%s349 + $0x30] sm:$0xf]
      %v389 = vld [vmem:[%s349 + $0x34] sm:$0xf]
      %v390 = vld [vmem:[%s349 + $0x38] sm:$0xf]
      %v391 = vld [vmem:[%s349 + $0x3c] sm:$0xf]
      %v392 = vld [vmem:[%s349 + $0x40] sm:$0xf]
      %v393 = vld [vmem:[%s349 + $0x44] sm:$0xf]
      %v394 = vld [vmem:[%s349 + $0x48] sm:$0xf]
      %v395 = vld [vmem:[%s349 + $0x4c] sm:$0xf]
      %v396 = vld [vmem:[%s349 + $0x50] sm:$0xf]
      %v397 = vld [vmem:[%s349 + $0x54] sm:$0xf]
      %v398 = vld [vmem:[%s349 + $0x58] sm:$0xf]
      %v399 = vld [vmem:[%s349 + $0x5c] sm:$0xf]
      %v400 = vld [vmem:[%s349 + $0x60] sm:$0xf]
      %v401 = vld [vmem:[%s349 + $0x64] sm:$0xf]
      %v402 = vld [vmem:[%s349 + $0x68] sm:$0xf]
      %v403 = vld [vmem:[%s349 + $0x6c] sm:$0xf]
      %v404 = vld [vmem:[%s349 + $0x70] sm:$0xf]
      %v405 = vld [vmem:[%s349 + $0x74] sm:$0xf]
      %v406 = vld [vmem:[%s349 + $0x78] sm:$0xf]
      %v407 = vld [vmem:[%s349 + $0x7c] sm:$0xf]
      %v408 = vld [vmem:[%s355] sm:$0xf]
      %v409 = vld [vmem:[%s355 + $0x4] sm:$0xf]
      %v410 = vld [vmem:[%s355 + $0x8] sm:$0xf]
      %v411 = vld [vmem:[%s355 + $0xc] sm:$0xf]
      %v412 = vld [vmem:[%s355 + $0x10] sm:$0xf]
      %v413 = vld [vmem:[%s355 + $0x14] sm:$0xf]
      %v414 = vld [vmem:[%s355 + $0x18] sm:$0xf]
      %v415 = vld [vmem:[%s355 + $0x1c] sm:$0xf]
      %v416 = vld [vmem:[%s355 + $0x20] sm:$0xf]
      %v417 = vld [vmem:[%s355 + $0x24] sm:$0xf]
      %v418 = vld [vmem:[%s355 + $0x28] sm:$0xf]
      %v419 = vld [vmem:[%s355 + $0x2c] sm:$0xf]
      %v420 = vld [vmem:[%s355 + $0x30] sm:$0xf]
      %v421 = vld [vmem:[%s355 + $0x34] sm:$0xf]
      %v422 = vld [vmem:[%s355 + $0x38] sm:$0xf]
      %v423 = vld [vmem:[%s355 + $0x3c] sm:$0xf]
      %v424 = vld [vmem:[%s355 + $0x40] sm:$0xf]
      %v425 = vld [vmem:[%s355 + $0x44] sm:$0xf]
      %v426 = vld [vmem:[%s355 + $0x48] sm:$0xf]
      %v427 = vld [vmem:[%s355 + $0x4c] sm:$0xf]
      %v428 = vld [vmem:[%s355 + $0x50] sm:$0xf]
      %v429 = vld [vmem:[%s355 + $0x54] sm:$0xf]
      %v430 = vld [vmem:[%s355 + $0x58] sm:$0xf]
      %v431 = vld [vmem:[%s355 + $0x5c] sm:$0xf]
      %v432 = vld [vmem:[%s355 + $0x60] sm:$0xf]
      %v433 = vld [vmem:[%s355 + $0x64] sm:$0xf]
      %v434 = vld [vmem:[%s355 + $0x68] sm:$0xf]
      %v435 = vld [vmem:[%s355 + $0x6c] sm:$0xf]
      %v436 = vld [vmem:[%s355 + $0x70] sm:$0xf]
      %v437 = vld [vmem:[%s355 + $0x74] sm:$0xf]
      %v438 = vld [vmem:[%s355 + $0x78] sm:$0xf]
      %v439 = vld [vmem:[%s355 + $0x7c] sm:$0xf]
      %v440 = vld [vmem:[%s361] sm:$0xf]
      %v441 = vld [vmem:[%s361 + $0x4] sm:$0xf]
      %v442 = vld [vmem:[%s361 + $0x8] sm:$0xf]
      %v443 = vld [vmem:[%s361 + $0xc] sm:$0xf]
      %v444 = vld [vmem:[%s361 + $0x10] sm:$0xf]
      %v445 = vld [vmem:[%s361 + $0x14] sm:$0xf]
      %v446 = vld [vmem:[%s361 + $0x18] sm:$0xf]
      %v447 = vld [vmem:[%s361 + $0x1c] sm:$0xf]
      %v448 = vld [vmem:[%s361 + $0x20] sm:$0xf]
      %v449 = vld [vmem:[%s361 + $0x24] sm:$0xf]
      %v450 = vld [vmem:[%s361 + $0x28] sm:$0xf]
      %v451 = vld [vmem:[%s361 + $0x2c] sm:$0xf]
      %v452 = vld [vmem:[%s361 + $0x30] sm:$0xf]
      %v453 = vld [vmem:[%s361 + $0x34] sm:$0xf]
      %v454 = vld [vmem:[%s361 + $0x38] sm:$0xf]
      %v455 = vld [vmem:[%s361 + $0x3c] sm:$0xf]
      %v456 = vld [vmem:[%s361 + $0x40] sm:$0xf]
      %v457 = vld [vmem:[%s361 + $0x44] sm:$0xf]
      %v458 = vld [vmem:[%s361 + $0x48] sm:$0xf]
      %v459 = vld [vmem:[%s361 + $0x4c] sm:$0xf]
      %v460 = vld [vmem:[%s361 + $0x50] sm:$0xf]
      %v461 = vld [vmem:[%s361 + $0x54] sm:$0xf]
      %v462 = vld [vmem:[%s361 + $0x58] sm:$0xf]
      %v463 = vld [vmem:[%s361 + $0x5c] sm:$0xf]
      %v464 = vld [vmem:[%s361 + $0x60] sm:$0xf]
      %v465 = vld [vmem:[%s361 + $0x64] sm:$0xf]
      %v466 = vld [vmem:[%s361 + $0x68] sm:$0xf]
      %v467 = vld [vmem:[%s361 + $0x6c] sm:$0xf]
      %v468 = vld [vmem:[%s361 + $0x70] sm:$0xf]
      %v469 = vld [vmem:[%s361 + $0x74] sm:$0xf]
      %v470 = vld [vmem:[%s361 + $0x78] sm:$0xf]
      %v471 = vld [vmem:[%s361 + $0x7c] sm:$0xf]
      %v472 = vld [vmem:[%s367] sm:$0xf]
      %v473 = vld [vmem:[%s367 + $0x4] sm:$0xf]
      %v474 = vld [vmem:[%s367 + $0x8] sm:$0xf]
      %v475 = vld [vmem:[%s367 + $0xc] sm:$0xf]
      %v476 = vld [vmem:[%s367 + $0x10] sm:$0xf]
      %v477 = vld [vmem:[%s367 + $0x14] sm:$0xf]
      %v478 = vld [vmem:[%s367 + $0x18] sm:$0xf]
      %v479 = vld [vmem:[%s367 + $0x1c] sm:$0xf]
      %v480 = vld [vmem:[%s367 + $0x20] sm:$0xf]
      %v481 = vld [vmem:[%s367 + $0x24] sm:$0xf]
      %v482 = vld [vmem:[%s367 + $0x28] sm:$0xf]
      %v483 = vld [vmem:[%s367 + $0x2c] sm:$0xf]
      %v484 = vld [vmem:[%s367 + $0x30] sm:$0xf]
      %v485 = vld [vmem:[%s367 + $0x34] sm:$0xf]
      %v486 = vld [vmem:[%s367 + $0x38] sm:$0xf]
      %v487 = vld [vmem:[%s367 + $0x3c] sm:$0xf]
      %v488 = vld [vmem:[%s367 + $0x40] sm:$0xf]
      %v489 = vld [vmem:[%s367 + $0x44] sm:$0xf]
      %v490 = vld [vmem:[%s367 + $0x48] sm:$0xf]
      %v491 = vld [vmem:[%s367 + $0x4c] sm:$0xf]
      %v492 = vld [vmem:[%s367 + $0x50] sm:$0xf]
      %v493 = vld [vmem:[%s367 + $0x54] sm:$0xf]
      %v494 = vld [vmem:[%s367 + $0x58] sm:$0xf]
      %v495 = vld [vmem:[%s367 + $0x5c] sm:$0xf]
      %v496 = vld [vmem:[%s367 + $0x60] sm:$0xf]
      %v497 = vld [vmem:[%s367 + $0x64] sm:$0xf]
      %v498 = vld [vmem:[%s367 + $0x68] sm:$0xf]
      %v499 = vld [vmem:[%s367 + $0x6c] sm:$0xf]
      %v500 = vld [vmem:[%s367 + $0x70] sm:$0xf]
      %v501 = vld [vmem:[%s367 + $0x74] sm:$0xf]
      %v502 = vld [vmem:[%s367 + $0x78] sm:$0xf]
      %v503 = vld [vmem:[%s367 + $0x7c] sm:$0xf]
      %v536 = vunpack.c.l.b16 %v376
      %v537 = vunpack.c.l.b16 %v377
      %v538 = vunpack.c.l.b16 %v378
      %v539 = vunpack.c.l.b16 %v379
      %v540 = vunpack.c.l.b16 %v380
      %v541 = vunpack.c.l.b16 %v381
      %v542 = vunpack.c.l.b16 %v382
      %v543 = vunpack.c.l.b16 %v383
      %v544 = vunpack.c.l.b16 %v384
      %v545 = vunpack.c.l.b16 %v385
      %v546 = vunpack.c.l.b16 %v386
      %v547 = vunpack.c.l.b16 %v387
      %v548 = vunpack.c.l.b16 %v388
      %v549 = vunpack.c.l.b16 %v389
      %v550 = vunpack.c.l.b16 %v390
      %v551 = vunpack.c.l.b16 %v391
      %v552 = vunpack.c.l.b16 %v392
      %v553 = vunpack.c.l.b16 %v393
      %v554 = vunpack.c.l.b16 %v394
      %v555 = vunpack.c.l.b16 %v395
      %v556 = vunpack.c.l.b16 %v396
      %v557 = vunpack.c.l.b16 %v397
      %v558 = vunpack.c.l.b16 %v398
      %v559 = vunpack.c.l.b16 %v399
      %v560 = vunpack.c.l.b16 %v400
      %v561 = vunpack.c.l.b16 %v401
      %v562 = vunpack.c.l.b16 %v402
      %v563 = vunpack.c.l.b16 %v403
      %v564 = vunpack.c.l.b16 %v404
      %v565 = vunpack.c.l.b16 %v405
      %v566 = vunpack.c.l.b16 %v406
      %v567 = vunpack.c.l.b16 %v407
      %v568 = vpack.c.b16 %v537, %v536
      %v569 = vpack.c.b16 %v539, %v538
      %v570 = vpack.c.b16 %v541, %v540
      %v571 = vpack.c.b16 %v543, %v542
      %v572 = vpack.c.b16 %v545, %v544
      %v573 = vpack.c.b16 %v547, %v546
      %v574 = vpack.c.b16 %v549, %v548
      %v575 = vpack.c.b16 %v551, %v550
      %v576 = vpack.c.b16 %v553, %v552
      %v577 = vpack.c.b16 %v555, %v554
      %v578 = vpack.c.b16 %v557, %v556
      %v579 = vpack.c.b16 %v559, %v558
      %v580 = vpack.c.b16 %v561, %v560
      %v581 = vpack.c.b16 %v563, %v562
      %v582 = vpack.c.b16 %v565, %v564
      %v583 = vpack.c.b16 %v567, %v566
      %v632 = vunpack.c.l.b16 %v408
      %v633 = vunpack.c.l.b16 %v409
      %v634 = vunpack.c.l.b16 %v410
      %v635 = vunpack.c.l.b16 %v411
      %v636 = vunpack.c.l.b16 %v412
      %v637 = vunpack.c.l.b16 %v413
      %v638 = vunpack.c.l.b16 %v414
      %v639 = vunpack.c.l.b16 %v415
      %v640 = vunpack.c.l.b16 %v416
      %v641 = vunpack.c.l.b16 %v417
      %v642 = vunpack.c.l.b16 %v418
      %v643 = vunpack.c.l.b16 %v419
      %v644 = vunpack.c.l.b16 %v420
      %v645 = vunpack.c.l.b16 %v421
      %v646 = vunpack.c.l.b16 %v422
      %v647 = vunpack.c.l.b16 %v423
      %v648 = vunpack.c.l.b16 %v424
      %v649 = vunpack.c.l.b16 %v425
      %v650 = vunpack.c.l.b16 %v426
      %v651 = vunpack.c.l.b16 %v427
      %v652 = vunpack.c.l.b16 %v428
      %v653 = vunpack.c.l.b16 %v429
      %v654 = vunpack.c.l.b16 %v430
      %v655 = vunpack.c.l.b16 %v431
      %v656 = vunpack.c.l.b16 %v432
      %v657 = vunpack.c.l.b16 %v433
      %v658 = vunpack.c.l.b16 %v434
      %v659 = vunpack.c.l.b16 %v435
      %v660 = vunpack.c.l.b16 %v436
      %v661 = vunpack.c.l.b16 %v437
      %v662 = vunpack.c.l.b16 %v438
      %v663 = vunpack.c.l.b16 %v439
      %v664 = vpack.c.b16 %v633, %v632
      %v665 = vpack.c.b16 %v635, %v634
      %v666 = vpack.c.b16 %v637, %v636
      %v667 = vpack.c.b16 %v639, %v638
      %v668 = vpack.c.b16 %v641, %v640
      %v669 = vpack.c.b16 %v643, %v642
      %v670 = vpack.c.b16 %v645, %v644
      %v671 = vpack.c.b16 %v647, %v646
      %v672 = vpack.c.b16 %v649, %v648
      %v673 = vpack.c.b16 %v651, %v650
      %v674 = vpack.c.b16 %v653, %v652
      %v675 = vpack.c.b16 %v655, %v654
      %v676 = vpack.c.b16 %v657, %v656
      %v677 = vpack.c.b16 %v659, %v658
      %v678 = vpack.c.b16 %v661, %v660
      %v679 = vpack.c.b16 %v663, %v662
      %v728 = vunpack.c.l.b16 %v440
      %v729 = vunpack.c.l.b16 %v441
      %v730 = vunpack.c.l.b16 %v442
      %v731 = vunpack.c.l.b16 %v443
      %v732 = vunpack.c.l.b16 %v444
      %v733 = vunpack.c.l.b16 %v445
      %v734 = vunpack.c.l.b16 %v446
      %v735 = vunpack.c.l.b16 %v447
      %v736 = vunpack.c.l.b16 %v448
      %v737 = vunpack.c.l.b16 %v449
      %v738 = vunpack.c.l.b16 %v450
      %v739 = vunpack.c.l.b16 %v451
      %v740 = vunpack.c.l.b16 %v452
      %v741 = vunpack.c.l.b16 %v453
      %v742 = vunpack.c.l.b16 %v454
      %v743 = vunpack.c.l.b16 %v455
      %v744 = vunpack.c.l.b16 %v456
      %v745 = vunpack.c.l.b16 %v457
      %v746 = vunpack.c.l.b16 %v458
      %v747 = vunpack.c.l.b16 %v459
      %v748 = vunpack.c.l.b16 %v460
      %v749 = vunpack.c.l.b16 %v461
      %v750 = vunpack.c.l.b16 %v462
      %v751 = vunpack.c.l.b16 %v463
      %v752 = vunpack.c.l.b16 %v464
      %v753 = vunpack.c.l.b16 %v465
      %v754 = vunpack.c.l.b16 %v466
      %v755 = vunpack.c.l.b16 %v467
      %v756 = vunpack.c.l.b16 %v468
      %v757 = vunpack.c.l.b16 %v469
      %v758 = vunpack.c.l.b16 %v470
      %v759 = vunpack.c.l.b16 %v471
      %v760 = vpack.c.b16 %v729, %v728
      %v761 = vpack.c.b16 %v731, %v730
      %v762 = vpack.c.b16 %v733, %v732
      %v763 = vpack.c.b16 %v735, %v734
      %v764 = vpack.c.b16 %v737, %v736
      %v765 = vpack.c.b16 %v739, %v738
      %v766 = vpack.c.b16 %v741, %v740
      %v767 = vpack.c.b16 %v743, %v742
      %v768 = vpack.c.b16 %v745, %v744
      %v769 = vpack.c.b16 %v747, %v746
      %v770 = vpack.c.b16 %v749, %v748
      %v771 = vpack.c.b16 %v751, %v750
      %v772 = vpack.c.b16 %v753, %v752
      %v773 = vpack.c.b16 %v755, %v754
      %v774 = vpack.c.b16 %v757, %v756
      %v775 = vpack.c.b16 %v759, %v758
      %v824 = vunpack.c.l.b16 %v472
      %v825 = vunpack.c.l.b16 %v473
      %v826 = vunpack.c.l.b16 %v474
      %v827 = vunpack.c.l.b16 %v475
      %v828 = vunpack.c.l.b16 %v476
      %v829 = vunpack.c.l.b16 %v477
      %v830 = vunpack.c.l.b16 %v478
      %v831 = vunpack.c.l.b16 %v479
      %v832 = vunpack.c.l.b16 %v480
      %v833 = vunpack.c.l.b16 %v481
      %v834 = vunpack.c.l.b16 %v482
      %v835 = vunpack.c.l.b16 %v483
      %v836 = vunpack.c.l.b16 %v484
      %v837 = vunpack.c.l.b16 %v485
      %v838 = vunpack.c.l.b16 %v486
      %v839 = vunpack.c.l.b16 %v487
      %v840 = vunpack.c.l.b16 %v488
      %v841 = vunpack.c.l.b16 %v489
      %v842 = vunpack.c.l.b16 %v490
      %v843 = vunpack.c.l.b16 %v491
      %v844 = vunpack.c.l.b16 %v492
      %v845 = vunpack.c.l.b16 %v493
      %v846 = vunpack.c.l.b16 %v494
      %v847 = vunpack.c.l.b16 %v495
      %v848 = vunpack.c.l.b16 %v496
      %v849 = vunpack.c.l.b16 %v497
      %v850 = vunpack.c.l.b16 %v498
      %v851 = vunpack.c.l.b16 %v499
      %v852 = vunpack.c.l.b16 %v500
      %v853 = vunpack.c.l.b16 %v501
      %v854 = vunpack.c.l.b16 %v502
      %v855 = vunpack.c.l.b16 %v503
      %v856 = vpack.c.b16 %v825, %v824
      %v857 = vpack.c.b16 %v827, %v826
      %v858 = vpack.c.b16 %v829, %v828
      %v859 = vpack.c.b16 %v831, %v830
      %v860 = vpack.c.b16 %v833, %v832
      %v861 = vpack.c.b16 %v835, %v834
      %v862 = vpack.c.b16 %v837, %v836
      %v863 = vpack.c.b16 %v839, %v838
      %v864 = vpack.c.b16 %v841, %v840
      %v865 = vpack.c.b16 %v843, %v842
      %v866 = vpack.c.b16 %v845, %v844
      %v867 = vpack.c.b16 %v847, %v846
      %v868 = vpack.c.b16 %v849, %v848
      %v869 = vpack.c.b16 %v851, %v850
      %v870 = vpack.c.b16 %v853, %v852
      %v871 = vpack.c.b16 %v855, %v854
      %v888 = vld [vmem:[%s4] sm:$0xf]
      %v889 = vld [vmem:[%s4 + $0x4] sm:$0xf]
      %v890 = vld [vmem:[%s4 + $0x8] sm:$0xf]
      %v891 = vld [vmem:[%s4 + $0xc] sm:$0xf]
      %v892 = vld [vmem:[%s4 + $0x10] sm:$0xf]
      %v893 = vld [vmem:[%s4 + $0x14] sm:$0xf]
      %v894 = vld [vmem:[%s4 + $0x18] sm:$0xf]
      %v895 = vld [vmem:[%s4 + $0x1c] sm:$0xf]
      %v896 = vld [vmem:[%s4 + $0x20] sm:$0xf]
      %v897 = vld [vmem:[%s4 + $0x24] sm:$0xf]
      %v898 = vld [vmem:[%s4 + $0x28] sm:$0xf]
      %v899 = vld [vmem:[%s4 + $0x2c] sm:$0xf]
      %v900 = vld [vmem:[%s4 + $0x30] sm:$0xf]
      %v901 = vld [vmem:[%s4 + $0x34] sm:$0xf]
      %v902 = vld [vmem:[%s4 + $0x38] sm:$0xf]
      %v903 = vld [vmem:[%s4 + $0x3c] sm:$0xf]
      %v904 = vld [vmem:[%s4 + $0x40] sm:$0xf]
      %v905 = vld [vmem:[%s4 + $0x44] sm:$0xf]
      %v906 = vld [vmem:[%s4 + $0x48] sm:$0xf]
      %v907 = vld [vmem:[%s4 + $0x4c] sm:$0xf]
      %v908 = vld [vmem:[%s4 + $0x50] sm:$0xf]
      %v909 = vld [vmem:[%s4 + $0x54] sm:$0xf]
      %v910 = vld [vmem:[%s4 + $0x58] sm:$0xf]
      %v911 = vld [vmem:[%s4 + $0x5c] sm:$0xf]
      %v912 = vld [vmem:[%s4 + $0x60] sm:$0xf]
      %v913 = vld [vmem:[%s4 + $0x64] sm:$0xf]
      %v914 = vld [vmem:[%s4 + $0x68] sm:$0xf]
      %v915 = vld [vmem:[%s4 + $0x6c] sm:$0xf]
      %v916 = vld [vmem:[%s4 + $0x70] sm:$0xf]
      %v917 = vld [vmem:[%s4 + $0x74] sm:$0xf]
      %v918 = vld [vmem:[%s4 + $0x78] sm:$0xf]
      %v919 = vld [vmem:[%s4 + $0x7c] sm:$0xf]
      %v920 = vld [vmem:[%s4 + $0x80] sm:$0xf]
      %v921 = vld [vmem:[%s4 + $0x84] sm:$0xf]
      %v922 = vld [vmem:[%s4 + $0x88] sm:$0xf]
      %v923 = vld [vmem:[%s4 + $0x8c] sm:$0xf]
      %v924 = vld [vmem:[%s4 + $0x90] sm:$0xf]
      %v925 = vld [vmem:[%s4 + $0x94] sm:$0xf]
      %v926 = vld [vmem:[%s4 + $0x98] sm:$0xf]
      %v927 = vld [vmem:[%s4 + $0x9c] sm:$0xf]
      %v928 = vld [vmem:[%s4 + $0xa0] sm:$0xf]
      %v929 = vld [vmem:[%s4 + $0xa4] sm:$0xf]
      %v930 = vld [vmem:[%s4 + $0xa8] sm:$0xf]
      %v931 = vld [vmem:[%s4 + $0xac] sm:$0xf]
      %v932 = vld [vmem:[%s4 + $0xb0] sm:$0xf]
      %v933 = vld [vmem:[%s4 + $0xb4] sm:$0xf]
      %v934 = vld [vmem:[%s4 + $0xb8] sm:$0xf]
      %v935 = vld [vmem:[%s4 + $0xbc] sm:$0xf]
      %v936 = vld [vmem:[%s4 + $0xc0] sm:$0xf]
      %v937 = vld [vmem:[%s4 + $0xc4] sm:$0xf]
      %v938 = vld [vmem:[%s4 + $0xc8] sm:$0xf]
      %v939 = vld [vmem:[%s4 + $0xcc] sm:$0xf]
      %v940 = vld [vmem:[%s4 + $0xd0] sm:$0xf]
      %v941 = vld [vmem:[%s4 + $0xd4] sm:$0xf]
      %v942 = vld [vmem:[%s4 + $0xd8] sm:$0xf]
      %v943 = vld [vmem:[%s4 + $0xdc] sm:$0xf]
      %v944 = vld [vmem:[%s4 + $0xe0] sm:$0xf]
      %v945 = vld [vmem:[%s4 + $0xe4] sm:$0xf]
      %v946 = vld [vmem:[%s4 + $0xe8] sm:$0xf]
      %v947 = vld [vmem:[%s4 + $0xec] sm:$0xf]
      %v948 = vld [vmem:[%s4 + $0xf0] sm:$0xf]
      %v949 = vld [vmem:[%s4 + $0xf4] sm:$0xf]
      %v950 = vld [vmem:[%s4 + $0xf8] sm:$0xf]
      %v951 = vld [vmem:[%s4 + $0xfc] sm:$0xf]
      %v952 = vld [vmem:[%s5] sm:$0x1]
      %v954 = vlaneseq
      %v955 = vshrl.u32 %v954, 7
      %v956 = vsub.s32 0, %v955
      %v957 = vrot.slane %v952, %v956
      %v1023 = vunpack.c.l.b16 %v888
      %v1024 = vunpack.c.l.b16 %v889
      %v1025 = vunpack.c.l.b16 %v890
      %v1026 = vunpack.c.l.b16 %v891
      %v1027 = vunpack.c.l.b16 %v892
      %v1028 = vunpack.c.l.b16 %v893
      %v1029 = vunpack.c.l.b16 %v894
      %v1030 = vunpack.c.l.b16 %v895
      %v1031 = vunpack.c.l.b16 %v896
      %v1032 = vunpack.c.l.b16 %v897
      %v1033 = vunpack.c.l.b16 %v898
      %v1034 = vunpack.c.l.b16 %v899
      %v1035 = vunpack.c.l.b16 %v900
      %v1036 = vunpack.c.l.b16 %v901
      %v1037 = vunpack.c.l.b16 %v902
      %v1038 = vunpack.c.l.b16 %v903
      %v1039 = vunpack.c.l.b16 %v904
      %v1040 = vunpack.c.l.b16 %v905
      %v1041 = vunpack.c.l.b16 %v906
      %v1042 = vunpack.c.l.b16 %v907
      %v1043 = vunpack.c.l.b16 %v908
      %v1044 = vunpack.c.l.b16 %v909
      %v1045 = vunpack.c.l.b16 %v910
      %v1046 = vunpack.c.l.b16 %v911
      %v1047 = vunpack.c.l.b16 %v912
      %v1048 = vunpack.c.l.b16 %v913
      %v1049 = vunpack.c.l.b16 %v914
      %v1050 = vunpack.c.l.b16 %v915
      %v1051 = vunpack.c.l.b16 %v916
      %v1052 = vunpack.c.l.b16 %v917
      %v1053 = vunpack.c.l.b16 %v918
      %v1054 = vunpack.c.l.b16 %v919
      %v1055 = vunpack.c.l.b16 %v920
      %v1056 = vunpack.c.l.b16 %v921
      %v1057 = vunpack.c.l.b16 %v922
      %v1058 = vunpack.c.l.b16 %v923
      %v1059 = vunpack.c.l.b16 %v924
      %v1060 = vunpack.c.l.b16 %v925
      %v1061 = vunpack.c.l.b16 %v926
      %v1062 = vunpack.c.l.b16 %v927
      %v1063 = vunpack.c.l.b16 %v928
      %v1064 = vunpack.c.l.b16 %v929
      %v1065 = vunpack.c.l.b16 %v930
      %v1066 = vunpack.c.l.b16 %v931
      %v1067 = vunpack.c.l.b16 %v932
      %v1068 = vunpack.c.l.b16 %v933
      %v1069 = vunpack.c.l.b16 %v934
      %v1070 = vunpack.c.l.b16 %v935
      %v1071 = vunpack.c.l.b16 %v936
      %v1072 = vunpack.c.l.b16 %v937
      %v1073 = vunpack.c.l.b16 %v938
      %v1074 = vunpack.c.l.b16 %v939
      %v1075 = vunpack.c.l.b16 %v940
      %v1076 = vunpack.c.l.b16 %v941
      %v1077 = vunpack.c.l.b16 %v942
      %v1078 = vunpack.c.l.b16 %v943
      %v1079 = vunpack.c.l.b16 %v944
      %v1080 = vunpack.c.l.b16 %v945
      %v1081 = vunpack.c.l.b16 %v946
      %v1082 = vunpack.c.l.b16 %v947
      %v1083 = vunpack.c.l.b16 %v948
      %v1084 = vunpack.c.l.b16 %v949
      %v1085 = vunpack.c.l.b16 %v950
      %v1086 = vunpack.c.l.b16 %v951
      %v1087 = vpack.c.b16 %v1024, %v1023
      %v1088 = vpack.c.b16 %v1026, %v1025
      %v1089 = vpack.c.b16 %v1028, %v1027
      %v1090 = vpack.c.b16 %v1030, %v1029
      %v1091 = vpack.c.b16 %v1032, %v1031
      %v1092 = vpack.c.b16 %v1034, %v1033
      %v1093 = vpack.c.b16 %v1036, %v1035
      %v1094 = vpack.c.b16 %v1038, %v1037
      %v1095 = vpack.c.b16 %v1040, %v1039
      %v1096 = vpack.c.b16 %v1042, %v1041
      %v1097 = vpack.c.b16 %v1044, %v1043
      %v1098 = vpack.c.b16 %v1046, %v1045
      %v1099 = vpack.c.b16 %v1048, %v1047
      %v1100 = vpack.c.b16 %v1050, %v1049
      %v1101 = vpack.c.b16 %v1052, %v1051
      %v1102 = vpack.c.b16 %v1054, %v1053
      %v1103 = vpack.c.b16 %v1056, %v1055
      %v1104 = vpack.c.b16 %v1058, %v1057
      %v1105 = vpack.c.b16 %v1060, %v1059
      %v1106 = vpack.c.b16 %v1062, %v1061
      %v1107 = vpack.c.b16 %v1064, %v1063
      %v1108 = vpack.c.b16 %v1066, %v1065
      %v1109 = vpack.c.b16 %v1068, %v1067
      %v1110 = vpack.c.b16 %v1070, %v1069
      %v1111 = vpack.c.b16 %v1072, %v1071
      %v1112 = vpack.c.b16 %v1074, %v1073
      %v1113 = vpack.c.b16 %v1076, %v1075
      %v1114 = vpack.c.b16 %v1078, %v1077
      %v1115 = vpack.c.b16 %v1080, %v1079
      %v1116 = vpack.c.b16 %v1082, %v1081
      %v1117 = vpack.c.b16 %v1084, %v1083
      %v1118 = vpack.c.b16 %v1086, %v1085
      %1151 = vmatprep.subr.bf16.mxu0 0
      %1152 = vmatpush1.bf16.msra.mxu0 %v1094
      %1153 = vmatprep.subr.bf16.mxu0 0
      %1154 = vmatpush1.bf16.msra.mxu0 %v1093
      %1155 = vmatprep.subr.bf16.mxu0 0
      %1156 = vmatpush1.bf16.msra.mxu0 %v1092
      %1157 = vmatprep.subr.bf16.mxu0 0
      %1158 = vmatpush1.bf16.msra.mxu0 %v1091
      %1159 = vmatprep.subr.bf16.mxu0 0
      %1160 = vmatpush1.bf16.msra.mxu0 %v1090
      %1161 = vmatprep.subr.bf16.mxu0 0
      %1162 = vmatpush1.bf16.msra.mxu0 %v1089
      %1163 = vmatprep.subr.bf16.mxu0 0
      %1164 = vmatpush1.bf16.msra.mxu0 %v1088
      %1165 = vmatprep.subr.bf16.mxu0 0
      %1166 = vmatpush1.bf16.msra.mxu0 %v1087
      %1167 = vmatprep.subr.bf16.mxu0 0
      %1168 = vmatpush2.bf16.msra.mxu0 %v1102
      %1169 = vmatprep.subr.bf16.mxu0 0
      %1170 = vmatpush2.bf16.msra.mxu0 %v1101
      %1171 = vmatprep.subr.bf16.mxu0 0
      %1172 = vmatpush2.bf16.msra.mxu0 %v1100
      %1173 = vmatprep.subr.bf16.mxu0 0
      %1174 = vmatpush2.bf16.msra.mxu0 %v1099
      %1175 = vmatprep.subr.bf16.mxu0 0
      %1176 = vmatpush2.bf16.msra.mxu0 %v1098
      %1177 = vmatprep.subr.bf16.mxu0 0
      %1178 = vmatpush2.bf16.msra.mxu0 %v1097
      %1179 = vmatprep.subr.bf16.mxu0 0
      %1180 = vmatpush2.bf16.msra.mxu0 %v1096
      %1181 = vmatprep.subr.bf16.mxu0 0
      %1182 = vmatpush2.bf16.msra.mxu0 %v1095
      %1183 = vmatprep.mubr.bf16.mxu0 %v664
      %1184 = vmatmul.mubr.bf16.gmra.mxu0 %v568
      %v1185 = vpop.f32.mrf.mxu0
      %v1186 = vadd.f32 %v957, %v1185
      %v1187 = vpop.f32.mrf.mxu0
      %v1188 = vpop.f32.mrf.mxu0
      %v1189 = vadd.f32 %v957, %v1188
      %v1190 = vpop.f32.mrf.mxu0
      %1191 = vmatprep.mubr.bf16.mxu0 %v665
      %1192 = vmatmul.mubr.bf16.gmra.mxu0 %v569
      %v1193 = vpop.f32.mrf.mxu0
      %v1194 = vadd.f32 %v957, %v1193
      %v1195 = vpop.f32.mrf.mxu0
      %v1196 = vpop.f32.mrf.mxu0
      %v1197 = vadd.f32 %v957, %v1196
      %v1198 = vpop.f32.mrf.mxu0
      %1199 = vmatprep.mubr.bf16.mxu0 %v666
      %1200 = vmatmul.mubr.bf16.gmra.mxu0 %v570
      %v1201 = vpop.f32.mrf.mxu0
      %v1202 = vadd.f32 %v957, %v1201
      %v1203 = vpop.f32.mrf.mxu0
      %v1204 = vpop.f32.mrf.mxu0
      %v1205 = vadd.f32 %v957, %v1204
      %v1206 = vpop.f32.mrf.mxu0
      %1207 = vmatprep.mubr.bf16.mxu0 %v667
      %1208 = vmatmul.mubr.bf16.gmra.mxu0 %v571
      %v1209 = vpop.f32.mrf.mxu0
      %v1210 = vadd.f32 %v957, %v1209
      %v1211 = vpop.f32.mrf.mxu0
      %v1212 = vpop.f32.mrf.mxu0
      %v1213 = vadd.f32 %v957, %v1212
      %v1214 = vpop.f32.mrf.mxu0
      %1215 = vmatprep.mubr.bf16.mxu0 %v668
      %1216 = vmatmul.mubr.bf16.gmra.mxu0 %v572
      %v1217 = vpop.f32.mrf.mxu0
      %v1218 = vadd.f32 %v957, %v1217
      %v1219 = vpop.f32.mrf.mxu0
      %v1220 = vpop.f32.mrf.mxu0
      %v1221 = vadd.f32 %v957, %v1220
      %v1222 = vpop.f32.mrf.mxu0
      %1223 = vmatprep.mubr.bf16.mxu0 %v669
      %1224 = vmatmul.mubr.bf16.gmra.mxu0 %v573
      %v1225 = vpop.f32.mrf.mxu0
      %v1226 = vadd.f32 %v957, %v1225
      %v1227 = vpop.f32.mrf.mxu0
      %v1228 = vpop.f32.mrf.mxu0
      %v1229 = vadd.f32 %v957, %v1228
      %v1230 = vpop.f32.mrf.mxu0
      %1231 = vmatprep.mubr.bf16.mxu0 %v670
      %1232 = vmatmul.mubr.bf16.gmra.mxu0 %v574
      %v1233 = vpop.f32.mrf.mxu0
      %v1234 = vadd.f32 %v957, %v1233
      %v1235 = vpop.f32.mrf.mxu0
      %v1236 = vpop.f32.mrf.mxu0
      %v1237 = vadd.f32 %v957, %v1236
      %v1238 = vpop.f32.mrf.mxu0
      %1239 = vmatprep.mubr.bf16.mxu0 %v671
      %1240 = vmatmul.mubr.bf16.gmra.mxu0 %v575
      %v1241 = vpop.f32.mrf.mxu0
      %v1242 = vadd.f32 %v957, %v1241
      %v1243 = vpop.f32.mrf.mxu0
      %v1244 = vpop.f32.mrf.mxu0
      %v1245 = vadd.f32 %v957, %v1244
      %v1246 = vpop.f32.mrf.mxu0
      %1247 = vmatprep.mubr.bf16.mxu0 %v672
      %1248 = vmatmul.mubr.bf16.gmra.mxu0 %v576
      %v1249 = vpop.f32.mrf.mxu0
      %v1250 = vadd.f32 %v957, %v1249
      %v1251 = vpop.f32.mrf.mxu0
      %v1252 = vpop.f32.mrf.mxu0
      %v1253 = vadd.f32 %v957, %v1252
      %v1254 = vpop.f32.mrf.mxu0
      %1255 = vmatprep.mubr.bf16.mxu0 %v673
      %1256 = vmatmul.mubr.bf16.gmra.mxu0 %v577
      %v1257 = vpop.f32.mrf.mxu0
      %v1258 = vadd.f32 %v957, %v1257
      %v1259 = vpop.f32.mrf.mxu0
      %v1260 = vpop.f32.mrf.mxu0
      %v1261 = vadd.f32 %v957, %v1260
      %v1262 = vpop.f32.mrf.mxu0
      %1263 = vmatprep.mubr.bf16.mxu0 %v674
      %1264 = vmatmul.mubr.bf16.gmra.mxu0 %v578
      %v1265 = vpop.f32.mrf.mxu0
      %v1266 = vadd.f32 %v957, %v1265
      %v1267 = vpop.f32.mrf.mxu0
      %v1268 = vpop.f32.mrf.mxu0
      %v1269 = vadd.f32 %v957, %v1268
      %v1270 = vpop.f32.mrf.mxu0
      %1271 = vmatprep.mubr.bf16.mxu0 %v675
      %1272 = vmatmul.mubr.bf16.gmra.mxu0 %v579
      %v1273 = vpop.f32.mrf.mxu0
      %v1274 = vadd.f32 %v957, %v1273
      %v1275 = vpop.f32.mrf.mxu0
      %v1276 = vpop.f32.mrf.mxu0
      %v1277 = vadd.f32 %v957, %v1276
      %v1278 = vpop.f32.mrf.mxu0
      %1279 = vmatprep.mubr.bf16.mxu0 %v676
      %1280 = vmatmul.mubr.bf16.gmra.mxu0 %v580
      %v1281 = vpop.f32.mrf.mxu0
      %v1282 = vadd.f32 %v957, %v1281
      %v1283 = vpop.f32.mrf.mxu0
      %v1284 = vpop.f32.mrf.mxu0
      %v1285 = vadd.f32 %v957, %v1284
      %v1286 = vpop.f32.mrf.mxu0
      %1287 = vmatprep.mubr.bf16.mxu0 %v677
      %1288 = vmatmul.mubr.bf16.gmra.mxu0 %v581
      %v1289 = vpop.f32.mrf.mxu0
      %v1290 = vadd.f32 %v957, %v1289
      %v1291 = vpop.f32.mrf.mxu0
      %v1292 = vpop.f32.mrf.mxu0
      %v1293 = vadd.f32 %v957, %v1292
      %v1294 = vpop.f32.mrf.mxu0
      %1295 = vmatprep.mubr.bf16.mxu0 %v678
      %1296 = vmatmul.mubr.bf16.gmra.mxu0 %v582
      %v1297 = vpop.f32.mrf.mxu0
      %v1298 = vadd.f32 %v957, %v1297
      %v1299 = vpop.f32.mrf.mxu0
      %v1300 = vpop.f32.mrf.mxu0
      %v1301 = vadd.f32 %v957, %v1300
      %v1302 = vpop.f32.mrf.mxu0
      %1303 = vmatprep.mubr.bf16.mxu0 %v679
      %1304 = vmatmul.mubr.bf16.gmra.mxu0 %v583
      %v1305 = vpop.f32.mrf.mxu0
      %v1306 = vadd.f32 %v957, %v1305
      %v1307 = vpop.f32.mrf.mxu0
      %v1308 = vpop.f32.mrf.mxu0
      %v1309 = vadd.f32 %v957, %v1308
      %v1310 = vpop.f32.mrf.mxu0
      %1311 = vdwg.mxu0
      %1312 = vmatprep.subr.bf16.mxu0 0
      %1313 = vmatpush1.bf16.msra.mxu0 %v1110
      %1314 = vmatprep.subr.bf16.mxu0 0
      %1315 = vmatpush1.bf16.msra.mxu0 %v1109
      %1316 = vmatprep.subr.bf16.mxu0 0
      %1317 = vmatpush1.bf16.msra.mxu0 %v1108
      %1318 = vmatprep.subr.bf16.mxu0 0
      %1319 = vmatpush1.bf16.msra.mxu0 %v1107
      %1320 = vmatprep.subr.bf16.mxu0 0
      %1321 = vmatpush1.bf16.msra.mxu0 %v1106
      %1322 = vmatprep.subr.bf16.mxu0 0
      %1323 = vmatpush1.bf16.msra.mxu0 %v1105
      %1324 = vmatprep.subr.bf16.mxu0 0
      %1325 = vmatpush1.bf16.msra.mxu0 %v1104
      %1326 = vmatprep.subr.bf16.mxu0 0
      %1327 = vmatpush1.bf16.msra.mxu0 %v1103
      %1328 = vmatprep.subr.bf16.mxu0 0
      %1329 = vmatpush2.bf16.msra.mxu0 %v1118
      %1330 = vmatprep.subr.bf16.mxu0 0
      %1331 = vmatpush2.bf16.msra.mxu0 %v1117
      %1332 = vmatprep.subr.bf16.mxu0 0
      %1333 = vmatpush2.bf16.msra.mxu0 %v1116
      %1334 = vmatprep.subr.bf16.mxu0 0
      %1335 = vmatpush2.bf16.msra.mxu0 %v1115
      %1336 = vmatprep.subr.bf16.mxu0 0
      %1337 = vmatpush2.bf16.msra.mxu0 %v1114
      %1338 = vmatprep.subr.bf16.mxu0 0
      %1339 = vmatpush2.bf16.msra.mxu0 %v1113
      %1340 = vmatprep.subr.bf16.mxu0 0
      %1341 = vmatpush2.bf16.msra.mxu0 %v1112
      %1342 = vmatprep.subr.bf16.mxu0 0
      %1343 = vmatpush2.bf16.msra.mxu0 %v1111
      %1344 = vmatprep.mubr.bf16.mxu0 %v856
      %1345 = vmatmul.mubr.bf16.gmra.mxu0 %v760
      %v1346 = vpop.f32.mrf.mxu0
      %v1347 = vadd.f32 %v1186, %v1346
      %v1348 = vpop.f32.mrf.mxu0
      %v1349 = vpop.f32.mrf.mxu0
      %v1350 = vadd.f32 %v1189, %v1349
      %v1351 = vpop.f32.mrf.mxu0
      %1352 = vmatprep.mubr.bf16.mxu0 %v857
      %1353 = vmatmul.mubr.bf16.gmra.mxu0 %v761
      %v1354 = vpop.f32.mrf.mxu0
      %v1355 = vadd.f32 %v1194, %v1354
      %v1356 = vpop.f32.mrf.mxu0
      %v1357 = vpop.f32.mrf.mxu0
      %v1358 = vadd.f32 %v1197, %v1357
      %v1359 = vpop.f32.mrf.mxu0
      %1360 = vmatprep.mubr.bf16.mxu0 %v858
      %1361 = vmatmul.mubr.bf16.gmra.mxu0 %v762
      %v1362 = vpop.f32.mrf.mxu0
      %v1363 = vadd.f32 %v1202, %v1362
      %v1364 = vpop.f32.mrf.mxu0
      %v1365 = vpop.f32.mrf.mxu0
      %v1366 = vadd.f32 %v1205, %v1365
      %v1367 = vpop.f32.mrf.mxu0
      %1368 = vmatprep.mubr.bf16.mxu0 %v859
      %1369 = vmatmul.mubr.bf16.gmra.mxu0 %v763
      %v1370 = vpop.f32.mrf.mxu0
      %v1371 = vadd.f32 %v1210, %v1370
      %v1372 = vpop.f32.mrf.mxu0
      %v1373 = vpop.f32.mrf.mxu0
      %v1374 = vadd.f32 %v1213, %v1373
      %v1375 = vpop.f32.mrf.mxu0
      %1376 = vmatprep.mubr.bf16.mxu0 %v860
      %1377 = vmatmul.mubr.bf16.gmra.mxu0 %v764
      %v1378 = vpop.f32.mrf.mxu0
      %v1379 = vadd.f32 %v1218, %v1378
      %v1380 = vpop.f32.mrf.mxu0
      %v1381 = vpop.f32.mrf.mxu0
      %v1382 = vadd.f32 %v1221, %v1381
      %v1383 = vpop.f32.mrf.mxu0
      %1384 = vmatprep.mubr.bf16.mxu0 %v861
      %1385 = vmatmul.mubr.bf16.gmra.mxu0 %v765
      %v1386 = vpop.f32.mrf.mxu0
      %v1387 = vadd.f32 %v1226, %v1386
      %v1388 = vpop.f32.mrf.mxu0
      %v1389 = vpop.f32.mrf.mxu0
      %v1390 = vadd.f32 %v1229, %v1389
      %v1391 = vpop.f32.mrf.mxu0
      %1392 = vmatprep.mubr.bf16.mxu0 %v862
      %1393 = vmatmul.mubr.bf16.gmra.mxu0 %v766
      %v1394 = vpop.f32.mrf.mxu0
      %v1395 = vadd.f32 %v1234, %v1394
      %v1396 = vpop.f32.mrf.mxu0
      %v1397 = vpop.f32.mrf.mxu0
      %v1398 = vadd.f32 %v1237, %v1397
      %v1399 = vpop.f32.mrf.mxu0
      %1400 = vmatprep.mubr.bf16.mxu0 %v863
      %1401 = vmatmul.mubr.bf16.gmra.mxu0 %v767
      %v1402 = vpop.f32.mrf.mxu0
      %v1403 = vadd.f32 %v1242, %v1402
      %v1404 = vpop.f32.mrf.mxu0
      %v1405 = vpop.f32.mrf.mxu0
      %v1406 = vadd.f32 %v1245, %v1405
      %v1407 = vpop.f32.mrf.mxu0
      %1408 = vmatprep.mubr.bf16.mxu0 %v864
      %1409 = vmatmul.mubr.bf16.gmra.mxu0 %v768
      %v1410 = vpop.f32.mrf.mxu0
      %v1411 = vadd.f32 %v1250, %v1410
      %v1412 = vpop.f32.mrf.mxu0
      %v1413 = vpop.f32.mrf.mxu0
      %v1414 = vadd.f32 %v1253, %v1413
      %v1415 = vpop.f32.mrf.mxu0
      %1416 = vmatprep.mubr.bf16.mxu0 %v865
      %1417 = vmatmul.mubr.bf16.gmra.mxu0 %v769
      %v1418 = vpop.f32.mrf.mxu0
      %v1419 = vadd.f32 %v1258, %v1418
      %v1420 = vpop.f32.mrf.mxu0
      %v1421 = vpop.f32.mrf.mxu0
      %v1422 = vadd.f32 %v1261, %v1421
      %v1423 = vpop.f32.mrf.mxu0
      %1424 = vmatprep.mubr.bf16.mxu0 %v866
      %1425 = vmatmul.mubr.bf16.gmra.mxu0 %v770
      %v1426 = vpop.f32.mrf.mxu0
      %v1427 = vadd.f32 %v1266, %v1426
      %v1428 = vpop.f32.mrf.mxu0
      %v1429 = vpop.f32.mrf.mxu0
      %v1430 = vadd.f32 %v1269, %v1429
      %v1431 = vpop.f32.mrf.mxu0
      %1432 = vmatprep.mubr.bf16.mxu0 %v867
      %1433 = vmatmul.mubr.bf16.gmra.mxu0 %v771
      %v1434 = vpop.f32.mrf.mxu0
      %v1435 = vadd.f32 %v1274, %v1434
      %v1436 = vpop.f32.mrf.mxu0
      %v1437 = vpop.f32.mrf.mxu0
      %v1438 = vadd.f32 %v1277, %v1437
      %v1439 = vpop.f32.mrf.mxu0
      %1440 = vmatprep.mubr.bf16.mxu0 %v868
      %1441 = vmatmul.mubr.bf16.gmra.mxu0 %v772
      %v1442 = vpop.f32.mrf.mxu0
      %v1443 = vadd.f32 %v1282, %v1442
      %v1444 = vpop.f32.mrf.mxu0
      %v1445 = vpop.f32.mrf.mxu0
      %v1446 = vadd.f32 %v1285, %v1445
      %v1447 = vpop.f32.mrf.mxu0
      %1448 = vmatprep.mubr.bf16.mxu0 %v869
      %1449 = vmatmul.mubr.bf16.gmra.mxu0 %v773
      %v1450 = vpop.f32.mrf.mxu0
      %v1451 = vadd.f32 %v1290, %v1450
      %v1452 = vpop.f32.mrf.mxu0
      %v1453 = vpop.f32.mrf.mxu0
      %v1454 = vadd.f32 %v1293, %v1453
      %v1455 = vpop.f32.mrf.mxu0
      %1456 = vmatprep.mubr.bf16.mxu0 %v870
      %1457 = vmatmul.mubr.bf16.gmra.mxu0 %v774
      %v1458 = vpop.f32.mrf.mxu0
      %v1459 = vadd.f32 %v1298, %v1458
      %v1460 = vpop.f32.mrf.mxu0
      %v1461 = vpop.f32.mrf.mxu0
      %v1462 = vadd.f32 %v1301, %v1461
      %v1463 = vpop.f32.mrf.mxu0
      %1464 = vmatprep.mubr.bf16.mxu0 %v871
      %1465 = vmatmul.mubr.bf16.gmra.mxu0 %v775
      %v1466 = vpop.f32.mrf.mxu0
      %v1467 = vadd.f32 %v1306, %v1466
      %v1468 = vpop.f32.mrf.mxu0
      %v1469 = vpop.f32.mrf.mxu0
      %v1470 = vadd.f32 %v1309, %v1469
      %v1471 = vpop.f32.mrf.mxu0
      %1472 = vdwg.mxu0
      %v1473 = vmax.f32 %v1347, 0.0
      %v1474 = vmax.f32 %v1350, 0.0
      %v1475 = vmax.f32 %v1355, 0.0
      %v1476 = vmax.f32 %v1358, 0.0
      %v1477 = vmax.f32 %v1363, 0.0
      %v1478 = vmax.f32 %v1366, 0.0
      %v1479 = vmax.f32 %v1371, 0.0
      %v1480 = vmax.f32 %v1374, 0.0
      %v1481 = vmax.f32 %v1379, 0.0
      %v1482 = vmax.f32 %v1382, 0.0
      %v1483 = vmax.f32 %v1387, 0.0
      %v1484 = vmax.f32 %v1390, 0.0
      %v1485 = vmax.f32 %v1395, 0.0
      %v1486 = vmax.f32 %v1398, 0.0
      %v1487 = vmax.f32 %v1403, 0.0
      %v1488 = vmax.f32 %v1406, 0.0
      %v1489 = vmax.f32 %v1411, 0.0
      %v1490 = vmax.f32 %v1414, 0.0
      %v1491 = vmax.f32 %v1419, 0.0
      %v1492 = vmax.f32 %v1422, 0.0
      %v1493 = vmax.f32 %v1427, 0.0
      %v1494 = vmax.f32 %v1430, 0.0
      %v1495 = vmax.f32 %v1435, 0.0
      %v1496 = vmax.f32 %v1438, 0.0
      %v1497 = vmax.f32 %v1443, 0.0
      %v1498 = vmax.f32 %v1446, 0.0
      %v1499 = vmax.f32 %v1451, 0.0
      %v1500 = vmax.f32 %v1454, 0.0
      %v1501 = vmax.f32 %v1459, 0.0
      %v1502 = vmax.f32 %v1462, 0.0
      %v1503 = vmax.f32 %v1467, 0.0
      %v1504 = vmax.f32 %v1470, 0.0
      %v1505 = vld [vmem:[%s6] sm:$0xff]
      %v1506 = vld [vmem:[%s6 + $0x8] sm:$0xff]
      %v1507 = vld [vmem:[%s6 + $0x10] sm:$0xff]
      %v1508 = vld [vmem:[%s6 + $0x18] sm:$0xff]
      %v1509 = vld [vmem:[%s6 + $0x20] sm:$0xff]
      %v1510 = vld [vmem:[%s6 + $0x28] sm:$0xff]
      %v1511 = vld [vmem:[%s6 + $0x30] sm:$0xff]
      %v1512 = vld [vmem:[%s6 + $0x38] sm:$0xff]
      %v1513 = vld [vmem:[%s7] sm:$0x1]
      %v1515 = vlaneseq
      %v1516 = vshrl.u32 %v1515, 7
      %v1517 = vsub.s32 0, %v1516
      %v1518 = vrot.slane %v1513, %v1517
      %vm1520 = vcmask 523264
      %v1522 = vsel %vm1520, %v1473, 0
      %v1525 = vsel %vm1520, %v1474, 0
      %v1528 = vsel %vm1520, %v1475, 0
      %v1531 = vsel %vm1520, %v1476, 0
      %v1534 = vsel %vm1520, %v1477, 0
      %v1537 = vsel %vm1520, %v1478, 0
      %v1540 = vsel %vm1520, %v1479, 0
      %v1543 = vsel %vm1520, %v1480, 0
      %v1546 = vsel %vm1520, %v1481, 0
      %v1549 = vsel %vm1520, %v1482, 0
      %v1552 = vsel %vm1520, %v1483, 0
      %v1555 = vsel %vm1520, %v1484, 0
      %v1558 = vsel %vm1520, %v1485, 0
      %v1561 = vsel %vm1520, %v1486, 0
      %v1564 = vsel %vm1520, %v1487, 0
      %v1567 = vsel %vm1520, %v1488, 0
      %v1570 = vsel %vm1520, %v1489, 0
      %v1573 = vsel %vm1520, %v1490, 0
      %v1576 = vsel %vm1520, %v1491, 0
      %v1579 = vsel %vm1520, %v1492, 0
      %v1582 = vsel %vm1520, %v1493, 0
      %v1585 = vsel %vm1520, %v1494, 0
      %v1588 = vsel %vm1520, %v1495, 0
      %v1591 = vsel %vm1520, %v1496, 0
      %v1594 = vsel %vm1520, %v1497, 0
      %v1597 = vsel %vm1520, %v1498, 0
      %v1600 = vsel %vm1520, %v1499, 0
      %v1603 = vsel %vm1520, %v1500, 0
      %v1606 = vsel %vm1520, %v1501, 0
      %v1609 = vsel %vm1520, %v1502, 0
      %v1612 = vsel %vm1520, %v1503, 0
      %v1615 = vsel %vm1520, %v1504, 0
      %1617 = vmatprep.subr.mxu0 0.0
      %1618 = vmatpush1.msra.mxu0 0.0
      %1619 = vmatprep.subr.mxu0 0.0
      %1620 = vmatpush1.msra.mxu0 0.0
      %1621 = vmatprep.subr.mxu0 0.0
      %1622 = vmatpush1.msra.mxu0 0.0
      %1623 = vmatprep.subr.mxu0 0.0
      %1624 = vmatpush1.msra.mxu0 0.0
      %1625 = vmatprep.subr.mxu0 0.0
      %1626 = vmatpush1.msra.mxu0 0.0
      %1627 = vmatprep.subr.mxu0 0.0
      %1628 = vmatpush1.msra.mxu0 0.0
      %1629 = vmatprep.subr.mxu0 0.0
      %1630 = vmatpush1.msra.mxu0 0.0
      %1631 = vmatprep.subr.mxu0 0.0
      %1632 = vmatpush1.msra.mxu0 0.0
      %1633 = vmatprep.subr.mxu0 0.0
      %1634 = vmatpush1.msra.mxu0 %v1512
      %1635 = vmatprep.subr.mxu0 0.0
      %1636 = vmatpush1.msra.mxu0 %v1511
      %1637 = vmatprep.subr.mxu0 0.0
      %1638 = vmatpush1.msra.mxu0 %v1510
      %1639 = vmatprep.subr.mxu0 0.0
      %1640 = vmatpush1.msra.mxu0 %v1509
      %1641 = vmatprep.subr.mxu0 0.0
      %1642 = vmatpush1.msra.mxu0 %v1508
      %1643 = vmatprep.subr.mxu0 0.0
      %1644 = vmatpush1.msra.mxu0 %v1507
      %1645 = vmatprep.subr.mxu0 0.0
      %1646 = vmatpush1.msra.mxu0 %v1506
      %1647 = vmatprep.subr.mxu0 0.0
      %1648 = vmatpush1.msra.mxu0 %v1505
      %1649 = vmatprep.subr.mxu0 0.0
      %1650 = vmatpush2.msra.mxu0 0.0
      %1651 = vmatprep.subr.mxu0 0.0
      %1652 = vmatpush2.msra.mxu0 0.0
      %1653 = vmatprep.subr.mxu0 0.0
      %1654 = vmatpush2.msra.mxu0 0.0
      %1655 = vmatprep.subr.mxu0 0.0
      %1656 = vmatpush2.msra.mxu0 0.0
      %1657 = vmatprep.subr.mxu0 0.0
      %1658 = vmatpush2.msra.mxu0 0.0
      %1659 = vmatprep.subr.mxu0 0.0
      %1660 = vmatpush2.msra.mxu0 0.0
      %1661 = vmatprep.subr.mxu0 0.0
      %1662 = vmatpush2.msra.mxu0 0.0
      %1663 = vmatprep.subr.mxu0 0.0
      %1664 = vmatpush2.msra.mxu0 0.0
      %1665 = vmatprep.subr.mxu0 0.0
      %1666 = vmatpush2.msra.mxu0 0.0
      %1667 = vmatprep.subr.mxu0 0.0
      %1668 = vmatpush2.msra.mxu0 0.0
      %1669 = vmatprep.subr.mxu0 0.0
      %1670 = vmatpush2.msra.mxu0 0.0
      %1671 = vmatprep.subr.mxu0 0.0
      %1672 = vmatpush2.msra.mxu0 0.0
      %1673 = vmatprep.subr.mxu0 0.0
      %1674 = vmatpush2.msra.mxu0 0.0
      %1675 = vmatprep.subr.mxu0 0.0
      %1676 = vmatpush2.msra.mxu0 0.0
      %1677 = vmatprep.subr.mxu0 0.0
      %1678 = vmatpush2.msra.mxu0 0.0
      %1679 = vmatprep.subr.mxu0 0.0
      %1680 = vmatpush2.msra.mxu0 0.0
      %1681 = vmatprep.mubr.f32.mxu0 0.0
      %1682 = vmatmul.mubr.f32.gmra.mxu0 %v1522
      %v1683 = vpop.f32.mrf.mxu0
      %v1684 = vadd.f32 %v1518, %v1683
      %v1685 = vpop.f32.mrf.mxu0
      %1686 = vmatprep.mubr.f32.mxu0 0.0
      %1687 = vmatmul.mubr.f32.gmra.mxu0 %v1525
      %v1688 = vpop.f32.mrf.mxu0
      %v1689 = vadd.f32 %v1518, %v1688
      %v1690 = vpop.f32.mrf.mxu0
      %1691 = vmatprep.mubr.f32.mxu0 0.0
      %1692 = vmatmul.mubr.f32.gmra.mxu0 %v1528
      %v1693 = vpop.f32.mrf.mxu0
      %v1694 = vadd.f32 %v1518, %v1693
      %v1695 = vpop.f32.mrf.mxu0
      %1696 = vmatprep.mubr.f32.mxu0 0.0
      %1697 = vmatmul.mubr.f32.gmra.mxu0 %v1531
      %v1698 = vpop.f32.mrf.mxu0
      %v1699 = vadd.f32 %v1518, %v1698
      %v1700 = vpop.f32.mrf.mxu0
      %1701 = vmatprep.mubr.f32.mxu0 0.0
      %1702 = vmatmul.mubr.f32.gmra.mxu0 %v1534
      %v1703 = vpop.f32.mrf.mxu0
      %v1704 = vadd.f32 %v1518, %v1703
      %v1705 = vpop.f32.mrf.mxu0
      %1706 = vmatprep.mubr.f32.mxu0 0.0
      %1707 = vmatmul.mubr.f32.gmra.mxu0 %v1537
      %v1708 = vpop.f32.mrf.mxu0
      %v1709 = vadd.f32 %v1518, %v1708
      %v1710 = vpop.f32.mrf.mxu0
      %1711 = vmatprep.mubr.f32.mxu0 0.0
      %1712 = vmatmul.mubr.f32.gmra.mxu0 %v1540
      %v1713 = vpop.f32.mrf.mxu0
      %v1714 = vadd.f32 %v1518, %v1713
      %v1715 = vpop.f32.mrf.mxu0
      %1716 = vmatprep.mubr.f32.mxu0 0.0
      %1717 = vmatmul.mubr.f32.gmra.mxu0 %v1543
      %v1718 = vpop.f32.mrf.mxu0
      %v1719 = vadd.f32 %v1518, %v1718
      %v1720 = vpop.f32.mrf.mxu0
      %1721 = vmatprep.mubr.f32.mxu0 0.0
      %1722 = vmatmul.mubr.f32.gmra.mxu0 %v1546
      %v1723 = vpop.f32.mrf.mxu0
      %v1724 = vadd.f32 %v1518, %v1723
      %v1725 = vpop.f32.mrf.mxu0
      %1726 = vmatprep.mubr.f32.mxu0 0.0
      %1727 = vmatmul.mubr.f32.gmra.mxu0 %v1549
      %v1728 = vpop.f32.mrf.mxu0
      %v1729 = vadd.f32 %v1518, %v1728
      %v1730 = vpop.f32.mrf.mxu0
      %1731 = vmatprep.mubr.f32.mxu0 0.0
      %1732 = vmatmul.mubr.f32.gmra.mxu0 %v1552
      %v1733 = vpop.f32.mrf.mxu0
      %v1734 = vadd.f32 %v1518, %v1733
      %v1735 = vpop.f32.mrf.mxu0
      %1736 = vmatprep.mubr.f32.mxu0 0.0
      %1737 = vmatmul.mubr.f32.gmra.mxu0 %v1555
      %v1738 = vpop.f32.mrf.mxu0
      %v1739 = vadd.f32 %v1518, %v1738
      %v1740 = vpop.f32.mrf.mxu0
      %1741 = vmatprep.mubr.f32.mxu0 0.0
      %1742 = vmatmul.mubr.f32.gmra.mxu0 %v1558
      %v1743 = vpop.f32.mrf.mxu0
      %v1744 = vadd.f32 %v1518, %v1743
      %v1745 = vpop.f32.mrf.mxu0
      %1746 = vmatprep.mubr.f32.mxu0 0.0
      %1747 = vmatmul.mubr.f32.gmra.mxu0 %v1561
      %v1748 = vpop.f32.mrf.mxu0
      %v1749 = vadd.f32 %v1518, %v1748
      %v1750 = vpop.f32.mrf.mxu0
      %1751 = vmatprep.mubr.f32.mxu0 0.0
      %1752 = vmatmul.mubr.f32.gmra.mxu0 %v1564
      %v1753 = vpop.f32.mrf.mxu0
      %v1754 = vadd.f32 %v1518, %v1753
      %v1755 = vpop.f32.mrf.mxu0
      %1756 = vmatprep.mubr.f32.mxu0 0.0
      %1757 = vmatmul.mubr.f32.gmra.mxu0 %v1567
      %v1758 = vpop.f32.mrf.mxu0
      %v1759 = vadd.f32 %v1518, %v1758
      %v1760 = vpop.f32.mrf.mxu0
      %1761 = vmatprep.mubr.f32.mxu0 0.0
      %1762 = vmatmul.mubr.f32.gmra.mxu0 %v1570
      %v1763 = vpop.f32.mrf.mxu0
      %v1764 = vadd.f32 %v1518, %v1763
      %v1765 = vpop.f32.mrf.mxu0
      %1766 = vmatprep.mubr.f32.mxu0 0.0
      %1767 = vmatmul.mubr.f32.gmra.mxu0 %v1573
      %v1768 = vpop.f32.mrf.mxu0
      %v1769 = vadd.f32 %v1518, %v1768
      %v1770 = vpop.f32.mrf.mxu0
      %1771 = vmatprep.mubr.f32.mxu0 0.0
      %1772 = vmatmul.mubr.f32.gmra.mxu0 %v1576
      %v1773 = vpop.f32.mrf.mxu0
      %v1774 = vadd.f32 %v1518, %v1773
      %v1775 = vpop.f32.mrf.mxu0
      %1776 = vmatprep.mubr.f32.mxu0 0.0
      %1777 = vmatmul.mubr.f32.gmra.mxu0 %v1579
      %v1778 = vpop.f32.mrf.mxu0
      %v1779 = vadd.f32 %v1518, %v1778
      %v1780 = vpop.f32.mrf.mxu0
      %1781 = vmatprep.mubr.f32.mxu0 0.0
      %1782 = vmatmul.mubr.f32.gmra.mxu0 %v1582
      %v1783 = vpop.f32.mrf.mxu0
      %v1784 = vadd.f32 %v1518, %v1783
      %v1785 = vpop.f32.mrf.mxu0
      %1786 = vmatprep.mubr.f32.mxu0 0.0
      %1787 = vmatmul.mubr.f32.gmra.mxu0 %v1585
      %v1788 = vpop.f32.mrf.mxu0
      %v1789 = vadd.f32 %v1518, %v1788
      %v1790 = vpop.f32.mrf.mxu0
      %1791 = vmatprep.mubr.f32.mxu0 0.0
      %1792 = vmatmul.mubr.f32.gmra.mxu0 %v1588
      %v1793 = vpop.f32.mrf.mxu0
      %v1794 = vadd.f32 %v1518, %v1793
      %v1795 = vpop.f32.mrf.mxu0
      %1796 = vmatprep.mubr.f32.mxu0 0.0
      %1797 = vmatmul.mubr.f32.gmra.mxu0 %v1591
      %v1798 = vpop.f32.mrf.mxu0
      %v1799 = vadd.f32 %v1518, %v1798
      %v1800 = vpop.f32.mrf.mxu0
      %1801 = vmatprep.mubr.f32.mxu0 0.0
      %1802 = vmatmul.mubr.f32.gmra.mxu0 %v1594
      %v1803 = vpop.f32.mrf.mxu0
      %v1804 = vadd.f32 %v1518, %v1803
      %v1805 = vpop.f32.mrf.mxu0
      %1806 = vmatprep.mubr.f32.mxu0 0.0
      %1807 = vmatmul.mubr.f32.gmra.mxu0 %v1597
      %v1808 = vpop.f32.mrf.mxu0
      %v1809 = vadd.f32 %v1518, %v1808
      %v1810 = vpop.f32.mrf.mxu0
      %1811 = vmatprep.mubr.f32.mxu0 0.0
      %1812 = vmatmul.mubr.f32.gmra.mxu0 %v1600
      %v1813 = vpop.f32.mrf.mxu0
      %v1814 = vadd.f32 %v1518, %v1813
      %v1815 = vpop.f32.mrf.mxu0
      %1816 = vmatprep.mubr.f32.mxu0 0.0
      %1817 = vmatmul.mubr.f32.gmra.mxu0 %v1603
      %v1818 = vpop.f32.mrf.mxu0
      %v1819 = vadd.f32 %v1518, %v1818
      %v1820 = vpop.f32.mrf.mxu0
      %1821 = vmatprep.mubr.f32.mxu0 0.0
      %1822 = vmatmul.mubr.f32.gmra.mxu0 %v1606
      %v1823 = vpop.f32.mrf.mxu0
      %v1824 = vadd.f32 %v1518, %v1823
      %v1825 = vpop.f32.mrf.mxu0
      %1826 = vmatprep.mubr.f32.mxu0 0.0
      %1827 = vmatmul.mubr.f32.gmra.mxu0 %v1609
      %v1828 = vpop.f32.mrf.mxu0
      %v1829 = vadd.f32 %v1518, %v1828
      %v1830 = vpop.f32.mrf.mxu0
      %1831 = vmatprep.mubr.f32.mxu0 0.0
      %1832 = vmatmul.mubr.f32.gmra.mxu0 %v1612
      %v1833 = vpop.f32.mrf.mxu0
      %v1834 = vadd.f32 %v1518, %v1833
      %v1835 = vpop.f32.mrf.mxu0
      %1836 = vmatprep.mubr.f32.mxu0 0.0
      %1837 = vmatmul.mubr.f32.gmra.mxu0 %v1615
      %v1838 = vpop.f32.mrf.mxu0
      %v1839 = vadd.f32 %v1518, %v1838
      %v1840 = vpop.f32.mrf.mxu0
      %1841 = vdwg.mxu0
      %vm1842 = vcmask 31744
      %v1843 = vsel %vm1842, %v1684, -inf
      %1844 = vmax.xlane.f32.xlu0 %v1843
      %v1845 = vpop.xlane.xlu0 %1844
      %v1846 = vsel %vm1842, %v1689, -inf
      %1847 = vmax.xlane.f32.xlu0 %v1846
      %v1848 = vpop.xlane.xlu0 %1847
      %v1849 = vsel %vm1842, %v1694, -inf
      %1850 = vmax.xlane.f32.xlu0 %v1849
      %v1851 = vpop.xlane.xlu0 %1850
      %v1852 = vsel %vm1842, %v1699, -inf
      %1853 = vmax.xlane.f32.xlu0 %v1852
      %v1854 = vpop.xlane.xlu0 %1853
      %v1855 = vsel %vm1842, %v1704, -inf
      %1856 = vmax.xlane.f32.xlu0 %v1855
      %v1857 = vpop.xlane.xlu0 %1856
      %v1858 = vsel %vm1842, %v1709, -inf
      %1859 = vmax.xlane.f32.xlu0 %v1858
      %v1860 = vpop.xlane.xlu0 %1859
      %v1861 = vsel %vm1842, %v1714, -inf
      %1862 = vmax.xlane.f32.xlu0 %v1861
      %v1863 = vpop.xlane.xlu0 %1862
      %v1864 = vsel %vm1842, %v1719, -inf
      %1865 = vmax.xlane.f32.xlu0 %v1864
      %v1866 = vpop.xlane.xlu0 %1865
      %v1867 = vsel %vm1842, %v1724, -inf
      %1868 = vmax.xlane.f32.xlu0 %v1867
      %v1869 = vpop.xlane.xlu0 %1868
      %v1870 = vsel %vm1842, %v1729, -inf
      %1871 = vmax.xlane.f32.xlu0 %v1870
      %v1872 = vpop.xlane.xlu0 %1871
      %v1873 = vsel %vm1842, %v1734, -inf
      %1874 = vmax.xlane.f32.xlu0 %v1873
      %v1875 = vpop.xlane.xlu0 %1874
      %v1876 = vsel %vm1842, %v1739, -inf
      %1877 = vmax.xlane.f32.xlu0 %v1876
      %v1878 = vpop.xlane.xlu0 %1877
      %v1879 = vsel %vm1842, %v1744, -inf
      %1880 = vmax.xlane.f32.xlu0 %v1879
      %v1881 = vpop.xlane.xlu0 %1880
      %v1882 = vsel %vm1842, %v1749, -inf
      %1883 = vmax.xlane.f32.xlu0 %v1882
      %v1884 = vpop.xlane.xlu0 %1883
      %v1885 = vsel %vm1842, %v1754, -inf
      %1886 = vmax.xlane.f32.xlu0 %v1885
      %v1887 = vpop.xlane.xlu0 %1886
      %v1888 = vsel %vm1842, %v1759, -inf
      %1889 = vmax.xlane.f32.xlu0 %v1888
      %v1890 = vpop.xlane.xlu0 %1889
      %v1891 = vsel %vm1842, %v1764, -inf
      %1892 = vmax.xlane.f32.xlu0 %v1891
      %v1893 = vpop.xlane.xlu0 %1892
      %v1894 = vsel %vm1842, %v1769, -inf
      %1895 = vmax.xlane.f32.xlu0 %v1894
      %v1896 = vpop.xlane.xlu0 %1895
      %v1897 = vsel %vm1842, %v1774, -inf
      %1898 = vmax.xlane.f32.xlu0 %v1897
      %v1899 = vpop.xlane.xlu0 %1898
      %v1900 = vsel %vm1842, %v1779, -inf
      %1901 = vmax.xlane.f32.xlu0 %v1900
      %v1902 = vpop.xlane.xlu0 %1901
      %v1903 = vsel %vm1842, %v1784, -inf
      %1904 = vmax.xlane.f32.xlu0 %v1903
      %v1905 = vpop.xlane.xlu0 %1904
      %v1906 = vsel %vm1842, %v1789, -inf
      %1907 = vmax.xlane.f32.xlu0 %v1906
      %v1908 = vpop.xlane.xlu0 %1907
      %v1909 = vsel %vm1842, %v1794, -inf
      %1910 = vmax.xlane.f32.xlu0 %v1909
      %v1911 = vpop.xlane.xlu0 %1910
      %v1912 = vsel %vm1842, %v1799, -inf
      %1913 = vmax.xlane.f32.xlu0 %v1912
      %v1914 = vpop.xlane.xlu0 %1913
      %v1915 = vsel %vm1842, %v1804, -inf
      %1916 = vmax.xlane.f32.xlu0 %v1915
      %v1917 = vpop.xlane.xlu0 %1916
      %v1918 = vsel %vm1842, %v1809, -inf
      %1919 = vmax.xlane.f32.xlu0 %v1918
      %v1920 = vpop.xlane.xlu0 %1919
      %v1921 = vsel %vm1842, %v1814, -inf
      %1922 = vmax.xlane.f32.xlu0 %v1921
      %v1923 = vpop.xlane.xlu0 %1922
      %v1924 = vsel %vm1842, %v1819, -inf
      %1925 = vmax.xlane.f32.xlu0 %v1924
      %v1926 = vpop.xlane.xlu0 %1925
      %v1927 = vsel %vm1842, %v1824, -inf
      %1928 = vmax.xlane.f32.xlu0 %v1927
      %v1929 = vpop.xlane.xlu0 %1928
      %v1930 = vsel %vm1842, %v1829, -inf
      %1931 = vmax.xlane.f32.xlu0 %v1930
      %v1932 = vpop.xlane.xlu0 %1931
      %v1933 = vsel %vm1842, %v1834, -inf
      %1934 = vmax.xlane.f32.xlu0 %v1933
      %v1935 = vpop.xlane.xlu0 %1934
      %v1936 = vsel %vm1842, %v1839, -inf
      %1937 = vmax.xlane.f32.xlu0 %v1936
      %v1938 = vpop.xlane.xlu0 %1937
      %v1939 = vsub.f32 %v1684, %v1845
      %v1940 = vsub.f32 %v1689, %v1848
      %v1941 = vsub.f32 %v1694, %v1851
      %v1942 = vsub.f32 %v1699, %v1854
      %v1943 = vsub.f32 %v1704, %v1857
      %v1944 = vsub.f32 %v1709, %v1860
      %v1945 = vsub.f32 %v1714, %v1863
      %v1946 = vsub.f32 %v1719, %v1866
      %v1947 = vsub.f32 %v1724, %v1869
      %v1948 = vsub.f32 %v1729, %v1872
      %v1949 = vsub.f32 %v1734, %v1875
      %v1950 = vsub.f32 %v1739, %v1878
      %v1951 = vsub.f32 %v1744, %v1881
      %v1952 = vsub.f32 %v1749, %v1884
      %v1953 = vsub.f32 %v1754, %v1887
      %v1954 = vsub.f32 %v1759, %v1890
      %v1955 = vsub.f32 %v1764, %v1893
      %v1956 = vsub.f32 %v1769, %v1896
      %v1957 = vsub.f32 %v1774, %v1899
      %v1958 = vsub.f32 %v1779, %v1902
      %v1959 = vsub.f32 %v1784, %v1905
      %v1960 = vsub.f32 %v1789, %v1908
      %v1961 = vsub.f32 %v1794, %v1911
      %v1962 = vsub.f32 %v1799, %v1914
      %v1963 = vsub.f32 %v1804, %v1917
      %v1964 = vsub.f32 %v1809, %v1920
      %v1965 = vsub.f32 %v1814, %v1923
      %v1966 = vsub.f32 %v1819, %v1926
      %v1967 = vsub.f32 %v1824, %v1929
      %v1968 = vsub.f32 %v1829, %v1932
      %v1969 = vsub.f32 %v1834, %v1935
      %v1970 = vsub.f32 %v1839, %v1938
      %v1971 = vmul.f32 %v1939, 1.442695
      %v1972 = vpow.pop %v1971
      %v1973 = vmul.f32 %v1940, 1.442695
      %v1974 = vpow.pop %v1973
      %v1975 = vmul.f32 %v1941, 1.442695
      %v1976 = vpow.pop %v1975
      %v1977 = vmul.f32 %v1942, 1.442695
      %v1978 = vpow.pop %v1977
      %v1979 = vmul.f32 %v1943, 1.442695
      %v1980 = vpow.pop %v1979
      %v1981 = vmul.f32 %v1944, 1.442695
      %v1982 = vpow.pop %v1981
      %v1983 = vmul.f32 %v1945, 1.442695
      %v1984 = vpow.pop %v1983
      %v1985 = vmul.f32 %v1946, 1.442695
      %v1986 = vpow.pop %v1985
      %v1987 = vmul.f32 %v1947, 1.442695
      %v1988 = vpow.pop %v1987
      %v1989 = vmul.f32 %v1948, 1.442695
      %v1990 = vpow.pop %v1989
      %v1991 = vmul.f32 %v1949, 1.442695
      %v1992 = vpow.pop %v1991
      %v1993 = vmul.f32 %v1950, 1.442695
      %v1994 = vpow.pop %v1993
      %v1995 = vmul.f32 %v1951, 1.442695
      %v1996 = vpow.pop %v1995
      %v1997 = vmul.f32 %v1952, 1.442695
      %v1998 = vpow.pop %v1997
      %v1999 = vmul.f32 %v1953, 1.442695
      %v2000 = vpow.pop %v1999
      %v2001 = vmul.f32 %v1954, 1.442695
      %v2002 = vpow.pop %v2001
      %v2003 = vmul.f32 %v1955, 1.442695
      %v2004 = vpow.pop %v2003
      %v2005 = vmul.f32 %v1956, 1.442695
      %v2006 = vpow.pop %v2005
      %v2007 = vmul.f32 %v1957, 1.442695
      %v2008 = vpow.pop %v2007
      %v2009 = vmul.f32 %v1958, 1.442695
      %v2010 = vpow.pop %v2009
      %v2011 = vmul.f32 %v1959, 1.442695
      %v2012 = vpow.pop %v2011
      %v2013 = vmul.f32 %v1960, 1.442695
      %v2014 = vpow.pop %v2013
      %v2015 = vmul.f32 %v1961, 1.442695
      %v2016 = vpow.pop %v2015
      %v2017 = vmul.f32 %v1962, 1.442695
      %v2018 = vpow.pop %v2017
      %v2019 = vmul.f32 %v1963, 1.442695
      %v2020 = vpow.pop %v2019
      %v2021 = vmul.f32 %v1964, 1.442695
      %v2022 = vpow.pop %v2021
      %v2023 = vmul.f32 %v1965, 1.442695
      %v2024 = vpow.pop %v2023
      %v2025 = vmul.f32 %v1966, 1.442695
      %v2026 = vpow.pop %v2025
      %v2027 = vmul.f32 %v1967, 1.442695
      %v2028 = vpow.pop %v2027
      %v2029 = vmul.f32 %v1968, 1.442695
      %v2030 = vpow.pop %v2029
      %v2031 = vmul.f32 %v1969, 1.442695
      %v2032 = vpow.pop %v2031
      %v2033 = vmul.f32 %v1970, 1.442695
      %v2034 = vpow.pop %v2033
      %2067 = vrot.lane.b32.xlu0 %v1972, 127
      %v2068 = vpop.permute.xlu0 %2067
      %2069 = vrot.lane.b32.xlu0 %v1974, 127
      %v2070 = vpop.permute.xlu0 %2069
      %2071 = vrot.lane.b32.xlu0 %v1976, 127
      %v2072 = vpop.permute.xlu0 %2071
      %2073 = vrot.lane.b32.xlu0 %v1978, 127
      %v2074 = vpop.permute.xlu0 %2073
      %2075 = vrot.lane.b32.xlu0 %v1980, 127
      %v2076 = vpop.permute.xlu0 %2075
      %2077 = vrot.lane.b32.xlu0 %v1982, 127
      %v2078 = vpop.permute.xlu0 %2077
      %2079 = vrot.lane.b32.xlu0 %v1984, 127
      %v2080 = vpop.permute.xlu0 %2079
      %2081 = vrot.lane.b32.xlu0 %v1986, 127
      %v2082 = vpop.permute.xlu0 %2081
      %2083 = vrot.lane.b32.xlu0 %v1988, 127
      %v2084 = vpop.permute.xlu0 %2083
      %2085 = vrot.lane.b32.xlu0 %v1990, 127
      %v2086 = vpop.permute.xlu0 %2085
      %2087 = vrot.lane.b32.xlu0 %v1992, 127
      %v2088 = vpop.permute.xlu0 %2087
      %2089 = vrot.lane.b32.xlu0 %v1994, 127
      %v2090 = vpop.permute.xlu0 %2089
      %2091 = vrot.lane.b32.xlu0 %v1996, 127
      %v2092 = vpop.permute.xlu0 %2091
      %2093 = vrot.lane.b32.xlu0 %v1998, 127
      %v2094 = vpop.permute.xlu0 %2093
      %2095 = vrot.lane.b32.xlu0 %v2000, 127
      %v2096 = vpop.permute.xlu0 %2095
      %2097 = vrot.lane.b32.xlu0 %v2002, 127
      %v2098 = vpop.permute.xlu0 %2097
      %2099 = vrot.lane.b32.xlu0 %v2004, 127
      %v2100 = vpop.permute.xlu0 %2099
      %2101 = vrot.lane.b32.xlu0 %v2006, 127
      %v2102 = vpop.permute.xlu0 %2101
      %2103 = vrot.lane.b32.xlu0 %v2008, 127
      %v2104 = vpop.permute.xlu0 %2103
      %2105 = vrot.lane.b32.xlu0 %v2010, 127
      %v2106 = vpop.permute.xlu0 %2105
      %2107 = vrot.lane.b32.xlu0 %v2012, 127
      %v2108 = vpop.permute.xlu0 %2107
      %2109 = vrot.lane.b32.xlu0 %v2014, 127
      %v2110 = vpop.permute.xlu0 %2109
      %2111 = vrot.lane.b32.xlu0 %v2016, 127
      %v2112 = vpop.permute.xlu0 %2111
      %2113 = vrot.lane.b32.xlu0 %v2018, 127
      %v2114 = vpop.permute.xlu0 %2113
      %2115 = vrot.lane.b32.xlu0 %v2020, 127
      %v2116 = vpop.permute.xlu0 %2115
      %2117 = vrot.lane.b32.xlu0 %v2022, 127
      %v2118 = vpop.permute.xlu0 %2117
      %2119 = vrot.lane.b32.xlu0 %v2024, 127
      %v2120 = vpop.permute.xlu0 %2119
      %2121 = vrot.lane.b32.xlu0 %v2026, 127
      %v2122 = vpop.permute.xlu0 %2121
      %2123 = vrot.lane.b32.xlu0 %v2028, 127
      %v2124 = vpop.permute.xlu0 %2123
      %2125 = vrot.lane.b32.xlu0 %v2030, 127
      %v2126 = vpop.permute.xlu0 %2125
      %2127 = vrot.lane.b32.xlu0 %v2032, 127
      %v2128 = vpop.permute.xlu0 %2127
      %2129 = vrot.lane.b32.xlu0 %v2034, 127
      %v2130 = vpop.permute.xlu0 %2129
      %v2163 = vadd.f32 %v1972, %v2068
      %v2164 = vadd.f32 %v1974, %v2070
      %v2165 = vadd.f32 %v1976, %v2072
      %v2166 = vadd.f32 %v1978, %v2074
      %v2167 = vadd.f32 %v1980, %v2076
      %v2168 = vadd.f32 %v1982, %v2078
      %v2169 = vadd.f32 %v1984, %v2080
      %v2170 = vadd.f32 %v1986, %v2082
      %v2171 = vadd.f32 %v1988, %v2084
      %v2172 = vadd.f32 %v1990, %v2086
      %v2173 = vadd.f32 %v1992, %v2088
      %v2174 = vadd.f32 %v1994, %v2090
      %v2175 = vadd.f32 %v1996, %v2092
      %v2176 = vadd.f32 %v1998, %v2094
      %v2177 = vadd.f32 %v2000, %v2096
      %v2178 = vadd.f32 %v2002, %v2098
      %v2179 = vadd.f32 %v2004, %v2100
      %v2180 = vadd.f32 %v2006, %v2102
      %v2181 = vadd.f32 %v2008, %v2104
      %v2182 = vadd.f32 %v2010, %v2106
      %v2183 = vadd.f32 %v2012, %v2108
      %v2184 = vadd.f32 %v2014, %v2110
      %v2185 = vadd.f32 %v2016, %v2112
      %v2186 = vadd.f32 %v2018, %v2114
      %v2187 = vadd.f32 %v2020, %v2116
      %v2188 = vadd.f32 %v2022, %v2118
      %v2189 = vadd.f32 %v2024, %v2120
      %v2190 = vadd.f32 %v2026, %v2122
      %v2191 = vadd.f32 %v2028, %v2124
      %v2192 = vadd.f32 %v2030, %v2126
      %v2193 = vadd.f32 %v2032, %v2128
      %v2194 = vadd.f32 %v2034, %v2130
      %2195 = vrot.lane.b32.xlu0 %v1972, 126
      %v2196 = vpop.permute.xlu0 %2195
      %2197 = vrot.lane.b32.xlu0 %v1974, 126
      %v2198 = vpop.permute.xlu0 %2197
      %2199 = vrot.lane.b32.xlu0 %v1976, 126
      %v2200 = vpop.permute.xlu0 %2199
      %2201 = vrot.lane.b32.xlu0 %v1978, 126
      %v2202 = vpop.permute.xlu0 %2201
      %2203 = vrot.lane.b32.xlu0 %v1980, 126
      %v2204 = vpop.permute.xlu0 %2203
      %2205 = vrot.lane.b32.xlu0 %v1982, 126
      %v2206 = vpop.permute.xlu0 %2205
      %2207 = vrot.lane.b32.xlu0 %v1984, 126
      %v2208 = vpop.permute.xlu0 %2207
      %2209 = vrot.lane.b32.xlu0 %v1986, 126
      %v2210 = vpop.permute.xlu0 %2209
      %2211 = vrot.lane.b32.xlu0 %v1988, 126
      %v2212 = vpop.permute.xlu0 %2211
      %2213 = vrot.lane.b32.xlu0 %v1990, 126
      %v2214 = vpop.permute.xlu0 %2213
      %2215 = vrot.lane.b32.xlu0 %v1992, 126
      %v2216 = vpop.permute.xlu0 %2215
      %2217 = vrot.lane.b32.xlu0 %v1994, 126
      %v2218 = vpop.permute.xlu0 %2217
      %2219 = vrot.lane.b32.xlu0 %v1996, 126
      %v2220 = vpop.permute.xlu0 %2219
      %2221 = vrot.lane.b32.xlu0 %v1998, 126
      %v2222 = vpop.permute.xlu0 %2221
      %2223 = vrot.lane.b32.xlu0 %v2000, 126
      %v2224 = vpop.permute.xlu0 %2223
      %2225 = vrot.lane.b32.xlu0 %v2002, 126
      %v2226 = vpop.permute.xlu0 %2225
      %2227 = vrot.lane.b32.xlu0 %v2004, 126
      %v2228 = vpop.permute.xlu0 %2227
      %2229 = vrot.lane.b32.xlu0 %v2006, 126
      %v2230 = vpop.permute.xlu0 %2229
      %2231 = vrot.lane.b32.xlu0 %v2008, 126
      %v2232 = vpop.permute.xlu0 %2231
      %2233 = vrot.lane.b32.xlu0 %v2010, 126
      %v2234 = vpop.permute.xlu0 %2233
      %2235 = vrot.lane.b32.xlu0 %v2012, 126
      %v2236 = vpop.permute.xlu0 %2235
      %2237 = vrot.lane.b32.xlu0 %v2014, 126
      %v2238 = vpop.permute.xlu0 %2237
      %2239 = vrot.lane.b32.xlu0 %v2016, 126
      %v2240 = vpop.permute.xlu0 %2239
      %2241 = vrot.lane.b32.xlu0 %v2018, 126
      %v2242 = vpop.permute.xlu0 %2241
      %2243 = vrot.lane.b32.xlu0 %v2020, 126
      %v2244 = vpop.permute.xlu0 %2243
      %2245 = vrot.lane.b32.xlu0 %v2022, 126
      %v2246 = vpop.permute.xlu0 %2245
      %2247 = vrot.lane.b32.xlu0 %v2024, 126
      %v2248 = vpop.permute.xlu0 %2247
      %2249 = vrot.lane.b32.xlu0 %v2026, 126
      %v2250 = vpop.permute.xlu0 %2249
      %2251 = vrot.lane.b32.xlu0 %v2028, 126
      %v2252 = vpop.permute.xlu0 %2251
      %2253 = vrot.lane.b32.xlu0 %v2030, 126
      %v2254 = vpop.permute.xlu0 %2253
      %2255 = vrot.lane.b32.xlu0 %v2032, 126
      %v2256 = vpop.permute.xlu0 %2255
      %2257 = vrot.lane.b32.xlu0 %v2034, 126
      %v2258 = vpop.permute.xlu0 %2257
      %v2291 = vadd.f32 %v2163, %v2196
      %v2292 = vadd.f32 %v2164, %v2198
      %v2293 = vadd.f32 %v2165, %v2200
      %v2294 = vadd.f32 %v2166, %v2202
      %v2295 = vadd.f32 %v2167, %v2204
      %v2296 = vadd.f32 %v2168, %v2206
      %v2297 = vadd.f32 %v2169, %v2208
      %v2298 = vadd.f32 %v2170, %v2210
      %v2299 = vadd.f32 %v2171, %v2212
      %v2300 = vadd.f32 %v2172, %v2214
      %v2301 = vadd.f32 %v2173, %v2216
      %v2302 = vadd.f32 %v2174, %v2218
      %v2303 = vadd.f32 %v2175, %v2220
      %v2304 = vadd.f32 %v2176, %v2222
      %v2305 = vadd.f32 %v2177, %v2224
      %v2306 = vadd.f32 %v2178, %v2226
      %v2307 = vadd.f32 %v2179, %v2228
      %v2308 = vadd.f32 %v2180, %v2230
      %v2309 = vadd.f32 %v2181, %v2232
      %v2310 = vadd.f32 %v2182, %v2234
      %v2311 = vadd.f32 %v2183, %v2236
      %v2312 = vadd.f32 %v2184, %v2238
      %v2313 = vadd.f32 %v2185, %v2240
      %v2314 = vadd.f32 %v2186, %v2242
      %v2315 = vadd.f32 %v2187, %v2244
      %v2316 = vadd.f32 %v2188, %v2246
      %v2317 = vadd.f32 %v2189, %v2248
      %v2318 = vadd.f32 %v2190, %v2250
      %v2319 = vadd.f32 %v2191, %v2252
      %v2320 = vadd.f32 %v2192, %v2254
      %v2321 = vadd.f32 %v2193, %v2256
      %v2322 = vadd.f32 %v2194, %v2258
      %2323 = vrot.lane.b32.xlu0 %v1972, 125
      %v2324 = vpop.permute.xlu0 %2323
      %2325 = vrot.lane.b32.xlu0 %v1974, 125
      %v2326 = vpop.permute.xlu0 %2325
      %2327 = vrot.lane.b32.xlu0 %v1976, 125
      %v2328 = vpop.permute.xlu0 %2327
      %2329 = vrot.lane.b32.xlu0 %v1978, 125
      %v2330 = vpop.permute.xlu0 %2329
      %2331 = vrot.lane.b32.xlu0 %v1980, 125
      %v2332 = vpop.permute.xlu0 %2331
      %2333 = vrot.lane.b32.xlu0 %v1982, 125
      %v2334 = vpop.permute.xlu0 %2333
      %2335 = vrot.lane.b32.xlu0 %v1984, 125
      %v2336 = vpop.permute.xlu0 %2335
      %2337 = vrot.lane.b32.xlu0 %v1986, 125
      %v2338 = vpop.permute.xlu0 %2337
      %2339 = vrot.lane.b32.xlu0 %v1988, 125
      %v2340 = vpop.permute.xlu0 %2339
      %2341 = vrot.lane.b32.xlu0 %v1990, 125
      %v2342 = vpop.permute.xlu0 %2341
      %2343 = vrot.lane.b32.xlu0 %v1992, 125
      %v2344 = vpop.permute.xlu0 %2343
      %2345 = vrot.lane.b32.xlu0 %v1994, 125
      %v2346 = vpop.permute.xlu0 %2345
      %2347 = vrot.lane.b32.xlu0 %v1996, 125
      %v2348 = vpop.permute.xlu0 %2347
      %2349 = vrot.lane.b32.xlu0 %v1998, 125
      %v2350 = vpop.permute.xlu0 %2349
      %2351 = vrot.lane.b32.xlu0 %v2000, 125
      %v2352 = vpop.permute.xlu0 %2351
      %2353 = vrot.lane.b32.xlu0 %v2002, 125
      %v2354 = vpop.permute.xlu0 %2353
      %2355 = vrot.lane.b32.xlu0 %v2004, 125
      %v2356 = vpop.permute.xlu0 %2355
      %2357 = vrot.lane.b32.xlu0 %v2006, 125
      %v2358 = vpop.permute.xlu0 %2357
      %2359 = vrot.lane.b32.xlu0 %v2008, 125
      %v2360 = vpop.permute.xlu0 %2359
      %2361 = vrot.lane.b32.xlu0 %v2010, 125
      %v2362 = vpop.permute.xlu0 %2361
      %2363 = vrot.lane.b32.xlu0 %v2012, 125
      %v2364 = vpop.permute.xlu0 %2363
      %2365 = vrot.lane.b32.xlu0 %v2014, 125
      %v2366 = vpop.permute.xlu0 %2365
      %2367 = vrot.lane.b32.xlu0 %v2016, 125
      %v2368 = vpop.permute.xlu0 %2367
      %2369 = vrot.lane.b32.xlu0 %v2018, 125
      %v2370 = vpop.permute.xlu0 %2369
      %2371 = vrot.lane.b32.xlu0 %v2020, 125
      %v2372 = vpop.permute.xlu0 %2371
      %2373 = vrot.lane.b32.xlu0 %v2022, 125
      %v2374 = vpop.permute.xlu0 %2373
      %2375 = vrot.lane.b32.xlu0 %v2024, 125
      %v2376 = vpop.permute.xlu0 %2375
      %2377 = vrot.lane.b32.xlu0 %v2026, 125
      %v2378 = vpop.permute.xlu0 %2377
      %2379 = vrot.lane.b32.xlu0 %v2028, 125
      %v2380 = vpop.permute.xlu0 %2379
      %2381 = vrot.lane.b32.xlu0 %v2030, 125
      %v2382 = vpop.permute.xlu0 %2381
      %2383 = vrot.lane.b32.xlu0 %v2032, 125
      %v2384 = vpop.permute.xlu0 %2383
      %2385 = vrot.lane.b32.xlu0 %v2034, 125
      %v2386 = vpop.permute.xlu0 %2385
      %v2419 = vadd.f32 %v2291, %v2324
      %v2420 = vadd.f32 %v2292, %v2326
      %v2421 = vadd.f32 %v2293, %v2328
      %v2422 = vadd.f32 %v2294, %v2330
      %v2423 = vadd.f32 %v2295, %v2332
      %v2424 = vadd.f32 %v2296, %v2334
      %v2425 = vadd.f32 %v2297, %v2336
      %v2426 = vadd.f32 %v2298, %v2338
      %v2427 = vadd.f32 %v2299, %v2340
      %v2428 = vadd.f32 %v2300, %v2342
      %v2429 = vadd.f32 %v2301, %v2344
      %v2430 = vadd.f32 %v2302, %v2346
      %v2431 = vadd.f32 %v2303, %v2348
      %v2432 = vadd.f32 %v2304, %v2350
      %v2433 = vadd.f32 %v2305, %v2352
      %v2434 = vadd.f32 %v2306, %v2354
      %v2435 = vadd.f32 %v2307, %v2356
      %v2436 = vadd.f32 %v2308, %v2358
      %v2437 = vadd.f32 %v2309, %v2360
      %v2438 = vadd.f32 %v2310, %v2362
      %v2439 = vadd.f32 %v2311, %v2364
      %v2440 = vadd.f32 %v2312, %v2366
      %v2441 = vadd.f32 %v2313, %v2368
      %v2442 = vadd.f32 %v2314, %v2370
      %v2443 = vadd.f32 %v2315, %v2372
      %v2444 = vadd.f32 %v2316, %v2374
      %v2445 = vadd.f32 %v2317, %v2376
      %v2446 = vadd.f32 %v2318, %v2378
      %v2447 = vadd.f32 %v2319, %v2380
      %v2448 = vadd.f32 %v2320, %v2382
      %v2449 = vadd.f32 %v2321, %v2384
      %v2450 = vadd.f32 %v2322, %v2386
      %v2451 = vrcp.pop %v2419
      %v2452 = vrcp.pop %v2420
      %v2453 = vrcp.pop %v2421
      %v2454 = vrcp.pop %v2422
      %v2455 = vrcp.pop %v2423
      %v2456 = vrcp.pop %v2424
      %v2457 = vrcp.pop %v2425
      %v2458 = vrcp.pop %v2426
      %v2459 = vrcp.pop %v2427
      %v2460 = vrcp.pop %v2428
      %v2461 = vrcp.pop %v2429
      %v2462 = vrcp.pop %v2430
      %v2463 = vrcp.pop %v2431
      %v2464 = vrcp.pop %v2432
      %v2465 = vrcp.pop %v2433
      %v2466 = vrcp.pop %v2434
      %v2467 = vrcp.pop %v2435
      %v2468 = vrcp.pop %v2436
      %v2469 = vrcp.pop %v2437
      %v2470 = vrcp.pop %v2438
      %v2471 = vrcp.pop %v2439
      %v2472 = vrcp.pop %v2440
      %v2473 = vrcp.pop %v2441
      %v2474 = vrcp.pop %v2442
      %v2475 = vrcp.pop %v2443
      %v2476 = vrcp.pop %v2444
      %v2477 = vrcp.pop %v2445
      %v2478 = vrcp.pop %v2446
      %v2479 = vrcp.pop %v2447
      %v2480 = vrcp.pop %v2448
      %v2481 = vrcp.pop %v2449
      %v2482 = vrcp.pop %v2450
      %v2483 = vunpack.c.l.bf16 %v376
      %v2484 = vunpack.c.l.bf16 %v377
      %v2485 = vunpack.c.l.bf16 %v378
      %v2486 = vunpack.c.l.bf16 %v379
      %v2487 = vunpack.c.l.bf16 %v380
      %v2488 = vunpack.c.l.bf16 %v381
      %v2489 = vunpack.c.l.bf16 %v382
      %v2490 = vunpack.c.l.bf16 %v383
      %v2491 = vunpack.c.l.bf16 %v384
      %v2492 = vunpack.c.l.bf16 %v385
      %v2493 = vunpack.c.l.bf16 %v386
      %v2494 = vunpack.c.l.bf16 %v387
      %v2495 = vunpack.c.l.bf16 %v388
      %v2496 = vunpack.c.l.bf16 %v389
      %v2497 = vunpack.c.l.bf16 %v390
      %v2498 = vunpack.c.l.bf16 %v391
      %v2499 = vunpack.c.l.bf16 %v392
      %v2500 = vunpack.c.l.bf16 %v393
      %v2501 = vunpack.c.l.bf16 %v394
      %v2502 = vunpack.c.l.bf16 %v395
      %v2503 = vunpack.c.l.bf16 %v396
      %v2504 = vunpack.c.l.bf16 %v397
      %v2505 = vunpack.c.l.bf16 %v398
      %v2506 = vunpack.c.l.bf16 %v399
      %v2507 = vunpack.c.l.bf16 %v400
      %v2508 = vunpack.c.l.bf16 %v401
      %v2509 = vunpack.c.l.bf16 %v402
      %v2510 = vunpack.c.l.bf16 %v403
      %v2511 = vunpack.c.l.bf16 %v404
      %v2512 = vunpack.c.l.bf16 %v405
      %v2513 = vunpack.c.l.bf16 %v406
      %v2514 = vunpack.c.l.bf16 %v407
      %2515 = vset.pattern.permute.xlu0 0
      %2516 = vperm.xlu0 %2515, %v1972
      %v2517 = vpop.permute.xlu0 %2516
      %2519 = vset.pattern.permute.xlu0 0
      %2520 = vperm.xlu0 %2519, %v1974
      %v2521 = vpop.permute.xlu0 %2520
      %2523 = vset.pattern.permute.xlu0 0
      %2524 = vperm.xlu0 %2523, %v1976
      %v2525 = vpop.permute.xlu0 %2524
      %2527 = vset.pattern.permute.xlu0 0
      %2528 = vperm.xlu0 %2527, %v1978
      %v2529 = vpop.permute.xlu0 %2528
      %2531 = vset.pattern.permute.xlu0 0
      %2532 = vperm.xlu0 %2531, %v1980
      %v2533 = vpop.permute.xlu0 %2532
      %2535 = vset.pattern.permute.xlu0 0
      %2536 = vperm.xlu0 %2535, %v1982
      %v2537 = vpop.permute.xlu0 %2536
      %2539 = vset.pattern.permute.xlu0 0
      %2540 = vperm.xlu0 %2539, %v1984
      %v2541 = vpop.permute.xlu0 %2540
      %2543 = vset.pattern.permute.xlu0 0
      %2544 = vperm.xlu0 %2543, %v1986
      %v2545 = vpop.permute.xlu0 %2544
      %2547 = vset.pattern.permute.xlu0 0
      %2548 = vperm.xlu0 %2547, %v1988
      %v2549 = vpop.permute.xlu0 %2548
      %2551 = vset.pattern.permute.xlu0 0
      %2552 = vperm.xlu0 %2551, %v1990
      %v2553 = vpop.permute.xlu0 %2552
      %2555 = vset.pattern.permute.xlu0 0
      %2556 = vperm.xlu0 %2555, %v1992
      %v2557 = vpop.permute.xlu0 %2556
      %2559 = vset.pattern.permute.xlu0 0
      %2560 = vperm.xlu0 %2559, %v1994
      %v2561 = vpop.permute.xlu0 %2560
      %2563 = vset.pattern.permute.xlu0 0
      %2564 = vperm.xlu0 %2563, %v1996
      %v2565 = vpop.permute.xlu0 %2564
      %2567 = vset.pattern.permute.xlu0 0
      %2568 = vperm.xlu0 %2567, %v1998
      %v2569 = vpop.permute.xlu0 %2568
      %2571 = vset.pattern.permute.xlu0 0
      %2572 = vperm.xlu0 %2571, %v2000
      %v2573 = vpop.permute.xlu0 %2572
      %2575 = vset.pattern.permute.xlu0 0
      %2576 = vperm.xlu0 %2575, %v2002
      %v2577 = vpop.permute.xlu0 %2576
      %2579 = vset.pattern.permute.xlu0 0
      %2580 = vperm.xlu0 %2579, %v2004
      %v2581 = vpop.permute.xlu0 %2580
      %2583 = vset.pattern.permute.xlu0 0
      %2584 = vperm.xlu0 %2583, %v2006
      %v2585 = vpop.permute.xlu0 %2584
      %2587 = vset.pattern.permute.xlu0 0
      %2588 = vperm.xlu0 %2587, %v2008
      %v2589 = vpop.permute.xlu0 %2588
      %2591 = vset.pattern.permute.xlu0 0
      %2592 = vperm.xlu0 %2591, %v2010
      %v2593 = vpop.permute.xlu0 %2592
      %2595 = vset.pattern.permute.xlu0 0
      %2596 = vperm.xlu0 %2595, %v2012
      %v2597 = vpop.permute.xlu0 %2596
      %2599 = vset.pattern.permute.xlu0 0
      %2600 = vperm.xlu0 %2599, %v2014
      %v2601 = vpop.permute.xlu0 %2600
      %2603 = vset.pattern.permute.xlu0 0
      %2604 = vperm.xlu0 %2603, %v2016
      %v2605 = vpop.permute.xlu0 %2604
      %2607 = vset.pattern.permute.xlu0 0
      %2608 = vperm.xlu0 %2607, %v2018
      %v2609 = vpop.permute.xlu0 %2608
      %2611 = vset.pattern.permute.xlu0 0
      %2612 = vperm.xlu0 %2611, %v2020
      %v2613 = vpop.permute.xlu0 %2612
      %2615 = vset.pattern.permute.xlu0 0
      %2616 = vperm.xlu0 %2615, %v2022
      %v2617 = vpop.permute.xlu0 %2616
      %2619 = vset.pattern.permute.xlu0 0
      %2620 = vperm.xlu0 %2619, %v2024
      %v2621 = vpop.permute.xlu0 %2620
      %2623 = vset.pattern.permute.xlu0 0
      %2624 = vperm.xlu0 %2623, %v2026
      %v2625 = vpop.permute.xlu0 %2624
      %2627 = vset.pattern.permute.xlu0 0
      %2628 = vperm.xlu0 %2627, %v2028
      %v2629 = vpop.permute.xlu0 %2628
      %2631 = vset.pattern.permute.xlu0 0
      %2632 = vperm.xlu0 %2631, %v2030
      %v2633 = vpop.permute.xlu0 %2632
      %2635 = vset.pattern.permute.xlu0 0
      %2636 = vperm.xlu0 %2635, %v2032
      %v2637 = vpop.permute.xlu0 %2636
      %2639 = vset.pattern.permute.xlu0 0
      %2640 = vperm.xlu0 %2639, %v2034
      %v2641 = vpop.permute.xlu0 %2640
      %v2643 = vmul.f32 %v2483, %v2517
      %v2644 = vmul.f32 %v2484, %v2521
      %v2645 = vmul.f32 %v2485, %v2525
      %v2646 = vmul.f32 %v2486, %v2529
      %v2647 = vmul.f32 %v2487, %v2533
      %v2648 = vmul.f32 %v2488, %v2537
      %v2649 = vmul.f32 %v2489, %v2541
      %v2650 = vmul.f32 %v2490, %v2545
      %v2651 = vmul.f32 %v2491, %v2549
      %v2652 = vmul.f32 %v2492, %v2553
      %v2653 = vmul.f32 %v2493, %v2557
      %v2654 = vmul.f32 %v2494, %v2561
      %v2655 = vmul.f32 %v2495, %v2565
      %v2656 = vmul.f32 %v2496, %v2569
      %v2657 = vmul.f32 %v2497, %v2573
      %v2658 = vmul.f32 %v2498, %v2577
      %v2659 = vmul.f32 %v2499, %v2581
      %v2660 = vmul.f32 %v2500, %v2585
      %v2661 = vmul.f32 %v2501, %v2589
      %v2662 = vmul.f32 %v2502, %v2593
      %v2663 = vmul.f32 %v2503, %v2597
      %v2664 = vmul.f32 %v2504, %v2601
      %v2665 = vmul.f32 %v2505, %v2605
      %v2666 = vmul.f32 %v2506, %v2609
      %v2667 = vmul.f32 %v2507, %v2613
      %v2668 = vmul.f32 %v2508, %v2617
      %v2669 = vmul.f32 %v2509, %v2621
      %v2670 = vmul.f32 %v2510, %v2625
      %v2671 = vmul.f32 %v2511, %v2629
      %v2672 = vmul.f32 %v2512, %v2633
      %v2673 = vmul.f32 %v2513, %v2637
      %v2674 = vmul.f32 %v2514, %v2641
      %v2675 = vunpack.c.l.bf16 %v408
      %v2676 = vunpack.c.l.bf16 %v409
      %v2677 = vunpack.c.l.bf16 %v410
      %v2678 = vunpack.c.l.bf16 %v411
      %v2679 = vunpack.c.l.bf16 %v412
      %v2680 = vunpack.c.l.bf16 %v413
      %v2681 = vunpack.c.l.bf16 %v414
      %v2682 = vunpack.c.l.bf16 %v415
      %v2683 = vunpack.c.l.bf16 %v416
      %v2684 = vunpack.c.l.bf16 %v417
      %v2685 = vunpack.c.l.bf16 %v418
      %v2686 = vunpack.c.l.bf16 %v419
      %v2687 = vunpack.c.l.bf16 %v420
      %v2688 = vunpack.c.l.bf16 %v421
      %v2689 = vunpack.c.l.bf16 %v422
      %v2690 = vunpack.c.l.bf16 %v423
      %v2691 = vunpack.c.l.bf16 %v424
      %v2692 = vunpack.c.l.bf16 %v425
      %v2693 = vunpack.c.l.bf16 %v426
      %v2694 = vunpack.c.l.bf16 %v427
      %v2695 = vunpack.c.l.bf16 %v428
      %v2696 = vunpack.c.l.bf16 %v429
      %v2697 = vunpack.c.l.bf16 %v430
      %v2698 = vunpack.c.l.bf16 %v431
      %v2699 = vunpack.c.l.bf16 %v432
      %v2700 = vunpack.c.l.bf16 %v433
      %v2701 = vunpack.c.l.bf16 %v434
      %v2702 = vunpack.c.l.bf16 %v435
      %v2703 = vunpack.c.l.bf16 %v436
      %v2704 = vunpack.c.l.bf16 %v437
      %v2705 = vunpack.c.l.bf16 %v438
      %v2706 = vunpack.c.l.bf16 %v439
      %2707 = vset.pattern.permute.xlu0 1
      %2708 = vperm.xlu0 %2707, %v1972
      %v2709 = vpop.permute.xlu0 %2708
      %2711 = vset.pattern.permute.xlu0 1
      %2712 = vperm.xlu0 %2711, %v1974
      %v2713 = vpop.permute.xlu0 %2712
      %2715 = vset.pattern.permute.xlu0 1
      %2716 = vperm.xlu0 %2715, %v1976
      %v2717 = vpop.permute.xlu0 %2716
      %2719 = vset.pattern.permute.xlu0 1
      %2720 = vperm.xlu0 %2719, %v1978
      %v2721 = vpop.permute.xlu0 %2720
      %2723 = vset.pattern.permute.xlu0 1
      %2724 = vperm.xlu0 %2723, %v1980
      %v2725 = vpop.permute.xlu0 %2724
      %2727 = vset.pattern.permute.xlu0 1
      %2728 = vperm.xlu0 %2727, %v1982
      %v2729 = vpop.permute.xlu0 %2728
      %2731 = vset.pattern.permute.xlu0 1
      %2732 = vperm.xlu0 %2731, %v1984
      %v2733 = vpop.permute.xlu0 %2732
      %2735 = vset.pattern.permute.xlu0 1
      %2736 = vperm.xlu0 %2735, %v1986
      %v2737 = vpop.permute.xlu0 %2736
      %2739 = vset.pattern.permute.xlu0 1
      %2740 = vperm.xlu0 %2739, %v1988
      %v2741 = vpop.permute.xlu0 %2740
      %2743 = vset.pattern.permute.xlu0 1
      %2744 = vperm.xlu0 %2743, %v1990
      %v2745 = vpop.permute.xlu0 %2744
      %2747 = vset.pattern.permute.xlu0 1
      %2748 = vperm.xlu0 %2747, %v1992
      %v2749 = vpop.permute.xlu0 %2748
      %2751 = vset.pattern.permute.xlu0 1
      %2752 = vperm.xlu0 %2751, %v1994
      %v2753 = vpop.permute.xlu0 %2752
      %2755 = vset.pattern.permute.xlu0 1
      %2756 = vperm.xlu0 %2755, %v1996
      %v2757 = vpop.permute.xlu0 %2756
      %2759 = vset.pattern.permute.xlu0 1
      %2760 = vperm.xlu0 %2759, %v1998
      %v2761 = vpop.permute.xlu0 %2760
      %2763 = vset.pattern.permute.xlu0 1
      %2764 = vperm.xlu0 %2763, %v2000
      %v2765 = vpop.permute.xlu0 %2764
      %2767 = vset.pattern.permute.xlu0 1
      %2768 = vperm.xlu0 %2767, %v2002
      %v2769 = vpop.permute.xlu0 %2768
      %2771 = vset.pattern.permute.xlu0 1
      %2772 = vperm.xlu0 %2771, %v2004
      %v2773 = vpop.permute.xlu0 %2772
      %2775 = vset.pattern.permute.xlu0 1
      %2776 = vperm.xlu0 %2775, %v2006
      %v2777 = vpop.permute.xlu0 %2776
      %2779 = vset.pattern.permute.xlu0 1
      %2780 = vperm.xlu0 %2779, %v2008
      %v2781 = vpop.permute.xlu0 %2780
      %2783 = vset.pattern.permute.xlu0 1
      %2784 = vperm.xlu0 %2783, %v2010
      %v2785 = vpop.permute.xlu0 %2784
      %2787 = vset.pattern.permute.xlu0 1
      %2788 = vperm.xlu0 %2787, %v2012
      %v2789 = vpop.permute.xlu0 %2788
      %2791 = vset.pattern.permute.xlu0 1
      %2792 = vperm.xlu0 %2791, %v2014
      %v2793 = vpop.permute.xlu0 %2792
      %2795 = vset.pattern.permute.xlu0 1
      %2796 = vperm.xlu0 %2795, %v2016
      %v2797 = vpop.permute.xlu0 %2796
      %2799 = vset.pattern.permute.xlu0 1
      %2800 = vperm.xlu0 %2799, %v2018
      %v2801 = vpop.permute.xlu0 %2800
      %2803 = vset.pattern.permute.xlu0 1
      %2804 = vperm.xlu0 %2803, %v2020
      %v2805 = vpop.permute.xlu0 %2804
      %2807 = vset.pattern.permute.xlu0 1
      %2808 = vperm.xlu0 %2807, %v2022
      %v2809 = vpop.permute.xlu0 %2808
      %2811 = vset.pattern.permute.xlu0 1
      %2812 = vperm.xlu0 %2811, %v2024
      %v2813 = vpop.permute.xlu0 %2812
      %2815 = vset.pattern.permute.xlu0 1
      %2816 = vperm.xlu0 %2815, %v2026
      %v2817 = vpop.permute.xlu0 %2816
      %2819 = vset.pattern.permute.xlu0 1
      %2820 = vperm.xlu0 %2819, %v2028
      %v2821 = vpop.permute.xlu0 %2820
      %2823 = vset.pattern.permute.xlu0 1
      %2824 = vperm.xlu0 %2823, %v2030
      %v2825 = vpop.permute.xlu0 %2824
      %2827 = vset.pattern.permute.xlu0 1
      %2828 = vperm.xlu0 %2827, %v2032
      %v2829 = vpop.permute.xlu0 %2828
      %2831 = vset.pattern.permute.xlu0 1
      %2832 = vperm.xlu0 %2831, %v2034
      %v2833 = vpop.permute.xlu0 %2832
      %v2835 = vmul.f32 %v2675, %v2709
      %v2836 = vmul.f32 %v2676, %v2713
      %v2837 = vmul.f32 %v2677, %v2717
      %v2838 = vmul.f32 %v2678, %v2721
      %v2839 = vmul.f32 %v2679, %v2725
      %v2840 = vmul.f32 %v2680, %v2729
      %v2841 = vmul.f32 %v2681, %v2733
      %v2842 = vmul.f32 %v2682, %v2737
      %v2843 = vmul.f32 %v2683, %v2741
      %v2844 = vmul.f32 %v2684, %v2745
      %v2845 = vmul.f32 %v2685, %v2749
      %v2846 = vmul.f32 %v2686, %v2753
      %v2847 = vmul.f32 %v2687, %v2757
      %v2848 = vmul.f32 %v2688, %v2761
      %v2849 = vmul.f32 %v2689, %v2765
      %v2850 = vmul.f32 %v2690, %v2769
      %v2851 = vmul.f32 %v2691, %v2773
      %v2852 = vmul.f32 %v2692, %v2777
      %v2853 = vmul.f32 %v2693, %v2781
      %v2854 = vmul.f32 %v2694, %v2785
      %v2855 = vmul.f32 %v2695, %v2789
      %v2856 = vmul.f32 %v2696, %v2793
      %v2857 = vmul.f32 %v2697, %v2797
      %v2858 = vmul.f32 %v2698, %v2801
      %v2859 = vmul.f32 %v2699, %v2805
      %v2860 = vmul.f32 %v2700, %v2809
      %v2861 = vmul.f32 %v2701, %v2813
      %v2862 = vmul.f32 %v2702, %v2817
      %v2863 = vmul.f32 %v2703, %v2821
      %v2864 = vmul.f32 %v2704, %v2825
      %v2865 = vmul.f32 %v2705, %v2829
      %v2866 = vmul.f32 %v2706, %v2833
      %v2867 = vadd.f32 %v2643, %v2835
      %v2868 = vadd.f32 %v2644, %v2836
      %v2869 = vadd.f32 %v2645, %v2837
      %v2870 = vadd.f32 %v2646, %v2838
      %v2871 = vadd.f32 %v2647, %v2839
      %v2872 = vadd.f32 %v2648, %v2840
      %v2873 = vadd.f32 %v2649, %v2841
      %v2874 = vadd.f32 %v2650, %v2842
      %v2875 = vadd.f32 %v2651, %v2843
      %v2876 = vadd.f32 %v2652, %v2844
      %v2877 = vadd.f32 %v2653, %v2845
      %v2878 = vadd.f32 %v2654, %v2846
      %v2879 = vadd.f32 %v2655, %v2847
      %v2880 = vadd.f32 %v2656, %v2848
      %v2881 = vadd.f32 %v2657, %v2849
      %v2882 = vadd.f32 %v2658, %v2850
      %v2883 = vadd.f32 %v2659, %v2851
      %v2884 = vadd.f32 %v2660, %v2852
      %v2885 = vadd.f32 %v2661, %v2853
      %v2886 = vadd.f32 %v2662, %v2854
      %v2887 = vadd.f32 %v2663, %v2855
      %v2888 = vadd.f32 %v2664, %v2856
      %v2889 = vadd.f32 %v2665, %v2857
      %v2890 = vadd.f32 %v2666, %v2858
      %v2891 = vadd.f32 %v2667, %v2859
      %v2892 = vadd.f32 %v2668, %v2860
      %v2893 = vadd.f32 %v2669, %v2861
      %v2894 = vadd.f32 %v2670, %v2862
      %v2895 = vadd.f32 %v2671, %v2863
      %v2896 = vadd.f32 %v2672, %v2864
      %v2897 = vadd.f32 %v2673, %v2865
      %v2898 = vadd.f32 %v2674, %v2866
      %v2899 = vunpack.c.l.bf16 %v440
      %v2900 = vunpack.c.l.bf16 %v441
      %v2901 = vunpack.c.l.bf16 %v442
      %v2902 = vunpack.c.l.bf16 %v443
      %v2903 = vunpack.c.l.bf16 %v444
      %v2904 = vunpack.c.l.bf16 %v445
      %v2905 = vunpack.c.l.bf16 %v446
      %v2906 = vunpack.c.l.bf16 %v447
      %v2907 = vunpack.c.l.bf16 %v448
      %v2908 = vunpack.c.l.bf16 %v449
      %v2909 = vunpack.c.l.bf16 %v450
      %v2910 = vunpack.c.l.bf16 %v451
      %v2911 = vunpack.c.l.bf16 %v452
      %v2912 = vunpack.c.l.bf16 %v453
      %v2913 = vunpack.c.l.bf16 %v454
      %v2914 = vunpack.c.l.bf16 %v455
      %v2915 = vunpack.c.l.bf16 %v456
      %v2916 = vunpack.c.l.bf16 %v457
      %v2917 = vunpack.c.l.bf16 %v458
      %v2918 = vunpack.c.l.bf16 %v459
      %v2919 = vunpack.c.l.bf16 %v460
      %v2920 = vunpack.c.l.bf16 %v461
      %v2921 = vunpack.c.l.bf16 %v462
      %v2922 = vunpack.c.l.bf16 %v463
      %v2923 = vunpack.c.l.bf16 %v464
      %v2924 = vunpack.c.l.bf16 %v465
      %v2925 = vunpack.c.l.bf16 %v466
      %v2926 = vunpack.c.l.bf16 %v467
      %v2927 = vunpack.c.l.bf16 %v468
      %v2928 = vunpack.c.l.bf16 %v469
      %v2929 = vunpack.c.l.bf16 %v470
      %v2930 = vunpack.c.l.bf16 %v471
      %2931 = vset.pattern.permute.xlu0 2
      %2932 = vperm.xlu0 %2931, %v1972
      %v2933 = vpop.permute.xlu0 %2932
      %2935 = vset.pattern.permute.xlu0 2
      %2936 = vperm.xlu0 %2935, %v1974
      %v2937 = vpop.permute.xlu0 %2936
      %2939 = vset.pattern.permute.xlu0 2
      %2940 = vperm.xlu0 %2939, %v1976
      %v2941 = vpop.permute.xlu0 %2940
      %2943 = vset.pattern.permute.xlu0 2
      %2944 = vperm.xlu0 %2943, %v1978
      %v2945 = vpop.permute.xlu0 %2944
      %2947 = vset.pattern.permute.xlu0 2
      %2948 = vperm.xlu0 %2947, %v1980
      %v2949 = vpop.permute.xlu0 %2948
      %2951 = vset.pattern.permute.xlu0 2
      %2952 = vperm.xlu0 %2951, %v1982
      %v2953 = vpop.permute.xlu0 %2952
      %2955 = vset.pattern.permute.xlu0 2
      %2956 = vperm.xlu0 %2955, %v1984
      %v2957 = vpop.permute.xlu0 %2956
      %2959 = vset.pattern.permute.xlu0 2
      %2960 = vperm.xlu0 %2959, %v1986
      %v2961 = vpop.permute.xlu0 %2960
      %2963 = vset.pattern.permute.xlu0 2
      %2964 = vperm.xlu0 %2963, %v1988
      %v2965 = vpop.permute.xlu0 %2964
      %2967 = vset.pattern.permute.xlu0 2
      %2968 = vperm.xlu0 %2967, %v1990
      %v2969 = vpop.permute.xlu0 %2968
      %2971 = vset.pattern.permute.xlu0 2
      %2972 = vperm.xlu0 %2971, %v1992
      %v2973 = vpop.permute.xlu0 %2972
      %2975 = vset.pattern.permute.xlu0 2
      %2976 = vperm.xlu0 %2975, %v1994
      %v2977 = vpop.permute.xlu0 %2976
      %2979 = vset.pattern.permute.xlu0 2
      %2980 = vperm.xlu0 %2979, %v1996
      %v2981 = vpop.permute.xlu0 %2980
      %2983 = vset.pattern.permute.xlu0 2
      %2984 = vperm.xlu0 %2983, %v1998
      %v2985 = vpop.permute.xlu0 %2984
      %2987 = vset.pattern.permute.xlu0 2
      %2988 = vperm.xlu0 %2987, %v2000
      %v2989 = vpop.permute.xlu0 %2988
      %2991 = vset.pattern.permute.xlu0 2
      %2992 = vperm.xlu0 %2991, %v2002
      %v2993 = vpop.permute.xlu0 %2992
      %2995 = vset.pattern.permute.xlu0 2
      %2996 = vperm.xlu0 %2995, %v2004
      %v2997 = vpop.permute.xlu0 %2996
      %2999 = vset.pattern.permute.xlu0 2
      %3000 = vperm.xlu0 %2999, %v2006
      %v3001 = vpop.permute.xlu0 %3000
      %3003 = vset.pattern.permute.xlu0 2
      %3004 = vperm.xlu0 %3003, %v2008
      %v3005 = vpop.permute.xlu0 %3004
      %3007 = vset.pattern.permute.xlu0 2
      %3008 = vperm.xlu0 %3007, %v2010
      %v3009 = vpop.permute.xlu0 %3008
      %3011 = vset.pattern.permute.xlu0 2
      %3012 = vperm.xlu0 %3011, %v2012
      %v3013 = vpop.permute.xlu0 %3012
      %3015 = vset.pattern.permute.xlu0 2
      %3016 = vperm.xlu0 %3015, %v2014
      %v3017 = vpop.permute.xlu0 %3016
      %3019 = vset.pattern.permute.xlu0 2
      %3020 = vperm.xlu0 %3019, %v2016
      %v3021 = vpop.permute.xlu0 %3020
      %3023 = vset.pattern.permute.xlu0 2
      %3024 = vperm.xlu0 %3023, %v2018
      %v3025 = vpop.permute.xlu0 %3024
      %3027 = vset.pattern.permute.xlu0 2
      %3028 = vperm.xlu0 %3027, %v2020
      %v3029 = vpop.permute.xlu0 %3028
      %3031 = vset.pattern.permute.xlu0 2
      %3032 = vperm.xlu0 %3031, %v2022
      %v3033 = vpop.permute.xlu0 %3032
      %3035 = vset.pattern.permute.xlu0 2
      %3036 = vperm.xlu0 %3035, %v2024
      %v3037 = vpop.permute.xlu0 %3036
      %3039 = vset.pattern.permute.xlu0 2
      %3040 = vperm.xlu0 %3039, %v2026
      %v3041 = vpop.permute.xlu0 %3040
      %3043 = vset.pattern.permute.xlu0 2
      %3044 = vperm.xlu0 %3043, %v2028
      %v3045 = vpop.permute.xlu0 %3044
      %3047 = vset.pattern.permute.xlu0 2
      %3048 = vperm.xlu0 %3047, %v2030
      %v3049 = vpop.permute.xlu0 %3048
      %3051 = vset.pattern.permute.xlu0 2
      %3052 = vperm.xlu0 %3051, %v2032
      %v3053 = vpop.permute.xlu0 %3052
      %3055 = vset.pattern.permute.xlu0 2
      %3056 = vperm.xlu0 %3055, %v2034
      %v3057 = vpop.permute.xlu0 %3056
      %v3059 = vmul.f32 %v2899, %v2933
      %v3060 = vmul.f32 %v2900, %v2937
      %v3061 = vmul.f32 %v2901, %v2941
      %v3062 = vmul.f32 %v2902, %v2945
      %v3063 = vmul.f32 %v2903, %v2949
      %v3064 = vmul.f32 %v2904, %v2953
      %v3065 = vmul.f32 %v2905, %v2957
      %v3066 = vmul.f32 %v2906, %v2961
      %v3067 = vmul.f32 %v2907, %v2965
      %v3068 = vmul.f32 %v2908, %v2969
      %v3069 = vmul.f32 %v2909, %v2973
      %v3070 = vmul.f32 %v2910, %v2977
      %v3071 = vmul.f32 %v2911, %v2981
      %v3072 = vmul.f32 %v2912, %v2985
      %v3073 = vmul.f32 %v2913, %v2989
      %v3074 = vmul.f32 %v2914, %v2993
      %v3075 = vmul.f32 %v2915, %v2997
      %v3076 = vmul.f32 %v2916, %v3001
      %v3077 = vmul.f32 %v2917, %v3005
      %v3078 = vmul.f32 %v2918, %v3009
      %v3079 = vmul.f32 %v2919, %v3013
      %v3080 = vmul.f32 %v2920, %v3017
      %v3081 = vmul.f32 %v2921, %v3021
      %v3082 = vmul.f32 %v2922, %v3025
      %v3083 = vmul.f32 %v2923, %v3029
      %v3084 = vmul.f32 %v2924, %v3033
      %v3085 = vmul.f32 %v2925, %v3037
      %v3086 = vmul.f32 %v2926, %v3041
      %v3087 = vmul.f32 %v2927, %v3045
      %v3088 = vmul.f32 %v2928, %v3049
      %v3089 = vmul.f32 %v2929, %v3053
      %v3090 = vmul.f32 %v2930, %v3057
      %v3091 = vadd.f32 %v2867, %v3059
      %v3092 = vadd.f32 %v2868, %v3060
      %v3093 = vadd.f32 %v2869, %v3061
      %v3094 = vadd.f32 %v2870, %v3062
      %v3095 = vadd.f32 %v2871, %v3063
      %v3096 = vadd.f32 %v2872, %v3064
      %v3097 = vadd.f32 %v2873, %v3065
      %v3098 = vadd.f32 %v2874, %v3066
      %v3099 = vadd.f32 %v2875, %v3067
      %v3100 = vadd.f32 %v2876, %v3068
      %v3101 = vadd.f32 %v2877, %v3069
      %v3102 = vadd.f32 %v2878, %v3070
      %v3103 = vadd.f32 %v2879, %v3071
      %v3104 = vadd.f32 %v2880, %v3072
      %v3105 = vadd.f32 %v2881, %v3073
      %v3106 = vadd.f32 %v2882, %v3074
      %v3107 = vadd.f32 %v2883, %v3075
      %v3108 = vadd.f32 %v2884, %v3076
      %v3109 = vadd.f32 %v2885, %v3077
      %v3110 = vadd.f32 %v2886, %v3078
      %v3111 = vadd.f32 %v2887, %v3079
      %v3112 = vadd.f32 %v2888, %v3080
      %v3113 = vadd.f32 %v2889, %v3081
      %v3114 = vadd.f32 %v2890, %v3082
      %v3115 = vadd.f32 %v2891, %v3083
      %v3116 = vadd.f32 %v2892, %v3084
      %v3117 = vadd.f32 %v2893, %v3085
      %v3118 = vadd.f32 %v2894, %v3086
      %v3119 = vadd.f32 %v2895, %v3087
      %v3120 = vadd.f32 %v2896, %v3088
      %v3121 = vadd.f32 %v2897, %v3089
      %v3122 = vadd.f32 %v2898, %v3090
      %v3123 = vunpack.c.l.bf16 %v472
      %v3124 = vunpack.c.l.bf16 %v473
      %v3125 = vunpack.c.l.bf16 %v474
      %v3126 = vunpack.c.l.bf16 %v475
      %v3127 = vunpack.c.l.bf16 %v476
      %v3128 = vunpack.c.l.bf16 %v477
      %v3129 = vunpack.c.l.bf16 %v478
      %v3130 = vunpack.c.l.bf16 %v479
      %v3131 = vunpack.c.l.bf16 %v480
      %v3132 = vunpack.c.l.bf16 %v481
      %v3133 = vunpack.c.l.bf16 %v482
      %v3134 = vunpack.c.l.bf16 %v483
      %v3135 = vunpack.c.l.bf16 %v484
      %v3136 = vunpack.c.l.bf16 %v485
      %v3137 = vunpack.c.l.bf16 %v486
      %v3138 = vunpack.c.l.bf16 %v487
      %v3139 = vunpack.c.l.bf16 %v488
      %v3140 = vunpack.c.l.bf16 %v489
      %v3141 = vunpack.c.l.bf16 %v490
      %v3142 = vunpack.c.l.bf16 %v491
      %v3143 = vunpack.c.l.bf16 %v492
      %v3144 = vunpack.c.l.bf16 %v493
      %v3145 = vunpack.c.l.bf16 %v494
      %v3146 = vunpack.c.l.bf16 %v495
      %v3147 = vunpack.c.l.bf16 %v496
      %v3148 = vunpack.c.l.bf16 %v497
      %v3149 = vunpack.c.l.bf16 %v498
      %v3150 = vunpack.c.l.bf16 %v499
      %v3151 = vunpack.c.l.bf16 %v500
      %v3152 = vunpack.c.l.bf16 %v501
      %v3153 = vunpack.c.l.bf16 %v502
      %v3154 = vunpack.c.l.bf16 %v503
      %3155 = vset.pattern.permute.xlu0 3
      %3156 = vperm.xlu0 %3155, %v1972
      %v3157 = vpop.permute.xlu0 %3156
      %3159 = vset.pattern.permute.xlu0 3
      %3160 = vperm.xlu0 %3159, %v1974
      %v3161 = vpop.permute.xlu0 %3160
      %3163 = vset.pattern.permute.xlu0 3
      %3164 = vperm.xlu0 %3163, %v1976
      %v3165 = vpop.permute.xlu0 %3164
      %3167 = vset.pattern.permute.xlu0 3
      %3168 = vperm.xlu0 %3167, %v1978
      %v3169 = vpop.permute.xlu0 %3168
      %3171 = vset.pattern.permute.xlu0 3
      %3172 = vperm.xlu0 %3171, %v1980
      %v3173 = vpop.permute.xlu0 %3172
      %3175 = vset.pattern.permute.xlu0 3
      %3176 = vperm.xlu0 %3175, %v1982
      %v3177 = vpop.permute.xlu0 %3176
      %3179 = vset.pattern.permute.xlu0 3
      %3180 = vperm.xlu0 %3179, %v1984
      %v3181 = vpop.permute.xlu0 %3180
      %3183 = vset.pattern.permute.xlu0 3
      %3184 = vperm.xlu0 %3183, %v1986
      %v3185 = vpop.permute.xlu0 %3184
      %3187 = vset.pattern.permute.xlu0 3
      %3188 = vperm.xlu0 %3187, %v1988
      %v3189 = vpop.permute.xlu0 %3188
      %3191 = vset.pattern.permute.xlu0 3
      %3192 = vperm.xlu0 %3191, %v1990
      %v3193 = vpop.permute.xlu0 %3192
      %3195 = vset.pattern.permute.xlu0 3
      %3196 = vperm.xlu0 %3195, %v1992
      %v3197 = vpop.permute.xlu0 %3196
      %3199 = vset.pattern.permute.xlu0 3
      %3200 = vperm.xlu0 %3199, %v1994
      %v3201 = vpop.permute.xlu0 %3200
      %3203 = vset.pattern.permute.xlu0 3
      %3204 = vperm.xlu0 %3203, %v1996
      %v3205 = vpop.permute.xlu0 %3204
      %3207 = vset.pattern.permute.xlu0 3
      %3208 = vperm.xlu0 %3207, %v1998
      %v3209 = vpop.permute.xlu0 %3208
      %3211 = vset.pattern.permute.xlu0 3
      %3212 = vperm.xlu0 %3211, %v2000
      %v3213 = vpop.permute.xlu0 %3212
      %3215 = vset.pattern.permute.xlu0 3
      %3216 = vperm.xlu0 %3215, %v2002
      %v3217 = vpop.permute.xlu0 %3216
      %3219 = vset.pattern.permute.xlu0 3
      %3220 = vperm.xlu0 %3219, %v2004
      %v3221 = vpop.permute.xlu0 %3220
      %3223 = vset.pattern.permute.xlu0 3
      %3224 = vperm.xlu0 %3223, %v2006
      %v3225 = vpop.permute.xlu0 %3224
      %3227 = vset.pattern.permute.xlu0 3
      %3228 = vperm.xlu0 %3227, %v2008
      %v3229 = vpop.permute.xlu0 %3228
      %3231 = vset.pattern.permute.xlu0 3
      %3232 = vperm.xlu0 %3231, %v2010
      %v3233 = vpop.permute.xlu0 %3232
      %3235 = vset.pattern.permute.xlu0 3
      %3236 = vperm.xlu0 %3235, %v2012
      %v3237 = vpop.permute.xlu0 %3236
      %3239 = vset.pattern.permute.xlu0 3
      %3240 = vperm.xlu0 %3239, %v2014
      %v3241 = vpop.permute.xlu0 %3240
      %3243 = vset.pattern.permute.xlu0 3
      %3244 = vperm.xlu0 %3243, %v2016
      %v3245 = vpop.permute.xlu0 %3244
      %3247 = vset.pattern.permute.xlu0 3
      %3248 = vperm.xlu0 %3247, %v2018
      %v3249 = vpop.permute.xlu0 %3248
      %3251 = vset.pattern.permute.xlu0 3
      %3252 = vperm.xlu0 %3251, %v2020
      %v3253 = vpop.permute.xlu0 %3252
      %3255 = vset.pattern.permute.xlu0 3
      %3256 = vperm.xlu0 %3255, %v2022
      %v3257 = vpop.permute.xlu0 %3256
      %3259 = vset.pattern.permute.xlu0 3
      %3260 = vperm.xlu0 %3259, %v2024
      %v3261 = vpop.permute.xlu0 %3260
      %3263 = vset.pattern.permute.xlu0 3
      %3264 = vperm.xlu0 %3263, %v2026
      %v3265 = vpop.permute.xlu0 %3264
      %3267 = vset.pattern.permute.xlu0 3
      %3268 = vperm.xlu0 %3267, %v2028
      %v3269 = vpop.permute.xlu0 %3268
      %3271 = vset.pattern.permute.xlu0 3
      %3272 = vperm.xlu0 %3271, %v2030
      %v3273 = vpop.permute.xlu0 %3272
      %3275 = vset.pattern.permute.xlu0 3
      %3276 = vperm.xlu0 %3275, %v2032
      %v3277 = vpop.permute.xlu0 %3276
      %3279 = vset.pattern.permute.xlu0 3
      %3280 = vperm.xlu0 %3279, %v2034
      %v3281 = vpop.permute.xlu0 %3280
      %v3283 = vmul.f32 %v3123, %v3157
      %v3284 = vmul.f32 %v3124, %v3161
      %v3285 = vmul.f32 %v3125, %v3165
      %v3286 = vmul.f32 %v3126, %v3169
      %v3287 = vmul.f32 %v3127, %v3173
      %v3288 = vmul.f32 %v3128, %v3177
      %v3289 = vmul.f32 %v3129, %v3181
      %v3290 = vmul.f32 %v3130, %v3185
      %v3291 = vmul.f32 %v3131, %v3189
      %v3292 = vmul.f32 %v3132, %v3193
      %v3293 = vmul.f32 %v3133, %v3197
      %v3294 = vmul.f32 %v3134, %v3201
      %v3295 = vmul.f32 %v3135, %v3205
      %v3296 = vmul.f32 %v3136, %v3209
      %v3297 = vmul.f32 %v3137, %v3213
      %v3298 = vmul.f32 %v3138, %v3217
      %v3299 = vmul.f32 %v3139, %v3221
      %v3300 = vmul.f32 %v3140, %v3225
      %v3301 = vmul.f32 %v3141, %v3229
      %v3302 = vmul.f32 %v3142, %v3233
      %v3303 = vmul.f32 %v3143, %v3237
      %v3304 = vmul.f32 %v3144, %v3241
      %v3305 = vmul.f32 %v3145, %v3245
      %v3306 = vmul.f32 %v3146, %v3249
      %v3307 = vmul.f32 %v3147, %v3253
      %v3308 = vmul.f32 %v3148, %v3257
      %v3309 = vmul.f32 %v3149, %v3261
      %v3310 = vmul.f32 %v3150, %v3265
      %v3311 = vmul.f32 %v3151, %v3269
      %v3312 = vmul.f32 %v3152, %v3273
      %v3313 = vmul.f32 %v3153, %v3277
      %v3314 = vmul.f32 %v3154, %v3281
      %v3315 = vadd.f32 %v3091, %v3283
      %v3316 = vadd.f32 %v3092, %v3284
      %v3317 = vadd.f32 %v3093, %v3285
      %v3318 = vadd.f32 %v3094, %v3286
      %v3319 = vadd.f32 %v3095, %v3287
      %v3320 = vadd.f32 %v3096, %v3288
      %v3321 = vadd.f32 %v3097, %v3289
      %v3322 = vadd.f32 %v3098, %v3290
      %v3323 = vadd.f32 %v3099, %v3291
      %v3324 = vadd.f32 %v3100, %v3292
      %v3325 = vadd.f32 %v3101, %v3293
      %v3326 = vadd.f32 %v3102, %v3294
      %v3327 = vadd.f32 %v3103, %v3295
      %v3328 = vadd.f32 %v3104, %v3296
      %v3329 = vadd.f32 %v3105, %v3297
      %v3330 = vadd.f32 %v3106, %v3298
      %v3331 = vadd.f32 %v3107, %v3299
      %v3332 = vadd.f32 %v3108, %v3300
      %v3333 = vadd.f32 %v3109, %v3301
      %v3334 = vadd.f32 %v3110, %v3302
      %v3335 = vadd.f32 %v3111, %v3303
      %v3336 = vadd.f32 %v3112, %v3304
      %v3337 = vadd.f32 %v3113, %v3305
      %v3338 = vadd.f32 %v3114, %v3306
      %v3339 = vadd.f32 %v3115, %v3307
      %v3340 = vadd.f32 %v3116, %v3308
      %v3341 = vadd.f32 %v3117, %v3309
      %v3342 = vadd.f32 %v3118, %v3310
      %v3343 = vadd.f32 %v3119, %v3311
      %v3344 = vadd.f32 %v3120, %v3312
      %v3345 = vadd.f32 %v3121, %v3313
      %v3346 = vadd.f32 %v3122, %v3314
      %3348 = vset.pattern.permute.xlu0 0
      %3349 = vperm.xlu0 %3348, %v2451
      %v3350 = vpop.permute.xlu0 %3349
      %3353 = vset.pattern.permute.xlu0 0
      %3354 = vperm.xlu0 %3353, %v2452
      %v3355 = vpop.permute.xlu0 %3354
      %3358 = vset.pattern.permute.xlu0 0
      %3359 = vperm.xlu0 %3358, %v2453
      %v3360 = vpop.permute.xlu0 %3359
      %3363 = vset.pattern.permute.xlu0 0
      %3364 = vperm.xlu0 %3363, %v2454
      %v3365 = vpop.permute.xlu0 %3364
      %3368 = vset.pattern.permute.xlu0 0
      %3369 = vperm.xlu0 %3368, %v2455
      %v3370 = vpop.permute.xlu0 %3369
      %3373 = vset.pattern.permute.xlu0 0
      %3374 = vperm.xlu0 %3373, %v2456
      %v3375 = vpop.permute.xlu0 %3374
      %3378 = vset.pattern.permute.xlu0 0
      %3379 = vperm.xlu0 %3378, %v2457
      %v3380 = vpop.permute.xlu0 %3379
      %3383 = vset.pattern.permute.xlu0 0
      %3384 = vperm.xlu0 %3383, %v2458
      %v3385 = vpop.permute.xlu0 %3384
      %3388 = vset.pattern.permute.xlu0 0
      %3389 = vperm.xlu0 %3388, %v2459
      %v3390 = vpop.permute.xlu0 %3389
      %3393 = vset.pattern.permute.xlu0 0
      %3394 = vperm.xlu0 %3393, %v2460
      %v3395 = vpop.permute.xlu0 %3394
      %3398 = vset.pattern.permute.xlu0 0
      %3399 = vperm.xlu0 %3398, %v2461
      %v3400 = vpop.permute.xlu0 %3399
      %3403 = vset.pattern.permute.xlu0 0
      %3404 = vperm.xlu0 %3403, %v2462
      %v3405 = vpop.permute.xlu0 %3404
      %3408 = vset.pattern.permute.xlu0 0
      %3409 = vperm.xlu0 %3408, %v2463
      %v3410 = vpop.permute.xlu0 %3409
      %3413 = vset.pattern.permute.xlu0 0
      %3414 = vperm.xlu0 %3413, %v2464
      %v3415 = vpop.permute.xlu0 %3414
      %3418 = vset.pattern.permute.xlu0 0
      %3419 = vperm.xlu0 %3418, %v2465
      %v3420 = vpop.permute.xlu0 %3419
      %3423 = vset.pattern.permute.xlu0 0
      %3424 = vperm.xlu0 %3423, %v2466
      %v3425 = vpop.permute.xlu0 %3424
      %3428 = vset.pattern.permute.xlu0 0
      %3429 = vperm.xlu0 %3428, %v2467
      %v3430 = vpop.permute.xlu0 %3429
      %3433 = vset.pattern.permute.xlu0 0
      %3434 = vperm.xlu0 %3433, %v2468
      %v3435 = vpop.permute.xlu0 %3434
      %3438 = vset.pattern.permute.xlu0 0
      %3439 = vperm.xlu0 %3438, %v2469
      %v3440 = vpop.permute.xlu0 %3439
      %3443 = vset.pattern.permute.xlu0 0
      %3444 = vperm.xlu0 %3443, %v2470
      %v3445 = vpop.permute.xlu0 %3444
      %3448 = vset.pattern.permute.xlu0 0
      %3449 = vperm.xlu0 %3448, %v2471
      %v3450 = vpop.permute.xlu0 %3449
      %3453 = vset.pattern.permute.xlu0 0
      %3454 = vperm.xlu0 %3453, %v2472
      %v3455 = vpop.permute.xlu0 %3454
      %3458 = vset.pattern.permute.xlu0 0
      %3459 = vperm.xlu0 %3458, %v2473
      %v3460 = vpop.permute.xlu0 %3459
      %3463 = vset.pattern.permute.xlu0 0
      %3464 = vperm.xlu0 %3463, %v2474
      %v3465 = vpop.permute.xlu0 %3464
      %3468 = vset.pattern.permute.xlu0 0
      %3469 = vperm.xlu0 %3468, %v2475
      %v3470 = vpop.permute.xlu0 %3469
      %3473 = vset.pattern.permute.xlu0 0
      %3474 = vperm.xlu0 %3473, %v2476
      %v3475 = vpop.permute.xlu0 %3474
      %3478 = vset.pattern.permute.xlu0 0
      %3479 = vperm.xlu0 %3478, %v2477
      %v3480 = vpop.permute.xlu0 %3479
      %3483 = vset.pattern.permute.xlu0 0
      %3484 = vperm.xlu0 %3483, %v2478
      %v3485 = vpop.permute.xlu0 %3484
      %3488 = vset.pattern.permute.xlu0 0
      %3489 = vperm.xlu0 %3488, %v2479
      %v3490 = vpop.permute.xlu0 %3489
      %3493 = vset.pattern.permute.xlu0 0
      %3494 = vperm.xlu0 %3493, %v2480
      %v3495 = vpop.permute.xlu0 %3494
      %3498 = vset.pattern.permute.xlu0 0
      %3499 = vperm.xlu0 %3498, %v2481
      %v3500 = vpop.permute.xlu0 %3499
      %3503 = vset.pattern.permute.xlu0 0
      %3504 = vperm.xlu0 %3503, %v2482
      %v3505 = vpop.permute.xlu0 %3504
      %v3507 = vmul.f32 %v3315, %v3350
      %v3508 = vmul.f32 %v3316, %v3355
      %v3509 = vmul.f32 %v3317, %v3360
      %v3510 = vmul.f32 %v3318, %v3365
      %v3511 = vmul.f32 %v3319, %v3370
      %v3512 = vmul.f32 %v3320, %v3375
      %v3513 = vmul.f32 %v3321, %v3380
      %v3514 = vmul.f32 %v3322, %v3385
      %v3515 = vmul.f32 %v3323, %v3390
      %v3516 = vmul.f32 %v3324, %v3395
      %v3517 = vmul.f32 %v3325, %v3400
      %v3518 = vmul.f32 %v3326, %v3405
      %v3519 = vmul.f32 %v3327, %v3410
      %v3520 = vmul.f32 %v3328, %v3415
      %v3521 = vmul.f32 %v3329, %v3420
      %v3522 = vmul.f32 %v3330, %v3425
      %v3523 = vmul.f32 %v3331, %v3430
      %v3524 = vmul.f32 %v3332, %v3435
      %v3525 = vmul.f32 %v3333, %v3440
      %v3526 = vmul.f32 %v3334, %v3445
      %v3527 = vmul.f32 %v3335, %v3450
      %v3528 = vmul.f32 %v3336, %v3455
      %v3529 = vmul.f32 %v3337, %v3460
      %v3530 = vmul.f32 %v3338, %v3465
      %v3531 = vmul.f32 %v3339, %v3470
      %v3532 = vmul.f32 %v3340, %v3475
      %v3533 = vmul.f32 %v3341, %v3480
      %v3534 = vmul.f32 %v3342, %v3485
      %v3535 = vmul.f32 %v3343, %v3490
      %v3536 = vmul.f32 %v3344, %v3495
      %v3537 = vmul.f32 %v3345, %v3500
      %v3538 = vmul.f32 %v3346, %v3505
      %v3539 = vpack.c.bf16 %v3508, %v3507
      %v3540 = vpack.c.bf16 %v3510, %v3509
      %v3541 = vpack.c.bf16 %v3512, %v3511
      %v3542 = vpack.c.bf16 %v3514, %v3513
      %v3543 = vpack.c.bf16 %v3516, %v3515
      %v3544 = vpack.c.bf16 %v3518, %v3517
      %v3545 = vpack.c.bf16 %v3520, %v3519
      %v3546 = vpack.c.bf16 %v3522, %v3521
      %v3547 = vpack.c.bf16 %v3524, %v3523
      %v3548 = vpack.c.bf16 %v3526, %v3525
      %v3549 = vpack.c.bf16 %v3528, %v3527
      %v3550 = vpack.c.bf16 %v3530, %v3529
      %v3551 = vpack.c.bf16 %v3532, %v3531
      %v3552 = vpack.c.bf16 %v3534, %v3533
      %v3553 = vpack.c.bf16 %v3536, %v3535
      %v3554 = vpack.c.bf16 %v3538, %v3537
      %v3571 = vunpack.c.l.b16 %v3539
      %v3572 = vunpack.c.h.b16 %v3539
      %v3573 = vunpack.c.l.b16 %v3540
      %v3574 = vunpack.c.h.b16 %v3540
      %v3575 = vunpack.c.l.b16 %v3541
      %v3576 = vunpack.c.h.b16 %v3541
      %v3577 = vunpack.c.l.b16 %v3542
      %v3578 = vunpack.c.h.b16 %v3542
      %v3579 = vunpack.c.l.b16 %v3543
      %v3580 = vunpack.c.h.b16 %v3543
      %v3581 = vunpack.c.l.b16 %v3544
      %v3582 = vunpack.c.h.b16 %v3544
      %v3583 = vunpack.c.l.b16 %v3545
      %v3584 = vunpack.c.h.b16 %v3545
      %v3585 = vunpack.c.l.b16 %v3546
      %v3586 = vunpack.c.h.b16 %v3546
      %v3587 = vunpack.c.l.b16 %v3547
      %v3588 = vunpack.c.h.b16 %v3547
      %v3589 = vunpack.c.l.b16 %v3548
      %v3590 = vunpack.c.h.b16 %v3548
      %v3591 = vunpack.c.l.b16 %v3549
      %v3592 = vunpack.c.h.b16 %v3549
      %v3593 = vunpack.c.l.b16 %v3550
      %v3594 = vunpack.c.h.b16 %v3550
      %v3595 = vunpack.c.l.b16 %v3551
      %v3596 = vunpack.c.h.b16 %v3551
      %v3597 = vunpack.c.l.b16 %v3552
      %v3598 = vunpack.c.h.b16 %v3552
      %v3599 = vunpack.c.l.b16 %v3553
      %v3600 = vunpack.c.h.b16 %v3553
      %v3601 = vunpack.c.l.b16 %v3554
      %v3602 = vunpack.c.h.b16 %v3554
      %v3603 = vpack.c.b16 %v3571, %v3571
      %v3604 = vpack.c.b16 %v3572, %v3572
      %v3605 = vpack.c.b16 %v3573, %v3573
      %v3606 = vpack.c.b16 %v3574, %v3574
      %v3607 = vpack.c.b16 %v3575, %v3575
      %v3608 = vpack.c.b16 %v3576, %v3576
      %v3609 = vpack.c.b16 %v3577, %v3577
      %v3610 = vpack.c.b16 %v3578, %v3578
      %v3611 = vpack.c.b16 %v3579, %v3579
      %v3612 = vpack.c.b16 %v3580, %v3580
      %v3613 = vpack.c.b16 %v3581, %v3581
      %v3614 = vpack.c.b16 %v3582, %v3582
      %v3615 = vpack.c.b16 %v3583, %v3583
      %v3616 = vpack.c.b16 %v3584, %v3584
      %v3617 = vpack.c.b16 %v3585, %v3585
      %v3618 = vpack.c.b16 %v3586, %v3586
      %v3619 = vpack.c.b16 %v3587, %v3587
      %v3620 = vpack.c.b16 %v3588, %v3588
      %v3621 = vpack.c.b16 %v3589, %v3589
      %v3622 = vpack.c.b16 %v3590, %v3590
      %v3623 = vpack.c.b16 %v3591, %v3591
      %v3624 = vpack.c.b16 %v3592, %v3592
      %v3625 = vpack.c.b16 %v3593, %v3593
      %v3626 = vpack.c.b16 %v3594, %v3594
      %v3627 = vpack.c.b16 %v3595, %v3595
      %v3628 = vpack.c.b16 %v3596, %v3596
      %v3629 = vpack.c.b16 %v3597, %v3597
      %v3630 = vpack.c.b16 %v3598, %v3598
      %v3631 = vpack.c.b16 %v3599, %v3599
      %v3632 = vpack.c.b16 %v3600, %v3600
      %v3633 = vpack.c.b16 %v3601, %v3601
      %v3634 = vpack.c.b16 %v3602, %v3602
      %3667 = vst [vmem:[%s373] sm:$0xf] %v3603
      %3668 = vst [vmem:[%s373 + $0x4] sm:$0xf] %v3604
      %3669 = vst [vmem:[%s373 + $0x8] sm:$0xf] %v3605
      %3670 = vst [vmem:[%s373 + $0xc] sm:$0xf] %v3606
      %3671 = vst [vmem:[%s373 + $0x10] sm:$0xf] %v3607
      %3672 = vst [vmem:[%s373 + $0x14] sm:$0xf] %v3608
      %3673 = vst [vmem:[%s373 + $0x18] sm:$0xf] %v3609
      %3674 = vst [vmem:[%s373 + $0x1c] sm:$0xf] %v3610
      %3675 = vst [vmem:[%s373 + $0x20] sm:$0xf] %v3611
      %3676 = vst [vmem:[%s373 + $0x24] sm:$0xf] %v3612
      %3677 = vst [vmem:[%s373 + $0x28] sm:$0xf] %v3613
      %3678 = vst [vmem:[%s373 + $0x2c] sm:$0xf] %v3614
      %3679 = vst [vmem:[%s373 + $0x30] sm:$0xf] %v3615
      %3680 = vst [vmem:[%s373 + $0x34] sm:$0xf] %v3616
      %3681 = vst [vmem:[%s373 + $0x38] sm:$0xf] %v3617
      %3682 = vst [vmem:[%s373 + $0x3c] sm:$0xf] %v3618
      %3683 = vst [vmem:[%s373 + $0x40] sm:$0xf] %v3619
      %3684 = vst [vmem:[%s373 + $0x44] sm:$0xf] %v3620
      %3685 = vst [vmem:[%s373 + $0x48] sm:$0xf] %v3621
      %3686 = vst [vmem:[%s373 + $0x4c] sm:$0xf] %v3622
      %3687 = vst [vmem:[%s373 + $0x50] sm:$0xf] %v3623
      %3688 = vst [vmem:[%s373 + $0x54] sm:$0xf] %v3624
      %3689 = vst [vmem:[%s373 + $0x58] sm:$0xf] %v3625
      %3690 = vst [vmem:[%s373 + $0x5c] sm:$0xf] %v3626
      %3691 = vst [vmem:[%s373 + $0x60] sm:$0xf] %v3627
      %3692 = vst [vmem:[%s373 + $0x64] sm:$0xf] %v3628
      %3693 = vst [vmem:[%s373 + $0x68] sm:$0xf] %v3629
      %3694 = vst [vmem:[%s373 + $0x6c] sm:$0xf] %v3630
      %3695 = vst [vmem:[%s373 + $0x70] sm:$0xf] %v3631
      %3696 = vst [vmem:[%s373 + $0x74] sm:$0xf] %v3632
      %3697 = vst [vmem:[%s373 + $0x78] sm:$0xf] %v3633
      %3698 = vst [vmem:[%s373 + $0x7c] sm:$0xf] %v3634
      %s3699 = smul.u32 32, %s19
      %p3700 = scmp.lt.s32.totalorder %s3699, 63
      %s3701 = scalar_select %p3700, %s3699, 63
      %s3702 = smul.addr %s3701, 4
      %s3703 = scalar_lea.vmem %s8, %s3702
      // Predicated region
      $region53: #{asff_level1_forward.8} parent=51 // pred_check
        %p3704 = pneg %p225
      $region54: #{asff_level1_forward.8} parent=51 // pred_check_branch
        %3706 = sbr.rel (%p3704) target = $region56
      $region55: #{asff_level1_forward.8} parent=51 // pred_region
        %s3707 = smul.u32 32, %s19
      $region56: #{asff_level1_forward.8} parent=51 // pred_fallthru
        _
    $region52: #{asff_level1_forward.8} parent=5 // pred_fallthru
      _
    %p3708 = scmp.le.s32.totalorder 2, %s14
    // Predicated region
    $region57: #{asff_level1_forward.8} parent=5 // pred_check
      %p3709 = pneg %p3708
    $region58: #{asff_level1_forward.8} parent=5 // pred_check_branch
      %3711 = sbr.rel (%p3709) target = $region60
    $region59: #{asff_level1_forward.8} parent=5 // pred_region
      %s3712 = ssub.s32 %s14, 2
      // Predicated region
      $region61: #{asff_level1_forward.8} parent=59 // pred_check
        %p3713 = pneg %p231
      $region62: #{asff_level1_forward.8} parent=59 // pred_check_branch
        %3715 = sbr.rel (%p3713) target = $region64
      $region63: #{asff_level1_forward.8} parent=59 // pred_region
        %s3716 = smul.u32 32, %s20
        %p3717 = scmp.lt.s32.totalorder %s3716, 63
        %s3718 = scalar_select %p3717, %s3716, 63
        %s3719 = smul.addr %s3718, 4
        %s3720 = scalar_lea.vmem %s8, %s3719
      $region64: #{asff_level1_forward.8} parent=59 // pred_fallthru
        _
    $region60: #{asff_level1_forward.8} parent=5 // pred_fallthru
      _
  $region6: #{asff_level1_forward.8} parent=0 // loop_footer
    %s18 = sadd.s32 1, %s14
  $region7: #{asff_level1_forward.8} parent=0 // loop_footer_branch
    %13 = sbr.rel target = $region3
  $region8: #{asff_level1_forward.8} parent=0 // loop_exit
    _

// kernel: asff_level1_forward.9
$region0: #{asff_level1_forward.9}
  #allocation0 [shape = 'u32[]', space=smem, size = 0x4, offset = 0x4, fixed_abs, tag = 'smem constant byte address 0x4 - core index']
  #allocation1 [shape = 'u32[144,128]{1,0:T(1,128)}', space=vmem, size = 0x12000, scoped, tag = 'internal scratch']
  %s0 = inlined_call_operand.vmem [shape: bf16[2,18,18,128], index: 0, kind: input, shape index: {}]
  %s1 = inlined_call_operand.vmem [shape: bf16[1152,128], index: 1, kind: input, shape index: {}]
  %s2 = inlined_call_operand.vmem [shape: f32[1,128], index: 2, kind: input, shape index: {}]
  %s3 = inlined_call_operand.hbm [shape: f32[2,16,16,128], index: 3, kind: output, shape index: {}]
  %s4 = sld [smem:[#allocation0]]
  $region45: #{asff_level1_forward.9} parent=0
    _
  %s6 = ssub.s32 1, %s4
  %s7 = scalar_select 0, %s6, %s4
  $region1: #{asff_level1_forward.9} parent=0
    #allocation2 [shape = 'u8[262144]{0}', space=vmem, size = 0x40000, scoped, tag = 'output window, operand 0']
    #allocation3 [shape = 's32[2]{0}', space=sflag, size = 0x8, scoped, tag = 'scoped memory for asff_level1_forward.9']
    %8 = vsyncpa [#allocation3], 0
    %s9 = scalar_lea.sflag [#allocation3], 1
    %10 = vsyncpa %s9, 0
    loop: start=0, step=1, limit=4
    $region2: #{asff_level1_forward.9} parent=1 // loop_pre_header
      _
    $region3: #{asff_level1_forward.9} parent=1 // loop_header
      %s12 = sphi 0, %s16
      %p13 = scmp.ge.s32.totalorder %s12, 4
      %s19 = sphi 0, %s31
      %s20 = sphi 0, %s27
      %s21 = sphi 0, %s19
      %s22 = sphi 0, %s20
      %s23 = sphi 0, %s21
      %s24 = sphi 0, %s22
      %s34 = sphi 0, %s36
      %s37 = sphi 0, %s34
      %s38 = sphi 0, %s37
      %s54 = sphi 0, %s38
      %s58 = sphi 0, %s58
      %s60 = sphi 0, %s58
      %s61 = sphi 0, %s60
      %s75 = sphi 0, %s61
      %s79 = sphi 0, %s79
      %s81 = sphi 0, %s79
      %s82 = sphi 0, %s81
      %s96 = sphi 0, %s82
      %s104 = sphi 0, %s106
      %s107 = sphi 0, %s104
      %s108 = sphi 0, %s107
      %s124 = sphi 0, %s108
    $region4: #{asff_level1_forward.9} parent=1 // loop_header_branch
      %15 = sbr.rel (%p13) target = $region8
    $region5: #{asff_level1_forward.9} parent=1 // loop_body
      %s17 = ssub.s32 %s12, 1
      %s18 = ssub.s32 %s12, 2
      %s25 = sadd.s32 1, %s20
      %p26 = scmp.ge.s32.totalorder %s25, 1
      %s27 = scalar_select %p26, 0, %s25
      %s28 = sadd.s32 1, %s19
      %s29 = scalar_select %p26, %s28, %s19
      %p30 = scmp.ge.s32.totalorder %s29, 2
      %s31 = scalar_select %p30, 0, %s29
      %s32 = ssub.s32 %s19, %s31
      %p33 = scmp.eq.s32.totalorder %s32, 0
      %s35 = sadd.s32 %s34, 1
      %s36 = scalar_select %p33, %s34, %s35
      %p39 = pneg %p33
      %p40 = scmp.eq.s32.totalorder %s12, 1
      %p41 = por %p39, %p40
      %p42 = scmp.ne.s32.totalorder %s34, %s37
      %p43 = scmp.eq.s32.totalorder %s12, 0
      %p44 = por %p42, %p43
      %p45 = scmp.ne.s32.totalorder %s34, %s37
      %p46 = scmp.eq.s32.totalorder %s17, 1
      %p47 = por %p45, %p46
      %p48 = scmp.ne.s32.totalorder %s37, %s38
      %p49 = scmp.eq.s32.totalorder %s17, 0
      %p50 = por %p48, %p49
      %p51 = scmp.ne.s32.totalorder %s37, %s38
      %p52 = scmp.eq.s32.totalorder %s18, 1
      %p53 = por %p51, %p52
      %p55 = scmp.ne.s32.totalorder %s38, %s54
      %p56 = scmp.eq.s32.totalorder %s18, 0
      %p57 = por %p55, %p56
      %s59 = sadd.s32 %s58, 1
      %p62 = scmp.eq.s32.totalorder %s12, 1
      %p63 = scmp.ne.s32.totalorder %s58, %s60
      %p64 = scmp.eq.s32.totalorder %s12, 0
      %p65 = por %p63, %p64
      %p66 = scmp.ne.s32.totalorder %s58, %s60
      %p67 = scmp.eq.s32.totalorder %s17, 1
      %p68 = por %p66, %p67
      %p69 = scmp.ne.s32.totalorder %s60, %s61
      %p70 = scmp.eq.s32.totalorder %s17, 0
      %p71 = por %p69, %p70
      %p72 = scmp.ne.s32.totalorder %s60, %s61
      %p73 = scmp.eq.s32.totalorder %s18, 1
      %p74 = por %p72, %p73
      %p76 = scmp.ne.s32.totalorder %s61, %s75
      %p77 = scmp.eq.s32.totalorder %s18, 0
      %p78 = por %p76, %p77
      %s80 = sadd.s32 %s79, 1
      %p83 = scmp.eq.s32.totalorder %s12, 1
      %p84 = scmp.ne.s32.totalorder %s79, %s81
      %p85 = scmp.eq.s32.totalorder %s12, 0
      %p86 = por %p84, %p85
      %p87 = scmp.ne.s32.totalorder %s79, %s81
      %p88 = scmp.eq.s32.totalorder %s17, 1
      %p89 = por %p87, %p88
      %p90 = scmp.ne.s32.totalorder %s81, %s82
      %p91 = scmp.eq.s32.totalorder %s17, 0
      %p92 = por %p90, %p91
      %p93 = scmp.ne.s32.totalorder %s81, %s82
      %p94 = scmp.eq.s32.totalorder %s18, 1
      %p95 = por %p93, %p94
      %p97 = scmp.ne.s32.totalorder %s82, %s96
      %p98 = scmp.eq.s32.totalorder %s18, 0
      %p99 = por %p97, %p98
      %s100 = ssub.s32 %s19, %s31
      %s101 = ssub.s32 %s20, %s27
      %s102 = sor.u32 %s100, %s101
      %p103 = scmp.eq.s32.totalorder %s102, 0
      %s105 = sadd.s32 %s104, 1
      %s106 = scalar_select %p103, %s104, %s105
      %p109 = pneg %p103
      %p110 = scmp.eq.s32.totalorder %s12, 1
      %p111 = por %p109, %p110
      %p112 = scmp.ne.s32.totalorder %s104, %s107
      %p113 = scmp.eq.s32.totalorder %s12, 0
      %p114 = por %p112, %p113
      %p115 = scmp.ne.s32.totalorder %s104, %s107
      %p116 = scmp.eq.s32.totalorder %s17, 1
      %p117 = por %p115, %p116
      %p118 = scmp.ne.s32.totalorder %s107, %s108
      %p119 = scmp.eq.s32.totalorder %s17, 0
      %p120 = por %p118, %p119
      %p121 = scmp.ne.s32.totalorder %s107, %s108
      %p122 = scmp.eq.s32.totalorder %s18, 1
      %p123 = por %p121, %p122
      %p125 = scmp.ne.s32.totalorder %s108, %s124
      %p126 = scmp.eq.s32.totalorder %s18, 0
      %p127 = por %p125, %p126
      %p128 = scmp.le.s32.totalorder 1, %s12
      %p129 = scmp.lt.s32.totalorder %s12, 3
      %p130 = pnand %p128, %p129
      %p131 = pneg %p130
      // Predicated region
      $region9: #{asff_level1_forward.9} parent=5 // pred_check
        _
      $region10: #{asff_level1_forward.9} parent=5 // pred_check_branch
        %133 = sbr.rel (%p130) target = $region12
      $region11: #{asff_level1_forward.9} parent=5 // pred_region
        %s134 = ssub.s32 %s12, 1
        // Predicated region
        $region13: #{asff_level1_forward.9} parent=11 // pred_check
          %p135 = pneg %p71
        $region14: #{asff_level1_forward.9} parent=11 // pred_check_branch
          %137 = sbr.rel (%p135) target = $region16
        $region15: #{asff_level1_forward.9} parent=11 // pred_region
          _
        $region16: #{asff_level1_forward.9} parent=11 // pred_fallthru
          _
        // Predicated region
        $region17: #{asff_level1_forward.9} parent=11 // pred_check
          %p138 = pneg %p92
        $region18: #{asff_level1_forward.9} parent=11 // pred_check_branch
          %140 = sbr.rel (%p138) target = $region20
        $region19: #{asff_level1_forward.9} parent=11 // pred_region
          _
        $region20: #{asff_level1_forward.9} parent=11 // pred_fallthru
          _
      $region12: #{asff_level1_forward.9} parent=5 // pred_fallthru
        _
      %p141 = scmp.lt.s32.totalorder %s12, 2
      // Predicated region
      $region21: #{asff_level1_forward.9} parent=5 // pred_check
        %p142 = pneg %p141
      $region22: #{asff_level1_forward.9} parent=5 // pred_check_branch
        %144 = sbr.rel (%p142) target = $region24
      $region23: #{asff_level1_forward.9} parent=5 // pred_region
        // Predicated region
        $region25: #{asff_level1_forward.9} parent=23 // pred_check
          %p145 = pneg %p44
        $region26: #{asff_level1_forward.9} parent=23 // pred_check_branch
          %147 = sbr.rel (%p145) target = $region28
        $region27: #{asff_level1_forward.9} parent=23 // pred_region
          %p148 = scmp.lt.s32.totalorder %s19, 1
          %s149 = scalar_select %p148, %s19, 1
          %s150 = smul.addr %s149, 54
          %s151 = smul.addr %s150, 4
          %s152 = scalar_lea.vmem %s0, %s151
        $region28: #{asff_level1_forward.9} parent=23 // pred_fallthru
          _
      $region24: #{asff_level1_forward.9} parent=5 // pred_fallthru
        _
      %p153 = scmp.le.s32.totalorder 1, %s12
      %p154 = scmp.lt.s32.totalorder %s12, 3
      %p155 = pnand %p153, %p154
      %p156 = pneg %p155
      // Predicated region
      $region29: #{asff_level1_forward.9} parent=5 // pred_check
        _
      $region30: #{asff_level1_forward.9} parent=5 // pred_check_branch
        %158 = sbr.rel (%p155) target = $region32
      $region31: #{asff_level1_forward.9} parent=5 // pred_region
        %s159 = ssub.s32 %s12, 1
        %p160 = scmp.lt.s32.totalorder %s21, 1
        %s161 = scalar_select %p160, %s21, 1
        %s162 = smul.addr %s161, 54
        %s163 = smul.addr %s162, 4
        %s164 = scalar_lea.vmem %s0, %s163
        %p165 = pneg %p50
        %p166 = pneg %p47
        %p167 = pneg %p71
        %p168 = pneg %p68
        %p169 = pneg %p92
        %p170 = pneg %p89
        %p171 = pneg %p120
        %p172 = pneg %p117
        %s173 = sand.u32 %s107, 1
        %s174 = scalar_lea.sflag [#allocation3], %s173
        %s175 = sand.u32 %s107, 1
        %s176 = smul.addr %s175, 256
        %s177 = scalar_lea.vmem [#allocation2], %s176
        %p178 = scmp.lt.s32.totalorder %s21, 1
        %s179 = scalar_select %p178, %s21, 1
        %s180 = smul.addr %s179, 54
        %s181 = smul.addr %s180, 4
        %s182 = scalar_lea.vmem %s0, %s181
        %s183 = smul.u32 16, %s22
        %s185 = smul.u32 %s22, 16
        %s186 = smul.u32 %s185, 3
        %s187 = smul.addr %s186, 4
        %s188 = scalar_lea.vmem %s182, %s187
        %v189 = vld [vmem:[%s188] sm:$0xf]
        %v190 = vld [vmem:[%s188 + $0x4] sm:$0xf]
        %v191 = vld [vmem:[%s188 + $0x8] sm:$0x1]
        %v192 = vld [vmem:[%s188 + $0xc] sm:$0xf]
        %v193 = vld [vmem:[%s188 + $0x10] sm:$0xf]
        %v194 = vld [vmem:[%s188 + $0x14] sm:$0x1]
        %v195 = vld [vmem:[%s188 + $0x18] sm:$0xf]
        %v196 = vld [vmem:[%s188 + $0x1c] sm:$0xf]
        %v197 = vld [vmem:[%s188 + $0x20] sm:$0x1]
        %v198 = vld [vmem:[%s188 + $0x24] sm:$0xf]
        %v199 = vld [vmem:[%s188 + $0x28] sm:$0xf]
        %v200 = vld [vmem:[%s188 + $0x2c] sm:$0x1]
        %v201 = vld [vmem:[%s188 + $0x30] sm:$0xf]
        %v202 = vld [vmem:[%s188 + $0x34] sm:$0xf]
        %v203 = vld [vmem:[%s188 + $0x38] sm:$0x1]
        %v204 = vld [vmem:[%s188 + $0x3c] sm:$0xf]
        %v205 = vld [vmem:[%s188 + $0x40] sm:$0xf]
        %v206 = vld [vmem:[%s188 + $0x44] sm:$0x1]
        %v207 = vld [vmem:[%s188 + $0x48] sm:$0xf]
        %v208 = vld [vmem:[%s188 + $0x4c] sm:$0xf]
        %v209 = vld [vmem:[%s188 + $0x50] sm:$0x1]
        %v210 = vld [vmem:[%s188 + $0x54] sm:$0xf]
        %v211 = vld [vmem:[%s188 + $0x58] sm:$0xf]
        %v212 = vld [vmem:[%s188 + $0x5c] sm:$0x1]
        %v213 = vld [vmem:[%s188 + $0x60] sm:$0xf]
        %v214 = vld [vmem:[%s188 + $0x64] sm:$0xf]
        %v215 = vld [vmem:[%s188 + $0x68] sm:$0x1]
        %v216 = vld [vmem:[%s188 + $0x6c] sm:$0xf]
        %v217 = vld [vmem:[%s188 + $0x70] sm:$0xf]
        %v218 = vld [vmem:[%s188 + $0x74] sm:$0x1]
        %v219 = vld [vmem:[%s188 + $0x78] sm:$0xf]
        %v220 = vld [vmem:[%s188 + $0x7c] sm:$0xf]
        %v221 = vld [vmem:[%s188 + $0x80] sm:$0x1]
        %v222 = vld [vmem:[%s188 + $0x84] sm:$0xf]
        %v223 = vld [vmem:[%s188 + $0x88] sm:$0xf]
        %v224 = vld [vmem:[%s188 + $0x8c] sm:$0x1]
        %v225 = vld [vmem:[%s188 + $0x90] sm:$0xf]
        %v226 = vld [vmem:[%s188 + $0x94] sm:$0xf]
        %v227 = vld [vmem:[%s188 + $0x98] sm:$0x1]
        %v228 = vld [vmem:[%s188 + $0x9c] sm:$0xf]
        %v229 = vld [vmem:[%s188 + $0xa0] sm:$0xf]
        %v230 = vld [vmem:[%s188 + $0xa4] sm:$0x1]
        %v231 = vld [vmem:[%s188 + $0xa8] sm:$0xf]
        %v232 = vld [vmem:[%s188 + $0xac] sm:$0xf]
        %v233 = vld [vmem:[%s188 + $0xb0] sm:$0x1]
        %v234 = vld [vmem:[%s188 + $0xb4] sm:$0xf]
        %v235 = vld [vmem:[%s188 + $0xb8] sm:$0xf]
        %v236 = vld [vmem:[%s188 + $0xbc] sm:$0x1]
        %v237 = vld [vmem:[%s188 + $0xc0] sm:$0xf]
        %v238 = vld [vmem:[%s188 + $0xc4] sm:$0xf]
        %v239 = vld [vmem:[%s188 + $0xc8] sm:$0x1]
        %v240 = vld [vmem:[%s188 + $0xcc] sm:$0xf]
        %v241 = vld [vmem:[%s188 + $0xd0] sm:$0xf]
        %v242 = vld [vmem:[%s188 + $0xd4] sm:$0x1]
        %v275 = vunpack.c.l.b16 %v189
        %v276 = vunpack.c.l.b16 %v190
        %v277 = vunpack.c.l.b16 %v192
        %v278 = vunpack.c.l.b16 %v193
        %v279 = vunpack.c.l.b16 %v195
        %v280 = vunpack.c.l.b16 %v196
        %v281 = vunpack.c.l.b16 %v198
        %v282 = vunpack.c.l.b16 %v199
        %v283 = vunpack.c.l.b16 %v201
        %v284 = vunpack.c.l.b16 %v202
        %v285 = vunpack.c.l.b16 %v204
        %v286 = vunpack.c.l.b16 %v205
        %v287 = vunpack.c.l.b16 %v207
        %v288 = vunpack.c.l.b16 %v208
        %v289 = vunpack.c.l.b16 %v210
        %v290 = vunpack.c.l.b16 %v211
        %v291 = vunpack.c.l.b16 %v213
        %v292 = vunpack.c.l.b16 %v214
        %v293 = vunpack.c.l.b16 %v216
        %v294 = vunpack.c.l.b16 %v217
        %v295 = vunpack.c.l.b16 %v219
        %v296 = vunpack.c.l.b16 %v220
        %v297 = vunpack.c.l.b16 %v222
        %v298 = vunpack.c.l.b16 %v223
        %v299 = vunpack.c.l.b16 %v225
        %v300 = vunpack.c.l.b16 %v226
        %v301 = vunpack.c.l.b16 %v228
        %v302 = vunpack.c.l.b16 %v229
        %v303 = vunpack.c.l.b16 %v231
        %v304 = vunpack.c.l.b16 %v232
        %v305 = vunpack.c.l.b16 %v234
        %v306 = vunpack.c.l.b16 %v235
        %v307 = vpack.c.b16 %v276, %v275
        %v308 = vpack.c.b16 %v278, %v277
        %v309 = vpack.c.b16 %v280, %v279
        %v310 = vpack.c.b16 %v282, %v281
        %v311 = vpack.c.b16 %v284, %v283
        %v312 = vpack.c.b16 %v286, %v285
        %v313 = vpack.c.b16 %v288, %v287
        %v314 = vpack.c.b16 %v290, %v289
        %v315 = vpack.c.b16 %v292, %v291
        %v316 = vpack.c.b16 %v294, %v293
        %v317 = vpack.c.b16 %v296, %v295
        %v318 = vpack.c.b16 %v298, %v297
        %v319 = vpack.c.b16 %v300, %v299
        %v320 = vpack.c.b16 %v302, %v301
        %v321 = vpack.c.b16 %v304, %v303
        %v322 = vpack.c.b16 %v306, %v305
        %v355 = vunpack.c.l.b16 %v191
        %v356 = vunpack.c.l.b16 %v194
        %v357 = vunpack.c.l.b16 %v197
        %v358 = vunpack.c.l.b16 %v200
        %v359 = vunpack.c.l.b16 %v203
        %v360 = vunpack.c.l.b16 %v206
        %v361 = vunpack.c.l.b16 %v209
        %v362 = vunpack.c.l.b16 %v212
        %v363 = vunpack.c.l.b16 %v215
        %v364 = vunpack.c.l.b16 %v218
        %v365 = vunpack.c.l.b16 %v221
        %v366 = vunpack.c.l.b16 %v224
        %v367 = vunpack.c.l.b16 %v227
        %v368 = vunpack.c.l.b16 %v230
        %v369 = vunpack.c.l.b16 %v233
        %v370 = vunpack.c.l.b16 %v236
        %v371 = vpack.c.b16 %v355, %v355
        %v372 = vpack.c.b16 %v356, %v356
        %v373 = vpack.c.b16 %v357, %v357
        %v374 = vpack.c.b16 %v358, %v358
        %v375 = vpack.c.b16 %v359, %v359
        %v376 = vpack.c.b16 %v360, %v360
        %v377 = vpack.c.b16 %v361, %v361
        %v378 = vpack.c.b16 %v362, %v362
        %v379 = vpack.c.b16 %v363, %v363
        %v380 = vpack.c.b16 %v364, %v364
        %v381 = vpack.c.b16 %v365, %v365
        %v382 = vpack.c.b16 %v366, %v366
        %v383 = vpack.c.b16 %v367, %v367
        %v384 = vpack.c.b16 %v368, %v368
        %v385 = vpack.c.b16 %v369, %v369
        %v386 = vpack.c.b16 %v370, %v370
        %vm387 = vsmask.f32 7424
        %v389 = vshrl.u32 %v307, 16
        %v391 = vshll.u32 %v307, 16
        %v393 = vrot.slane %v391, 1
        %v394 = vor.u32 %v389, %v393
        %v396 = vshll.u32 %v371, 16
        %v398 = vrot.slane %v396, 1
        %v399 = vsel %vm387, %v394, %v398
        %v401 = vshrl.u32 %v308, 16
        %v403 = vshll.u32 %v308, 16
        %v405 = vrot.slane %v403, 1
        %v406 = vor.u32 %v401, %v405
        %v408 = vshll.u32 %v372, 16
        %v410 = vrot.slane %v408, 1
        %v411 = vsel %vm387, %v406, %v410
        %v413 = vshrl.u32 %v309, 16
        %v415 = vshll.u32 %v309, 16
        %v417 = vrot.slane %v415, 1
        %v418 = vor.u32 %v413, %v417
        %v420 = vshll.u32 %v373, 16
        %v422 = vrot.slane %v420, 1
        %v423 = vsel %vm387, %v418, %v422
        %v425 = vshrl.u32 %v310, 16
        %v427 = vshll.u32 %v310, 16
        %v429 = vrot.slane %v427, 1
        %v430 = vor.u32 %v425, %v429
        %v432 = vshll.u32 %v374, 16
        %v434 = vrot.slane %v432, 1
        %v435 = vsel %vm387, %v430, %v434
        %v437 = vshrl.u32 %v311, 16
        %v439 = vshll.u32 %v311, 16
        %v441 = vrot.slane %v439, 1
        %v442 = vor.u32 %v437, %v441
        %v444 = vshll.u32 %v375, 16
        %v446 = vrot.slane %v444, 1
        %v447 = vsel %vm387, %v442, %v446
        %v449 = vshrl.u32 %v312, 16
        %v451 = vshll.u32 %v312, 16
        %v453 = vrot.slane %v451, 1
        %v454 = vor.u32 %v449, %v453
        %v456 = vshll.u32 %v376, 16
        %v458 = vrot.slane %v456, 1
        %v459 = vsel %vm387, %v454, %v458
        %v461 = vshrl.u32 %v313, 16
        %v463 = vshll.u32 %v313, 16
        %v465 = vrot.slane %v463, 1
        %v466 = vor.u32 %v461, %v465
        %v468 = vshll.u32 %v377, 16
        %v470 = vrot.slane %v468, 1
        %v471 = vsel %vm387, %v466, %v470
        %v473 = vshrl.u32 %v314, 16
        %v475 = vshll.u32 %v314, 16
        %v477 = vrot.slane %v475, 1
        %v478 = vor.u32 %v473, %v477
        %v480 = vshll.u32 %v378, 16
        %v482 = vrot.slane %v480, 1
        %v483 = vsel %vm387, %v478, %v482
        %v485 = vshrl.u32 %v315, 16
        %v487 = vshll.u32 %v315, 16
        %v489 = vrot.slane %v487, 1
        %v490 = vor.u32 %v485, %v489
        %v492 = vshll.u32 %v379, 16
        %v494 = vrot.slane %v492, 1
        %v495 = vsel %vm387, %v490, %v494
        %v497 = vshrl.u32 %v316, 16
        %v499 = vshll.u32 %v316, 16
        %v501 = vrot.slane %v499, 1
        %v502 = vor.u32 %v497, %v501
        %v504 = vshll.u32 %v380, 16
        %v506 = vrot.slane %v504, 1
        %v507 = vsel %vm387, %v502, %v506
        %v509 = vshrl.u32 %v317, 16
        %v511 = vshll.u32 %v317, 16
        %v513 = vrot.slane %v511, 1
        %v514 = vor.u32 %v509, %v513
        %v516 = vshll.u32 %v381, 16
        %v518 = vrot.slane %v516, 1
        %v519 = vsel %vm387, %v514, %v518
        %v521 = vshrl.u32 %v318, 16
        %v523 = vshll.u32 %v318, 16
        %v525 = vrot.slane %v523, 1
        %v526 = vor.u32 %v521, %v525
        %v528 = vshll.u32 %v382, 16
        %v530 = vrot.slane %v528, 1
        %v531 = vsel %vm387, %v526, %v530
        %v533 = vshrl.u32 %v319, 16
        %v535 = vshll.u32 %v319, 16
        %v537 = vrot.slane %v535, 1
        %v538 = vor.u32 %v533, %v537
        %v540 = vshll.u32 %v383, 16
        %v542 = vrot.slane %v540, 1
        %v543 = vsel %vm387, %v538, %v542
        %v545 = vshrl.u32 %v320, 16
        %v547 = vshll.u32 %v320, 16
        %v549 = vrot.slane %v547, 1
        %v550 = vor.u32 %v545, %v549
        %v552 = vshll.u32 %v384, 16
        %v554 = vrot.slane %v552, 1
        %v555 = vsel %vm387, %v550, %v554
        %v557 = vshrl.u32 %v321, 16
        %v559 = vshll.u32 %v321, 16
        %v561 = vrot.slane %v559, 1
        %v562 = vor.u32 %v557, %v561
        %v564 = vshll.u32 %v385, 16
        %v566 = vrot.slane %v564, 1
        %v567 = vsel %vm387, %v562, %v566
        %v569 = vshrl.u32 %v322, 16
        %v571 = vshll.u32 %v322, 16
        %v573 = vrot.slane %v571, 1
        %v574 = vor.u32 %v569, %v573
        %v576 = vshll.u32 %v386, 16
        %v578 = vrot.slane %v576, 1
        %v579 = vsel %vm387, %v574, %v578
        %vm596 = vcmask 1046528
        %v597 = vrot.slane %v307, 1
        %v598 = vrot.slane %v371, 1
        %v599 = vsel %vm596, %v597, %v598
        %v600 = vrot.slane %v308, 1
        %v601 = vrot.slane %v372, 1
        %v602 = vsel %vm596, %v600, %v601
        %v603 = vrot.slane %v309, 1
        %v604 = vrot.slane %v373, 1
        %v605 = vsel %vm596, %v603, %v604
        %v606 = vrot.slane %v310, 1
        %v607 = vrot.slane %v374, 1
        %v608 = vsel %vm596, %v606, %v607
        %v609 = vrot.slane %v311, 1
        %v610 = vrot.slane %v375, 1
        %v611 = vsel %vm596, %v609, %v610
        %v612 = vrot.slane %v312, 1
        %v613 = vrot.slane %v376, 1
        %v614 = vsel %vm596, %v612, %v613
        %v615 = vrot.slane %v313, 1
        %v616 = vrot.slane %v377, 1
        %v617 = vsel %vm596, %v615, %v616
        %v618 = vrot.slane %v314, 1
        %v619 = vrot.slane %v378, 1
        %v620 = vsel %vm596, %v618, %v619
        %v621 = vrot.slane %v315, 1
        %v622 = vrot.slane %v379, 1
        %v623 = vsel %vm596, %v621, %v622
        %v624 = vrot.slane %v316, 1
        %v625 = vrot.slane %v380, 1
        %v626 = vsel %vm596, %v624, %v625
        %v627 = vrot.slane %v317, 1
        %v628 = vrot.slane %v381, 1
        %v629 = vsel %vm596, %v627, %v628
        %v630 = vrot.slane %v318, 1
        %v631 = vrot.slane %v382, 1
        %v632 = vsel %vm596, %v630, %v631
        %v633 = vrot.slane %v319, 1
        %v634 = vrot.slane %v383, 1
        %v635 = vsel %vm596, %v633, %v634
        %v636 = vrot.slane %v320, 1
        %v637 = vrot.slane %v384, 1
        %v638 = vsel %vm596, %v636, %v637
        %v639 = vrot.slane %v321, 1
        %v640 = vrot.slane %v385, 1
        %v641 = vsel %vm596, %v639, %v640
        %v642 = vrot.slane %v322, 1
        %v643 = vrot.slane %v386, 1
        %v644 = vsel %vm596, %v642, %v643
        %v663 = vunpack.c.l.b16 %v237
        %v664 = vunpack.c.l.b16 %v238
        %v665 = vpack.c.b16 %v664, %v663
        %v668 = vunpack.c.l.b16 %v239
        %v669 = vpack.c.b16 %v668, %v668
        %v671 = vshrl.u32 %v665, 16
        %v673 = vshll.u32 %v665, 16
        %v675 = vrot.slane %v673, 1
        %v676 = vor.u32 %v671, %v675
        %v678 = vshll.u32 %v669, 16
        %v680 = vrot.slane %v678, 1
        %v681 = vsel %vm387, %v676, %v680
        %v683 = vrot.slane %v665, 1
        %v684 = vrot.slane %v669, 1
        %v685 = vsel %vm596, %v683, %v684
        %v689 = vunpack.c.l.b16 %v240
        %v690 = vunpack.c.l.b16 %v241
        %v691 = vpack.c.b16 %v690, %v689
        %v694 = vunpack.c.l.b16 %v242
        %v695 = vpack.c.b16 %v694, %v694
        %v697 = vshrl.u32 %v691, 16
        %v699 = vshll.u32 %v691, 16
        %v701 = vrot.slane %v699, 1
        %v702 = vor.u32 %v697, %v701
        %v704 = vshll.u32 %v695, 16
        %v706 = vrot.slane %v704, 1
        %v707 = vsel %vm387, %v702, %v706
        %v709 = vrot.slane %v691, 1
        %v710 = vrot.slane %v695, 1
        %v711 = vsel %vm596, %v709, %v710
        %v713 = vld [vmem:[%s1] sm:$0xf]
        %v714 = vld [vmem:[%s1 + $0x4] sm:$0xf]
        %v715 = vld [vmem:[%s1 + $0x8] sm:$0xf]
        %v716 = vld [vmem:[%s1 + $0xc] sm:$0xf]
        %v717 = vld [vmem:[%s1 + $0x10] sm:$0xf]
        %v718 = vld [vmem:[%s1 + $0x14] sm:$0xf]
        %v719 = vld [vmem:[%s1 + $0x18] sm:$0xf]
        %v720 = vld [vmem:[%s1 + $0x1c] sm:$0xf]
        %v721 = vld [vmem:[%s1 + $0x20] sm:$0xf]
        %v722 = vld [vmem:[%s1 + $0x24] sm:$0xf]
        %v723 = vld [vmem:[%s1 + $0x28] sm:$0xf]
        %v724 = vld [vmem:[%s1 + $0x2c] sm:$0xf]
        %v725 = vld [vmem:[%s1 + $0x30] sm:$0xf]
        %v726 = vld [vmem:[%s1 + $0x34] sm:$0xf]
        %v727 = vld [vmem:[%s1 + $0x38] sm:$0xf]
        %v728 = vld [vmem:[%s1 + $0x3c] sm:$0xf]
        %v729 = vld [vmem:[%s1 + $0x40] sm:$0xf]
        %v730 = vld [vmem:[%s1 + $0x44] sm:$0xf]
        %v731 = vld [vmem:[%s1 + $0x48] sm:$0xf]
        %v732 = vld [vmem:[%s1 + $0x4c] sm:$0xf]
        %v733 = vld [vmem:[%s1 + $0x50] sm:$0xf]
        %v734 = vld [vmem:[%s1 + $0x54] sm:$0xf]
        %v735 = vld [vmem:[%s1 + $0x58] sm:$0xf]
        %v736 = vld [vmem:[%s1 + $0x5c] sm:$0xf]
        %v737 = vld [vmem:[%s1 + $0x60] sm:$0xf]
        %v738 = vld [vmem:[%s1 + $0x64] sm:$0xf]
        %v739 = vld [vmem:[%s1 + $0x68] sm:$0xf]
        %v740 = vld [vmem:[%s1 + $0x6c] sm:$0xf]
        %v741 = vld [vmem:[%s1 + $0x70] sm:$0xf]
        %v742 = vld [vmem:[%s1 + $0x74] sm:$0xf]
        %v743 = vld [vmem:[%s1 + $0x78] sm:$0xf]
        %v744 = vld [vmem:[%s1 + $0x7c] sm:$0xf]
        %v745 = vld [vmem:[%s1 + $0x80] sm:$0xf]
        %v746 = vld [vmem:[%s1 + $0x84] sm:$0xf]
        %v747 = vld [vmem:[%s1 + $0x88] sm:$0xf]
        %v748 = vld [vmem:[%s1 + $0x8c] sm:$0xf]
        %v749 = vld [vmem:[%s1 + $0x90] sm:$0xf]
        %v750 = vld [vmem:[%s1 + $0x94] sm:$0xf]
        %v751 = vld [vmem:[%s1 + $0x98] sm:$0xf]
        %v752 = vld [vmem:[%s1 + $0x9c] sm:$0xf]
        %v753 = vld [vmem:[%s1 + $0xa0] sm:$0xf]
        %v754 = vld [vmem:[%s1 + $0xa4] sm:$0xf]
        %v755 = vld [vmem:[%s1 + $0xa8] sm:$0xf]
        %v756 = vld [vmem:[%s1 + $0xac] sm:$0xf]
        %v757 = vld [vmem:[%s1 + $0xb0] sm:$0xf]
        %v758 = vld [vmem:[%s1 + $0xb4] sm:$0xf]
        %v759 = vld [vmem:[%s1 + $0xb8] sm:$0xf]
        %v760 = vld [vmem:[%s1 + $0xbc] sm:$0xf]
        %v761 = vld [vmem:[%s1 + $0xc0] sm:$0xf]
        %v762 = vld [vmem:[%s1 + $0xc4] sm:$0xf]
        %v763 = vld [vmem:[%s1 + $0xc8] sm:$0xf]
        %v764 = vld [vmem:[%s1 + $0xcc] sm:$0xf]
        %v765 = vld [vmem:[%s1 + $0xd0] sm:$0xf]
        %v766 = vld [vmem:[%s1 + $0xd4] sm:$0xf]
        %v767 = vld [vmem:[%s1 + $0xd8] sm:$0xf]
        %v768 = vld [vmem:[%s1 + $0xdc] sm:$0xf]
        %v769 = vld [vmem:[%s1 + $0xe0] sm:$0xf]
        %v770 = vld [vmem:[%s1 + $0xe4] sm:$0xf]
        %v771 = vld [vmem:[%s1 + $0xe8] sm:$0xf]
        %v772 = vld [vmem:[%s1 + $0xec] sm:$0xf]
        %v773 = vld [vmem:[%s1 + $0xf0] sm:$0xf]
        %v774 = vld [vmem:[%s1 + $0xf4] sm:$0xf]
        %v775 = vld [vmem:[%s1 + $0xf8] sm:$0xf]
        %v776 = vld [vmem:[%s1 + $0xfc] sm:$0xf]
        %v777 = vld [vmem:[%s1 + $0x100] sm:$0xf]
        %v778 = vld [vmem:[%s1 + $0x104] sm:$0xf]
        %v779 = vld [vmem:[%s1 + $0x108] sm:$0xf]
        %v780 = vld [vmem:[%s1 + $0x10c] sm:$0xf]
        %v781 = vld [vmem:[%s1 + $0x110] sm:$0xf]
        %v782 = vld [vmem:[%s1 + $0x114] sm:$0xf]
        %v783 = vld [vmem:[%s1 + $0x118] sm:$0xf]
        %v784 = vld [vmem:[%s1 + $0x11c] sm:$0xf]
        %v785 = vld [vmem:[%s1 + $0x120] sm:$0xf]
        %v786 = vld [vmem:[%s1 + $0x124] sm:$0xf]
        %v787 = vld [vmem:[%s1 + $0x128] sm:$0xf]
        %v788 = vld [vmem:[%s1 + $0x12c] sm:$0xf]
        %v789 = vld [vmem:[%s1 + $0x130] sm:$0xf]
        %v790 = vld [vmem:[%s1 + $0x134] sm:$0xf]
        %v791 = vld [vmem:[%s1 + $0x138] sm:$0xf]
        %v792 = vld [vmem:[%s1 + $0x13c] sm:$0xf]
        %v793 = vld [vmem:[%s1 + $0x140] sm:$0xf]
        %v794 = vld [vmem:[%s1 + $0x144] sm:$0xf]
        %v795 = vld [vmem:[%s1 + $0x148] sm:$0xf]
        %v796 = vld [vmem:[%s1 + $0x14c] sm:$0xf]
        %v797 = vld [vmem:[%s1 + $0x150] sm:$0xf]
        %v798 = vld [vmem:[%s1 + $0x154] sm:$0xf]
        %v799 = vld [vmem:[%s1 + $0x158] sm:$0xf]
        %v800 = vld [vmem:[%s1 + $0x15c] sm:$0xf]
        %v801 = vld [vmem:[%s1 + $0x160] sm:$0xf]
        %v802 = vld [vmem:[%s1 + $0x164] sm:$0xf]
        %v803 = vld [vmem:[%s1 + $0x168] sm:$0xf]
        %v804 = vld [vmem:[%s1 + $0x16c] sm:$0xf]
        %v805 = vld [vmem:[%s1 + $0x170] sm:$0xf]
        %v806 = vld [vmem:[%s1 + $0x174] sm:$0xf]
        %v807 = vld [vmem:[%s1 + $0x178] sm:$0xf]
        %v808 = vld [vmem:[%s1 + $0x17c] sm:$0xf]
        %v809 = vld [vmem:[%s1 + $0x180] sm:$0xf]
        %v810 = vld [vmem:[%s1 + $0x184] sm:$0xf]
        %v811 = vld [vmem:[%s1 + $0x188] sm:$0xf]
        %v812 = vld [vmem:[%s1 + $0x18c] sm:$0xf]
        %v813 = vld [vmem:[%s1 + $0x190] sm:$0xf]
        %v814 = vld [vmem:[%s1 + $0x194] sm:$0xf]
        %v815 = vld [vmem:[%s1 + $0x198] sm:$0xf]
        %v816 = vld [vmem:[%s1 + $0x19c] sm:$0xf]
        %v817 = vld [vmem:[%s1 + $0x1a0] sm:$0xf]
        %v818 = vld [vmem:[%s1 + $0x1a4] sm:$0xf]
        %v819 = vld [vmem:[%s1 + $0x1a8] sm:$0xf]
        %v820 = vld [vmem:[%s1 + $0x1ac] sm:$0xf]
        %v821 = vld [vmem:[%s1 + $0x1b0] sm:$0xf]
        %v822 = vld [vmem:[%s1 + $0x1b4] sm:$0xf]
        %v823 = vld [vmem:[%s1 + $0x1b8] sm:$0xf]
        %v824 = vld [vmem:[%s1 + $0x1bc] sm:$0xf]
        %v825 = vld [vmem:[%s1 + $0x1c0] sm:$0xf]
        %v826 = vld [vmem:[%s1 + $0x1c4] sm:$0xf]
        %v827 = vld [vmem:[%s1 + $0x1c8] sm:$0xf]
        %v828 = vld [vmem:[%s1 + $0x1cc] sm:$0xf]
        %v829 = vld [vmem:[%s1 + $0x1d0] sm:$0xf]
        %v830 = vld [vmem:[%s1 + $0x1d4] sm:$0xf]
        %v831 = vld [vmem:[%s1 + $0x1d8] sm:$0xf]
        %v832 = vld [vmem:[%s1 + $0x1dc] sm:$0xf]
        %v833 = vld [vmem:[%s1 + $0x1e0] sm:$0xf]
        %v834 = vld [vmem:[%s1 + $0x1e4] sm:$0xf]
        %v835 = vld [vmem:[%s1 + $0x1e8] sm:$0xf]
        %v836 = vld [vmem:[%s1 + $0x1ec] sm:$0xf]
        %v837 = vld [vmem:[%s1 + $0x1f0] sm:$0xf]
        %v838 = vld [vmem:[%s1 + $0x1f4] sm:$0xf]
        %v839 = vld [vmem:[%s1 + $0x1f8] sm:$0xf]
        %v840 = vld [vmem:[%s1 + $0x1fc] sm:$0xf]
        %v841 = vld [vmem:[%s1 + $0x200] sm:$0xf]
        %v842 = vld [vmem:[%s1 + $0x204] sm:$0xf]
        %v843 = vld [vmem:[%s1 + $0x208] sm:$0xf]
        %v844 = vld [vmem:[%s1 + $0x20c] sm:$0xf]
        %v845 = vld [vmem:[%s1 + $0x210] sm:$0xf]
        %v846 = vld [vmem:[%s1 + $0x214] sm:$0xf]
        %v847 = vld [vmem:[%s1 + $0x218] sm:$0xf]
        %v848 = vld [vmem:[%s1 + $0x21c] sm:$0xf]
        %v849 = vld [vmem:[%s1 + $0x220] sm:$0xf]
        %v850 = vld [vmem:[%s1 + $0x224] sm:$0xf]
        %v851 = vld [vmem:[%s1 + $0x228] sm:$0xf]
        %v852 = vld [vmem:[%s1 + $0x22c] sm:$0xf]
        %v853 = vld [vmem:[%s1 + $0x230] sm:$0xf]
        %v854 = vld [vmem:[%s1 + $0x234] sm:$0xf]
        %v855 = vld [vmem:[%s1 + $0x238] sm:$0xf]
        %v856 = vld [vmem:[%s1 + $0x23c] sm:$0xf]
        %v857 = vld [vmem:[%s2] sm:$0x1]
        %v859 = vlaneseq
        %v860 = vshrl.u32 %v859, 7
        %v861 = vsub.s32 0, %v860
        %v862 = vrot.slane %v857, %v861
        %v1008 = vunpack.c.l.b16 %v713
        %v1009 = vunpack.c.l.b16 %v714
        %v1010 = vunpack.c.l.b16 %v715
        %v1011 = vunpack.c.l.b16 %v716
        %v1012 = vunpack.c.l.b16 %v717
        %v1013 = vunpack.c.l.b16 %v718
        %v1014 = vunpack.c.l.b16 %v719
        %v1015 = vunpack.c.l.b16 %v720
        %v1016 = vunpack.c.l.b16 %v721
        %v1017 = vunpack.c.l.b16 %v722
        %v1018 = vunpack.c.l.b16 %v723
        %v1019 = vunpack.c.l.b16 %v724
        %v1020 = vunpack.c.l.b16 %v725
        %v1021 = vunpack.c.l.b16 %v726
        %v1022 = vunpack.c.l.b16 %v727
        %v1023 = vunpack.c.l.b16 %v728
        %v1024 = vunpack.c.l.b16 %v729
        %v1025 = vunpack.c.l.b16 %v730
        %v1026 = vunpack.c.l.b16 %v731
        %v1027 = vunpack.c.l.b16 %v732
        %v1028 = vunpack.c.l.b16 %v733
        %v1029 = vunpack.c.l.b16 %v734
        %v1030 = vunpack.c.l.b16 %v735
        %v1031 = vunpack.c.l.b16 %v736
        %v1032 = vunpack.c.l.b16 %v737
        %v1033 = vunpack.c.l.b16 %v738
        %v1034 = vunpack.c.l.b16 %v739
        %v1035 = vunpack.c.l.b16 %v740
        %v1036 = vunpack.c.l.b16 %v741
        %v1037 = vunpack.c.l.b16 %v742
        %v1038 = vunpack.c.l.b16 %v743
        %v1039 = vunpack.c.l.b16 %v744
        %v1040 = vunpack.c.l.b16 %v745
        %v1041 = vunpack.c.l.b16 %v746
        %v1042 = vunpack.c.l.b16 %v747
        %v1043 = vunpack.c.l.b16 %v748
        %v1044 = vunpack.c.l.b16 %v749
        %v1045 = vunpack.c.l.b16 %v750
        %v1046 = vunpack.c.l.b16 %v751
        %v1047 = vunpack.c.l.b16 %v752
        %v1048 = vunpack.c.l.b16 %v753
        %v1049 = vunpack.c.l.b16 %v754
        %v1050 = vunpack.c.l.b16 %v755
        %v1051 = vunpack.c.l.b16 %v756
        %v1052 = vunpack.c.l.b16 %v757
        %v1053 = vunpack.c.l.b16 %v758
        %v1054 = vunpack.c.l.b16 %v759
        %v1055 = vunpack.c.l.b16 %v760
        %v1056 = vunpack.c.l.b16 %v761
        %v1057 = vunpack.c.l.b16 %v762
        %v1058 = vunpack.c.l.b16 %v763
        %v1059 = vunpack.c.l.b16 %v764
        %v1060 = vunpack.c.l.b16 %v765
        %v1061 = vunpack.c.l.b16 %v766
        %v1062 = vunpack.c.l.b16 %v767
        %v1063 = vunpack.c.l.b16 %v768
        %v1064 = vunpack.c.l.b16 %v769
        %v1065 = vunpack.c.l.b16 %v770
        %v1066 = vunpack.c.l.b16 %v771
        %v1067 = vunpack.c.l.b16 %v772
        %v1068 = vunpack.c.l.b16 %v773
        %v1069 = vunpack.c.l.b16 %v774
        %v1070 = vunpack.c.l.b16 %v775
        %v1071 = vunpack.c.l.b16 %v776
        %v1072 = vunpack.c.l.b16 %v777
        %v1073 = vunpack.c.l.b16 %v778
        %v1074 = vunpack.c.l.b16 %v779
        %v1075 = vunpack.c.l.b16 %v780
        %v1076 = vunpack.c.l.b16 %v781
        %v1077 = vunpack.c.l.b16 %v782
        %v1078 = vunpack.c.l.b16 %v783
        %v1079 = vunpack.c.l.b16 %v784
        %v1080 = vunpack.c.l.b16 %v785
        %v1081 = vunpack.c.l.b16 %v786
        %v1082 = vunpack.c.l.b16 %v787
        %v1083 = vunpack.c.l.b16 %v788
        %v1084 = vunpack.c.l.b16 %v789
        %v1085 = vunpack.c.l.b16 %v790
        %v1086 = vunpack.c.l.b16 %v791
        %v1087 = vunpack.c.l.b16 %v792
        %v1088 = vunpack.c.l.b16 %v793
        %v1089 = vunpack.c.l.b16 %v794
        %v1090 = vunpack.c.l.b16 %v795
        %v1091 = vunpack.c.l.b16 %v796
        %v1092 = vunpack.c.l.b16 %v797
        %v1093 = vunpack.c.l.b16 %v798
        %v1094 = vunpack.c.l.b16 %v799
        %v1095 = vunpack.c.l.b16 %v800
        %v1096 = vunpack.c.l.b16 %v801
        %v1097 = vunpack.c.l.b16 %v802
        %v1098 = vunpack.c.l.b16 %v803
        %v1099 = vunpack.c.l.b16 %v804
        %v1100 = vunpack.c.l.b16 %v805
        %v1101 = vunpack.c.l.b16 %v806
        %v1102 = vunpack.c.l.b16 %v807
        %v1103 = vunpack.c.l.b16 %v808
        %v1104 = vunpack.c.l.b16 %v809
        %v1105 = vunpack.c.l.b16 %v810
        %v1106 = vunpack.c.l.b16 %v811
        %v1107 = vunpack.c.l.b16 %v812
        %v1108 = vunpack.c.l.b16 %v813
        %v1109 = vunpack.c.l.b16 %v814
        %v1110 = vunpack.c.l.b16 %v815
        %v1111 = vunpack.c.l.b16 %v816
        %v1112 = vunpack.c.l.b16 %v817
        %v1113 = vunpack.c.l.b16 %v818
        %v1114 = vunpack.c.l.b16 %v819
        %v1115 = vunpack.c.l.b16 %v820
        %v1116 = vunpack.c.l.b16 %v821
        %v1117 = vunpack.c.l.b16 %v822
        %v1118 = vunpack.c.l.b16 %v823
        %v1119 = vunpack.c.l.b16 %v824
        %v1120 = vunpack.c.l.b16 %v825
        %v1121 = vunpack.c.l.b16 %v826
        %v1122 = vunpack.c.l.b16 %v827
        %v1123 = vunpack.c.l.b16 %v828
        %v1124 = vunpack.c.l.b16 %v829
        %v1125 = vunpack.c.l.b16 %v830
        %v1126 = vunpack.c.l.b16 %v831
        %v1127 = vunpack.c.l.b16 %v832
        %v1128 = vunpack.c.l.b16 %v833
        %v1129 = vunpack.c.l.b16 %v834
        %v1130 = vunpack.c.l.b16 %v835
        %v1131 = vunpack.c.l.b16 %v836
        %v1132 = vunpack.c.l.b16 %v837
        %v1133 = vunpack.c.l.b16 %v838
        %v1134 = vunpack.c.l.b16 %v839
        %v1135 = vunpack.c.l.b16 %v840
        %v1136 = vunpack.c.l.b16 %v841
        %v1137 = vunpack.c.l.b16 %v842
        %v1138 = vunpack.c.l.b16 %v843
        %v1139 = vunpack.c.l.b16 %v844
        %v1140 = vunpack.c.l.b16 %v845
        %v1141 = vunpack.c.l.b16 %v846
        %v1142 = vunpack.c.l.b16 %v847
        %v1143 = vunpack.c.l.b16 %v848
        %v1144 = vunpack.c.l.b16 %v849
        %v1145 = vunpack.c.l.b16 %v850
        %v1146 = vunpack.c.l.b16 %v851
        %v1147 = vunpack.c.l.b16 %v852
        %v1148 = vunpack.c.l.b16 %v853
        %v1149 = vunpack.c.l.b16 %v854
        %v1150 = vunpack.c.l.b16 %v855
        %v1151 = vunpack.c.l.b16 %v856
        %v1152 = vpack.c.b16 %v1009, %v1008
        %v1153 = vpack.c.b16 %v1011, %v1010
        %v1154 = vpack.c.b16 %v1013, %v1012
        %v1155 = vpack.c.b16 %v1015, %v1014
        %v1156 = vpack.c.b16 %v1017, %v1016
        %v1157 = vpack.c.b16 %v1019, %v1018
        %v1158 = vpack.c.b16 %v1021, %v1020
        %v1159 = vpack.c.b16 %v1023, %v1022
        %v1160 = vpack.c.b16 %v1025, %v1024
        %v1161 = vpack.c.b16 %v1027, %v1026
        %v1162 = vpack.c.b16 %v1029, %v1028
        %v1163 = vpack.c.b16 %v1031, %v1030
        %v1164 = vpack.c.b16 %v1033, %v1032
        %v1165 = vpack.c.b16 %v1035, %v1034
        %v1166 = vpack.c.b16 %v1037, %v1036
        %v1167 = vpack.c.b16 %v1039, %v1038
        %v1168 = vpack.c.b16 %v1041, %v1040
        %v1169 = vpack.c.b16 %v1043, %v1042
        %v1170 = vpack.c.b16 %v1045, %v1044
        %v1171 = vpack.c.b16 %v1047, %v1046
        %v1172 = vpack.c.b16 %v1049, %v1048
        %v1173 = vpack.c.b16 %v1051, %v1050
        %v1174 = vpack.c.b16 %v1053, %v1052
        %v1175 = vpack.c.b16 %v1055, %v1054
        %v1176 = vpack.c.b16 %v1057, %v1056
        %v1177 = vpack.c.b16 %v1059, %v1058
        %v1178 = vpack.c.b16 %v1061, %v1060
        %v1179 = vpack.c.b16 %v1063, %v1062
        %v1180 = vpack.c.b16 %v1065, %v1064
        %v1181 = vpack.c.b16 %v1067, %v1066
        %v1182 = vpack.c.b16 %v1069, %v1068
        %v1183 = vpack.c.b16 %v1071, %v1070
        %v1184 = vpack.c.b16 %v1073, %v1072
        %v1185 = vpack.c.b16 %v1075, %v1074
        %v1186 = vpack.c.b16 %v1077, %v1076
        %v1187 = vpack.c.b16 %v1079, %v1078
        %v1188 = vpack.c.b16 %v1081, %v1080
        %v1189 = vpack.c.b16 %v1083, %v1082
        %v1190 = vpack.c.b16 %v1085, %v1084
        %v1191 = vpack.c.b16 %v1087, %v1086
        %v1192 = vpack.c.b16 %v1089, %v1088
        %v1193 = vpack.c.b16 %v1091, %v1090
        %v1194 = vpack.c.b16 %v1093, %v1092
        %v1195 = vpack.c.b16 %v1095, %v1094
        %v1196 = vpack.c.b16 %v1097, %v1096
        %v1197 = vpack.c.b16 %v1099, %v1098
        %v1198 = vpack.c.b16 %v1101, %v1100
        %v1199 = vpack.c.b16 %v1103, %v1102
        %v1200 = vpack.c.b16 %v1105, %v1104
        %v1201 = vpack.c.b16 %v1107, %v1106
        %v1202 = vpack.c.b16 %v1109, %v1108
        %v1203 = vpack.c.b16 %v1111, %v1110
        %v1204 = vpack.c.b16 %v1113, %v1112
        %v1205 = vpack.c.b16 %v1115, %v1114
        %v1206 = vpack.c.b16 %v1117, %v1116
        %v1207 = vpack.c.b16 %v1119, %v1118
        %v1208 = vpack.c.b16 %v1121, %v1120
        %v1209 = vpack.c.b16 %v1123, %v1122
        %v1210 = vpack.c.b16 %v1125, %v1124
        %v1211 = vpack.c.b16 %v1127, %v1126
        %v1212 = vpack.c.b16 %v1129, %v1128
        %v1213 = vpack.c.b16 %v1131, %v1130
        %v1214 = vpack.c.b16 %v1133, %v1132
        %v1215 = vpack.c.b16 %v1135, %v1134
        %v1216 = vpack.c.b16 %v1137, %v1136
        %v1217 = vpack.c.b16 %v1139, %v1138
        %v1218 = vpack.c.b16 %v1141, %v1140
        %v1219 = vpack.c.b16 %v1143, %v1142
        %v1220 = vpack.c.b16 %v1145, %v1144
        %v1221 = vpack.c.b16 %v1147, %v1146
        %v1222 = vpack.c.b16 %v1149, %v1148
        %v1223 = vpack.c.b16 %v1151, %v1150
        %1296 = vmatprep.subr.bf16.mxu0 0
        %1297 = vmatpush1.bf16.msra.mxu0 %v1159
        %1298 = vmatprep.subr.bf16.mxu0 0
        %1299 = vmatpush1.bf16.msra.mxu0 %v1158
        %1300 = vmatprep.subr.bf16.mxu0 0
        %1301 = vmatpush1.bf16.msra.mxu0 %v1157
        %1302 = vmatprep.subr.bf16.mxu0 0
        %1303 = vmatpush1.bf16.msra.mxu0 %v1156
        %1304 = vmatprep.subr.bf16.mxu0 0
        %1305 = vmatpush1.bf16.msra.mxu0 %v1155
        %1306 = vmatprep.subr.bf16.mxu0 0
        %1307 = vmatpush1.bf16.msra.mxu0 %v1154
        %1308 = vmatprep.subr.bf16.mxu0 0
        %1309 = vmatpush1.bf16.msra.mxu0 %v1153
        %1310 = vmatprep.subr.bf16.mxu0 0
        %1311 = vmatpush1.bf16.msra.mxu0 %v1152
        %1312 = vmatprep.subr.bf16.mxu0 0
        %1313 = vmatpush2.bf16.msra.mxu0 %v1167
        %1314 = vmatprep.subr.bf16.mxu0 0
        %1315 = vmatpush2.bf16.msra.mxu0 %v1166
        %1316 = vmatprep.subr.bf16.mxu0 0
        %1317 = vmatpush2.bf16.msra.mxu0 %v1165
        %1318 = vmatprep.subr.bf16.mxu0 0
        %1319 = vmatpush2.bf16.msra.mxu0 %v1164
        %1320 = vmatprep.subr.bf16.mxu0 0
        %1321 = vmatpush2.bf16.msra.mxu0 %v1163
        %1322 = vmatprep.subr.bf16.mxu0 0
        %1323 = vmatpush2.bf16.msra.mxu0 %v1162
        %1324 = vmatprep.subr.bf16.mxu0 0
        %1325 = vmatpush2.bf16.msra.mxu0 %v1161
        %1326 = vmatprep.subr.bf16.mxu0 0
        %1327 = vmatpush2.bf16.msra.mxu0 %v1160
        %1328 = vmatprep.mubr.bf16.mxu0 %v399
        %1329 = vmatmul.mubr.bf16.gmra.mxu0 %v307
        %v1330 = vpop.f32.mrf.mxu0
        %v1331 = vadd.f32 %v862, %v1330
        %v1332 = vpop.f32.mrf.mxu0
        %v1333 = vpop.f32.mrf.mxu0
        %v1334 = vadd.f32 %v862, %v1333
        %v1335 = vpop.f32.mrf.mxu0
        %1336 = vmatprep.mubr.bf16.mxu0 %v411
        %1337 = vmatmul.mubr.bf16.gmra.mxu0 %v308
        %v1338 = vpop.f32.mrf.mxu0
        %v1339 = vadd.f32 %v862, %v1338
        %v1340 = vpop.f32.mrf.mxu0
        %v1341 = vpop.f32.mrf.mxu0
        %v1342 = vadd.f32 %v862, %v1341
        %v1343 = vpop.f32.mrf.mxu0
        %1344 = vmatprep.mubr.bf16.mxu0 %v423
        %1345 = vmatmul.mubr.bf16.gmra.mxu0 %v309
        %v1346 = vpop.f32.mrf.mxu0
        %v1347 = vadd.f32 %v862, %v1346
        %v1348 = vpop.f32.mrf.mxu0
        %v1349 = vpop.f32.mrf.mxu0
        %v1350 = vadd.f32 %v862, %v1349
        %v1351 = vpop.f32.mrf.mxu0
        %1352 = vmatprep.mubr.bf16.mxu0 %v435
        %1353 = vmatmul.mubr.bf16.gmra.mxu0 %v310
        %v1354 = vpop.f32.mrf.mxu0
        %v1355 = vadd.f32 %v862, %v1354
        %v1356 = vpop.f32.mrf.mxu0
        %v1357 = vpop.f32.mrf.mxu0
        %v1358 = vadd.f32 %v862, %v1357
        %v1359 = vpop.f32.mrf.mxu0
        %1360 = vmatprep.mubr.bf16.mxu0 %v447
        %1361 = vmatmul.mubr.bf16.gmra.mxu0 %v311
        %v1362 = vpop.f32.mrf.mxu0
        %v1363 = vadd.f32 %v862, %v1362
        %v1364 = vpop.f32.mrf.mxu0
        %v1365 = vpop.f32.mrf.mxu0
        %v1366 = vadd.f32 %v862, %v1365
        %v1367 = vpop.f32.mrf.mxu0
        %1368 = vmatprep.mubr.bf16.mxu0 %v459
        %1369 = vmatmul.mubr.bf16.gmra.mxu0 %v312
        %v1370 = vpop.f32.mrf.mxu0
        %v1371 = vadd.f32 %v862, %v1370
        %v1372 = vpop.f32.mrf.mxu0
        %v1373 = vpop.f32.mrf.mxu0
        %v1374 = vadd.f32 %v862, %v1373
        %v1375 = vpop.f32.mrf.mxu0
        %1376 = vmatprep.mubr.bf16.mxu0 %v471
        %1377 = vmatmul.mubr.bf16.gmra.mxu0 %v313
        %v1378 = vpop.f32.mrf.mxu0
        %v1379 = vadd.f32 %v862, %v1378
        %v1380 = vpop.f32.mrf.mxu0
        %v1381 = vpop.f32.mrf.mxu0
        %v1382 = vadd.f32 %v862, %v1381
        %v1383 = vpop.f32.mrf.mxu0
        %1384 = vmatprep.mubr.bf16.mxu0 %v483
        %1385 = vmatmul.mubr.bf16.gmra.mxu0 %v314
        %v1386 = vpop.f32.mrf.mxu0
        %v1387 = vadd.f32 %v862, %v1386
        %v1388 = vpop.f32.mrf.mxu0
        %v1389 = vpop.f32.mrf.mxu0
        %v1390 = vadd.f32 %v862, %v1389
        %v1391 = vpop.f32.mrf.mxu0
        %1392 = vmatprep.mubr.bf16.mxu0 %v495
        %1393 = vmatmul.mubr.bf16.gmra.mxu0 %v315
        %v1394 = vpop.f32.mrf.mxu0
        %v1395 = vadd.f32 %v862, %v1394
        %v1396 = vpop.f32.mrf.mxu0
        %v1397 = vpop.f32.mrf.mxu0
        %v1398 = vadd.f32 %v862, %v1397
        %v1399 = vpop.f32.mrf.mxu0
        %1400 = vmatprep.mubr.bf16.mxu0 %v507
        %1401 = vmatmul.mubr.bf16.gmra.mxu0 %v316
        %v1402 = vpop.f32.mrf.mxu0
        %v1403 = vadd.f32 %v862, %v1402
        %v1404 = vpop.f32.mrf.mxu0
        %v1405 = vpop.f32.mrf.mxu0
        %v1406 = vadd.f32 %v862, %v1405
        %v1407 = vpop.f32.mrf.mxu0
        %1408 = vmatprep.mubr.bf16.mxu0 %v519
        %1409 = vmatmul.mubr.bf16.gmra.mxu0 %v317
        %v1410 = vpop.f32.mrf.mxu0
        %v1411 = vadd.f32 %v862, %v1410
        %v1412 = vpop.f32.mrf.mxu0
        %v1413 = vpop.f32.mrf.mxu0
        %v1414 = vadd.f32 %v862, %v1413
        %v1415 = vpop.f32.mrf.mxu0
        %1416 = vmatprep.mubr.bf16.mxu0 %v531
        %1417 = vmatmul.mubr.bf16.gmra.mxu0 %v318
        %v1418 = vpop.f32.mrf.mxu0
        %v1419 = vadd.f32 %v862, %v1418
        %v1420 = vpop.f32.mrf.mxu0
        %v1421 = vpop.f32.mrf.mxu0
        %v1422 = vadd.f32 %v862, %v1421
        %v1423 = vpop.f32.mrf.mxu0
        %1424 = vmatprep.mubr.bf16.mxu0 %v543
        %1425 = vmatmul.mubr.bf16.gmra.mxu0 %v319
        %v1426 = vpop.f32.mrf.mxu0
        %v1427 = vadd.f32 %v862, %v1426
        %v1428 = vpop.f32.mrf.mxu0
        %v1429 = vpop.f32.mrf.mxu0
        %v1430 = vadd.f32 %v862, %v1429
        %v1431 = vpop.f32.mrf.mxu0
        %1432 = vmatprep.mubr.bf16.mxu0 %v555
        %1433 = vmatmul.mubr.bf16.gmra.mxu0 %v320
        %v1434 = vpop.f32.mrf.mxu0
        %v1435 = vadd.f32 %v862, %v1434
        %v1436 = vpop.f32.mrf.mxu0
        %v1437 = vpop.f32.mrf.mxu0
        %v1438 = vadd.f32 %v862, %v1437
        %v1439 = vpop.f32.mrf.mxu0
        %1440 = vmatprep.mubr.bf16.mxu0 %v567
        %1441 = vmatmul.mubr.bf16.gmra.mxu0 %v321
        %v1442 = vpop.f32.mrf.mxu0
        %v1443 = vadd.f32 %v862, %v1442
        %v1444 = vpop.f32.mrf.mxu0
        %v1445 = vpop.f32.mrf.mxu0
        %v1446 = vadd.f32 %v862, %v1445
        %v1447 = vpop.f32.mrf.mxu0
        %1448 = vmatprep.mubr.bf16.mxu0 %v579
        %1449 = vmatmul.mubr.bf16.gmra.mxu0 %v322
        %v1450 = vpop.f32.mrf.mxu0
        %v1451 = vadd.f32 %v862, %v1450
        %v1452 = vpop.f32.mrf.mxu0
        %v1453 = vpop.f32.mrf.mxu0
        %v1454 = vadd.f32 %v862, %v1453
        %v1455 = vpop.f32.mrf.mxu0
        %1456 = vdwg.mxu0
        %1457 = vmatprep.subr.bf16.mxu0 0
        %1458 = vmatpush1.bf16.msra.mxu0 %v1175
        %1459 = vmatprep.subr.bf16.mxu0 0
        %1460 = vmatpush1.bf16.msra.mxu0 %v1174
        %1461 = vmatprep.subr.bf16.mxu0 0
        %1462 = vmatpush1.bf16.msra.mxu0 %v1173
        %1463 = vmatprep.subr.bf16.mxu0 0
        %1464 = vmatpush1.bf16.msra.mxu0 %v1172
        %1465 = vmatprep.subr.bf16.mxu0 0
        %1466 = vmatpush1.bf16.msra.mxu0 %v1171
        %1467 = vmatprep.subr.bf16.mxu0 0
        %1468 = vmatpush1.bf16.msra.mxu0 %v1170
        %1469 = vmatprep.subr.bf16.mxu0 0
        %1470 = vmatpush1.bf16.msra.mxu0 %v1169
        %1471 = vmatprep.subr.bf16.mxu0 0
        %1472 = vmatpush1.bf16.msra.mxu0 %v1168
        %1473 = vmatprep.subr.bf16.mxu0 0
        %1474 = vmatpush2.bf16.msra.mxu0 %v1183
        %1475 = vmatprep.subr.bf16.mxu0 0
        %1476 = vmatpush2.bf16.msra.mxu0 %v1182
        %1477 = vmatprep.subr.bf16.mxu0 0
        %1478 = vmatpush2.bf16.msra.mxu0 %v1181
        %1479 = vmatprep.subr.bf16.mxu0 0
        %1480 = vmatpush2.bf16.msra.mxu0 %v1180
        %1481 = vmatprep.subr.bf16.mxu0 0
        %1482 = vmatpush2.bf16.msra.mxu0 %v1179
        %1483 = vmatprep.subr.bf16.mxu0 0
        %1484 = vmatpush2.bf16.msra.mxu0 %v1178
        %1485 = vmatprep.subr.bf16.mxu0 0
        %1486 = vmatpush2.bf16.msra.mxu0 %v1177
        %1487 = vmatprep.subr.bf16.mxu0 0
        %1488 = vmatpush2.bf16.msra.mxu0 %v1176
        %1489 = vmatprep.mubr.bf16.mxu0 %v308
        %1490 = vmatmul.mubr.bf16.gmra.mxu0 %v599
        %v1491 = vpop.f32.mrf.mxu0
        %v1492 = vadd.f32 %v1331, %v1491
        %v1493 = vpop.f32.mrf.mxu0
        %v1494 = vpop.f32.mrf.mxu0
        %v1495 = vadd.f32 %v1334, %v1494
        %v1496 = vpop.f32.mrf.mxu0
        %1497 = vmatprep.mubr.bf16.mxu0 %v309
        %1498 = vmatmul.mubr.bf16.gmra.mxu0 %v602
        %v1499 = vpop.f32.mrf.mxu0
        %v1500 = vadd.f32 %v1339, %v1499
        %v1501 = vpop.f32.mrf.mxu0
        %v1502 = vpop.f32.mrf.mxu0
        %v1503 = vadd.f32 %v1342, %v1502
        %v1504 = vpop.f32.mrf.mxu0
        %1505 = vmatprep.mubr.bf16.mxu0 %v310
        %1506 = vmatmul.mubr.bf16.gmra.mxu0 %v605
        %v1507 = vpop.f32.mrf.mxu0
        %v1508 = vadd.f32 %v1347, %v1507
        %v1509 = vpop.f32.mrf.mxu0
        %v1510 = vpop.f32.mrf.mxu0
        %v1511 = vadd.f32 %v1350, %v1510
        %v1512 = vpop.f32.mrf.mxu0
        %1513 = vmatprep.mubr.bf16.mxu0 %v311
        %1514 = vmatmul.mubr.bf16.gmra.mxu0 %v608
        %v1515 = vpop.f32.mrf.mxu0
        %v1516 = vadd.f32 %v1355, %v1515
        %v1517 = vpop.f32.mrf.mxu0
        %v1518 = vpop.f32.mrf.mxu0
        %v1519 = vadd.f32 %v1358, %v1518
        %v1520 = vpop.f32.mrf.mxu0
        %1521 = vmatprep.mubr.bf16.mxu0 %v312
        %1522 = vmatmul.mubr.bf16.gmra.mxu0 %v611
        %v1523 = vpop.f32.mrf.mxu0
        %v1524 = vadd.f32 %v1363, %v1523
        %v1525 = vpop.f32.mrf.mxu0
        %v1526 = vpop.f32.mrf.mxu0
        %v1527 = vadd.f32 %v1366, %v1526
        %v1528 = vpop.f32.mrf.mxu0
        %1529 = vmatprep.mubr.bf16.mxu0 %v313
        %1530 = vmatmul.mubr.bf16.gmra.mxu0 %v614
        %v1531 = vpop.f32.mrf.mxu0
        %v1532 = vadd.f32 %v1371, %v1531
        %v1533 = vpop.f32.mrf.mxu0
        %v1534 = vpop.f32.mrf.mxu0
        %v1535 = vadd.f32 %v1374, %v1534
        %v1536 = vpop.f32.mrf.mxu0
        %1537 = vmatprep.mubr.bf16.mxu0 %v314
        %1538 = vmatmul.mubr.bf16.gmra.mxu0 %v617
        %v1539 = vpop.f32.mrf.mxu0
        %v1540 = vadd.f32 %v1379, %v1539
        %v1541 = vpop.f32.mrf.mxu0
        %v1542 = vpop.f32.mrf.mxu0
        %v1543 = vadd.f32 %v1382, %v1542
        %v1544 = vpop.f32.mrf.mxu0
        %1545 = vmatprep.mubr.bf16.mxu0 %v315
        %1546 = vmatmul.mubr.bf16.gmra.mxu0 %v620
        %v1547 = vpop.f32.mrf.mxu0
        %v1548 = vadd.f32 %v1387, %v1547
        %v1549 = vpop.f32.mrf.mxu0
        %v1550 = vpop.f32.mrf.mxu0
        %v1551 = vadd.f32 %v1390, %v1550
        %v1552 = vpop.f32.mrf.mxu0
        %1553 = vmatprep.mubr.bf16.mxu0 %v316
        %1554 = vmatmul.mubr.bf16.gmra.mxu0 %v623
        %v1555 = vpop.f32.mrf.mxu0
        %v1556 = vadd.f32 %v1395, %v1555
        %v1557 = vpop.f32.mrf.mxu0
        %v1558 = vpop.f32.mrf.mxu0
        %v1559 = vadd.f32 %v1398, %v1558
        %v1560 = vpop.f32.mrf.mxu0
        %1561 = vmatprep.mubr.bf16.mxu0 %v317
        %1562 = vmatmul.mubr.bf16.gmra.mxu0 %v626
        %v1563 = vpop.f32.mrf.mxu0
        %v1564 = vadd.f32 %v1403, %v1563
        %v1565 = vpop.f32.mrf.mxu0
        %v1566 = vpop.f32.mrf.mxu0
        %v1567 = vadd.f32 %v1406, %v1566
        %v1568 = vpop.f32.mrf.mxu0
        %1569 = vmatprep.mubr.bf16.mxu0 %v318
        %1570 = vmatmul.mubr.bf16.gmra.mxu0 %v629
        %v1571 = vpop.f32.mrf.mxu0
        %v1572 = vadd.f32 %v1411, %v1571
        %v1573 = vpop.f32.mrf.mxu0
        %v1574 = vpop.f32.mrf.mxu0
        %v1575 = vadd.f32 %v1414, %v1574
        %v1576 = vpop.f32.mrf.mxu0
        %1577 = vmatprep.mubr.bf16.mxu0 %v319
        %1578 = vmatmul.mubr.bf16.gmra.mxu0 %v632
        %v1579 = vpop.f32.mrf.mxu0
        %v1580 = vadd.f32 %v1419, %v1579
        %v1581 = vpop.f32.mrf.mxu0
        %v1582 = vpop.f32.mrf.mxu0
        %v1583 = vadd.f32 %v1422, %v1582
        %v1584 = vpop.f32.mrf.mxu0
        %1585 = vmatprep.mubr.bf16.mxu0 %v320
        %1586 = vmatmul.mubr.bf16.gmra.mxu0 %v635
        %v1587 = vpop.f32.mrf.mxu0
        %v1588 = vadd.f32 %v1427, %v1587
        %v1589 = vpop.f32.mrf.mxu0
        %v1590 = vpop.f32.mrf.mxu0
        %v1591 = vadd.f32 %v1430, %v1590
        %v1592 = vpop.f32.mrf.mxu0
        %1593 = vmatprep.mubr.bf16.mxu0 %v321
        %1594 = vmatmul.mubr.bf16.gmra.mxu0 %v638
        %v1595 = vpop.f32.mrf.mxu0
        %v1596 = vadd.f32 %v1435, %v1595
        %v1597 = vpop.f32.mrf.mxu0
        %v1598 = vpop.f32.mrf.mxu0
        %v1599 = vadd.f32 %v1438, %v1598
        %v1600 = vpop.f32.mrf.mxu0
        %1601 = vmatprep.mubr.bf16.mxu0 %v322
        %1602 = vmatmul.mubr.bf16.gmra.mxu0 %v641
        %v1603 = vpop.f32.mrf.mxu0
        %v1604 = vadd.f32 %v1443, %v1603
        %v1605 = vpop.f32.mrf.mxu0
        %v1606 = vpop.f32.mrf.mxu0
        %v1607 = vadd.f32 %v1446, %v1606
        %v1608 = vpop.f32.mrf.mxu0
        %1609 = vmatprep.mubr.bf16.mxu0 %v665
        %1610 = vmatmul.mubr.bf16.gmra.mxu0 %v644
        %v1611 = vpop.f32.mrf.mxu0
        %v1612 = vadd.f32 %v1451, %v1611
        %v1613 = vpop.f32.mrf.mxu0
        %v1614 = vpop.f32.mrf.mxu0
        %v1615 = vadd.f32 %v1454, %v1614
        %v1616 = vpop.f32.mrf.mxu0
        %1617 = vdwg.mxu0
        %1618 = vmatprep.subr.bf16.mxu0 0
        %1619 = vmatpush1.bf16.msra.mxu0 %v1191
        %1620 = vmatprep.subr.bf16.mxu0 0
        %1621 = vmatpush1.bf16.msra.mxu0 %v1190
        %1622 = vmatprep.subr.bf16.mxu0 0
        %1623 = vmatpush1.bf16.msra.mxu0 %v1189
        %1624 = vmatprep.subr.bf16.mxu0 0
        %1625 = vmatpush1.bf16.msra.mxu0 %v1188
        %1626 = vmatprep.subr.bf16.mxu0 0
        %1627 = vmatpush1.bf16.msra.mxu0 %v1187
        %1628 = vmatprep.subr.bf16.mxu0 0
        %1629 = vmatpush1.bf16.msra.mxu0 %v1186
        %1630 = vmatprep.subr.bf16.mxu0 0
        %1631 = vmatpush1.bf16.msra.mxu0 %v1185
        %1632 = vmatprep.subr.bf16.mxu0 0
        %1633 = vmatpush1.bf16.msra.mxu0 %v1184
        %1634 = vmatprep.subr.bf16.mxu0 0
        %1635 = vmatpush2.bf16.msra.mxu0 %v1199
        %1636 = vmatprep.subr.bf16.mxu0 0
        %1637 = vmatpush2.bf16.msra.mxu0 %v1198
        %1638 = vmatprep.subr.bf16.mxu0 0
        %1639 = vmatpush2.bf16.msra.mxu0 %v1197
        %1640 = vmatprep.subr.bf16.mxu0 0
        %1641 = vmatpush2.bf16.msra.mxu0 %v1196
        %1642 = vmatprep.subr.bf16.mxu0 0
        %1643 = vmatpush2.bf16.msra.mxu0 %v1195
        %1644 = vmatprep.subr.bf16.mxu0 0
        %1645 = vmatpush2.bf16.msra.mxu0 %v1194
        %1646 = vmatprep.subr.bf16.mxu0 0
        %1647 = vmatpush2.bf16.msra.mxu0 %v1193
        %1648 = vmatprep.subr.bf16.mxu0 0
        %1649 = vmatpush2.bf16.msra.mxu0 %v1192
        %1650 = vmatprep.mubr.bf16.mxu0 %v602
        %1651 = vmatmul.mubr.bf16.gmra.mxu0 %v411
        %v1652 = vpop.f32.mrf.mxu0
        %v1653 = vadd.f32 %v1492, %v1652
        %v1654 = vpop.f32.mrf.mxu0
        %v1655 = vpop.f32.mrf.mxu0
        %v1656 = vadd.f32 %v1495, %v1655
        %v1657 = vpop.f32.mrf.mxu0
        %1658 = vmatprep.mubr.bf16.mxu0 %v605
        %1659 = vmatmul.mubr.bf16.gmra.mxu0 %v423
        %v1660 = vpop.f32.mrf.mxu0
        %v1661 = vadd.f32 %v1500, %v1660
        %v1662 = vpop.f32.mrf.mxu0
        %v1663 = vpop.f32.mrf.mxu0
        %v1664 = vadd.f32 %v1503, %v1663
        %v1665 = vpop.f32.mrf.mxu0
        %1666 = vmatprep.mubr.bf16.mxu0 %v608
        %1667 = vmatmul.mubr.bf16.gmra.mxu0 %v435
        %v1668 = vpop.f32.mrf.mxu0
        %v1669 = vadd.f32 %v1508, %v1668
        %v1670 = vpop.f32.mrf.mxu0
        %v1671 = vpop.f32.mrf.mxu0
        %v1672 = vadd.f32 %v1511, %v1671
        %v1673 = vpop.f32.mrf.mxu0
        %1674 = vmatprep.mubr.bf16.mxu0 %v611
        %1675 = vmatmul.mubr.bf16.gmra.mxu0 %v447
        %v1676 = vpop.f32.mrf.mxu0
        %v1677 = vadd.f32 %v1516, %v1676
        %v1678 = vpop.f32.mrf.mxu0
        %v1679 = vpop.f32.mrf.mxu0
        %v1680 = vadd.f32 %v1519, %v1679
        %v1681 = vpop.f32.mrf.mxu0
        %1682 = vmatprep.mubr.bf16.mxu0 %v614
        %1683 = vmatmul.mubr.bf16.gmra.mxu0 %v459
        %v1684 = vpop.f32.mrf.mxu0
        %v1685 = vadd.f32 %v1524, %v1684
        %v1686 = vpop.f32.mrf.mxu0
        %v1687 = vpop.f32.mrf.mxu0
        %v1688 = vadd.f32 %v1527, %v1687
        %v1689 = vpop.f32.mrf.mxu0
        %1690 = vmatprep.mubr.bf16.mxu0 %v617
        %1691 = vmatmul.mubr.bf16.gmra.mxu0 %v471
        %v1692 = vpop.f32.mrf.mxu0
        %v1693 = vadd.f32 %v1532, %v1692
        %v1694 = vpop.f32.mrf.mxu0
        %v1695 = vpop.f32.mrf.mxu0
        %v1696 = vadd.f32 %v1535, %v1695
        %v1697 = vpop.f32.mrf.mxu0
        %1698 = vmatprep.mubr.bf16.mxu0 %v620
        %1699 = vmatmul.mubr.bf16.gmra.mxu0 %v483
        %v1700 = vpop.f32.mrf.mxu0
        %v1701 = vadd.f32 %v1540, %v1700
        %v1702 = vpop.f32.mrf.mxu0
        %v1703 = vpop.f32.mrf.mxu0
        %v1704 = vadd.f32 %v1543, %v1703
        %v1705 = vpop.f32.mrf.mxu0
        %1706 = vmatprep.mubr.bf16.mxu0 %v623
        %1707 = vmatmul.mubr.bf16.gmra.mxu0 %v495
        %v1708 = vpop.f32.mrf.mxu0
        %v1709 = vadd.f32 %v1548, %v1708
        %v1710 = vpop.f32.mrf.mxu0
        %v1711 = vpop.f32.mrf.mxu0
        %v1712 = vadd.f32 %v1551, %v1711
        %v1713 = vpop.f32.mrf.mxu0
        %1714 = vmatprep.mubr.bf16.mxu0 %v626
        %1715 = vmatmul.mubr.bf16.gmra.mxu0 %v507
        %v1716 = vpop.f32.mrf.mxu0
        %v1717 = vadd.f32 %v1556, %v1716
        %v1718 = vpop.f32.mrf.mxu0
        %v1719 = vpop.f32.mrf.mxu0
        %v1720 = vadd.f32 %v1559, %v1719
        %v1721 = vpop.f32.mrf.mxu0
        %1722 = vmatprep.mubr.bf16.mxu0 %v629
        %1723 = vmatmul.mubr.bf16.gmra.mxu0 %v519
        %v1724 = vpop.f32.mrf.mxu0
        %v1725 = vadd.f32 %v1564, %v1724
        %v1726 = vpop.f32.mrf.mxu0
        %v1727 = vpop.f32.mrf.mxu0
        %v1728 = vadd.f32 %v1567, %v1727
        %v1729 = vpop.f32.mrf.mxu0
        %1730 = vmatprep.mubr.bf16.mxu0 %v632
        %1731 = vmatmul.mubr.bf16.gmra.mxu0 %v531
        %v1732 = vpop.f32.mrf.mxu0
        %v1733 = vadd.f32 %v1572, %v1732
        %v1734 = vpop.f32.mrf.mxu0
        %v1735 = vpop.f32.mrf.mxu0
        %v1736 = vadd.f32 %v1575, %v1735
        %v1737 = vpop.f32.mrf.mxu0
        %1738 = vmatprep.mubr.bf16.mxu0 %v635
        %1739 = vmatmul.mubr.bf16.gmra.mxu0 %v543
        %v1740 = vpop.f32.mrf.mxu0
        %v1741 = vadd.f32 %v1580, %v1740
        %v1742 = vpop.f32.mrf.mxu0
        %v1743 = vpop.f32.mrf.mxu0
        %v1744 = vadd.f32 %v1583, %v1743
        %v1745 = vpop.f32.mrf.mxu0
        %1746 = vmatprep.mubr.bf16.mxu0 %v638
        %1747 = vmatmul.mubr.bf16.gmra.mxu0 %v555
        %v1748 = vpop.f32.mrf.mxu0
        %v1749 = vadd.f32 %v1588, %v1748
        %v1750 = vpop.f32.mrf.mxu0
        %v1751 = vpop.f32.mrf.mxu0
        %v1752 = vadd.f32 %v1591, %v1751
        %v1753 = vpop.f32.mrf.mxu0
        %1754 = vmatprep.mubr.bf16.mxu0 %v641
        %1755 = vmatmul.mubr.bf16.gmra.mxu0 %v567
        %v1756 = vpop.f32.mrf.mxu0
        %v1757 = vadd.f32 %v1596, %v1756
        %v1758 = vpop.f32.mrf.mxu0
        %v1759 = vpop.f32.mrf.mxu0
        %v1760 = vadd.f32 %v1599, %v1759
        %v1761 = vpop.f32.mrf.mxu0
        %1762 = vmatprep.mubr.bf16.mxu0 %v644
        %1763 = vmatmul.mubr.bf16.gmra.mxu0 %v579
        %v1764 = vpop.f32.mrf.mxu0
        %v1765 = vadd.f32 %v1604, %v1764
        %v1766 = vpop.f32.mrf.mxu0
        %v1767 = vpop.f32.mrf.mxu0
        %v1768 = vadd.f32 %v1607, %v1767
        %v1769 = vpop.f32.mrf.mxu0
        %1770 = vmatprep.mubr.bf16.mxu0 %v685
        %1771 = vmatmul.mubr.bf16.gmra.mxu0 %v681
        %v1772 = vpop.f32.mrf.mxu0
        %v1773 = vadd.f32 %v1612, %v1772
        %v1774 = vpop.f32.mrf.mxu0
        %v1775 = vpop.f32.mrf.mxu0
        %v1776 = vadd.f32 %v1615, %v1775
        %v1777 = vpop.f32.mrf.mxu0
        %1778 = vdwg.mxu0
        %1779 = vmatprep.subr.bf16.mxu0 0
        %1780 = vmatpush1.bf16.msra.mxu0 %v1207
        %1781 = vmatprep.subr.bf16.mxu0 0
        %1782 = vmatpush1.bf16.msra.mxu0 %v1206
        %1783 = vmatprep.subr.bf16.mxu0 0
        %1784 = vmatpush1.bf16.msra.mxu0 %v1205
        %1785 = vmatprep.subr.bf16.mxu0 0
        %1786 = vmatpush1.bf16.msra.mxu0 %v1204
        %1787 = vmatprep.subr.bf16.mxu0 0
        %1788 = vmatpush1.bf16.msra.mxu0 %v1203
        %1789 = vmatprep.subr.bf16.mxu0 0
        %1790 = vmatpush1.bf16.msra.mxu0 %v1202
        %1791 = vmatprep.subr.bf16.mxu0 0
        %1792 = vmatpush1.bf16.msra.mxu0 %v1201
        %1793 = vmatprep.subr.bf16.mxu0 0
        %1794 = vmatpush1.bf16.msra.mxu0 %v1200
        %1795 = vmatprep.subr.bf16.mxu0 0
        %1796 = vmatpush2.bf16.msra.mxu0 %v1215
        %1797 = vmatprep.subr.bf16.mxu0 0
        %1798 = vmatpush2.bf16.msra.mxu0 %v1214
        %1799 = vmatprep.subr.bf16.mxu0 0
        %1800 = vmatpush2.bf16.msra.mxu0 %v1213
        %1801 = vmatprep.subr.bf16.mxu0 0
        %1802 = vmatpush2.bf16.msra.mxu0 %v1212
        %1803 = vmatprep.subr.bf16.mxu0 0
        %1804 = vmatpush2.bf16.msra.mxu0 %v1211
        %1805 = vmatprep.subr.bf16.mxu0 0
        %1806 = vmatpush2.bf16.msra.mxu0 %v1210
        %1807 = vmatprep.subr.bf16.mxu0 0
        %1808 = vmatpush2.bf16.msra.mxu0 %v1209
        %1809 = vmatprep.subr.bf16.mxu0 0
        %1810 = vmatpush2.bf16.msra.mxu0 %v1208
        %1811 = vmatprep.mubr.bf16.mxu0 %v423
        %1812 = vmatmul.mubr.bf16.gmra.mxu0 %v309
        %v1813 = vpop.f32.mrf.mxu0
        %v1814 = vadd.f32 %v1653, %v1813
        %v1815 = vpop.f32.mrf.mxu0
        %v1816 = vpop.f32.mrf.mxu0
        %v1817 = vadd.f32 %v1656, %v1816
        %v1818 = vpop.f32.mrf.mxu0
        %1819 = vmatprep.mubr.bf16.mxu0 %v435
        %1820 = vmatmul.mubr.bf16.gmra.mxu0 %v310
        %v1821 = vpop.f32.mrf.mxu0
        %v1822 = vadd.f32 %v1661, %v1821
        %v1823 = vpop.f32.mrf.mxu0
        %v1824 = vpop.f32.mrf.mxu0
        %v1825 = vadd.f32 %v1664, %v1824
        %v1826 = vpop.f32.mrf.mxu0
        %1827 = vmatprep.mubr.bf16.mxu0 %v447
        %1828 = vmatmul.mubr.bf16.gmra.mxu0 %v311
        %v1829 = vpop.f32.mrf.mxu0
        %v1830 = vadd.f32 %v1669, %v1829
        %v1831 = vpop.f32.mrf.mxu0
        %v1832 = vpop.f32.mrf.mxu0
        %v1833 = vadd.f32 %v1672, %v1832
        %v1834 = vpop.f32.mrf.mxu0
        %1835 = vmatprep.mubr.bf16.mxu0 %v459
        %1836 = vmatmul.mubr.bf16.gmra.mxu0 %v312
        %v1837 = vpop.f32.mrf.mxu0
        %v1838 = vadd.f32 %v1677, %v1837
        %v1839 = vpop.f32.mrf.mxu0
        %v1840 = vpop.f32.mrf.mxu0
        %v1841 = vadd.f32 %v1680, %v1840
        %v1842 = vpop.f32.mrf.mxu0
        %1843 = vmatprep.mubr.bf16.mxu0 %v471
        %1844 = vmatmul.mubr.bf16.gmra.mxu0 %v313
        %v1845 = vpop.f32.mrf.mxu0
        %v1846 = vadd.f32 %v1685, %v1845
        %v1847 = vpop.f32.mrf.mxu0
        %v1848 = vpop.f32.mrf.mxu0
        %v1849 = vadd.f32 %v1688, %v1848
        %v1850 = vpop.f32.mrf.mxu0
        %1851 = vmatprep.mubr.bf16.mxu0 %v483
        %1852 = vmatmul.mubr.bf16.gmra.mxu0 %v314
        %v1853 = vpop.f32.mrf.mxu0
        %v1854 = vadd.f32 %v1693, %v1853
        %v1855 = vpop.f32.mrf.mxu0
        %v1856 = vpop.f32.mrf.mxu0
        %v1857 = vadd.f32 %v1696, %v1856
        %v1858 = vpop.f32.mrf.mxu0
        %1859 = vmatprep.mubr.bf16.mxu0 %v495
        %1860 = vmatmul.mubr.bf16.gmra.mxu0 %v315
        %v1861 = vpop.f32.mrf.mxu0
        %v1862 = vadd.f32 %v1701, %v1861
        %v1863 = vpop.f32.mrf.mxu0
        %v1864 = vpop.f32.mrf.mxu0
        %v1865 = vadd.f32 %v1704, %v1864
        %v1866 = vpop.f32.mrf.mxu0
        %1867 = vmatprep.mubr.bf16.mxu0 %v507
        %1868 = vmatmul.mubr.bf16.gmra.mxu0 %v316
        %v1869 = vpop.f32.mrf.mxu0
        %v1870 = vadd.f32 %v1709, %v1869
        %v1871 = vpop.f32.mrf.mxu0
        %v1872 = vpop.f32.mrf.mxu0
        %v1873 = vadd.f32 %v1712, %v1872
        %v1874 = vpop.f32.mrf.mxu0
        %1875 = vmatprep.mubr.bf16.mxu0 %v519
        %1876 = vmatmul.mubr.bf16.gmra.mxu0 %v317
        %v1877 = vpop.f32.mrf.mxu0
        %v1878 = vadd.f32 %v1717, %v1877
        %v1879 = vpop.f32.mrf.mxu0
        %v1880 = vpop.f32.mrf.mxu0
        %v1881 = vadd.f32 %v1720, %v1880
        %v1882 = vpop.f32.mrf.mxu0
        %1883 = vmatprep.mubr.bf16.mxu0 %v531
        %1884 = vmatmul.mubr.bf16.gmra.mxu0 %v318
        %v1885 = vpop.f32.mrf.mxu0
        %v1886 = vadd.f32 %v1725, %v1885
        %v1887 = vpop.f32.mrf.mxu0
        %v1888 = vpop.f32.mrf.mxu0
        %v1889 = vadd.f32 %v1728, %v1888
        %v1890 = vpop.f32.mrf.mxu0
        %1891 = vmatprep.mubr.bf16.mxu0 %v543
        %1892 = vmatmul.mubr.bf16.gmra.mxu0 %v319
        %v1893 = vpop.f32.mrf.mxu0
        %v1894 = vadd.f32 %v1733, %v1893
        %v1895 = vpop.f32.mrf.mxu0
        %v1896 = vpop.f32.mrf.mxu0
        %v1897 = vadd.f32 %v1736, %v1896
        %v1898 = vpop.f32.mrf.mxu0
        %1899 = vmatprep.mubr.bf16.mxu0 %v555
        %1900 = vmatmul.mubr.bf16.gmra.mxu0 %v320
        %v1901 = vpop.f32.mrf.mxu0
        %v1902 = vadd.f32 %v1741, %v1901
        %v1903 = vpop.f32.mrf.mxu0
        %v1904 = vpop.f32.mrf.mxu0
        %v1905 = vadd.f32 %v1744, %v1904
        %v1906 = vpop.f32.mrf.mxu0
        %1907 = vmatprep.mubr.bf16.mxu0 %v567
        %1908 = vmatmul.mubr.bf16.gmra.mxu0 %v321
        %v1909 = vpop.f32.mrf.mxu0
        %v1910 = vadd.f32 %v1749, %v1909
        %v1911 = vpop.f32.mrf.mxu0
        %v1912 = vpop.f32.mrf.mxu0
        %v1913 = vadd.f32 %v1752, %v1912
        %v1914 = vpop.f32.mrf.mxu0
        %1915 = vmatprep.mubr.bf16.mxu0 %v579
        %1916 = vmatmul.mubr.bf16.gmra.mxu0 %v322
        %v1917 = vpop.f32.mrf.mxu0
        %v1918 = vadd.f32 %v1757, %v1917
        %v1919 = vpop.f32.mrf.mxu0
        %v1920 = vpop.f32.mrf.mxu0
        %v1921 = vadd.f32 %v1760, %v1920
        %v1922 = vpop.f32.mrf.mxu0
        %1923 = vmatprep.mubr.bf16.mxu0 %v681
        %1924 = vmatmul.mubr.bf16.gmra.mxu0 %v665
        %v1925 = vpop.f32.mrf.mxu0
        %v1926 = vadd.f32 %v1765, %v1925
        %v1927 = vpop.f32.mrf.mxu0
        %v1928 = vpop.f32.mrf.mxu0
        %v1929 = vadd.f32 %v1768, %v1928
        %v1930 = vpop.f32.mrf.mxu0
        %1931 = vmatprep.mubr.bf16.mxu0 %v707
        %1932 = vmatmul.mubr.bf16.gmra.mxu0 %v691
        %v1933 = vpop.f32.mrf.mxu0
        %v1934 = vadd.f32 %v1773, %v1933
        %v1935 = vpop.f32.mrf.mxu0
        %v1936 = vpop.f32.mrf.mxu0
        %v1937 = vadd.f32 %v1776, %v1936
        %v1938 = vpop.f32.mrf.mxu0
        %1939 = vdwg.mxu0
        %1940 = vmatprep.subr.bf16.mxu0 0
        %1941 = vmatpush1.bf16.msra.mxu0 %v1223
        %1942 = vmatprep.subr.bf16.mxu0 0
        %1943 = vmatpush1.bf16.msra.mxu0 %v1222
        %1944 = vmatprep.subr.bf16.mxu0 0
        %1945 = vmatpush1.bf16.msra.mxu0 %v1221
        %1946 = vmatprep.subr.bf16.mxu0 0
        %1947 = vmatpush1.bf16.msra.mxu0 %v1220
        %1948 = vmatprep.subr.bf16.mxu0 0
        %1949 = vmatpush1.bf16.msra.mxu0 %v1219
        %1950 = vmatprep.subr.bf16.mxu0 0
        %1951 = vmatpush1.bf16.msra.mxu0 %v1218
        %1952 = vmatprep.subr.bf16.mxu0 0
        %1953 = vmatpush1.bf16.msra.mxu0 %v1217
        %1954 = vmatprep.subr.bf16.mxu0 0
        %1955 = vmatpush1.bf16.msra.mxu0 %v1216
        %1956 = vmatprep.subr.bf16.mxu0 0
        %1957 = vmatpush2.bf16.msra.mxu0 0
        %1958 = vmatprep.subr.bf16.mxu0 0
        %1959 = vmatpush2.bf16.msra.mxu0 0
        %1960 = vmatprep.subr.bf16.mxu0 0
        %1961 = vmatpush2.bf16.msra.mxu0 0
        %1962 = vmatprep.subr.bf16.mxu0 0
        %1963 = vmatpush2.bf16.msra.mxu0 0
        %1964 = vmatprep.subr.bf16.mxu0 0
        %1965 = vmatpush2.bf16.msra.mxu0 0
        %1966 = vmatprep.subr.bf16.mxu0 0
        %1967 = vmatpush2.bf16.msra.mxu0 0
        %1968 = vmatprep.subr.bf16.mxu0 0
        %1969 = vmatpush2.bf16.msra.mxu0 0
        %1970 = vmatprep.subr.bf16.mxu0 0
        %1971 = vmatpush2.bf16.msra.mxu0 0
        %1972 = vmatprep.mubr.bf16.mxu0 0
        %1973 = vmatmul.mubr.bf16.gmra.mxu0 %v605
        %v1974 = vpop.f32.mrf.mxu0
        %v1975 = vadd.f32 %v1814, %v1974
        %v1976 = vpop.f32.mrf.mxu0
        %v1977 = vpop.f32.mrf.mxu0
        %v1978 = vadd.f32 %v1817, %v1977
        %v1979 = vpop.f32.mrf.mxu0
        %1980 = vmatprep.mubr.bf16.mxu0 0
        %1981 = vmatmul.mubr.bf16.gmra.mxu0 %v608
        %v1982 = vpop.f32.mrf.mxu0
        %v1983 = vadd.f32 %v1822, %v1982
        %v1984 = vpop.f32.mrf.mxu0
        %v1985 = vpop.f32.mrf.mxu0
        %v1986 = vadd.f32 %v1825, %v1985
        %v1987 = vpop.f32.mrf.mxu0
        %1988 = vmatprep.mubr.bf16.mxu0 0
        %1989 = vmatmul.mubr.bf16.gmra.mxu0 %v611
        %v1990 = vpop.f32.mrf.mxu0
        %v1991 = vadd.f32 %v1830, %v1990
        %v1992 = vpop.f32.mrf.mxu0
        %v1993 = vpop.f32.mrf.mxu0
        %v1994 = vadd.f32 %v1833, %v1993
        %v1995 = vpop.f32.mrf.mxu0
        %1996 = vmatprep.mubr.bf16.mxu0 0
        %1997 = vmatmul.mubr.bf16.gmra.mxu0 %v614
        %v1998 = vpop.f32.mrf.mxu0
        %v1999 = vadd.f32 %v1838, %v1998
        %v2000 = vpop.f32.mrf.mxu0
        %v2001 = vpop.f32.mrf.mxu0
        %v2002 = vadd.f32 %v1841, %v2001
        %v2003 = vpop.f32.mrf.mxu0
        %2004 = vmatprep.mubr.bf16.mxu0 0
        %2005 = vmatmul.mubr.bf16.gmra.mxu0 %v617
        %v2006 = vpop.f32.mrf.mxu0
        %v2007 = vadd.f32 %v1846, %v2006
        %v2008 = vpop.f32.mrf.mxu0
        %v2009 = vpop.f32.mrf.mxu0
        %v2010 = vadd.f32 %v1849, %v2009
        %v2011 = vpop.f32.mrf.mxu0
        %2012 = vmatprep.mubr.bf16.mxu0 0
        %2013 = vmatmul.mubr.bf16.gmra.mxu0 %v620
        %v2014 = vpop.f32.mrf.mxu0
        %v2015 = vadd.f32 %v1854, %v2014
        %v2016 = vpop.f32.mrf.mxu0
        %v2017 = vpop.f32.mrf.mxu0
        %v2018 = vadd.f32 %v1857, %v2017
        %v2019 = vpop.f32.mrf.mxu0
        %2020 = vmatprep.mubr.bf16.mxu0 0
        %2021 = vmatmul.mubr.bf16.gmra.mxu0 %v623
        %v2022 = vpop.f32.mrf.mxu0
        %v2023 = vadd.f32 %v1862, %v2022
        %v2024 = vpop.f32.mrf.mxu0
        %v2025 = vpop.f32.mrf.mxu0
        %v2026 = vadd.f32 %v1865, %v2025
        %v2027 = vpop.f32.mrf.mxu0
        %2028 = vmatprep.mubr.bf16.mxu0 0
        %2029 = vmatmul.mubr.bf16.gmra.mxu0 %v626
        %v2030 = vpop.f32.mrf.mxu0
        %v2031 = vadd.f32 %v1870, %v2030
        %v2032 = vpop.f32.mrf.mxu0
        %v2033 = vpop.f32.mrf.mxu0
        %v2034 = vadd.f32 %v1873, %v2033
        %v2035 = vpop.f32.mrf.mxu0
        %2036 = vmatprep.mubr.bf16.mxu0 0
        %2037 = vmatmul.mubr.bf16.gmra.mxu0 %v629
        %v2038 = vpop.f32.mrf.mxu0
        %v2039 = vadd.f32 %v1878, %v2038
        %v2040 = vpop.f32.mrf.mxu0
        %v2041 = vpop.f32.mrf.mxu0
        %v2042 = vadd.f32 %v1881, %v2041
        %v2043 = vpop.f32.mrf.mxu0
        %2044 = vmatprep.mubr.bf16.mxu0 0
        %2045 = vmatmul.mubr.bf16.gmra.mxu0 %v632
        %v2046 = vpop.f32.mrf.mxu0
        %v2047 = vadd.f32 %v1886, %v2046
        %v2048 = vpop.f32.mrf.mxu0
        %v2049 = vpop.f32.mrf.mxu0
        %v2050 = vadd.f32 %v1889, %v2049
        %v2051 = vpop.f32.mrf.mxu0
        %2052 = vmatprep.mubr.bf16.mxu0 0
        %2053 = vmatmul.mubr.bf16.gmra.mxu0 %v635
        %v2054 = vpop.f32.mrf.mxu0
        %v2055 = vadd.f32 %v1894, %v2054
        %v2056 = vpop.f32.mrf.mxu0
        %v2057 = vpop.f32.mrf.mxu0
        %v2058 = vadd.f32 %v1897, %v2057
        %v2059 = vpop.f32.mrf.mxu0
        %2060 = vmatprep.mubr.bf16.mxu0 0
        %2061 = vmatmul.mubr.bf16.gmra.mxu0 %v638
        %v2062 = vpop.f32.mrf.mxu0
        %v2063 = vadd.f32 %v1902, %v2062
        %v2064 = vpop.f32.mrf.mxu0
        %v2065 = vpop.f32.mrf.mxu0
        %v2066 = vadd.f32 %v1905, %v2065
        %v2067 = vpop.f32.mrf.mxu0
        %2068 = vmatprep.mubr.bf16.mxu0 0
        %2069 = vmatmul.mubr.bf16.gmra.mxu0 %v641
        %v2070 = vpop.f32.mrf.mxu0
        %v2071 = vadd.f32 %v1910, %v2070
        %v2072 = vpop.f32.mrf.mxu0
        %v2073 = vpop.f32.mrf.mxu0
        %v2074 = vadd.f32 %v1913, %v2073
        %v2075 = vpop.f32.mrf.mxu0
        %2076 = vmatprep.mubr.bf16.mxu0 0
        %2077 = vmatmul.mubr.bf16.gmra.mxu0 %v644
        %v2078 = vpop.f32.mrf.mxu0
        %v2079 = vadd.f32 %v1918, %v2078
        %v2080 = vpop.f32.mrf.mxu0
        %v2081 = vpop.f32.mrf.mxu0
        %v2082 = vadd.f32 %v1921, %v2081
        %v2083 = vpop.f32.mrf.mxu0
        %2084 = vmatprep.mubr.bf16.mxu0 0
        %2085 = vmatmul.mubr.bf16.gmra.mxu0 %v685
        %v2086 = vpop.f32.mrf.mxu0
        %v2087 = vadd.f32 %v1926, %v2086
        %v2088 = vpop.f32.mrf.mxu0
        %v2089 = vpop.f32.mrf.mxu0
        %v2090 = vadd.f32 %v1929, %v2089
        %v2091 = vpop.f32.mrf.mxu0
        %2092 = vmatprep.mubr.bf16.mxu0 0
        %2093 = vmatmul.mubr.bf16.gmra.mxu0 %v711
        %v2094 = vpop.f32.mrf.mxu0
        %v2095 = vadd.f32 %v1934, %v2094
        %v2096 = vpop.f32.mrf.mxu0
        %v2097 = vpop.f32.mrf.mxu0
        %v2098 = vadd.f32 %v1937, %v2097
        %v2099 = vpop.f32.mrf.mxu0
        %2100 = vdwg.mxu0
        %v2101 = vmax.f32 %v1975, 0.0
        %v2102 = vmax.f32 %v1978, 0.0
        %v2103 = vmax.f32 %v1983, 0.0
        %v2104 = vmax.f32 %v1986, 0.0
        %v2105 = vmax.f32 %v1991, 0.0
        %v2106 = vmax.f32 %v1994, 0.0
        %v2107 = vmax.f32 %v1999, 0.0
        %v2108 = vmax.f32 %v2002, 0.0
        %v2109 = vmax.f32 %v2007, 0.0
        %v2110 = vmax.f32 %v2010, 0.0
        %v2111 = vmax.f32 %v2015, 0.0
        %v2112 = vmax.f32 %v2018, 0.0
        %v2113 = vmax.f32 %v2023, 0.0
        %v2114 = vmax.f32 %v2026, 0.0
        %v2115 = vmax.f32 %v2031, 0.0
        %v2116 = vmax.f32 %v2034, 0.0
        %v2117 = vmax.f32 %v2039, 0.0
        %v2118 = vmax.f32 %v2042, 0.0
        %v2119 = vmax.f32 %v2047, 0.0
        %v2120 = vmax.f32 %v2050, 0.0
        %v2121 = vmax.f32 %v2055, 0.0
        %v2122 = vmax.f32 %v2058, 0.0
        %v2123 = vmax.f32 %v2063, 0.0
        %v2124 = vmax.f32 %v2066, 0.0
        %v2125 = vmax.f32 %v2071, 0.0
        %v2126 = vmax.f32 %v2074, 0.0
        %v2127 = vmax.f32 %v2079, 0.0
        %v2128 = vmax.f32 %v2082, 0.0
        %v2129 = vmax.f32 %v2087, 0.0
        %v2130 = vmax.f32 %v2090, 0.0
        %v2131 = vmax.f32 %v2095, 0.0
        %v2132 = vmax.f32 %v2098, 0.0
        %2133 = vst [vmem:[%s177] sm:$0xff] %v2101
        %2134 = vst [vmem:[%s177 + $0x8] sm:$0xff] %v2102
        %2135 = vst [vmem:[%s177 + $0x10] sm:$0xff] %v2103
        %2136 = vst [vmem:[%s177 + $0x18] sm:$0xff] %v2104
        %2137 = vst [vmem:[%s177 + $0x20] sm:$0xff] %v2105
        %2138 = vst [vmem:[%s177 + $0x28] sm:$0xff] %v2106
        %2139 = vst [vmem:[%s177 + $0x30] sm:$0xff] %v2107
        %2140 = vst [vmem:[%s177 + $0x38] sm:$0xff] %v2108
        %2141 = vst [vmem:[%s177 + $0x40] sm:$0xff] %v2109
        %2142 = vst [vmem:[%s177 + $0x48] sm:$0xff] %v2110
        %2143 = vst [vmem:[%s177 + $0x50] sm:$0xff] %v2111
        %2144 = vst [vmem:[%s177 + $0x58] sm:$0xff] %v2112
        %2145 = vst [vmem:[%s177 + $0x60] sm:$0xff] %v2113
        %2146 = vst [vmem:[%s177 + $0x68] sm:$0xff] %v2114
        %2147 = vst [vmem:[%s177 + $0x70] sm:$0xff] %v2115
        %2148 = vst [vmem:[%s177 + $0x78] sm:$0xff] %v2116
        %2149 = vst [vmem:[%s177 + $0x80] sm:$0xff] %v2117
        %2150 = vst [vmem:[%s177 + $0x88] sm:$0xff] %v2118
        %2151 = vst [vmem:[%s177 + $0x90] sm:$0xff] %v2119
        %2152 = vst [vmem:[%s177 + $0x98] sm:$0xff] %v2120
        %2153 = vst [vmem:[%s177 + $0xa0] sm:$0xff] %v2121
        %2154 = vst [vmem:[%s177 + $0xa8] sm:$0xff] %v2122
        %2155 = vst [vmem:[%s177 + $0xb0] sm:$0xff] %v2123
        %2156 = vst [vmem:[%s177 + $0xb8] sm:$0xff] %v2124
        %2157 = vst [vmem:[%s177 + $0xc0] sm:$0xff] %v2125
        %2158 = vst [vmem:[%s177 + $0xc8] sm:$0xff] %v2126
        %2159 = vst [vmem:[%s177 + $0xd0] sm:$0xff] %v2127
        %2160 = vst [vmem:[%s177 + $0xd8] sm:$0xff] %v2128
        %2161 = vst [vmem:[%s177 + $0xe0] sm:$0xff] %v2129
        %2162 = vst [vmem:[%s177 + $0xe8] sm:$0xff] %v2130
        %2163 = vst [vmem:[%s177 + $0xf0] sm:$0xff] %v2131
        %2164 = vst [vmem:[%s177 + $0xf8] sm:$0xff] %v2132
        %s2165 = sand.u32 %s107, 1
        %s2166 = scalar_lea.sflag [#allocation3], %s2165
        %s2167 = sand.u32 %s107, 1
        %s2168 = smul.addr %s2167, 256
        %s2169 = scalar_lea.vmem [#allocation2], %s2168
        // Predicated region
        $region33: #{asff_level1_forward.9} parent=31 // pred_check
          %p2170 = pneg %p117
        $region34: #{asff_level1_forward.9} parent=31 // pred_check_branch
          %2172 = sbr.rel (%p2170) target = $region36
        $region35: #{asff_level1_forward.9} parent=31 // pred_region
          %s2173 = smul.u32 16, %s22
          %s2175 = ssub.s32 4096, 4096
          %2176 = vsyncadd %s2166, %s2175
          %s2177 = smul.addr %s2173, 2
          %s2178 = smul.addr %s21, 32
          %s2179 = sadd.s32 %s2177, %s2178
          %s2180 = smul.addr %s2179, 128
          %s2181 = scalar_lea.hbm %s3, %s2180
          %s2182 = sshll.u32 %s2169, 4
          %s2183 = int_to_ptr.vmem [resolvable:$true] %s2182
          %2188 = dma.vmem_to_hbm [thread:$0]  %s2183, 4096, %s2181, %s2166, 128, 128, 8
        $region36: #{asff_level1_forward.9} parent=31 // pred_fallthru
          _
      $region32: #{asff_level1_forward.9} parent=5 // pred_fallthru
        _
      %p2189 = scmp.le.s32.totalorder 2, %s12
      // Predicated region
      $region37: #{asff_level1_forward.9} parent=5 // pred_check
        %p2190 = pneg %p2189
      $region38: #{asff_level1_forward.9} parent=5 // pred_check_branch
        %2192 = sbr.rel (%p2190) target = $region40
      $region39: #{asff_level1_forward.9} parent=5 // pred_region
        %s2193 = ssub.s32 %s12, 2
        // Predicated region
        $region41: #{asff_level1_forward.9} parent=39 // pred_check
          %p2194 = pneg %p123
        $region42: #{asff_level1_forward.9} parent=39 // pred_check_branch
          %2196 = sbr.rel (%p2194) target = $region44
        $region43: #{asff_level1_forward.9} parent=39 // pred_region
          %s2197 = sand.u32 %s108, 1
          %s2198 = scalar_lea.sflag [#allocation3], %s2197
          %s2199 = sand.u32 %s108, 1
          %s2200 = smul.addr %s2199, 256
          %s2201 = scalar_lea.vmem [#allocation2], %s2200
          %2202 = dma.done %s2198, 4096
        $region44: #{asff_level1_forward.9} parent=39 // pred_fallthru
          _
      $region40: #{asff_level1_forward.9} parent=5 // pred_fallthru
        _
    $region6: #{asff_level1_forward.9} parent=1 // loop_footer
      %s16 = sadd.s32 1, %s12
    $region7: #{asff_level1_forward.9} parent=1 // loop_footer_branch
      %11 = sbr.rel target = $region3
    $region8: #{asff_level1_forward.9} parent=1 // loop_exit
      _
    %2203 = vsyncpa [#allocation3], 1
    %s2204 = scalar_lea.sflag [#allocation3], 1
    %2205 = vsyncpa %s2204, 1

</llo_original>
